<compile_context>
chip_gen: v7x
topology: tpu7x:2x2x1
jax: 0.10.0
libtpu: 0.0.40
codegen_flags: <defaults>
</compile_context>

<pallas_src>
import math

import jax
import jax.numpy as jnp
from jax.experimental import pallas as pl
from jax.experimental.pallas import tpu as pltpu

KNW_CLASS_NUM = 25
OUT_PAD = 128          # lane-dense padded width of the final layer
BN_EPS = 1e-5
TK = 512               # K-chunk size used to pipeline the layer-1 weight DMA


def _elu(v):
    # ELU(alpha=1): x if x > 0 else exp(x) - 1.  No clamp needed: the exp
    # branch is discarded by the select for positive inputs (inf is harmless).
    return jnp.where(v > 0, v, jnp.exp(v) - 1.0)


def _batchnorm_train(v, gamma, beta):
    # BatchNorm1d in training mode (module default state after __init__):
    # per-feature batch mean / biased variance, eps=1e-5, affine params.
    # var as E[x^2] - E[x]^2 keeps the two XLU reductions independent.
    mean = jnp.mean(v, axis=0, keepdims=True)
    var = jnp.mean(v * v, axis=0, keepdims=True) - mean * mean
    return (v - mean) * jax.lax.rsqrt(var + BN_EPS) * gamma + beta
    # TODO(synk): running-mean/var buffer updates (training side effect) are
    # not modeled; they do not affect the forward output.


def classifier_kernel(x_ref,
                      w1_ref, b1_ref,
                      w2_ref, b2_ref, g2_ref, be2_ref,
                      w3_ref, b3_ref,
                      w4_ref, b4_ref, g4_ref, be4_ref,
                      w5_ref, b5_ref,
                      out_ref, acc_ref):
    k = pl.program_id(0)

    @pl.when(k == 0)
    def _():
        acc_ref[...] = jnp.zeros_like(acc_ref)

    # Layer 1 partial matmul on this K chunk (bf16 on the MXU, f32 accumulate).
    # The per-chunk weight DMA is double-buffered by the grid pipeline, so the
    # big 2048x1024 weight load overlaps compute instead of serializing.
    acc_ref[...] += jnp.dot(x_ref[...], w1_ref[...],
                            preferred_element_type=jnp.float32)

    @pl.when(k == pl.num_programs(0) - 1)
    def _():
        # Linear(2048, 1024) epilogue + ELU
        h = _elu(acc_ref[...] + b1_ref[...])

        # Linear(1024, 1024) + BatchNorm1d(1024) + ELU
        h = jnp.dot(h.astype(jnp.bfloat16), w2_ref[...],
                    preferred_element_type=jnp.float32) + b2_ref[...]
        h = _elu(_batchnorm_train(h, g2_ref[...], be2_ref[...]))

        # Linear(1024, 256) + ELU
        h = jnp.dot(h.astype(jnp.bfloat16), w3_ref[...],
                    preferred_element_type=jnp.float32) + b3_ref[...]
        h = _elu(h)

        # Linear(256, 256) + BatchNorm1d(256) + ELU
        h = jnp.dot(h.astype(jnp.bfloat16), w4_ref[...],
                    preferred_element_type=jnp.float32) + b4_ref[...]
        h = _elu(_batchnorm_train(h, g4_ref[...], be4_ref[...]))

        # Linear(256, 25) -- padded to 128 lanes for unmasked stores
        out_ref[...] = (jnp.dot(h.astype(jnp.bfloat16), w5_ref[...],
                                preferred_element_type=jnp.float32)
                        + b5_ref[...])


def classifier_forward(x, params):
    (w1, b1, w2, b2, g2, be2, w3, b3, w4, b4, g4, be4, w5, b5) = params
    B = x.shape[0]
    K = w1.shape[0]
    assert K % TK == 0
    kt = K // TK

    # Pad the 25-wide head to 128 output lanes (weights are bf16, bias f32).
    w5p = jnp.zeros((w5.shape[0], OUT_PAD), w5.dtype).at[:, :w5.shape[1]].set(w5)
    b5p = jnp.zeros((1, OUT_PAD), b5.dtype).at[:, :b5.shape[1]].set(b5)

    xb = x.astype(jnp.bfloat16)

    const = lambda k: (0, 0)
    grid_spec = pltpu.PrefetchScalarGridSpec(
        num_scalar_prefetch=0,
        grid=(kt,),
        in_specs=[
            pl.BlockSpec((B, TK), lambda k: (0, k)),        # x (K chunks)
            pl.BlockSpec((TK, 1024), lambda k: (k, 0)),     # w1 (K chunks)
            pl.BlockSpec((1, 1024), const),                 # b1
            pl.BlockSpec((1024, 1024), const),              # w2
            pl.BlockSpec((1, 1024), const),                 # b2
            pl.BlockSpec((1, 1024), const),                 # g2
            pl.BlockSpec((1, 1024), const),                 # be2
            pl.BlockSpec((1024, 256), const),               # w3
            pl.BlockSpec((1, 256), const),                  # b3
            pl.BlockSpec((256, 256), const),                # w4
            pl.BlockSpec((1, 256), const),                  # b4
            pl.BlockSpec((1, 256), const),                  # g4
            pl.BlockSpec((1, 256), const),                  # be4
            pl.BlockSpec((256, OUT_PAD), const),            # w5 (padded)
            pl.BlockSpec((1, OUT_PAD), const),              # b5 (padded)
        ],
        out_specs=pl.BlockSpec((B, OUT_PAD), const),
        scratch_shapes=[pltpu.VMEM((B, 1024), jnp.float32)],
    )

    flops = 2 * B * (2048 * 1024 + 1024 * 1024 + 1024 * 256
                     + 256 * 256 + 256 * OUT_PAD)
    weight_bytes = 2 * (2048 * 1024 + 1024 * 1024 + 1024 * 256
                        + 256 * 256 + 256 * OUT_PAD)          # bf16 weights
    small_bytes = 4 * (4 * 1024 + 4 * 256 + OUT_PAD)          # biases + BN (f32)
    io_bytes = 2 * B * 2048 + 4 * B * OUT_PAD                 # x in, logits out
    cost = pl.CostEstimate(flops=flops,
                           transcendentals=B * (1024 + 1024 + 256 + 256),
                           bytes_accessed=weight_bytes + small_bytes + io_bytes)

    out_padded = pl.pallas_call(
        classifier_kernel,
        out_shape=jax.ShapeDtypeStruct((B, OUT_PAD), jnp.float32),
        grid_spec=grid_spec,
        compiler_params=pltpu.CompilerParams(
            dimension_semantics=("arbitrary",),           # K is a reduction axis
            vmem_limit_bytes=24 * 1024 * 1024,            # fits all gens (v7x: 64 MiB phys)
        ),
        cost_estimate=cost,
    )(xb,
      w1, b1, w2, b2, g2, be2, w3, b3, w4, b4, g4, be4, w5p, b5p)

    return out_padded[:, :KNW_CLASS_NUM]


def init_params(key):
    """PyTorch-default-style init: U(-1/sqrt(fan_in), 1/sqrt(fan_in)) for
    Linear weights/biases; BatchNorm gamma=1, beta=0. Weights stored in
    bfloat16 (MXU-native), biases/BN params in float32. Deterministic via key."""
    dims = [(2048, 1024), (1024, 1024), (1024, 256), (256, 256),
            (256, KNW_CLASS_NUM)]
    keys = jax.random.split(key, 2 * len(dims))
    lin = []
    for i, (fan_in, fan_out) in enumerate(dims):
        bound = 1.0 / math.sqrt(fan_in)
        w = jax.random.uniform(keys[2 * i], (fan_in, fan_out),
                               jnp.float32, -bound, bound).astype(jnp.bfloat16)
        b = jax.random.uniform(keys[2 * i + 1], (1, fan_out),
                               jnp.float32, -bound, bound)
        lin.append((w, b))

    g2 = jnp.ones((1, 1024), jnp.float32)
    be2 = jnp.zeros((1, 1024), jnp.float32)
    g4 = jnp.ones((1, 256), jnp.float32)
    be4 = jnp.zeros((1, 256), jnp.float32)

    return [lin[0][0], lin[0][1],
            lin[1][0], lin[1][1], g2, be2,
            lin[2][0], lin[2][1],
            lin[3][0], lin[3][1], g4, be4,
            lin[4][0], lin[4][1]]


def reference_forward(x, p):
    # Mirrors the kernel's mixed-precision recipe (bf16 operands, f32 accum).
    (w1, b1, w2, b2, g2, be2, w3, b3, w4, b4, g4, be4, w5, b5) = p
    h = _elu(jnp.dot(x.astype(jnp.bfloat16), w1,
                     preferred_element_type=jnp.float32) + b1)
    h = jnp.dot(h.astype(jnp.bfloat16), w2,
                preferred_element_type=jnp.float32) + b2
    h = _elu(_batchnorm_train(h, g2, be2))
    h = _elu(jnp.dot(h.astype(jnp.bfloat16), w3,
                     preferred_element_type=jnp.float32) + b3)
    h = jnp.dot(h.astype(jnp.bfloat16), w4,
                preferred_element_type=jnp.float32) + b4
    h = _elu(_batchnorm_train(h, g4, be4))
    return jnp.dot(h.astype(jnp.bfloat16), w5,
                   preferred_element_type=jnp.float32) + b5


if __name__ == "__main__":
    key = jax.random.PRNGKey(0)
    k_x, k_p = jax.random.split(key)

    B = 8
    x = jax.random.normal(k_x, (B, 2048), jnp.float32)
    params = init_params(k_p)

    out = classifier_forward(x, params)
    out = jax.block_until_ready(out)

    ref = reference_forward(x, params)
    assert out.shape == (B, KNW_CLASS_NUM)
    assert jnp.allclose(out, ref, atol=1e-2, rtol=1e-2), (
        float(jnp.max(jnp.abs(out - ref))))

    print("KERNEL_OK")
</pallas_src>

<mosaic_0001>
module attributes {stable_mosaic.version = 11 : i64} {
  func.func @classifier_kernel(%arg0: i32, %arg1: memref<8x512xbf16, #tpu.memory_space<vmem>>, %arg2: memref<512x1024xbf16, #tpu.memory_space<vmem>>, %arg3: memref<1x1024xf32, #tpu.memory_space<vmem>>, %arg4: memref<1024x1024xbf16, #tpu.memory_space<vmem>>, %arg5: memref<1x1024xf32, #tpu.memory_space<vmem>>, %arg6: memref<1x1024xf32, #tpu.memory_space<vmem>>, %arg7: memref<1x1024xf32, #tpu.memory_space<vmem>>, %arg8: memref<1024x256xbf16, #tpu.memory_space<vmem>>, %arg9: memref<1x256xf32, #tpu.memory_space<vmem>>, %arg10: memref<256x256xbf16, #tpu.memory_space<vmem>>, %arg11: memref<1x256xf32, #tpu.memory_space<vmem>>, %arg12: memref<1x256xf32, #tpu.memory_space<vmem>>, %arg13: memref<1x256xf32, #tpu.memory_space<vmem>>, %arg14: memref<256x128xbf16, #tpu.memory_space<vmem>>, %arg15: memref<1x128xf32, #tpu.memory_space<vmem>>, %arg16: memref<8x128xf32, #tpu.memory_space<vmem>>, %arg17: memref<8x1024xf32, #tpu.memory_space<vmem>>) attributes {dimension_semantics = [#tpu.dimension_semantics<arbitrary>], iteration_bounds = array<i64: 4>, scalar_prefetch = 0 : i64, scratch_operands = 1 : i64, tpu.core_type = #tpu.core_type<tc>, window_params = [{transform_indices = @transform_0, window_bounds = array<i64: 8, 512>}, {transform_indices = @transform_1, window_bounds = array<i64: 512, 1024>}, {pipeline_mode = #tpu.pipeline_mode<synchronous>, transform_indices = @transform_2, window_bounds = array<i64: 1, 1024>}, {pipeline_mode = #tpu.pipeline_mode<synchronous>, transform_indices = @transform_3, window_bounds = array<i64: 1024, 1024>}, {pipeline_mode = #tpu.pipeline_mode<synchronous>, transform_indices = @transform_4, window_bounds = array<i64: 1, 1024>}, {pipeline_mode = #tpu.pipeline_mode<synchronous>, transform_indices = @transform_5, window_bounds = array<i64: 1, 1024>}, {pipeline_mode = #tpu.pipeline_mode<synchronous>, transform_indices = @transform_6, window_bounds = array<i64: 1, 1024>}, {pipeline_mode = #tpu.pipeline_mode<synchronous>, transform_indices = @transform_7, window_bounds = array<i64: 1024, 256>}, {pipeline_mode = #tpu.pipeline_mode<synchronous>, transform_indices = @transform_8, window_bounds = array<i64: 1, 256>}, {pipeline_mode = #tpu.pipeline_mode<synchronous>, transform_indices = @transform_9, window_bounds = array<i64: 256, 256>}, {pipeline_mode = #tpu.pipeline_mode<synchronous>, transform_indices = @transform_10, window_bounds = array<i64: 1, 256>}, {pipeline_mode = #tpu.pipeline_mode<synchronous>, transform_indices = @transform_11, window_bounds = array<i64: 1, 256>}, {pipeline_mode = #tpu.pipeline_mode<synchronous>, transform_indices = @transform_12, window_bounds = array<i64: 1, 256>}, {pipeline_mode = #tpu.pipeline_mode<synchronous>, transform_indices = @transform_13, window_bounds = array<i64: 256, 128>}, {pipeline_mode = #tpu.pipeline_mode<synchronous>, transform_indices = @transform_14, window_bounds = array<i64: 1, 128>}, {pipeline_mode = #tpu.pipeline_mode<synchronous>, transform_indices = @transform_15, window_bounds = array<i64: 8, 128>}]} {
    %c0_i32 = arith.constant 0 : i32
    %0 = arith.cmpi eq, %arg0, %c0_i32 : i32
    %1 = arith.extui %0 : i1 to i32
    %c0_i32_0 = arith.constant 0 : i32
    %2 = arith.cmpi ne, %1, %c0_i32_0 : i32
    scf.if %2 {
      %cst_9 = arith.constant 0.000000e+00 : f32
      %12 = vector.broadcast %cst_9 : f32 to vector<8x1024xf32>
      %c0_10 = arith.constant 0 : index
      %c0_11 = arith.constant 0 : index
      %13 = vector.load %arg17[%c0_10, %c0_11] : memref<8x1024xf32, #tpu.memory_space<vmem>>, vector<8x1024xf32>
      tpu.vector_store %arg17[%c0_10, %c0_11], %12 {strides = array<i32>} : memref<8x1024xf32, #tpu.memory_space<vmem>>, vector<8x1024xf32>,
    } else {
    }
    %c0 = arith.constant 0 : index
    %c0_1 = arith.constant 0 : index
    %3 = vector.load %arg17[%c0, %c0_1] : memref<8x1024xf32, #tpu.memory_space<vmem>>, vector<8x1024xf32>
    %c0_2 = arith.constant 0 : index
    %c0_3 = arith.constant 0 : index
    %4 = vector.load %arg1[%c0_2, %c0_3] : memref<8x512xbf16, #tpu.memory_space<vmem>>, vector<8x512xbf16>
    %c0_4 = arith.constant 0 : index
    %c0_5 = arith.constant 0 : index
    %5 = vector.load %arg2[%c0_4, %c0_5] : memref<512x1024xbf16, #tpu.memory_space<vmem>>, vector<512x1024xbf16>
    %cst = arith.constant dense<0.000000e+00> : vector<8x1024xf32>
    %6 = tpu.matmul %4, %5, %cst {dimension_numbers = #tpu.dot_dimension_numbers<[1], [0], [0], [1], [0, 0, 1, 1], [], []>} : vector<8x512xbf16>, vector<512x1024xbf16>, vector<8x1024xf32> -> vector<8x1024xf32>
    %7 = arith.addf %3, %6 : vector<8x1024xf32>
    %c0_6 = arith.constant 0 : index
    %c0_7 = arith.constant 0 : index
    %8 = vector.load %arg17[%c0_6, %c0_7] : memref<8x1024xf32, #tpu.memory_space<vmem>>, vector<8x1024xf32>
    tpu.vector_store %arg17[%c0_6, %c0_7], %7 {strides = array<i32>} : memref<8x1024xf32, #tpu.memory_space<vmem>>, vector<8x1024xf32>,
    %c3_i32 = arith.constant 3 : i32
    %9 = arith.cmpi eq, %arg0, %c3_i32 : i32
    %10 = arith.extui %9 : i1 to i32
    %c0_i32_8 = arith.constant 0 : i32
    %11 = arith.cmpi ne, %10, %c0_i32_8 : i32
    scf.if %11 {
      %c0_9 = arith.constant 0 : index
      %c0_10 = arith.constant 0 : index
      %12 = vector.load %arg17[%c0_9, %c0_10] : memref<8x1024xf32, #tpu.memory_space<vmem>>, vector<8x1024xf32>
      %c0_11 = arith.constant 0 : index
      %c0_12 = arith.constant 0 : index
      %13 = vector.load %arg3[%c0_11, %c0_12] : memref<1x1024xf32, #tpu.memory_space<vmem>>, vector<1x1024xf32>
      %14 = vector.broadcast %13 : vector<1x1024xf32> to vector<8x1024xf32>
      %15 = arith.addf %12, %14 : vector<8x1024xf32>
      %cst_13 = arith.constant 0.000000e+00 : f32
      %16 = vector.broadcast %cst_13 : f32 to vector<8x1024xf32>
      %17 = arith.cmpf ogt, %15, %16 : vector<8x1024xf32>
      %18 = math.exp %15 : vector<8x1024xf32>
      %cst_14 = arith.constant 1.000000e+00 : f32
      %19 = vector.broadcast %cst_14 : f32 to vector<8x1024xf32>
      %20 = arith.subf %18, %19 : vector<8x1024xf32>
      %21 = arith.select %17, %15, %20 : vector<8x1024xi1>, vector<8x1024xf32>
      %22 = arith.truncf %21 : vector<8x1024xf32> to vector<8x1024xbf16>
      %c0_15 = arith.constant 0 : index
      %c0_16 = arith.constant 0 : index
      %23 = vector.load %arg4[%c0_15, %c0_16] : memref<1024x1024xbf16, #tpu.memory_space<vmem>>, vector<1024x1024xbf16>
      %cst_17 = arith.constant dense<0.000000e+00> : vector<8x1024xf32>
      %24 = tpu.matmul %22, %23, %cst_17 {dimension_numbers = #tpu.dot_dimension_numbers<[1], [0], [0], [1], [0, 0, 1, 1], [], []>} : vector<8x1024xbf16>, vector<1024x1024xbf16>, vector<8x1024xf32> -> vector<8x1024xf32>
      %c0_18 = arith.constant 0 : index
      %c0_19 = arith.constant 0 : index
      %25 = vector.load %arg5[%c0_18, %c0_19] : memref<1x1024xf32, #tpu.memory_space<vmem>>, vector<1x1024xf32>
      %26 = vector.broadcast %25 : vector<1x1024xf32> to vector<8x1024xf32>
      %27 = arith.addf %24, %26 : vector<8x1024xf32>
      %c0_20 = arith.constant 0 : index
      %c0_21 = arith.constant 0 : index
      %28 = vector.load %arg6[%c0_20, %c0_21] : memref<1x1024xf32, #tpu.memory_space<vmem>>, vector<1x1024xf32>
      %c0_22 = arith.constant 0 : index
      %c0_23 = arith.constant 0 : index
      %29 = vector.load %arg7[%c0_22, %c0_23] : memref<1x1024xf32, #tpu.memory_space<vmem>>, vector<1x1024xf32>
      %cst_24 = arith.constant dense<0.000000e+00> : vector<1024xf32>
      %30 = vector.multi_reduction <add>, %27, %cst_24 [0] : vector<8x1024xf32> to vector<1024xf32>
      %31 = vector.shape_cast %30 : vector<1024xf32> to vector<1x1024xf32>
      %cst_25 = arith.constant 8.000000e+00 : f32
      %32 = vector.broadcast %cst_25 : f32 to vector<1x1024xf32>
      %33 = arith.divf %31, %32 : vector<1x1024xf32>
      %34 = arith.mulf %27, %27 : vector<8x1024xf32>
      %cst_26 = arith.constant dense<0.000000e+00> : vector<1024xf32>
      %35 = vector.multi_reduction <add>, %34, %cst_26 [0] : vector<8x1024xf32> to vector<1024xf32>
      %36 = vector.shape_cast %35 : vector<1024xf32> to vector<1x1024xf32>
      %cst_27 = arith.constant 8.000000e+00 : f32
      %37 = vector.broadcast %cst_27 : f32 to vector<1x1024xf32>
      %38 = arith.divf %36, %37 : vector<1x1024xf32>
      %39 = arith.mulf %33, %33 : vector<1x1024xf32>
      %40 = arith.subf %38, %39 : vector<1x1024xf32>
      %41 = vector.broadcast %33 : vector<1x1024xf32> to vector<8x1024xf32>
      %42 = arith.subf %27, %41 : vector<8x1024xf32>
      %cst_28 = arith.constant 9.99999974E-6 : f32
      %43 = vector.broadcast %cst_28 : f32 to vector<1x1024xf32>
      %44 = arith.addf %40, %43 : vector<1x1024xf32>
      %45 = math.rsqrt %44 : vector<1x1024xf32>
      %46 = vector.broadcast %45 : vector<1x1024xf32> to vector<8x1024xf32>
      %47 = arith.mulf %42, %46 : vector<8x1024xf32>
      %48 = vector.broadcast %28 : vector<1x1024xf32> to vector<8x1024xf32>
      %49 = arith.mulf %47, %48 : vector<8x1024xf32>
      %50 = vector.broadcast %29 : vector<1x1024xf32> to vector<8x1024xf32>
      %51 = arith.addf %49, %50 : vector<8x1024xf32>
      %cst_29 = arith.constant 0.000000e+00 : f32
      %52 = vector.broadcast %cst_29 : f32 to vector<8x1024xf32>
      %53 = arith.cmpf ogt, %51, %52 : vector<8x1024xf32>
      %54 = math.exp %51 : vector<8x1024xf32>
      %cst_30 = arith.constant 1.000000e+00 : f32
      %55 = vector.broadcast %cst_30 : f32 to vector<8x1024xf32>
      %56 = arith.subf %54, %55 : vector<8x1024xf32>
      %57 = arith.select %53, %51, %56 : vector<8x1024xi1>, vector<8x1024xf32>
      %58 = arith.truncf %57 : vector<8x1024xf32> to vector<8x1024xbf16>
      %c0_31 = arith.constant 0 : index
      %c0_32 = arith.constant 0 : index
      %59 = vector.load %arg8[%c0_31, %c0_32] : memref<1024x256xbf16, #tpu.memory_space<vmem>>, vector<1024x256xbf16>
      %cst_33 = arith.constant dense<0.000000e+00> : vector<8x256xf32>
      %60 = tpu.matmul %58, %59, %cst_33 {dimension_numbers = #tpu.dot_dimension_numbers<[1], [0], [0], [1], [0, 0, 1, 1], [], []>} : vector<8x1024xbf16>, vector<1024x256xbf16>, vector<8x256xf32> -> vector<8x256xf32>
      %c0_34 = arith.constant 0 : index
      %c0_35 = arith.constant 0 : index
      %61 = vector.load %arg9[%c0_34, %c0_35] : memref<1x256xf32, #tpu.memory_space<vmem>>, vector<1x256xf32>
      %62 = vector.broadcast %61 : vector<1x256xf32> to vector<8x256xf32>
      %63 = arith.addf %60, %62 : vector<8x256xf32>
      %cst_36 = arith.constant 0.000000e+00 : f32
      %64 = vector.broadcast %cst_36 : f32 to vector<8x256xf32>
      %65 = arith.cmpf ogt, %63, %64 : vector<8x256xf32>
      %66 = math.exp %63 : vector<8x256xf32>
      %cst_37 = arith.constant 1.000000e+00 : f32
      %67 = vector.broadcast %cst_37 : f32 to vector<8x256xf32>
      %68 = arith.subf %66, %67 : vector<8x256xf32>
      %69 = arith.select %65, %63, %68 : vector<8x256xi1>, vector<8x256xf32>
      %70 = arith.truncf %69 : vector<8x256xf32> to vector<8x256xbf16>
      %c0_38 = arith.constant 0 : index
      %c0_39 = arith.constant 0 : index
      %71 = vector.load %arg10[%c0_38, %c0_39] : memref<256x256xbf16, #tpu.memory_space<vmem>>, vector<256x256xbf16>
      %cst_40 = arith.constant dense<0.000000e+00> : vector<8x256xf32>
      %72 = tpu.matmul %70, %71, %cst_40 {dimension_numbers = #tpu.dot_dimension_numbers<[1], [0], [0], [1], [0, 0, 1, 1], [], []>} : vector<8x256xbf16>, vector<256x256xbf16>, vector<8x256xf32> -> vector<8x256xf32>
      %c0_41 = arith.constant 0 : index
      %c0_42 = arith.constant 0 : index
      %73 = vector.load %arg11[%c0_41, %c0_42] : memref<1x256xf32, #tpu.memory_space<vmem>>, vector<1x256xf32>
      %74 = vector.broadcast %73 : vector<1x256xf32> to vector<8x256xf32>
      %75 = arith.addf %72, %74 : vector<8x256xf32>
      %c0_43 = arith.constant 0 : index
      %c0_44 = arith.constant 0 : index
      %76 = vector.load %arg12[%c0_43, %c0_44] : memref<1x256xf32, #tpu.memory_space<vmem>>, vector<1x256xf32>
      %c0_45 = arith.constant 0 : index
      %c0_46 = arith.constant 0 : index
      %77 = vector.load %arg13[%c0_45, %c0_46] : memref<1x256xf32, #tpu.memory_space<vmem>>, vector<1x256xf32>
      %cst_47 = arith.constant dense<0.000000e+00> : vector<256xf32>
      %78 = vector.multi_reduction <add>, %75, %cst_47 [0] : vector<8x256xf32> to vector<256xf32>
      %79 = vector.shape_cast %78 : vector<256xf32> to vector<1x256xf32>
      %cst_48 = arith.constant 8.000000e+00 : f32
      %80 = vector.broadcast %cst_48 : f32 to vector<1x256xf32>
      %81 = arith.divf %79, %80 : vector<1x256xf32>
      %82 = arith.mulf %75, %75 : vector<8x256xf32>
      %cst_49 = arith.constant dense<0.000000e+00> : vector<256xf32>
      %83 = vector.multi_reduction <add>, %82, %cst_49 [0] : vector<8x256xf32> to vector<256xf32>
      %84 = vector.shape_cast %83 : vector<256xf32> to vector<1x256xf32>
      %cst_50 = arith.constant 8.000000e+00 : f32
      %85 = vector.broadcast %cst_50 : f32 to vector<1x256xf32>
      %86 = arith.divf %84, %85 : vector<1x256xf32>
      %87 = arith.mulf %81, %81 : vector<1x256xf32>
      %88 = arith.subf %86, %87 : vector<1x256xf32>
      %89 = vector.broadcast %81 : vector<1x256xf32> to vector<8x256xf32>
      %90 = arith.subf %75, %89 : vector<8x256xf32>
      %cst_51 = arith.constant 9.99999974E-6 : f32
      %91 = vector.broadcast %cst_51 : f32 to vector<1x256xf32>
      %92 = arith.addf %88, %91 : vector<1x256xf32>
      %93 = math.rsqrt %92 : vector<1x256xf32>
      %94 = vector.broadcast %93 : vector<1x256xf32> to vector<8x256xf32>
      %95 = arith.mulf %90, %94 : vector<8x256xf32>
      %96 = vector.broadcast %76 : vector<1x256xf32> to vector<8x256xf32>
      %97 = arith.mulf %95, %96 : vector<8x256xf32>
      %98 = vector.broadcast %77 : vector<1x256xf32> to vector<8x256xf32>
      %99 = arith.addf %97, %98 : vector<8x256xf32>
      %cst_52 = arith.constant 0.000000e+00 : f32
      %100 = vector.broadcast %cst_52 : f32 to vector<8x256xf32>
      %101 = arith.cmpf ogt, %99, %100 : vector<8x256xf32>
      %102 = math.exp %99 : vector<8x256xf32>
      %cst_53 = arith.constant 1.000000e+00 : f32
      %103 = vector.broadcast %cst_53 : f32 to vector<8x256xf32>
      %104 = arith.subf %102, %103 : vector<8x256xf32>
      %105 = arith.select %101, %99, %104 : vector<8x256xi1>, vector<8x256xf32>
      %106 = arith.truncf %105 : vector<8x256xf32> to vector<8x256xbf16>
      %c0_54 = arith.constant 0 : index
      %c0_55 = arith.constant 0 : index
      %107 = vector.load %arg14[%c0_54, %c0_55] : memref<256x128xbf16, #tpu.memory_space<vmem>>, vector<256x128xbf16>
      %cst_56 = arith.constant dense<0.000000e+00> : vector<8x128xf32>
      %108 = tpu.matmul %106, %107, %cst_56 {dimension_numbers = #tpu.dot_dimension_numbers<[1], [0], [0], [1], [0, 0, 1, 1], [], []>} : vector<8x256xbf16>, vector<256x128xbf16>, vector<8x128xf32> -> vector<8x128xf32>
      %c0_57 = arith.constant 0 : index
      %c0_58 = arith.constant 0 : index
      %109 = vector.load %arg15[%c0_57, %c0_58] : memref<1x128xf32, #tpu.memory_space<vmem>>, vector<1x128xf32>
      %110 = vector.broadcast %109 : vector<1x128xf32> to vector<8x128xf32>
      %111 = arith.addf %108, %110 : vector<8x128xf32>
      %c0_59 = arith.constant 0 : index
      %c0_60 = arith.constant 0 : index
      %112 = vector.load %arg16[%c0_59, %c0_60] : memref<8x128xf32, #tpu.memory_space<vmem>>, vector<8x128xf32>
      tpu.vector_store %arg16[%c0_59, %c0_60], %111 {strides = array<i32>} : memref<8x128xf32, #tpu.memory_space<vmem>>, vector<8x128xf32>,
    } else {
    }
    return
  }
  func.func @transform_0(%arg0: i32) -> (i32, i32) {
    %c0_i32 = arith.constant 0 : i32
    %c0_i32_0 = arith.constant 0 : i32
    return %c0_i32, %arg0 : i32, i32
  }
  func.func @transform_1(%arg0: i32) -> (i32, i32) {
    %c0_i32 = arith.constant 0 : i32
    %c0_i32_0 = arith.constant 0 : i32
    return %arg0, %c0_i32 : i32, i32
  }
  func.func @transform_2(%arg0: i32) -> (i32, i32) {
    %c0_i32 = arith.constant 0 : i32
    %c0_i32_0 = arith.constant 0 : i32
    %c0_i32_1 = arith.constant 0 : i32
    return %c0_i32, %c0_i32_0 : i32, i32
  }
  func.func @transform_3(%arg0: i32) -> (i32, i32) {
    %c0_i32 = arith.constant 0 : i32
    %c0_i32_0 = arith.constant 0 : i32
    %c0_i32_1 = arith.constant 0 : i32
    return %c0_i32, %c0_i32_0 : i32, i32
  }
  func.func @transform_4(%arg0: i32) -> (i32, i32) {
    %c0_i32 = arith.constant 0 : i32
    %c0_i32_0 = arith.constant 0 : i32
    %c0_i32_1 = arith.constant 0 : i32
    return %c0_i32, %c0_i32_0 : i32, i32
  }
  func.func @transform_5(%arg0: i32) -> (i32, i32) {
    %c0_i32 = arith.constant 0 : i32
    %c0_i32_0 = arith.constant 0 : i32
    %c0_i32_1 = arith.constant 0 : i32
    return %c0_i32, %c0_i32_0 : i32, i32
  }
  func.func @transform_6(%arg0: i32) -> (i32, i32) {
    %c0_i32 = arith.constant 0 : i32
    %c0_i32_0 = arith.constant 0 : i32
    %c0_i32_1 = arith.constant 0 : i32
    return %c0_i32, %c0_i32_0 : i32, i32
  }
  func.func @transform_7(%arg0: i32) -> (i32, i32) {
    %c0_i32 = arith.constant 0 : i32
    %c0_i32_0 = arith.constant 0 : i32
    %c0_i32_1 = arith.constant 0 : i32
    return %c0_i32, %c0_i32_0 : i32, i32
  }
  func.func @transform_8(%arg0: i32) -> (i32, i32) {
    %c0_i32 = arith.constant 0 : i32
    %c0_i32_0 = arith.constant 0 : i32
    %c0_i32_1 = arith.constant 0 : i32
    return %c0_i32, %c0_i32_0 : i32, i32
  }
  func.func @transform_9(%arg0: i32) -> (i32, i32) {
    %c0_i32 = arith.constant 0 : i32
    %c0_i32_0 = arith.constant 0 : i32
    %c0_i32_1 = arith.constant 0 : i32
    return %c0_i32, %c0_i32_0 : i32, i32
  }
  func.func @transform_10(%arg0: i32) -> (i32, i32) {
    %c0_i32 = arith.constant 0 : i32
    %c0_i32_0 = arith.constant 0 : i32
    %c0_i32_1 = arith.constant 0 : i32
    return %c0_i32, %c0_i32_0 : i32, i32
  }
  func.func @transform_11(%arg0: i32) -> (i32, i32) {
    %c0_i32 = arith.constant 0 : i32
    %c0_i32_0 = arith.constant 0 : i32
    %c0_i32_1 = arith.constant 0 : i32
    return %c0_i32, %c0_i32_0 : i32, i32
  }
  func.func @transform_12(%arg0: i32) -> (i32, i32) {
    %c0_i32 = arith.constant 0 : i32
    %c0_i32_0 = arith.constant 0 : i32
    %c0_i32_1 = arith.constant 0 : i32
    return %c0_i32, %c0_i32_0 : i32, i32
  }
  func.func @transform_13(%arg0: i32) -> (i32, i32) {
    %c0_i32 = arith.constant 0 : i32
    %c0_i32_0 = arith.constant 0 : i32
    %c0_i32_1 = arith.constant 0 : i32
    return %c0_i32, %c0_i32_0 : i32, i32
  }
  func.func @transform_14(%arg0: i32) -> (i32, i32) {
    %c0_i32 = arith.constant 0 : i32
    %c0_i32_0 = arith.constant 0 : i32
    %c0_i32_1 = arith.constant 0 : i32
    return %c0_i32, %c0_i32_0 : i32, i32
  }
  func.func @transform_15(%arg0: i32) -> (i32, i32) {
    %c0_i32 = arith.constant 0 : i32
    %c0_i32_0 = arith.constant 0 : i32
    %c0_i32_1 = arith.constant 0 : i32
    return %c0_i32, %c0_i32_0 : i32, i32
  }
}

</mosaic_0001>

<llo_original>
// kernel: tpu_custom_call.1
$region0: #{tpu_custom_call.1}
  #allocation0 [shape = 'u32[]', space=smem, size = 0x4, offset = 0x4, fixed_abs, tag = 'smem constant byte address 0x4 - core index']
  #allocation1 [shape = 'u32[144,128]{1,0:T(1,128)}', space=vmem, size = 0x12000, scoped, tag = 'internal scratch']
  #allocation2 [shape = 'f32[8,1024]{1,0:T(8,128)}', space=vmem, size = 0x8000, scoped, tag = 'scratch operand']
  %s0 = inlined_call_operand.hbm [shape: bf16[8,2048], index: 0, kind: input, shape index: {}]
  %s1 = inlined_call_operand.hbm [shape: bf16[2048,1024], index: 1, kind: input, shape index: {}]
  %s2 = inlined_call_operand.hbm [shape: f32[1,1024], index: 2, kind: input, shape index: {}]
  %s3 = inlined_call_operand.hbm [shape: bf16[1024,1024], index: 3, kind: input, shape index: {}]
  %s4 = inlined_call_operand.hbm [shape: f32[1,1024], index: 4, kind: input, shape index: {}]
  %s5 = inlined_call_operand.hbm [shape: f32[1,1024], index: 5, kind: input, shape index: {}]
  %s6 = inlined_call_operand.hbm [shape: f32[1,1024], index: 6, kind: input, shape index: {}]
  %s7 = inlined_call_operand.hbm [shape: bf16[1024,256], index: 7, kind: input, shape index: {}]
  %s8 = inlined_call_operand.hbm [shape: f32[1,256], index: 8, kind: input, shape index: {}]
  %s9 = inlined_call_operand.hbm [shape: bf16[256,256], index: 9, kind: input, shape index: {}]
  %s10 = inlined_call_operand.hbm [shape: f32[1,256], index: 10, kind: input, shape index: {}]
  %s11 = inlined_call_operand.hbm [shape: f32[1,256], index: 11, kind: input, shape index: {}]
  %s12 = inlined_call_operand.hbm [shape: f32[1,256], index: 12, kind: input, shape index: {}]
  %s13 = inlined_call_operand.hbm [shape: bf16[256,128], index: 13, kind: input, shape index: {}]
  %s14 = inlined_call_operand.hbm [shape: f32[1,128], index: 14, kind: input, shape index: {}]
  %s15 = inlined_call_operand.hbm [shape: f32[8,128], index: 15, kind: output, shape index: {}]
  %s16 = sld [smem:[#allocation0]]
  $region161: #{tpu_custom_call.1} parent=0
    _
  %s18 = ssub.s32 1, %s16
  %s19 = scalar_select 0, %s18, %s16
  $region1: #{tpu_custom_call.1} parent=0
    #allocation3 [shape = 'u8[16384]{0}', space=vmem, size = 0x4000, scoped, tag = 'input window, operand 0']
    #allocation4 [shape = 's32[2]{0}', space=sflag, size = 0x8, scoped, tag = 'scoped memory for tpu_custom_call.1']
    #allocation5 [shape = 's32[2]{0}', space=sflag, size = 0x8, scoped, tag = 'scoped memory for tpu_custom_call.1']
    #allocation6 [shape = 'u8[2097152]{0}', space=vmem, size = 0x200000, scoped, tag = 'input window, operand 1']
    #allocation7 [shape = 's32[2]{0}', space=sflag, size = 0x8, scoped, tag = 'scoped memory for tpu_custom_call.1']
    #allocation8 [shape = 'u8[4096]{0}', space=vmem, size = 0x1000, scoped, tag = 'input window, operand 2, single buffered']
    #allocation9 [shape = 'u8[2097152]{0}', space=vmem, size = 0x200000, scoped, tag = 'input window, operand 3, single buffered']
    #allocation10 [shape = 's32[1]{0}', space=sflag, size = 0x4, scoped, tag = 'scoped memory for tpu_custom_call.1']
    #allocation11 [shape = 'u8[4096]{0}', space=vmem, size = 0x1000, scoped, tag = 'input window, operand 4, single buffered']
    #allocation12 [shape = 'u8[4096]{0}', space=vmem, size = 0x1000, scoped, tag = 'input window, operand 5, single buffered']
    #allocation13 [shape = 's32[1]{0}', space=sflag, size = 0x4, scoped, tag = 'scoped memory for tpu_custom_call.1']
    #allocation14 [shape = 'u8[4096]{0}', space=vmem, size = 0x1000, scoped, tag = 'input window, operand 6, single buffered']
    #allocation15 [shape = 'u8[524288]{0}', space=vmem, size = 0x80000, scoped, tag = 'input window, operand 7, single buffered']
    #allocation16 [shape = 's32[1]{0}', space=sflag, size = 0x4, scoped, tag = 'scoped memory for tpu_custom_call.1']
    #allocation17 [shape = 'u8[1024]{0}', space=vmem, size = 0x400, scoped, tag = 'input window, operand 8, single buffered']
    #allocation18 [shape = 'u8[131072]{0}', space=vmem, size = 0x20000, scoped, tag = 'input window, operand 9, single buffered']
    #allocation19 [shape = 's32[1]{0}', space=sflag, size = 0x4, scoped, tag = 'scoped memory for tpu_custom_call.1']
    #allocation20 [shape = 'u8[1024]{0}', space=vmem, size = 0x400, scoped, tag = 'input window, operand 10, single buffered']
    #allocation21 [shape = 'u8[1024]{0}', space=vmem, size = 0x400, scoped, tag = 'input window, operand 11, single buffered']
    #allocation22 [shape = 's32[1]{0}', space=sflag, size = 0x4, scoped, tag = 'scoped memory for tpu_custom_call.1']
    #allocation23 [shape = 'u8[1024]{0}', space=vmem, size = 0x400, scoped, tag = 'input window, operand 12, single buffered']
    #allocation24 [shape = 'u8[65536]{0}', space=vmem, size = 0x10000, scoped, tag = 'input window, operand 13, single buffered']
    #allocation25 [shape = 's32[1]{0}', space=sflag, size = 0x4, scoped, tag = 'scoped memory for tpu_custom_call.1']
    #allocation26 [shape = 'u8[512]{0}', space=vmem, size = 0x400, scoped, tag = 'input window, operand 14, single buffered']
    #allocation27 [shape = 'u8[4096]{0}', space=vmem, size = 0x1000, scoped, tag = 'output window, operand 0, single buffered']
    %20 = vsyncpa [#allocation4], 0
    %s21 = scalar_lea.sflag [#allocation4], 1
    %22 = vsyncpa %s21, 0
    %23 = vsyncpa [#allocation7], 0
    %s24 = scalar_lea.sflag [#allocation7], 1
    %25 = vsyncpa %s24, 0
    %26 = vsyncpa [#allocation10], 0
    %27 = vsyncpa [#allocation13], 0
    %28 = vsyncpa [#allocation16], 0
    %29 = vsyncpa [#allocation19], 0
    %30 = vsyncpa [#allocation22], 0
    %31 = vsyncpa [#allocation25], 0
    %32 = vsyncpa [#allocation5], 0
    loop: start=0, step=1, limit=6
    $region2: #{tpu_custom_call.1} parent=1 // loop_pre_header
      _
    $region3: #{tpu_custom_call.1} parent=1 // loop_header
      %s34 = sphi 0, %s38
      %p35 = scmp.ge.s32.totalorder %s34, 6
      %s44 = sphi 0, %s46
      %s47 = sphi 0, %s44
      %s48 = sphi 0, %s47
      %s64 = sphi 0, %s48
      %s70 = sphi 0, %s72
      %s73 = sphi 0, %s70
      %s74 = sphi 0, %s73
      %s90 = sphi 0, %s74
      %s94 = sphi 0, %s94
      %s96 = sphi 0, %s94
      %s97 = sphi 0, %s96
      %s111 = sphi 0, %s97
      %s115 = sphi 0, %s115
      %s117 = sphi 0, %s115
      %s118 = sphi 0, %s117
      %s132 = sphi 0, %s118
      %s136 = sphi 0, %s136
      %s138 = sphi 0, %s136
      %s139 = sphi 0, %s138
      %s153 = sphi 0, %s139
      %s157 = sphi 0, %s157
      %s159 = sphi 0, %s157
      %s160 = sphi 0, %s159
      %s174 = sphi 0, %s160
      %s178 = sphi 0, %s178
      %s180 = sphi 0, %s178
      %s181 = sphi 0, %s180
      %s195 = sphi 0, %s181
      %s199 = sphi 0, %s199
      %s201 = sphi 0, %s199
      %s202 = sphi 0, %s201
      %s216 = sphi 0, %s202
      %s220 = sphi 0, %s220
      %s222 = sphi 0, %s220
      %s223 = sphi 0, %s222
      %s237 = sphi 0, %s223
      %s241 = sphi 0, %s241
      %s243 = sphi 0, %s241
      %s244 = sphi 0, %s243
      %s258 = sphi 0, %s244
      %s262 = sphi 0, %s262
      %s264 = sphi 0, %s262
      %s265 = sphi 0, %s264
      %s279 = sphi 0, %s265
      %s283 = sphi 0, %s283
      %s285 = sphi 0, %s283
      %s286 = sphi 0, %s285
      %s300 = sphi 0, %s286
      %s304 = sphi 0, %s304
      %s306 = sphi 0, %s304
      %s307 = sphi 0, %s306
      %s321 = sphi 0, %s307
      %s325 = sphi 0, %s325
      %s327 = sphi 0, %s325
      %s328 = sphi 0, %s327
      %s342 = sphi 0, %s328
      %s346 = sphi 0, %s346
      %s348 = sphi 0, %s346
      %s349 = sphi 0, %s348
      %s363 = sphi 0, %s349
      %s367 = sphi 0, %s367
      %s369 = sphi 0, %s367
      %s370 = sphi 0, %s369
      %s384 = sphi 0, %s370
    $region4: #{tpu_custom_call.1} parent=1 // loop_header_branch
      %37 = sbr.rel (%p35) target = $region8
    $region5: #{tpu_custom_call.1} parent=1 // loop_body
      %s39 = ssub.s32 %s34, 1
      %s40 = ssub.s32 %s34, 2
      %s41 = sadd.s32 %s34, 1
      %s42 = ssub.s32 %s34, %s41
      %p43 = scmp.eq.s32.totalorder %s42, 0
      %s45 = sadd.s32 %s44, 1
      %s46 = scalar_select %p43, %s44, %s45
      %p49 = pneg %p43
      %p50 = scmp.eq.s32.totalorder %s34, 3
      %p51 = por %p49, %p50
      %p52 = scmp.ne.s32.totalorder %s44, %s47
      %p53 = scmp.eq.s32.totalorder %s34, 0
      %p54 = por %p52, %p53
      %p55 = scmp.ne.s32.totalorder %s44, %s47
      %p56 = scmp.eq.s32.totalorder %s39, 3
      %p57 = por %p55, %p56
      %p58 = scmp.ne.s32.totalorder %s47, %s48
      %p59 = scmp.eq.s32.totalorder %s39, 0
      %p60 = por %p58, %p59
      %p61 = scmp.ne.s32.totalorder %s47, %s48
      %p62 = scmp.eq.s32.totalorder %s40, 3
      %p63 = por %p61, %p62
      %p65 = scmp.ne.s32.totalorder %s48, %s64
      %p66 = scmp.eq.s32.totalorder %s40, 0
      %p67 = por %p65, %p66
      %s68 = ssub.s32 %s34, %s41
      %p69 = scmp.eq.s32.totalorder %s68, 0
      %s71 = sadd.s32 %s70, 1
      %s72 = scalar_select %p69, %s70, %s71
      %p75 = pneg %p69
      %p76 = scmp.eq.s32.totalorder %s34, 3
      %p77 = por %p75, %p76
      %p78 = scmp.ne.s32.totalorder %s70, %s73
      %p79 = scmp.eq.s32.totalorder %s34, 0
      %p80 = por %p78, %p79
      %p81 = scmp.ne.s32.totalorder %s70, %s73
      %p82 = scmp.eq.s32.totalorder %s39, 3
      %p83 = por %p81, %p82
      %p84 = scmp.ne.s32.totalorder %s73, %s74
      %p85 = scmp.eq.s32.totalorder %s39, 0
      %p86 = por %p84, %p85
      %p87 = scmp.ne.s32.totalorder %s73, %s74
      %p88 = scmp.eq.s32.totalorder %s40, 3
      %p89 = por %p87, %p88
      %p91 = scmp.ne.s32.totalorder %s74, %s90
      %p92 = scmp.eq.s32.totalorder %s40, 0
      %p93 = por %p91, %p92
      %s95 = sadd.s32 %s94, 1
      %p98 = scmp.eq.s32.totalorder %s34, 3
      %p99 = scmp.ne.s32.totalorder %s94, %s96
      %p100 = scmp.eq.s32.totalorder %s34, 0
      %p101 = por %p99, %p100
      %p102 = scmp.ne.s32.totalorder %s94, %s96
      %p103 = scmp.eq.s32.totalorder %s39, 3
      %p104 = por %p102, %p103
      %p105 = scmp.ne.s32.totalorder %s96, %s97
      %p106 = scmp.eq.s32.totalorder %s39, 0
      %p107 = por %p105, %p106
      %p108 = scmp.ne.s32.totalorder %s96, %s97
      %p109 = scmp.eq.s32.totalorder %s40, 3
      %p110 = por %p108, %p109
      %p112 = scmp.ne.s32.totalorder %s97, %s111
      %p113 = scmp.eq.s32.totalorder %s40, 0
      %p114 = por %p112, %p113
      %s116 = sadd.s32 %s115, 1
      %p119 = scmp.eq.s32.totalorder %s34, 3
      %p120 = scmp.ne.s32.totalorder %s115, %s117
      %p121 = scmp.eq.s32.totalorder %s34, 0
      %p122 = por %p120, %p121
      %p123 = scmp.ne.s32.totalorder %s115, %s117
      %p124 = scmp.eq.s32.totalorder %s39, 3
      %p125 = por %p123, %p124
      %p126 = scmp.ne.s32.totalorder %s117, %s118
      %p127 = scmp.eq.s32.totalorder %s39, 0
      %p128 = por %p126, %p127
      %p129 = scmp.ne.s32.totalorder %s117, %s118
      %p130 = scmp.eq.s32.totalorder %s40, 3
      %p131 = por %p129, %p130
      %p133 = scmp.ne.s32.totalorder %s118, %s132
      %p134 = scmp.eq.s32.totalorder %s40, 0
      %p135 = por %p133, %p134
      %s137 = sadd.s32 %s136, 1
      %p140 = scmp.eq.s32.totalorder %s34, 3
      %p141 = scmp.ne.s32.totalorder %s136, %s138
      %p142 = scmp.eq.s32.totalorder %s34, 0
      %p143 = por %p141, %p142
      %p144 = scmp.ne.s32.totalorder %s136, %s138
      %p145 = scmp.eq.s32.totalorder %s39, 3
      %p146 = por %p144, %p145
      %p147 = scmp.ne.s32.totalorder %s138, %s139
      %p148 = scmp.eq.s32.totalorder %s39, 0
      %p149 = por %p147, %p148
      %p150 = scmp.ne.s32.totalorder %s138, %s139
      %p151 = scmp.eq.s32.totalorder %s40, 3
      %p152 = por %p150, %p151
      %p154 = scmp.ne.s32.totalorder %s139, %s153
      %p155 = scmp.eq.s32.totalorder %s40, 0
      %p156 = por %p154, %p155
      %s158 = sadd.s32 %s157, 1
      %p161 = scmp.eq.s32.totalorder %s34, 3
      %p162 = scmp.ne.s32.totalorder %s157, %s159
      %p163 = scmp.eq.s32.totalorder %s34, 0
      %p164 = por %p162, %p163
      %p165 = scmp.ne.s32.totalorder %s157, %s159
      %p166 = scmp.eq.s32.totalorder %s39, 3
      %p167 = por %p165, %p166
      %p168 = scmp.ne.s32.totalorder %s159, %s160
      %p169 = scmp.eq.s32.totalorder %s39, 0
      %p170 = por %p168, %p169
      %p171 = scmp.ne.s32.totalorder %s159, %s160
      %p172 = scmp.eq.s32.totalorder %s40, 3
      %p173 = por %p171, %p172
      %p175 = scmp.ne.s32.totalorder %s160, %s174
      %p176 = scmp.eq.s32.totalorder %s40, 0
      %p177 = por %p175, %p176
      %s179 = sadd.s32 %s178, 1
      %p182 = scmp.eq.s32.totalorder %s34, 3
      %p183 = scmp.ne.s32.totalorder %s178, %s180
      %p184 = scmp.eq.s32.totalorder %s34, 0
      %p185 = por %p183, %p184
      %p186 = scmp.ne.s32.totalorder %s178, %s180
      %p187 = scmp.eq.s32.totalorder %s39, 3
      %p188 = por %p186, %p187
      %p189 = scmp.ne.s32.totalorder %s180, %s181
      %p190 = scmp.eq.s32.totalorder %s39, 0
      %p191 = por %p189, %p190
      %p192 = scmp.ne.s32.totalorder %s180, %s181
      %p193 = scmp.eq.s32.totalorder %s40, 3
      %p194 = por %p192, %p193
      %p196 = scmp.ne.s32.totalorder %s181, %s195
      %p197 = scmp.eq.s32.totalorder %s40, 0
      %p198 = por %p196, %p197
      %s200 = sadd.s32 %s199, 1
      %p203 = scmp.eq.s32.totalorder %s34, 3
      %p204 = scmp.ne.s32.totalorder %s199, %s201
      %p205 = scmp.eq.s32.totalorder %s34, 0
      %p206 = por %p204, %p205
      %p207 = scmp.ne.s32.totalorder %s199, %s201
      %p208 = scmp.eq.s32.totalorder %s39, 3
      %p209 = por %p207, %p208
      %p210 = scmp.ne.s32.totalorder %s201, %s202
      %p211 = scmp.eq.s32.totalorder %s39, 0
      %p212 = por %p210, %p211
      %p213 = scmp.ne.s32.totalorder %s201, %s202
      %p214 = scmp.eq.s32.totalorder %s40, 3
      %p215 = por %p213, %p214
      %p217 = scmp.ne.s32.totalorder %s202, %s216
      %p218 = scmp.eq.s32.totalorder %s40, 0
      %p219 = por %p217, %p218
      %s221 = sadd.s32 %s220, 1
      %p224 = scmp.eq.s32.totalorder %s34, 3
      %p225 = scmp.ne.s32.totalorder %s220, %s222
      %p226 = scmp.eq.s32.totalorder %s34, 0
      %p227 = por %p225, %p226
      %p228 = scmp.ne.s32.totalorder %s220, %s222
      %p229 = scmp.eq.s32.totalorder %s39, 3
      %p230 = por %p228, %p229
      %p231 = scmp.ne.s32.totalorder %s222, %s223
      %p232 = scmp.eq.s32.totalorder %s39, 0
      %p233 = por %p231, %p232
      %p234 = scmp.ne.s32.totalorder %s222, %s223
      %p235 = scmp.eq.s32.totalorder %s40, 3
      %p236 = por %p234, %p235
      %p238 = scmp.ne.s32.totalorder %s223, %s237
      %p239 = scmp.eq.s32.totalorder %s40, 0
      %p240 = por %p238, %p239
      %s242 = sadd.s32 %s241, 1
      %p245 = scmp.eq.s32.totalorder %s34, 3
      %p246 = scmp.ne.s32.totalorder %s241, %s243
      %p247 = scmp.eq.s32.totalorder %s34, 0
      %p248 = por %p246, %p247
      %p249 = scmp.ne.s32.totalorder %s241, %s243
      %p250 = scmp.eq.s32.totalorder %s39, 3
      %p251 = por %p249, %p250
      %p252 = scmp.ne.s32.totalorder %s243, %s244
      %p253 = scmp.eq.s32.totalorder %s39, 0
      %p254 = por %p252, %p253
      %p255 = scmp.ne.s32.totalorder %s243, %s244
      %p256 = scmp.eq.s32.totalorder %s40, 3
      %p257 = por %p255, %p256
      %p259 = scmp.ne.s32.totalorder %s244, %s258
      %p260 = scmp.eq.s32.totalorder %s40, 0
      %p261 = por %p259, %p260
      %s263 = sadd.s32 %s262, 1
      %p266 = scmp.eq.s32.totalorder %s34, 3
      %p267 = scmp.ne.s32.totalorder %s262, %s264
      %p268 = scmp.eq.s32.totalorder %s34, 0
      %p269 = por %p267, %p268
      %p270 = scmp.ne.s32.totalorder %s262, %s264
      %p271 = scmp.eq.s32.totalorder %s39, 3
      %p272 = por %p270, %p271
      %p273 = scmp.ne.s32.totalorder %s264, %s265
      %p274 = scmp.eq.s32.totalorder %s39, 0
      %p275 = por %p273, %p274
      %p276 = scmp.ne.s32.totalorder %s264, %s265
      %p277 = scmp.eq.s32.totalorder %s40, 3
      %p278 = por %p276, %p277
      %p280 = scmp.ne.s32.totalorder %s265, %s279
      %p281 = scmp.eq.s32.totalorder %s40, 0
      %p282 = por %p280, %p281
      %s284 = sadd.s32 %s283, 1
      %p287 = scmp.eq.s32.totalorder %s34, 3
      %p288 = scmp.ne.s32.totalorder %s283, %s285
      %p289 = scmp.eq.s32.totalorder %s34, 0
      %p290 = por %p288, %p289
      %p291 = scmp.ne.s32.totalorder %s283, %s285
      %p292 = scmp.eq.s32.totalorder %s39, 3
      %p293 = por %p291, %p292
      %p294 = scmp.ne.s32.totalorder %s285, %s286
      %p295 = scmp.eq.s32.totalorder %s39, 0
      %p296 = por %p294, %p295
      %p297 = scmp.ne.s32.totalorder %s285, %s286
      %p298 = scmp.eq.s32.totalorder %s40, 3
      %p299 = por %p297, %p298
      %p301 = scmp.ne.s32.totalorder %s286, %s300
      %p302 = scmp.eq.s32.totalorder %s40, 0
      %p303 = por %p301, %p302
      %s305 = sadd.s32 %s304, 1
      %p308 = scmp.eq.s32.totalorder %s34, 3
      %p309 = scmp.ne.s32.totalorder %s304, %s306
      %p310 = scmp.eq.s32.totalorder %s34, 0
      %p311 = por %p309, %p310
      %p312 = scmp.ne.s32.totalorder %s304, %s306
      %p313 = scmp.eq.s32.totalorder %s39, 3
      %p314 = por %p312, %p313
      %p315 = scmp.ne.s32.totalorder %s306, %s307
      %p316 = scmp.eq.s32.totalorder %s39, 0
      %p317 = por %p315, %p316
      %p318 = scmp.ne.s32.totalorder %s306, %s307
      %p319 = scmp.eq.s32.totalorder %s40, 3
      %p320 = por %p318, %p319
      %p322 = scmp.ne.s32.totalorder %s307, %s321
      %p323 = scmp.eq.s32.totalorder %s40, 0
      %p324 = por %p322, %p323
      %s326 = sadd.s32 %s325, 1
      %p329 = scmp.eq.s32.totalorder %s34, 3
      %p330 = scmp.ne.s32.totalorder %s325, %s327
      %p331 = scmp.eq.s32.totalorder %s34, 0
      %p332 = por %p330, %p331
      %p333 = scmp.ne.s32.totalorder %s325, %s327
      %p334 = scmp.eq.s32.totalorder %s39, 3
      %p335 = por %p333, %p334
      %p336 = scmp.ne.s32.totalorder %s327, %s328
      %p337 = scmp.eq.s32.totalorder %s39, 0
      %p338 = por %p336, %p337
      %p339 = scmp.ne.s32.totalorder %s327, %s328
      %p340 = scmp.eq.s32.totalorder %s40, 3
      %p341 = por %p339, %p340
      %p343 = scmp.ne.s32.totalorder %s328, %s342
      %p344 = scmp.eq.s32.totalorder %s40, 0
      %p345 = por %p343, %p344
      %s347 = sadd.s32 %s346, 1
      %p350 = scmp.eq.s32.totalorder %s34, 3
      %p351 = scmp.ne.s32.totalorder %s346, %s348
      %p352 = scmp.eq.s32.totalorder %s34, 0
      %p353 = por %p351, %p352
      %p354 = scmp.ne.s32.totalorder %s346, %s348
      %p355 = scmp.eq.s32.totalorder %s39, 3
      %p356 = por %p354, %p355
      %p357 = scmp.ne.s32.totalorder %s348, %s349
      %p358 = scmp.eq.s32.totalorder %s39, 0
      %p359 = por %p357, %p358
      %p360 = scmp.ne.s32.totalorder %s348, %s349
      %p361 = scmp.eq.s32.totalorder %s40, 3
      %p362 = por %p360, %p361
      %p364 = scmp.ne.s32.totalorder %s349, %s363
      %p365 = scmp.eq.s32.totalorder %s40, 0
      %p366 = por %p364, %p365
      %s368 = sadd.s32 %s367, 1
      %p371 = scmp.eq.s32.totalorder %s34, 3
      %p372 = scmp.ne.s32.totalorder %s367, %s369
      %p373 = scmp.eq.s32.totalorder %s34, 0
      %p374 = por %p372, %p373
      %p375 = scmp.ne.s32.totalorder %s367, %s369
      %p376 = scmp.eq.s32.totalorder %s39, 3
      %p377 = por %p375, %p376
      %p378 = scmp.ne.s32.totalorder %s369, %s370
      %p379 = scmp.eq.s32.totalorder %s39, 0
      %p380 = por %p378, %p379
      %p381 = scmp.ne.s32.totalorder %s369, %s370
      %p382 = scmp.eq.s32.totalorder %s40, 3
      %p383 = por %p381, %p382
      %p385 = scmp.ne.s32.totalorder %s370, %s384
      %p386 = scmp.eq.s32.totalorder %s40, 0
      %p387 = por %p385, %p386
      %p388 = scmp.le.s32.totalorder 1, %s34
      %p389 = scmp.lt.s32.totalorder %s34, 5
      %p390 = pnand %p388, %p389
      %p391 = pneg %p390
      // Predicated region
      $region9: #{tpu_custom_call.1} parent=5 // pred_check
        _
      $region10: #{tpu_custom_call.1} parent=5 // pred_check_branch
        %393 = sbr.rel (%p390) target = $region12
      $region11: #{tpu_custom_call.1} parent=5 // pred_region
        %s394 = ssub.s32 %s34, 1
        // Predicated region
        $region13: #{tpu_custom_call.1} parent=11 // pred_check
          %p395 = pneg %p107
        $region14: #{tpu_custom_call.1} parent=11 // pred_check_branch
          %397 = sbr.rel (%p395) target = $region16
        $region15: #{tpu_custom_call.1} parent=11 // pred_region
          %s399 = ssub.s32 128, 128
          %400 = vsyncadd [#allocation7], %s399
          %s402 = sshll.u32 [#allocation8], 4
          %s403 = int_to_ptr.vmem [resolvable:$true] %s402
          %405 = dma.hbm_to_vmem [thread:$0]  %s2, 128, %s403, [#allocation7]
        $region16: #{tpu_custom_call.1} parent=11 // pred_fallthru
          _
        // Predicated region
        $region17: #{tpu_custom_call.1} parent=11 // pred_check
          %p406 = pneg %p128
        $region18: #{tpu_custom_call.1} parent=11 // pred_check_branch
          %408 = sbr.rel (%p406) target = $region20
        $region19: #{tpu_custom_call.1} parent=11 // pred_region
          %s410 = ssub.s32 65536, 65536
          %411 = vsyncadd [#allocation10], %s410
          %s412 = sshll.u32 [#allocation9], 4
          %s413 = int_to_ptr.vmem [resolvable:$true] %s412
          %418 = dma.hbm_to_vmem [thread:$0]  %s3, 65536, %s413, [#allocation10], 512, 512, 32
        $region20: #{tpu_custom_call.1} parent=11 // pred_fallthru
          _
        // Predicated region
        $region21: #{tpu_custom_call.1} parent=11 // pred_check
          %p419 = pneg %p149
        $region22: #{tpu_custom_call.1} parent=11 // pred_check_branch
          %421 = sbr.rel (%p419) target = $region24
        $region23: #{tpu_custom_call.1} parent=11 // pred_region
          %s423 = ssub.s32 128, 128
          %424 = vsyncadd [#allocation10], %s423
          %s426 = sshll.u32 [#allocation11], 4
          %s427 = int_to_ptr.vmem [resolvable:$true] %s426
          %429 = dma.hbm_to_vmem [thread:$0]  %s4, 128, %s427, [#allocation10]
        $region24: #{tpu_custom_call.1} parent=11 // pred_fallthru
          _
        // Predicated region
        $region25: #{tpu_custom_call.1} parent=11 // pred_check
          %p430 = pneg %p170
        $region26: #{tpu_custom_call.1} parent=11 // pred_check_branch
          %432 = sbr.rel (%p430) target = $region28
        $region27: #{tpu_custom_call.1} parent=11 // pred_region
          %s434 = ssub.s32 128, 128
          %435 = vsyncadd [#allocation13], %s434
          %s437 = sshll.u32 [#allocation12], 4
          %s438 = int_to_ptr.vmem [resolvable:$true] %s437
          %440 = dma.hbm_to_vmem [thread:$0]  %s5, 128, %s438, [#allocation13]
        $region28: #{tpu_custom_call.1} parent=11 // pred_fallthru
          _
        // Predicated region
        $region29: #{tpu_custom_call.1} parent=11 // pred_check
          %p441 = pneg %p191
        $region30: #{tpu_custom_call.1} parent=11 // pred_check_branch
          %443 = sbr.rel (%p441) target = $region32
        $region31: #{tpu_custom_call.1} parent=11 // pred_region
          %s445 = ssub.s32 128, 128
          %446 = vsyncadd [#allocation13], %s445
          %s448 = sshll.u32 [#allocation14], 4
          %s449 = int_to_ptr.vmem [resolvable:$true] %s448
          %451 = dma.hbm_to_vmem [thread:$0]  %s6, 128, %s449, [#allocation13]
        $region32: #{tpu_custom_call.1} parent=11 // pred_fallthru
          _
        // Predicated region
        $region33: #{tpu_custom_call.1} parent=11 // pred_check
          %p452 = pneg %p212
        $region34: #{tpu_custom_call.1} parent=11 // pred_check_branch
          %454 = sbr.rel (%p452) target = $region36
        $region35: #{tpu_custom_call.1} parent=11 // pred_region
          %s456 = ssub.s32 16384, 16384
          %457 = vsyncadd [#allocation16], %s456
          %s458 = sshll.u32 [#allocation15], 4
          %s459 = int_to_ptr.vmem [resolvable:$true] %s458
          %464 = dma.hbm_to_vmem [thread:$0]  %s7, 16384, %s459, [#allocation16], 128, 128, 8
        $region36: #{tpu_custom_call.1} parent=11 // pred_fallthru
          _
        // Predicated region
        $region37: #{tpu_custom_call.1} parent=11 // pred_check
          %p465 = pneg %p233
        $region38: #{tpu_custom_call.1} parent=11 // pred_check_branch
          %467 = sbr.rel (%p465) target = $region40
        $region39: #{tpu_custom_call.1} parent=11 // pred_region
          %s469 = ssub.s32 32, 32
          %470 = vsyncadd [#allocation16], %s469
          %s472 = sshll.u32 [#allocation17], 4
          %s473 = int_to_ptr.vmem [resolvable:$true] %s472
          %475 = dma.hbm_to_vmem [thread:$0]  %s8, 32, %s473, [#allocation16]
        $region40: #{tpu_custom_call.1} parent=11 // pred_fallthru
          _
        // Predicated region
        $region41: #{tpu_custom_call.1} parent=11 // pred_check
          %p476 = pneg %p254
        $region42: #{tpu_custom_call.1} parent=11 // pred_check_branch
          %478 = sbr.rel (%p476) target = $region44
        $region43: #{tpu_custom_call.1} parent=11 // pred_region
          %s480 = ssub.s32 4096, 4096
          %481 = vsyncadd [#allocation19], %s480
          %s482 = sshll.u32 [#allocation18], 4
          %s483 = int_to_ptr.vmem [resolvable:$true] %s482
          %488 = dma.hbm_to_vmem [thread:$0]  %s9, 4096, %s483, [#allocation19], 128, 128, 8
        $region44: #{tpu_custom_call.1} parent=11 // pred_fallthru
          _
        // Predicated region
        $region45: #{tpu_custom_call.1} parent=11 // pred_check
          %p489 = pneg %p275
        $region46: #{tpu_custom_call.1} parent=11 // pred_check_branch
          %491 = sbr.rel (%p489) target = $region48
        $region47: #{tpu_custom_call.1} parent=11 // pred_region
          %s493 = ssub.s32 32, 32
          %494 = vsyncadd [#allocation19], %s493
          %s496 = sshll.u32 [#allocation20], 4
          %s497 = int_to_ptr.vmem [resolvable:$true] %s496
          %499 = dma.hbm_to_vmem [thread:$0]  %s10, 32, %s497, [#allocation19]
        $region48: #{tpu_custom_call.1} parent=11 // pred_fallthru
          _
        // Predicated region
        $region49: #{tpu_custom_call.1} parent=11 // pred_check
          %p500 = pneg %p296
        $region50: #{tpu_custom_call.1} parent=11 // pred_check_branch
          %502 = sbr.rel (%p500) target = $region52
        $region51: #{tpu_custom_call.1} parent=11 // pred_region
          %s504 = ssub.s32 32, 32
          %505 = vsyncadd [#allocation22], %s504
          %s507 = sshll.u32 [#allocation21], 4
          %s508 = int_to_ptr.vmem [resolvable:$true] %s507
          %510 = dma.hbm_to_vmem [thread:$0]  %s11, 32, %s508, [#allocation22]
        $region52: #{tpu_custom_call.1} parent=11 // pred_fallthru
          _
        // Predicated region
        $region53: #{tpu_custom_call.1} parent=11 // pred_check
          %p511 = pneg %p317
        $region54: #{tpu_custom_call.1} parent=11 // pred_check_branch
          %513 = sbr.rel (%p511) target = $region56
        $region55: #{tpu_custom_call.1} parent=11 // pred_region
          %s515 = ssub.s32 32, 32
          %516 = vsyncadd [#allocation22], %s515
          %s518 = sshll.u32 [#allocation23], 4
          %s519 = int_to_ptr.vmem [resolvable:$true] %s518
          %521 = dma.hbm_to_vmem [thread:$0]  %s12, 32, %s519, [#allocation22]
        $region56: #{tpu_custom_call.1} parent=11 // pred_fallthru
          _
        // Predicated region
        $region57: #{tpu_custom_call.1} parent=11 // pred_check
          %p522 = pneg %p338
        $region58: #{tpu_custom_call.1} parent=11 // pred_check_branch
          %524 = sbr.rel (%p522) target = $region60
        $region59: #{tpu_custom_call.1} parent=11 // pred_region
          %s526 = ssub.s32 2048, 2048
          %527 = vsyncadd [#allocation25], %s526
          %s528 = sshll.u32 [#allocation24], 4
          %s529 = int_to_ptr.vmem [resolvable:$true] %s528
          %534 = dma.hbm_to_vmem [thread:$0]  %s13, 2048, %s529, [#allocation25], 64, 64, 4
        $region60: #{tpu_custom_call.1} parent=11 // pred_fallthru
          _
        // Predicated region
        $region61: #{tpu_custom_call.1} parent=11 // pred_check
          %p535 = pneg %p359
        $region62: #{tpu_custom_call.1} parent=11 // pred_check_branch
          %537 = sbr.rel (%p535) target = $region64
        $region63: #{tpu_custom_call.1} parent=11 // pred_region
          %s539 = ssub.s32 16, 16
          %540 = vsyncadd [#allocation25], %s539
          %s542 = sshll.u32 [#allocation26], 4
          %s543 = int_to_ptr.vmem [resolvable:$true] %s542
          %545 = dma.hbm_to_vmem [thread:$0]  %s14, 16, %s543, [#allocation25]
        $region64: #{tpu_custom_call.1} parent=11 // pred_fallthru
          _
      $region12: #{tpu_custom_call.1} parent=5 // pred_fallthru
        _
      %p546 = scmp.lt.s32.totalorder %s34, 4
      // Predicated region
      $region65: #{tpu_custom_call.1} parent=5 // pred_check
        %p547 = pneg %p546
      $region66: #{tpu_custom_call.1} parent=5 // pred_check_branch
        %549 = sbr.rel (%p547) target = $region68
      $region67: #{tpu_custom_call.1} parent=5 // pred_region
        // Predicated region
        $region69: #{tpu_custom_call.1} parent=67 // pred_check
          %p550 = pneg %p54
        $region70: #{tpu_custom_call.1} parent=67 // pred_check_branch
          %552 = sbr.rel (%p550) target = $region72
        $region71: #{tpu_custom_call.1} parent=67 // pred_region
          %s553 = sand.u32 %s44, 1
          %s554 = scalar_lea.sflag [#allocation4], %s553
          %s555 = sand.u32 %s44, 1
          %s556 = smul.addr %s555, 16
          %s557 = scalar_lea.vmem [#allocation3], %s556
          %s558 = smul.u32 4, %s34
          %s560 = ssub.s32 256, 256
          %561 = vsyncadd %s554, %s560
          %s562 = smul.addr %s558, 64
          %s563 = scalar_lea.hbm %s0, %s562
          %s565 = sshll.u32 %s557, 4
          %s566 = int_to_ptr.vmem [resolvable:$true] %s565
          %568 = dma.hbm_to_vmem [thread:$0]  %s563, 256, %s566, %s554
        $region72: #{tpu_custom_call.1} parent=67 // pred_fallthru
          _
        // Predicated region
        $region73: #{tpu_custom_call.1} parent=67 // pred_check
          %p569 = pneg %p80
        $region74: #{tpu_custom_call.1} parent=67 // pred_check_branch
          %571 = sbr.rel (%p569) target = $region76
        $region75: #{tpu_custom_call.1} parent=67 // pred_region
          %s572 = sand.u32 %s34, 1
          %s573 = scalar_lea.sflag [#allocation7], %s572
          %s574 = sand.u32 %s70, 1
          %s575 = smul.addr %s574, 2048
          %s576 = scalar_lea.vmem [#allocation6], %s575
          %s577 = smul.u32 64, %s34
          %s579 = ssub.s32 32768, 32768
          %580 = vsyncadd %s573, %s579
          %s581 = smul.addr %s577, 8
          %s582 = smul.addr %s581, 64
          %s583 = scalar_lea.hbm %s1, %s582
          %s584 = sshll.u32 %s576, 4
          %s585 = int_to_ptr.vmem [resolvable:$true] %s584
          %590 = dma.hbm_to_vmem [thread:$0]  %s583, 32768, %s585, %s573, 512, 512, 32
        $region76: #{tpu_custom_call.1} parent=67 // pred_fallthru
          _
      $region68: #{tpu_custom_call.1} parent=5 // pred_fallthru
        _
      %p591 = scmp.le.s32.totalorder 1, %s34
      %p592 = scmp.lt.s32.totalorder %s34, 5
      %p593 = pnand %p591, %p592
      %p594 = pneg %p593
      // Predicated region
      $region77: #{tpu_custom_call.1} parent=5 // pred_check
        _
      $region78: #{tpu_custom_call.1} parent=5 // pred_check_branch
        %596 = sbr.rel (%p593) target = $region80
      $region79: #{tpu_custom_call.1} parent=5 // pred_region
        %s597 = ssub.s32 %s34, 1
        %s598 = sand.u32 %s47, 1
        %s599 = scalar_lea.sflag [#allocation4], %s598
        %s600 = sand.u32 %s47, 1
        %s601 = smul.addr %s600, 16
        %s602 = scalar_lea.vmem [#allocation3], %s601
        // Predicated region
        $region81: #{tpu_custom_call.1} parent=79 // pred_check
          %p603 = pneg %p60
        $region82: #{tpu_custom_call.1} parent=79 // pred_check_branch
          %605 = sbr.rel (%p603) target = $region84
        $region83: #{tpu_custom_call.1} parent=79 // pred_region
          %606 = dma.done %s599, 256
        $region84: #{tpu_custom_call.1} parent=79 // pred_fallthru
          _
        %s607 = sand.u32 %s39, 1
        %s608 = scalar_lea.sflag [#allocation7], %s607
        %s609 = sand.u32 %s73, 1
        %s610 = smul.addr %s609, 2048
        %s611 = scalar_lea.vmem [#allocation6], %s610
        // Predicated region
        $region85: #{tpu_custom_call.1} parent=79 // pred_check
          %p612 = pneg %p86
        $region86: #{tpu_custom_call.1} parent=79 // pred_check_branch
          %614 = sbr.rel (%p612) target = $region88
        $region87: #{tpu_custom_call.1} parent=79 // pred_region
          %615 = dma.done %s608, 32768
        $region88: #{tpu_custom_call.1} parent=79 // pred_fallthru
          _
        // Predicated region
        $region89: #{tpu_custom_call.1} parent=79 // pred_check
          %p616 = pneg %p107
        $region90: #{tpu_custom_call.1} parent=79 // pred_check_branch
          %618 = sbr.rel (%p616) target = $region92
        $region91: #{tpu_custom_call.1} parent=79 // pred_region
          %619 = dma.done [#allocation7], 128
        $region92: #{tpu_custom_call.1} parent=79 // pred_fallthru
          _
        // Predicated region
        $region93: #{tpu_custom_call.1} parent=79 // pred_check
          %p620 = pneg %p128
        $region94: #{tpu_custom_call.1} parent=79 // pred_check_branch
          %622 = sbr.rel (%p620) target = $region96
        $region95: #{tpu_custom_call.1} parent=79 // pred_region
          %623 = dma.done [#allocation10], 65536
        $region96: #{tpu_custom_call.1} parent=79 // pred_fallthru
          _
        // Predicated region
        $region97: #{tpu_custom_call.1} parent=79 // pred_check
          %p624 = pneg %p149
        $region98: #{tpu_custom_call.1} parent=79 // pred_check_branch
          %626 = sbr.rel (%p624) target = $region100
        $region99: #{tpu_custom_call.1} parent=79 // pred_region
          %627 = dma.done [#allocation10], 128
        $region100: #{tpu_custom_call.1} parent=79 // pred_fallthru
          _
        // Predicated region
        $region101: #{tpu_custom_call.1} parent=79 // pred_check
          %p628 = pneg %p170
        $region102: #{tpu_custom_call.1} parent=79 // pred_check_branch
          %630 = sbr.rel (%p628) target = $region104
        $region103: #{tpu_custom_call.1} parent=79 // pred_region
          %631 = dma.done [#allocation13], 128
        $region104: #{tpu_custom_call.1} parent=79 // pred_fallthru
          _
        // Predicated region
        $region105: #{tpu_custom_call.1} parent=79 // pred_check
          %p632 = pneg %p191
        $region106: #{tpu_custom_call.1} parent=79 // pred_check_branch
          %634 = sbr.rel (%p632) target = $region108
        $region107: #{tpu_custom_call.1} parent=79 // pred_region
          %635 = dma.done [#allocation13], 128
        $region108: #{tpu_custom_call.1} parent=79 // pred_fallthru
          _
        // Predicated region
        $region109: #{tpu_custom_call.1} parent=79 // pred_check
          %p636 = pneg %p212
        $region110: #{tpu_custom_call.1} parent=79 // pred_check_branch
          %638 = sbr.rel (%p636) target = $region112
        $region111: #{tpu_custom_call.1} parent=79 // pred_region
          %639 = dma.done [#allocation16], 16384
        $region112: #{tpu_custom_call.1} parent=79 // pred_fallthru
          _
        // Predicated region
        $region113: #{tpu_custom_call.1} parent=79 // pred_check
          %p640 = pneg %p233
        $region114: #{tpu_custom_call.1} parent=79 // pred_check_branch
          %642 = sbr.rel (%p640) target = $region116
        $region115: #{tpu_custom_call.1} parent=79 // pred_region
          %643 = dma.done [#allocation16], 32
        $region116: #{tpu_custom_call.1} parent=79 // pred_fallthru
          _
        // Predicated region
        $region117: #{tpu_custom_call.1} parent=79 // pred_check
          %p644 = pneg %p254
        $region118: #{tpu_custom_call.1} parent=79 // pred_check_branch
          %646 = sbr.rel (%p644) target = $region120
        $region119: #{tpu_custom_call.1} parent=79 // pred_region
          %647 = dma.done [#allocation19], 4096
        $region120: #{tpu_custom_call.1} parent=79 // pred_fallthru
          _
        // Predicated region
        $region121: #{tpu_custom_call.1} parent=79 // pred_check
          %p648 = pneg %p275
        $region122: #{tpu_custom_call.1} parent=79 // pred_check_branch
          %650 = sbr.rel (%p648) target = $region124
        $region123: #{tpu_custom_call.1} parent=79 // pred_region
          %651 = dma.done [#allocation19], 32
        $region124: #{tpu_custom_call.1} parent=79 // pred_fallthru
          _
        // Predicated region
        $region125: #{tpu_custom_call.1} parent=79 // pred_check
          %p652 = pneg %p296
        $region126: #{tpu_custom_call.1} parent=79 // pred_check_branch
          %654 = sbr.rel (%p652) target = $region128
        $region127: #{tpu_custom_call.1} parent=79 // pred_region
          %655 = dma.done [#allocation22], 32
        $region128: #{tpu_custom_call.1} parent=79 // pred_fallthru
          _
        // Predicated region
        $region129: #{tpu_custom_call.1} parent=79 // pred_check
          %p656 = pneg %p317
        $region130: #{tpu_custom_call.1} parent=79 // pred_check_branch
          %658 = sbr.rel (%p656) target = $region132
        $region131: #{tpu_custom_call.1} parent=79 // pred_region
          %659 = dma.done [#allocation22], 32
        $region132: #{tpu_custom_call.1} parent=79 // pred_fallthru
          _
        // Predicated region
        $region133: #{tpu_custom_call.1} parent=79 // pred_check
          %p660 = pneg %p338
        $region134: #{tpu_custom_call.1} parent=79 // pred_check_branch
          %662 = sbr.rel (%p660) target = $region136
        $region135: #{tpu_custom_call.1} parent=79 // pred_region
          %663 = dma.done [#allocation25], 2048
        $region136: #{tpu_custom_call.1} parent=79 // pred_fallthru
          _
        // Predicated region
        $region137: #{tpu_custom_call.1} parent=79 // pred_check
          %p664 = pneg %p359
        $region138: #{tpu_custom_call.1} parent=79 // pred_check_branch
          %666 = sbr.rel (%p664) target = $region140
        $region139: #{tpu_custom_call.1} parent=79 // pred_region
          %667 = dma.done [#allocation25], 16
        $region140: #{tpu_custom_call.1} parent=79 // pred_fallthru
          _
        %s668 = sand.u32 %s47, 1
        %s669 = scalar_lea.sflag [#allocation4], %s668
        %s670 = sand.u32 %s47, 1
        %s671 = smul.addr %s670, 16
        %s672 = scalar_lea.vmem [#allocation3], %s671
        %p673 = pneg %p60
        %p674 = pneg %p57
        %s675 = sand.u32 %s39, 1
        %s676 = scalar_lea.sflag [#allocation7], %s675
        %s677 = sand.u32 %s73, 1
        %s678 = smul.addr %s677, 2048
        %s679 = scalar_lea.vmem [#allocation6], %s678
        %p680 = pneg %p86
        %p681 = pneg %p83
        %p682 = pneg %p107
        %p683 = pneg %p104
        %p684 = pneg %p128
        %p685 = pneg %p125
        %p686 = pneg %p149
        %p687 = pneg %p146
        %p688 = pneg %p170
        %p689 = pneg %p167
        %p690 = pneg %p191
        %p691 = pneg %p188
        %p692 = pneg %p212
        %p693 = pneg %p209
        %p694 = pneg %p233
        %p695 = pneg %p230
        %p696 = pneg %p254
        %p697 = pneg %p251
        %p698 = pneg %p275
        %p699 = pneg %p272
        %p700 = pneg %p296
        %p701 = pneg %p293
        %p702 = pneg %p317
        %p703 = pneg %p314
        %p704 = pneg %p338
        %p705 = pneg %p335
        %p706 = pneg %p359
        %p707 = pneg %p356
        %p708 = pneg %p380
        %p709 = pneg %p377
        %s710 = smul.u32 4, %s39
        %s711 = smul.u32 64, %s39
        %p713 = scmp.eq.s32.totalorder %s39, 0
        // Predicated region
        $region141: #{tpu_custom_call.1} parent=79 // pred_check
          %p714 = pneg %p713
        $region142: #{tpu_custom_call.1} parent=79 // pred_check_branch
          %716 = sbr.rel (%p714) target = $region144
        $region143: #{tpu_custom_call.1} parent=79 // pred_region
          %717 = vst [vmem:[#allocation2] sm:$0xff] 0.0
          %718 = vst [vmem:[#allocation2 + $0x8] sm:$0xff] 0.0
          %719 = vst [vmem:[#allocation2 + $0x10] sm:$0xff] 0.0
          %720 = vst [vmem:[#allocation2 + $0x18] sm:$0xff] 0.0
          %721 = vst [vmem:[#allocation2 + $0x20] sm:$0xff] 0.0
          %722 = vst [vmem:[#allocation2 + $0x28] sm:$0xff] 0.0
          %723 = vst [vmem:[#allocation2 + $0x30] sm:$0xff] 0.0
          %724 = vst [vmem:[#allocation2 + $0x38] sm:$0xff] 0.0
        $region144: #{tpu_custom_call.1} parent=79 // pred_fallthru
          _
        %v725 = vld [vmem:[#allocation2] sm:$0xff]
        %v726 = vld [vmem:[#allocation2 + $0x8] sm:$0xff]
        %v727 = vld [vmem:[#allocation2 + $0x10] sm:$0xff]
        %v728 = vld [vmem:[#allocation2 + $0x18] sm:$0xff]
        %v729 = vld [vmem:[#allocation2 + $0x20] sm:$0xff]
        %v730 = vld [vmem:[#allocation2 + $0x28] sm:$0xff]
        %v731 = vld [vmem:[#allocation2 + $0x30] sm:$0xff]
        %v732 = vld [vmem:[#allocation2 + $0x38] sm:$0xff]
        %v733 = vld [vmem:[%s602] sm:$0xff]
        %v734 = vld [vmem:[%s602 + $0x8] sm:$0xff]
        %v735 = vld [vmem:[%s611] sm:$0xff]
        %v736 = vld [vmem:[%s611 + $0x8] sm:$0xff]
        %v737 = vld [vmem:[%s611 + $0x10] sm:$0xff]
        %v738 = vld [vmem:[%s611 + $0x18] sm:$0xff]
        %v739 = vld [vmem:[%s611 + $0x20] sm:$0xff]
        %v740 = vld [vmem:[%s611 + $0x28] sm:$0xff]
        %v741 = vld [vmem:[%s611 + $0x30] sm:$0xff]
        %v742 = vld [vmem:[%s611 + $0x38] sm:$0xff]
        %v743 = vld [vmem:[%s611 + $0x40] sm:$0xff]
        %v744 = vld [vmem:[%s611 + $0x48] sm:$0xff]
        %v745 = vld [vmem:[%s611 + $0x50] sm:$0xff]
        %v746 = vld [vmem:[%s611 + $0x58] sm:$0xff]
        %v747 = vld [vmem:[%s611 + $0x60] sm:$0xff]
        %v748 = vld [vmem:[%s611 + $0x68] sm:$0xff]
        %v749 = vld [vmem:[%s611 + $0x70] sm:$0xff]
        %v750 = vld [vmem:[%s611 + $0x78] sm:$0xff]
        %v751 = vld [vmem:[%s611 + $0x80] sm:$0xff]
        %v752 = vld [vmem:[%s611 + $0x88] sm:$0xff]
        %v753 = vld [vmem:[%s611 + $0x90] sm:$0xff]
        %v754 = vld [vmem:[%s611 + $0x98] sm:$0xff]
        %v755 = vld [vmem:[%s611 + $0xa0] sm:$0xff]
        %v756 = vld [vmem:[%s611 + $0xa8] sm:$0xff]
        %v757 = vld [vmem:[%s611 + $0xb0] sm:$0xff]
        %v758 = vld [vmem:[%s611 + $0xb8] sm:$0xff]
        %v759 = vld [vmem:[%s611 + $0xc0] sm:$0xff]
        %v760 = vld [vmem:[%s611 + $0xc8] sm:$0xff]
        %v761 = vld [vmem:[%s611 + $0xd0] sm:$0xff]
        %v762 = vld [vmem:[%s611 + $0xd8] sm:$0xff]
        %v763 = vld [vmem:[%s611 + $0xe0] sm:$0xff]
        %v764 = vld [vmem:[%s611 + $0xe8] sm:$0xff]
        %v765 = vld [vmem:[%s611 + $0xf0] sm:$0xff]
        %v766 = vld [vmem:[%s611 + $0xf8] sm:$0xff]
        %v767 = vld [vmem:[%s611 + $0x100] sm:$0xff]
        %v768 = vld [vmem:[%s611 + $0x108] sm:$0xff]
        %v769 = vld [vmem:[%s611 + $0x110] sm:$0xff]
        %v770 = vld [vmem:[%s611 + $0x118] sm:$0xff]
        %v771 = vld [vmem:[%s611 + $0x120] sm:$0xff]
        %v772 = vld [vmem:[%s611 + $0x128] sm:$0xff]
        %v773 = vld [vmem:[%s611 + $0x130] sm:$0xff]
        %v774 = vld [vmem:[%s611 + $0x138] sm:$0xff]
        %v775 = vld [vmem:[%s611 + $0x140] sm:$0xff]
        %v776 = vld [vmem:[%s611 + $0x148] sm:$0xff]
        %v777 = vld [vmem:[%s611 + $0x150] sm:$0xff]
        %v778 = vld [vmem:[%s611 + $0x158] sm:$0xff]
        %v779 = vld [vmem:[%s611 + $0x160] sm:$0xff]
        %v780 = vld [vmem:[%s611 + $0x168] sm:$0xff]
        %v781 = vld [vmem:[%s611 + $0x170] sm:$0xff]
        %v782 = vld [vmem:[%s611 + $0x178] sm:$0xff]
        %v783 = vld [vmem:[%s611 + $0x180] sm:$0xff]
        %v784 = vld [vmem:[%s611 + $0x188] sm:$0xff]
        %v785 = vld [vmem:[%s611 + $0x190] sm:$0xff]
        %v786 = vld [vmem:[%s611 + $0x198] sm:$0xff]
        %v787 = vld [vmem:[%s611 + $0x1a0] sm:$0xff]
        %v788 = vld [vmem:[%s611 + $0x1a8] sm:$0xff]
        %v789 = vld [vmem:[%s611 + $0x1b0] sm:$0xff]
        %v790 = vld [vmem:[%s611 + $0x1b8] sm:$0xff]
        %v791 = vld [vmem:[%s611 + $0x1c0] sm:$0xff]
        %v792 = vld [vmem:[%s611 + $0x1c8] sm:$0xff]
        %v793 = vld [vmem:[%s611 + $0x1d0] sm:$0xff]
        %v794 = vld [vmem:[%s611 + $0x1d8] sm:$0xff]
        %v795 = vld [vmem:[%s611 + $0x1e0] sm:$0xff]
        %v796 = vld [vmem:[%s611 + $0x1e8] sm:$0xff]
        %v797 = vld [vmem:[%s611 + $0x1f0] sm:$0xff]
        %v798 = vld [vmem:[%s611 + $0x1f8] sm:$0xff]
        %v799 = vld [vmem:[%s611 + $0x200] sm:$0xff]
        %v800 = vld [vmem:[%s611 + $0x208] sm:$0xff]
        %v801 = vld [vmem:[%s611 + $0x210] sm:$0xff]
        %v802 = vld [vmem:[%s611 + $0x218] sm:$0xff]
        %v803 = vld [vmem:[%s611 + $0x220] sm:$0xff]
        %v804 = vld [vmem:[%s611 + $0x228] sm:$0xff]
        %v805 = vld [vmem:[%s611 + $0x230] sm:$0xff]
        %v806 = vld [vmem:[%s611 + $0x238] sm:$0xff]
        %v807 = vld [vmem:[%s611 + $0x240] sm:$0xff]
        %v808 = vld [vmem:[%s611 + $0x248] sm:$0xff]
        %v809 = vld [vmem:[%s611 + $0x250] sm:$0xff]
        %v810 = vld [vmem:[%s611 + $0x258] sm:$0xff]
        %v811 = vld [vmem:[%s611 + $0x260] sm:$0xff]
        %v812 = vld [vmem:[%s611 + $0x268] sm:$0xff]
        %v813 = vld [vmem:[%s611 + $0x270] sm:$0xff]
        %v814 = vld [vmem:[%s611 + $0x278] sm:$0xff]
        %v815 = vld [vmem:[%s611 + $0x280] sm:$0xff]
        %v816 = vld [vmem:[%s611 + $0x288] sm:$0xff]
        %v817 = vld [vmem:[%s611 + $0x290] sm:$0xff]
        %v818 = vld [vmem:[%s611 + $0x298] sm:$0xff]
        %v819 = vld [vmem:[%s611 + $0x2a0] sm:$0xff]
        %v820 = vld [vmem:[%s611 + $0x2a8] sm:$0xff]
        %v821 = vld [vmem:[%s611 + $0x2b0] sm:$0xff]
        %v822 = vld [vmem:[%s611 + $0x2b8] sm:$0xff]
        %v823 = vld [vmem:[%s611 + $0x2c0] sm:$0xff]
        %v824 = vld [vmem:[%s611 + $0x2c8] sm:$0xff]
        %v825 = vld [vmem:[%s611 + $0x2d0] sm:$0xff]
        %v826 = vld [vmem:[%s611 + $0x2d8] sm:$0xff]
        %v827 = vld [vmem:[%s611 + $0x2e0] sm:$0xff]
        %v828 = vld [vmem:[%s611 + $0x2e8] sm:$0xff]
        %v829 = vld [vmem:[%s611 + $0x2f0] sm:$0xff]
        %v830 = vld [vmem:[%s611 + $0x2f8] sm:$0xff]
        %v831 = vld [vmem:[%s611 + $0x300] sm:$0xff]
        %v832 = vld [vmem:[%s611 + $0x308] sm:$0xff]
        %v833 = vld [vmem:[%s611 + $0x310] sm:$0xff]
        %v834 = vld [vmem:[%s611 + $0x318] sm:$0xff]
        %v835 = vld [vmem:[%s611 + $0x320] sm:$0xff]
        %v836 = vld [vmem:[%s611 + $0x328] sm:$0xff]
        %v837 = vld [vmem:[%s611 + $0x330] sm:$0xff]
        %v838 = vld [vmem:[%s611 + $0x338] sm:$0xff]
        %v839 = vld [vmem:[%s611 + $0x340] sm:$0xff]
        %v840 = vld [vmem:[%s611 + $0x348] sm:$0xff]
        %v841 = vld [vmem:[%s611 + $0x350] sm:$0xff]
        %v842 = vld [vmem:[%s611 + $0x358] sm:$0xff]
        %v843 = vld [vmem:[%s611 + $0x360] sm:$0xff]
        %v844 = vld [vmem:[%s611 + $0x368] sm:$0xff]
        %v845 = vld [vmem:[%s611 + $0x370] sm:$0xff]
        %v846 = vld [vmem:[%s611 + $0x378] sm:$0xff]
        %v847 = vld [vmem:[%s611 + $0x380] sm:$0xff]
        %v848 = vld [vmem:[%s611 + $0x388] sm:$0xff]
        %v849 = vld [vmem:[%s611 + $0x390] sm:$0xff]
        %v850 = vld [vmem:[%s611 + $0x398] sm:$0xff]
        %v851 = vld [vmem:[%s611 + $0x3a0] sm:$0xff]
        %v852 = vld [vmem:[%s611 + $0x3a8] sm:$0xff]
        %v853 = vld [vmem:[%s611 + $0x3b0] sm:$0xff]
        %v854 = vld [vmem:[%s611 + $0x3b8] sm:$0xff]
        %v855 = vld [vmem:[%s611 + $0x3c0] sm:$0xff]
        %v856 = vld [vmem:[%s611 + $0x3c8] sm:$0xff]
        %v857 = vld [vmem:[%s611 + $0x3d0] sm:$0xff]
        %v858 = vld [vmem:[%s611 + $0x3d8] sm:$0xff]
        %v859 = vld [vmem:[%s611 + $0x3e0] sm:$0xff]
        %v860 = vld [vmem:[%s611 + $0x3e8] sm:$0xff]
        %v861 = vld [vmem:[%s611 + $0x3f0] sm:$0xff]
        %v862 = vld [vmem:[%s611 + $0x3f8] sm:$0xff]
        %v863 = vld [vmem:[%s611 + $0x400] sm:$0xff]
        %v864 = vld [vmem:[%s611 + $0x408] sm:$0xff]
        %v865 = vld [vmem:[%s611 + $0x410] sm:$0xff]
        %v866 = vld [vmem:[%s611 + $0x418] sm:$0xff]
        %v867 = vld [vmem:[%s611 + $0x420] sm:$0xff]
        %v868 = vld [vmem:[%s611 + $0x428] sm:$0xff]
        %v869 = vld [vmem:[%s611 + $0x430] sm:$0xff]
        %v870 = vld [vmem:[%s611 + $0x438] sm:$0xff]
        %v871 = vld [vmem:[%s611 + $0x440] sm:$0xff]
        %v872 = vld [vmem:[%s611 + $0x448] sm:$0xff]
        %v873 = vld [vmem:[%s611 + $0x450] sm:$0xff]
        %v874 = vld [vmem:[%s611 + $0x458] sm:$0xff]
        %v875 = vld [vmem:[%s611 + $0x460] sm:$0xff]
        %v876 = vld [vmem:[%s611 + $0x468] sm:$0xff]
        %v877 = vld [vmem:[%s611 + $0x470] sm:$0xff]
        %v878 = vld [vmem:[%s611 + $0x478] sm:$0xff]
        %v879 = vld [vmem:[%s611 + $0x480] sm:$0xff]
        %v880 = vld [vmem:[%s611 + $0x488] sm:$0xff]
        %v881 = vld [vmem:[%s611 + $0x490] sm:$0xff]
        %v882 = vld [vmem:[%s611 + $0x498] sm:$0xff]
        %v883 = vld [vmem:[%s611 + $0x4a0] sm:$0xff]
        %v884 = vld [vmem:[%s611 + $0x4a8] sm:$0xff]
        %v885 = vld [vmem:[%s611 + $0x4b0] sm:$0xff]
        %v886 = vld [vmem:[%s611 + $0x4b8] sm:$0xff]
        %v887 = vld [vmem:[%s611 + $0x4c0] sm:$0xff]
        %v888 = vld [vmem:[%s611 + $0x4c8] sm:$0xff]
        %v889 = vld [vmem:[%s611 + $0x4d0] sm:$0xff]
        %v890 = vld [vmem:[%s611 + $0x4d8] sm:$0xff]
        %v891 = vld [vmem:[%s611 + $0x4e0] sm:$0xff]
        %v892 = vld [vmem:[%s611 + $0x4e8] sm:$0xff]
        %v893 = vld [vmem:[%s611 + $0x4f0] sm:$0xff]
        %v894 = vld [vmem:[%s611 + $0x4f8] sm:$0xff]
        %v895 = vld [vmem:[%s611 + $0x500] sm:$0xff]
        %v896 = vld [vmem:[%s611 + $0x508] sm:$0xff]
        %v897 = vld [vmem:[%s611 + $0x510] sm:$0xff]
        %v898 = vld [vmem:[%s611 + $0x518] sm:$0xff]
        %v899 = vld [vmem:[%s611 + $0x520] sm:$0xff]
        %v900 = vld [vmem:[%s611 + $0x528] sm:$0xff]
        %v901 = vld [vmem:[%s611 + $0x530] sm:$0xff]
        %v902 = vld [vmem:[%s611 + $0x538] sm:$0xff]
        %v903 = vld [vmem:[%s611 + $0x540] sm:$0xff]
        %v904 = vld [vmem:[%s611 + $0x548] sm:$0xff]
        %v905 = vld [vmem:[%s611 + $0x550] sm:$0xff]
        %v906 = vld [vmem:[%s611 + $0x558] sm:$0xff]
        %v907 = vld [vmem:[%s611 + $0x560] sm:$0xff]
        %v908 = vld [vmem:[%s611 + $0x568] sm:$0xff]
        %v909 = vld [vmem:[%s611 + $0x570] sm:$0xff]
        %v910 = vld [vmem:[%s611 + $0x578] sm:$0xff]
        %v911 = vld [vmem:[%s611 + $0x580] sm:$0xff]
        %v912 = vld [vmem:[%s611 + $0x588] sm:$0xff]
        %v913 = vld [vmem:[%s611 + $0x590] sm:$0xff]
        %v914 = vld [vmem:[%s611 + $0x598] sm:$0xff]
        %v915 = vld [vmem:[%s611 + $0x5a0] sm:$0xff]
        %v916 = vld [vmem:[%s611 + $0x5a8] sm:$0xff]
        %v917 = vld [vmem:[%s611 + $0x5b0] sm:$0xff]
        %v918 = vld [vmem:[%s611 + $0x5b8] sm:$0xff]
        %v919 = vld [vmem:[%s611 + $0x5c0] sm:$0xff]
        %v920 = vld [vmem:[%s611 + $0x5c8] sm:$0xff]
        %v921 = vld [vmem:[%s611 + $0x5d0] sm:$0xff]
        %v922 = vld [vmem:[%s611 + $0x5d8] sm:$0xff]
        %v923 = vld [vmem:[%s611 + $0x5e0] sm:$0xff]
        %v924 = vld [vmem:[%s611 + $0x5e8] sm:$0xff]
        %v925 = vld [vmem:[%s611 + $0x5f0] sm:$0xff]
        %v926 = vld [vmem:[%s611 + $0x5f8] sm:$0xff]
        %v927 = vld [vmem:[%s611 + $0x600] sm:$0xff]
        %v928 = vld [vmem:[%s611 + $0x608] sm:$0xff]
        %v929 = vld [vmem:[%s611 + $0x610] sm:$0xff]
        %v930 = vld [vmem:[%s611 + $0x618] sm:$0xff]
        %v931 = vld [vmem:[%s611 + $0x620] sm:$0xff]
        %v932 = vld [vmem:[%s611 + $0x628] sm:$0xff]
        %v933 = vld [vmem:[%s611 + $0x630] sm:$0xff]
        %v934 = vld [vmem:[%s611 + $0x638] sm:$0xff]
        %v935 = vld [vmem:[%s611 + $0x640] sm:$0xff]
        %v936 = vld [vmem:[%s611 + $0x648] sm:$0xff]
        %v937 = vld [vmem:[%s611 + $0x650] sm:$0xff]
        %v938 = vld [vmem:[%s611 + $0x658] sm:$0xff]
        %v939 = vld [vmem:[%s611 + $0x660] sm:$0xff]
        %v940 = vld [vmem:[%s611 + $0x668] sm:$0xff]
        %v941 = vld [vmem:[%s611 + $0x670] sm:$0xff]
        %v942 = vld [vmem:[%s611 + $0x678] sm:$0xff]
        %v943 = vld [vmem:[%s611 + $0x680] sm:$0xff]
        %v944 = vld [vmem:[%s611 + $0x688] sm:$0xff]
        %v945 = vld [vmem:[%s611 + $0x690] sm:$0xff]
        %v946 = vld [vmem:[%s611 + $0x698] sm:$0xff]
        %v947 = vld [vmem:[%s611 + $0x6a0] sm:$0xff]
        %v948 = vld [vmem:[%s611 + $0x6a8] sm:$0xff]
        %v949 = vld [vmem:[%s611 + $0x6b0] sm:$0xff]
        %v950 = vld [vmem:[%s611 + $0x6b8] sm:$0xff]
        %v951 = vld [vmem:[%s611 + $0x6c0] sm:$0xff]
        %v952 = vld [vmem:[%s611 + $0x6c8] sm:$0xff]
        %v953 = vld [vmem:[%s611 + $0x6d0] sm:$0xff]
        %v954 = vld [vmem:[%s611 + $0x6d8] sm:$0xff]
        %v955 = vld [vmem:[%s611 + $0x6e0] sm:$0xff]
        %v956 = vld [vmem:[%s611 + $0x6e8] sm:$0xff]
        %v957 = vld [vmem:[%s611 + $0x6f0] sm:$0xff]
        %v958 = vld [vmem:[%s611 + $0x6f8] sm:$0xff]
        %v959 = vld [vmem:[%s611 + $0x700] sm:$0xff]
        %v960 = vld [vmem:[%s611 + $0x708] sm:$0xff]
        %v961 = vld [vmem:[%s611 + $0x710] sm:$0xff]
        %v962 = vld [vmem:[%s611 + $0x718] sm:$0xff]
        %v963 = vld [vmem:[%s611 + $0x720] sm:$0xff]
        %v964 = vld [vmem:[%s611 + $0x728] sm:$0xff]
        %v965 = vld [vmem:[%s611 + $0x730] sm:$0xff]
        %v966 = vld [vmem:[%s611 + $0x738] sm:$0xff]
        %v967 = vld [vmem:[%s611 + $0x740] sm:$0xff]
        %v968 = vld [vmem:[%s611 + $0x748] sm:$0xff]
        %v969 = vld [vmem:[%s611 + $0x750] sm:$0xff]
        %v970 = vld [vmem:[%s611 + $0x758] sm:$0xff]
        %v971 = vld [vmem:[%s611 + $0x760] sm:$0xff]
        %v972 = vld [vmem:[%s611 + $0x768] sm:$0xff]
        %v973 = vld [vmem:[%s611 + $0x770] sm:$0xff]
        %v974 = vld [vmem:[%s611 + $0x778] sm:$0xff]
        %v975 = vld [vmem:[%s611 + $0x780] sm:$0xff]
        %v976 = vld [vmem:[%s611 + $0x788] sm:$0xff]
        %v977 = vld [vmem:[%s611 + $0x790] sm:$0xff]
        %v978 = vld [vmem:[%s611 + $0x798] sm:$0xff]
        %v979 = vld [vmem:[%s611 + $0x7a0] sm:$0xff]
        %v980 = vld [vmem:[%s611 + $0x7a8] sm:$0xff]
        %v981 = vld [vmem:[%s611 + $0x7b0] sm:$0xff]
        %v982 = vld [vmem:[%s611 + $0x7b8] sm:$0xff]
        %v983 = vld [vmem:[%s611 + $0x7c0] sm:$0xff]
        %v984 = vld [vmem:[%s611 + $0x7c8] sm:$0xff]
        %v985 = vld [vmem:[%s611 + $0x7d0] sm:$0xff]
        %v986 = vld [vmem:[%s611 + $0x7d8] sm:$0xff]
        %v987 = vld [vmem:[%s611 + $0x7e0] sm:$0xff]
        %v988 = vld [vmem:[%s611 + $0x7e8] sm:$0xff]
        %v989 = vld [vmem:[%s611 + $0x7f0] sm:$0xff]
        %v990 = vld [vmem:[%s611 + $0x7f8] sm:$0xff]
        %v993 = vunpack.c.l.b16 %v733
        %v994 = vunpack.c.h.b16 %v733
        %v995 = vunpack.c.l.b16 %v734
        %v996 = vunpack.c.h.b16 %v734
        %v997 = vpack.c.b16 %v993, %v993
        %v998 = vpack.c.b16 %v994, %v994
        %v999 = vpack.c.b16 %v995, %v995
        %v1000 = vpack.c.b16 %v996, %v996
        %v1261 = vunpack.c.l.b16 %v735
        %v1262 = vunpack.c.h.b16 %v735
        %v1263 = vunpack.c.l.b16 %v736
        %v1264 = vunpack.c.h.b16 %v736
        %v1265 = vunpack.c.l.b16 %v737
        %v1266 = vunpack.c.h.b16 %v737
        %v1267 = vunpack.c.l.b16 %v738
        %v1268 = vunpack.c.h.b16 %v738
        %v1269 = vunpack.c.l.b16 %v739
        %v1270 = vunpack.c.h.b16 %v739
        %v1271 = vunpack.c.l.b16 %v740
        %v1272 = vunpack.c.h.b16 %v740
        %v1273 = vunpack.c.l.b16 %v741
        %v1274 = vunpack.c.h.b16 %v741
        %v1275 = vunpack.c.l.b16 %v742
        %v1276 = vunpack.c.h.b16 %v742
        %v1277 = vunpack.c.l.b16 %v743
        %v1278 = vunpack.c.h.b16 %v743
        %v1279 = vunpack.c.l.b16 %v744
        %v1280 = vunpack.c.h.b16 %v744
        %v1281 = vunpack.c.l.b16 %v745
        %v1282 = vunpack.c.h.b16 %v745
        %v1283 = vunpack.c.l.b16 %v746
        %v1284 = vunpack.c.h.b16 %v746
        %v1285 = vunpack.c.l.b16 %v747
        %v1286 = vunpack.c.h.b16 %v747
        %v1287 = vunpack.c.l.b16 %v748
        %v1288 = vunpack.c.h.b16 %v748
        %v1289 = vunpack.c.l.b16 %v749
        %v1290 = vunpack.c.h.b16 %v749
        %v1291 = vunpack.c.l.b16 %v750
        %v1292 = vunpack.c.h.b16 %v750
        %v1293 = vunpack.c.l.b16 %v751
        %v1294 = vunpack.c.h.b16 %v751
        %v1295 = vunpack.c.l.b16 %v752
        %v1296 = vunpack.c.h.b16 %v752
        %v1297 = vunpack.c.l.b16 %v753
        %v1298 = vunpack.c.h.b16 %v753
        %v1299 = vunpack.c.l.b16 %v754
        %v1300 = vunpack.c.h.b16 %v754
        %v1301 = vunpack.c.l.b16 %v755
        %v1302 = vunpack.c.h.b16 %v755
        %v1303 = vunpack.c.l.b16 %v756
        %v1304 = vunpack.c.h.b16 %v756
        %v1305 = vunpack.c.l.b16 %v757
        %v1306 = vunpack.c.h.b16 %v757
        %v1307 = vunpack.c.l.b16 %v758
        %v1308 = vunpack.c.h.b16 %v758
        %v1309 = vunpack.c.l.b16 %v759
        %v1310 = vunpack.c.h.b16 %v759
        %v1311 = vunpack.c.l.b16 %v760
        %v1312 = vunpack.c.h.b16 %v760
        %v1313 = vunpack.c.l.b16 %v761
        %v1314 = vunpack.c.h.b16 %v761
        %v1315 = vunpack.c.l.b16 %v762
        %v1316 = vunpack.c.h.b16 %v762
        %v1317 = vunpack.c.l.b16 %v763
        %v1318 = vunpack.c.h.b16 %v763
        %v1319 = vunpack.c.l.b16 %v764
        %v1320 = vunpack.c.h.b16 %v764
        %v1321 = vunpack.c.l.b16 %v765
        %v1322 = vunpack.c.h.b16 %v765
        %v1323 = vunpack.c.l.b16 %v766
        %v1324 = vunpack.c.h.b16 %v766
        %v1325 = vunpack.c.l.b16 %v767
        %v1326 = vunpack.c.h.b16 %v767
        %v1327 = vunpack.c.l.b16 %v768
        %v1328 = vunpack.c.h.b16 %v768
        %v1329 = vunpack.c.l.b16 %v769
        %v1330 = vunpack.c.h.b16 %v769
        %v1331 = vunpack.c.l.b16 %v770
        %v1332 = vunpack.c.h.b16 %v770
        %v1333 = vunpack.c.l.b16 %v771
        %v1334 = vunpack.c.h.b16 %v771
        %v1335 = vunpack.c.l.b16 %v772
        %v1336 = vunpack.c.h.b16 %v772
        %v1337 = vunpack.c.l.b16 %v773
        %v1338 = vunpack.c.h.b16 %v773
        %v1339 = vunpack.c.l.b16 %v774
        %v1340 = vunpack.c.h.b16 %v774
        %v1341 = vunpack.c.l.b16 %v775
        %v1342 = vunpack.c.h.b16 %v775
        %v1343 = vunpack.c.l.b16 %v776
        %v1344 = vunpack.c.h.b16 %v776
        %v1345 = vunpack.c.l.b16 %v777
        %v1346 = vunpack.c.h.b16 %v777
        %v1347 = vunpack.c.l.b16 %v778
        %v1348 = vunpack.c.h.b16 %v778
        %v1349 = vunpack.c.l.b16 %v779
        %v1350 = vunpack.c.h.b16 %v779
        %v1351 = vunpack.c.l.b16 %v780
        %v1352 = vunpack.c.h.b16 %v780
        %v1353 = vunpack.c.l.b16 %v781
        %v1354 = vunpack.c.h.b16 %v781
        %v1355 = vunpack.c.l.b16 %v782
        %v1356 = vunpack.c.h.b16 %v782
        %v1357 = vunpack.c.l.b16 %v783
        %v1358 = vunpack.c.h.b16 %v783
        %v1359 = vunpack.c.l.b16 %v784
        %v1360 = vunpack.c.h.b16 %v784
        %v1361 = vunpack.c.l.b16 %v785
        %v1362 = vunpack.c.h.b16 %v785
        %v1363 = vunpack.c.l.b16 %v786
        %v1364 = vunpack.c.h.b16 %v786
        %v1365 = vunpack.c.l.b16 %v787
        %v1366 = vunpack.c.h.b16 %v787
        %v1367 = vunpack.c.l.b16 %v788
        %v1368 = vunpack.c.h.b16 %v788
        %v1369 = vunpack.c.l.b16 %v789
        %v1370 = vunpack.c.h.b16 %v789
        %v1371 = vunpack.c.l.b16 %v790
        %v1372 = vunpack.c.h.b16 %v790
        %v1373 = vunpack.c.l.b16 %v791
        %v1374 = vunpack.c.h.b16 %v791
        %v1375 = vunpack.c.l.b16 %v792
        %v1376 = vunpack.c.h.b16 %v792
        %v1377 = vunpack.c.l.b16 %v793
        %v1378 = vunpack.c.h.b16 %v793
        %v1379 = vunpack.c.l.b16 %v794
        %v1380 = vunpack.c.h.b16 %v794
        %v1381 = vunpack.c.l.b16 %v795
        %v1382 = vunpack.c.h.b16 %v795
        %v1383 = vunpack.c.l.b16 %v796
        %v1384 = vunpack.c.h.b16 %v796
        %v1385 = vunpack.c.l.b16 %v797
        %v1386 = vunpack.c.h.b16 %v797
        %v1387 = vunpack.c.l.b16 %v798
        %v1388 = vunpack.c.h.b16 %v798
        %v1389 = vunpack.c.l.b16 %v799
        %v1390 = vunpack.c.h.b16 %v799
        %v1391 = vunpack.c.l.b16 %v800
        %v1392 = vunpack.c.h.b16 %v800
        %v1393 = vunpack.c.l.b16 %v801
        %v1394 = vunpack.c.h.b16 %v801
        %v1395 = vunpack.c.l.b16 %v802
        %v1396 = vunpack.c.h.b16 %v802
        %v1397 = vunpack.c.l.b16 %v803
        %v1398 = vunpack.c.h.b16 %v803
        %v1399 = vunpack.c.l.b16 %v804
        %v1400 = vunpack.c.h.b16 %v804
        %v1401 = vunpack.c.l.b16 %v805
        %v1402 = vunpack.c.h.b16 %v805
        %v1403 = vunpack.c.l.b16 %v806
        %v1404 = vunpack.c.h.b16 %v806
        %v1405 = vunpack.c.l.b16 %v807
        %v1406 = vunpack.c.h.b16 %v807
        %v1407 = vunpack.c.l.b16 %v808
        %v1408 = vunpack.c.h.b16 %v808
        %v1409 = vunpack.c.l.b16 %v809
        %v1410 = vunpack.c.h.b16 %v809
        %v1411 = vunpack.c.l.b16 %v810
        %v1412 = vunpack.c.h.b16 %v810
        %v1413 = vunpack.c.l.b16 %v811
        %v1414 = vunpack.c.h.b16 %v811
        %v1415 = vunpack.c.l.b16 %v812
        %v1416 = vunpack.c.h.b16 %v812
        %v1417 = vunpack.c.l.b16 %v813
        %v1418 = vunpack.c.h.b16 %v813
        %v1419 = vunpack.c.l.b16 %v814
        %v1420 = vunpack.c.h.b16 %v814
        %v1421 = vunpack.c.l.b16 %v815
        %v1422 = vunpack.c.h.b16 %v815
        %v1423 = vunpack.c.l.b16 %v816
        %v1424 = vunpack.c.h.b16 %v816
        %v1425 = vunpack.c.l.b16 %v817
        %v1426 = vunpack.c.h.b16 %v817
        %v1427 = vunpack.c.l.b16 %v818
        %v1428 = vunpack.c.h.b16 %v818
        %v1429 = vunpack.c.l.b16 %v819
        %v1430 = vunpack.c.h.b16 %v819
        %v1431 = vunpack.c.l.b16 %v820
        %v1432 = vunpack.c.h.b16 %v820
        %v1433 = vunpack.c.l.b16 %v821
        %v1434 = vunpack.c.h.b16 %v821
        %v1435 = vunpack.c.l.b16 %v822
        %v1436 = vunpack.c.h.b16 %v822
        %v1437 = vunpack.c.l.b16 %v823
        %v1438 = vunpack.c.h.b16 %v823
        %v1439 = vunpack.c.l.b16 %v824
        %v1440 = vunpack.c.h.b16 %v824
        %v1441 = vunpack.c.l.b16 %v825
        %v1442 = vunpack.c.h.b16 %v825
        %v1443 = vunpack.c.l.b16 %v826
        %v1444 = vunpack.c.h.b16 %v826
        %v1445 = vunpack.c.l.b16 %v827
        %v1446 = vunpack.c.h.b16 %v827
        %v1447 = vunpack.c.l.b16 %v828
        %v1448 = vunpack.c.h.b16 %v828
        %v1449 = vunpack.c.l.b16 %v829
        %v1450 = vunpack.c.h.b16 %v829
        %v1451 = vunpack.c.l.b16 %v830
        %v1452 = vunpack.c.h.b16 %v830
        %v1453 = vunpack.c.l.b16 %v831
        %v1454 = vunpack.c.h.b16 %v831
        %v1455 = vunpack.c.l.b16 %v832
        %v1456 = vunpack.c.h.b16 %v832
        %v1457 = vunpack.c.l.b16 %v833
        %v1458 = vunpack.c.h.b16 %v833
        %v1459 = vunpack.c.l.b16 %v834
        %v1460 = vunpack.c.h.b16 %v834
        %v1461 = vunpack.c.l.b16 %v835
        %v1462 = vunpack.c.h.b16 %v835
        %v1463 = vunpack.c.l.b16 %v836
        %v1464 = vunpack.c.h.b16 %v836
        %v1465 = vunpack.c.l.b16 %v837
        %v1466 = vunpack.c.h.b16 %v837
        %v1467 = vunpack.c.l.b16 %v838
        %v1468 = vunpack.c.h.b16 %v838
        %v1469 = vunpack.c.l.b16 %v839
        %v1470 = vunpack.c.h.b16 %v839
        %v1471 = vunpack.c.l.b16 %v840
        %v1472 = vunpack.c.h.b16 %v840
        %v1473 = vunpack.c.l.b16 %v841
        %v1474 = vunpack.c.h.b16 %v841
        %v1475 = vunpack.c.l.b16 %v842
        %v1476 = vunpack.c.h.b16 %v842
        %v1477 = vunpack.c.l.b16 %v843
        %v1478 = vunpack.c.h.b16 %v843
        %v1479 = vunpack.c.l.b16 %v844
        %v1480 = vunpack.c.h.b16 %v844
        %v1481 = vunpack.c.l.b16 %v845
        %v1482 = vunpack.c.h.b16 %v845
        %v1483 = vunpack.c.l.b16 %v846
        %v1484 = vunpack.c.h.b16 %v846
        %v1485 = vunpack.c.l.b16 %v847
        %v1486 = vunpack.c.h.b16 %v847
        %v1487 = vunpack.c.l.b16 %v848
        %v1488 = vunpack.c.h.b16 %v848
        %v1489 = vunpack.c.l.b16 %v849
        %v1490 = vunpack.c.h.b16 %v849
        %v1491 = vunpack.c.l.b16 %v850
        %v1492 = vunpack.c.h.b16 %v850
        %v1493 = vunpack.c.l.b16 %v851
        %v1494 = vunpack.c.h.b16 %v851
        %v1495 = vunpack.c.l.b16 %v852
        %v1496 = vunpack.c.h.b16 %v852
        %v1497 = vunpack.c.l.b16 %v853
        %v1498 = vunpack.c.h.b16 %v853
        %v1499 = vunpack.c.l.b16 %v854
        %v1500 = vunpack.c.h.b16 %v854
        %v1501 = vunpack.c.l.b16 %v855
        %v1502 = vunpack.c.h.b16 %v855
        %v1503 = vunpack.c.l.b16 %v856
        %v1504 = vunpack.c.h.b16 %v856
        %v1505 = vunpack.c.l.b16 %v857
        %v1506 = vunpack.c.h.b16 %v857
        %v1507 = vunpack.c.l.b16 %v858
        %v1508 = vunpack.c.h.b16 %v858
        %v1509 = vunpack.c.l.b16 %v859
        %v1510 = vunpack.c.h.b16 %v859
        %v1511 = vunpack.c.l.b16 %v860
        %v1512 = vunpack.c.h.b16 %v860
        %v1513 = vunpack.c.l.b16 %v861
        %v1514 = vunpack.c.h.b16 %v861
        %v1515 = vunpack.c.l.b16 %v862
        %v1516 = vunpack.c.h.b16 %v862
        %v1517 = vunpack.c.l.b16 %v863
        %v1518 = vunpack.c.h.b16 %v863
        %v1519 = vunpack.c.l.b16 %v864
        %v1520 = vunpack.c.h.b16 %v864
        %v1521 = vunpack.c.l.b16 %v865
        %v1522 = vunpack.c.h.b16 %v865
        %v1523 = vunpack.c.l.b16 %v866
        %v1524 = vunpack.c.h.b16 %v866
        %v1525 = vunpack.c.l.b16 %v867
        %v1526 = vunpack.c.h.b16 %v867
        %v1527 = vunpack.c.l.b16 %v868
        %v1528 = vunpack.c.h.b16 %v868
        %v1529 = vunpack.c.l.b16 %v869
        %v1530 = vunpack.c.h.b16 %v869
        %v1531 = vunpack.c.l.b16 %v870
        %v1532 = vunpack.c.h.b16 %v870
        %v1533 = vunpack.c.l.b16 %v871
        %v1534 = vunpack.c.h.b16 %v871
        %v1535 = vunpack.c.l.b16 %v872
        %v1536 = vunpack.c.h.b16 %v872
        %v1537 = vunpack.c.l.b16 %v873
        %v1538 = vunpack.c.h.b16 %v873
        %v1539 = vunpack.c.l.b16 %v874
        %v1540 = vunpack.c.h.b16 %v874
        %v1541 = vunpack.c.l.b16 %v875
        %v1542 = vunpack.c.h.b16 %v875
        %v1543 = vunpack.c.l.b16 %v876
        %v1544 = vunpack.c.h.b16 %v876
        %v1545 = vunpack.c.l.b16 %v877
        %v1546 = vunpack.c.h.b16 %v877
        %v1547 = vunpack.c.l.b16 %v878
        %v1548 = vunpack.c.h.b16 %v878
        %v1549 = vunpack.c.l.b16 %v879
        %v1550 = vunpack.c.h.b16 %v879
        %v1551 = vunpack.c.l.b16 %v880
        %v1552 = vunpack.c.h.b16 %v880
        %v1553 = vunpack.c.l.b16 %v881
        %v1554 = vunpack.c.h.b16 %v881
        %v1555 = vunpack.c.l.b16 %v882
        %v1556 = vunpack.c.h.b16 %v882
        %v1557 = vunpack.c.l.b16 %v883
        %v1558 = vunpack.c.h.b16 %v883
        %v1559 = vunpack.c.l.b16 %v884
        %v1560 = vunpack.c.h.b16 %v884
        %v1561 = vunpack.c.l.b16 %v885
        %v1562 = vunpack.c.h.b16 %v885
        %v1563 = vunpack.c.l.b16 %v886
        %v1564 = vunpack.c.h.b16 %v886
        %v1565 = vunpack.c.l.b16 %v887
        %v1566 = vunpack.c.h.b16 %v887
        %v1567 = vunpack.c.l.b16 %v888
        %v1568 = vunpack.c.h.b16 %v888
        %v1569 = vunpack.c.l.b16 %v889
        %v1570 = vunpack.c.h.b16 %v889
        %v1571 = vunpack.c.l.b16 %v890
        %v1572 = vunpack.c.h.b16 %v890
        %v1573 = vunpack.c.l.b16 %v891
        %v1574 = vunpack.c.h.b16 %v891
        %v1575 = vunpack.c.l.b16 %v892
        %v1576 = vunpack.c.h.b16 %v892
        %v1577 = vunpack.c.l.b16 %v893
        %v1578 = vunpack.c.h.b16 %v893
        %v1579 = vunpack.c.l.b16 %v894
        %v1580 = vunpack.c.h.b16 %v894
        %v1581 = vunpack.c.l.b16 %v895
        %v1582 = vunpack.c.h.b16 %v895
        %v1583 = vunpack.c.l.b16 %v896
        %v1584 = vunpack.c.h.b16 %v896
        %v1585 = vunpack.c.l.b16 %v897
        %v1586 = vunpack.c.h.b16 %v897
        %v1587 = vunpack.c.l.b16 %v898
        %v1588 = vunpack.c.h.b16 %v898
        %v1589 = vunpack.c.l.b16 %v899
        %v1590 = vunpack.c.h.b16 %v899
        %v1591 = vunpack.c.l.b16 %v900
        %v1592 = vunpack.c.h.b16 %v900
        %v1593 = vunpack.c.l.b16 %v901
        %v1594 = vunpack.c.h.b16 %v901
        %v1595 = vunpack.c.l.b16 %v902
        %v1596 = vunpack.c.h.b16 %v902
        %v1597 = vunpack.c.l.b16 %v903
        %v1598 = vunpack.c.h.b16 %v903
        %v1599 = vunpack.c.l.b16 %v904
        %v1600 = vunpack.c.h.b16 %v904
        %v1601 = vunpack.c.l.b16 %v905
        %v1602 = vunpack.c.h.b16 %v905
        %v1603 = vunpack.c.l.b16 %v906
        %v1604 = vunpack.c.h.b16 %v906
        %v1605 = vunpack.c.l.b16 %v907
        %v1606 = vunpack.c.h.b16 %v907
        %v1607 = vunpack.c.l.b16 %v908
        %v1608 = vunpack.c.h.b16 %v908
        %v1609 = vunpack.c.l.b16 %v909
        %v1610 = vunpack.c.h.b16 %v909
        %v1611 = vunpack.c.l.b16 %v910
        %v1612 = vunpack.c.h.b16 %v910
        %v1613 = vunpack.c.l.b16 %v911
        %v1614 = vunpack.c.h.b16 %v911
        %v1615 = vunpack.c.l.b16 %v912
        %v1616 = vunpack.c.h.b16 %v912
        %v1617 = vunpack.c.l.b16 %v913
        %v1618 = vunpack.c.h.b16 %v913
        %v1619 = vunpack.c.l.b16 %v914
        %v1620 = vunpack.c.h.b16 %v914
        %v1621 = vunpack.c.l.b16 %v915
        %v1622 = vunpack.c.h.b16 %v915
        %v1623 = vunpack.c.l.b16 %v916
        %v1624 = vunpack.c.h.b16 %v916
        %v1625 = vunpack.c.l.b16 %v917
        %v1626 = vunpack.c.h.b16 %v917
        %v1627 = vunpack.c.l.b16 %v918
        %v1628 = vunpack.c.h.b16 %v918
        %v1629 = vunpack.c.l.b16 %v919
        %v1630 = vunpack.c.h.b16 %v919
        %v1631 = vunpack.c.l.b16 %v920
        %v1632 = vunpack.c.h.b16 %v920
        %v1633 = vunpack.c.l.b16 %v921
        %v1634 = vunpack.c.h.b16 %v921
        %v1635 = vunpack.c.l.b16 %v922
        %v1636 = vunpack.c.h.b16 %v922
        %v1637 = vunpack.c.l.b16 %v923
        %v1638 = vunpack.c.h.b16 %v923
        %v1639 = vunpack.c.l.b16 %v924
        %v1640 = vunpack.c.h.b16 %v924
        %v1641 = vunpack.c.l.b16 %v925
        %v1642 = vunpack.c.h.b16 %v925
        %v1643 = vunpack.c.l.b16 %v926
        %v1644 = vunpack.c.h.b16 %v926
        %v1645 = vunpack.c.l.b16 %v927
        %v1646 = vunpack.c.h.b16 %v927
        %v1647 = vunpack.c.l.b16 %v928
        %v1648 = vunpack.c.h.b16 %v928
        %v1649 = vunpack.c.l.b16 %v929
        %v1650 = vunpack.c.h.b16 %v929
        %v1651 = vunpack.c.l.b16 %v930
        %v1652 = vunpack.c.h.b16 %v930
        %v1653 = vunpack.c.l.b16 %v931
        %v1654 = vunpack.c.h.b16 %v931
        %v1655 = vunpack.c.l.b16 %v932
        %v1656 = vunpack.c.h.b16 %v932
        %v1657 = vunpack.c.l.b16 %v933
        %v1658 = vunpack.c.h.b16 %v933
        %v1659 = vunpack.c.l.b16 %v934
        %v1660 = vunpack.c.h.b16 %v934
        %v1661 = vunpack.c.l.b16 %v935
        %v1662 = vunpack.c.h.b16 %v935
        %v1663 = vunpack.c.l.b16 %v936
        %v1664 = vunpack.c.h.b16 %v936
        %v1665 = vunpack.c.l.b16 %v937
        %v1666 = vunpack.c.h.b16 %v937
        %v1667 = vunpack.c.l.b16 %v938
        %v1668 = vunpack.c.h.b16 %v938
        %v1669 = vunpack.c.l.b16 %v939
        %v1670 = vunpack.c.h.b16 %v939
        %v1671 = vunpack.c.l.b16 %v940
        %v1672 = vunpack.c.h.b16 %v940
        %v1673 = vunpack.c.l.b16 %v941
        %v1674 = vunpack.c.h.b16 %v941
        %v1675 = vunpack.c.l.b16 %v942
        %v1676 = vunpack.c.h.b16 %v942
        %v1677 = vunpack.c.l.b16 %v943
        %v1678 = vunpack.c.h.b16 %v943
        %v1679 = vunpack.c.l.b16 %v944
        %v1680 = vunpack.c.h.b16 %v944
        %v1681 = vunpack.c.l.b16 %v945
        %v1682 = vunpack.c.h.b16 %v945
        %v1683 = vunpack.c.l.b16 %v946
        %v1684 = vunpack.c.h.b16 %v946
        %v1685 = vunpack.c.l.b16 %v947
        %v1686 = vunpack.c.h.b16 %v947
        %v1687 = vunpack.c.l.b16 %v948
        %v1688 = vunpack.c.h.b16 %v948
        %v1689 = vunpack.c.l.b16 %v949
        %v1690 = vunpack.c.h.b16 %v949
        %v1691 = vunpack.c.l.b16 %v950
        %v1692 = vunpack.c.h.b16 %v950
        %v1693 = vunpack.c.l.b16 %v951
        %v1694 = vunpack.c.h.b16 %v951
        %v1695 = vunpack.c.l.b16 %v952
        %v1696 = vunpack.c.h.b16 %v952
        %v1697 = vunpack.c.l.b16 %v953
        %v1698 = vunpack.c.h.b16 %v953
        %v1699 = vunpack.c.l.b16 %v954
        %v1700 = vunpack.c.h.b16 %v954
        %v1701 = vunpack.c.l.b16 %v955
        %v1702 = vunpack.c.h.b16 %v955
        %v1703 = vunpack.c.l.b16 %v956
        %v1704 = vunpack.c.h.b16 %v956
        %v1705 = vunpack.c.l.b16 %v957
        %v1706 = vunpack.c.h.b16 %v957
        %v1707 = vunpack.c.l.b16 %v958
        %v1708 = vunpack.c.h.b16 %v958
        %v1709 = vunpack.c.l.b16 %v959
        %v1710 = vunpack.c.h.b16 %v959
        %v1711 = vunpack.c.l.b16 %v960
        %v1712 = vunpack.c.h.b16 %v960
        %v1713 = vunpack.c.l.b16 %v961
        %v1714 = vunpack.c.h.b16 %v961
        %v1715 = vunpack.c.l.b16 %v962
        %v1716 = vunpack.c.h.b16 %v962
        %v1717 = vunpack.c.l.b16 %v963
        %v1718 = vunpack.c.h.b16 %v963
        %v1719 = vunpack.c.l.b16 %v964
        %v1720 = vunpack.c.h.b16 %v964
        %v1721 = vunpack.c.l.b16 %v965
        %v1722 = vunpack.c.h.b16 %v965
        %v1723 = vunpack.c.l.b16 %v966
        %v1724 = vunpack.c.h.b16 %v966
        %v1725 = vunpack.c.l.b16 %v967
        %v1726 = vunpack.c.h.b16 %v967
        %v1727 = vunpack.c.l.b16 %v968
        %v1728 = vunpack.c.h.b16 %v968
        %v1729 = vunpack.c.l.b16 %v969
        %v1730 = vunpack.c.h.b16 %v969
        %v1731 = vunpack.c.l.b16 %v970
        %v1732 = vunpack.c.h.b16 %v970
        %v1733 = vunpack.c.l.b16 %v971
        %v1734 = vunpack.c.h.b16 %v971
        %v1735 = vunpack.c.l.b16 %v972
        %v1736 = vunpack.c.h.b16 %v972
        %v1737 = vunpack.c.l.b16 %v973
        %v1738 = vunpack.c.h.b16 %v973
        %v1739 = vunpack.c.l.b16 %v974
        %v1740 = vunpack.c.h.b16 %v974
        %v1741 = vunpack.c.l.b16 %v975
        %v1742 = vunpack.c.h.b16 %v975
        %v1743 = vunpack.c.l.b16 %v976
        %v1744 = vunpack.c.h.b16 %v976
        %v1745 = vunpack.c.l.b16 %v977
        %v1746 = vunpack.c.h.b16 %v977
        %v1747 = vunpack.c.l.b16 %v978
        %v1748 = vunpack.c.h.b16 %v978
        %v1749 = vunpack.c.l.b16 %v979
        %v1750 = vunpack.c.h.b16 %v979
        %v1751 = vunpack.c.l.b16 %v980
        %v1752 = vunpack.c.h.b16 %v980
        %v1753 = vunpack.c.l.b16 %v981
        %v1754 = vunpack.c.h.b16 %v981
        %v1755 = vunpack.c.l.b16 %v982
        %v1756 = vunpack.c.h.b16 %v982
        %v1757 = vunpack.c.l.b16 %v983
        %v1758 = vunpack.c.h.b16 %v983
        %v1759 = vunpack.c.l.b16 %v984
        %v1760 = vunpack.c.h.b16 %v984
        %v1761 = vunpack.c.l.b16 %v985
        %v1762 = vunpack.c.h.b16 %v985
        %v1763 = vunpack.c.l.b16 %v986
        %v1764 = vunpack.c.h.b16 %v986
        %v1765 = vunpack.c.l.b16 %v987
        %v1766 = vunpack.c.h.b16 %v987
        %v1767 = vunpack.c.l.b16 %v988
        %v1768 = vunpack.c.h.b16 %v988
        %v1769 = vunpack.c.l.b16 %v989
        %v1770 = vunpack.c.h.b16 %v989
        %v1771 = vunpack.c.l.b16 %v990
        %v1772 = vunpack.c.h.b16 %v990
        %v1773 = vpack.c.b16 %v1269, %v1261
        %v1774 = vpack.c.b16 %v1270, %v1262
        %v1775 = vpack.c.b16 %v1271, %v1263
        %v1776 = vpack.c.b16 %v1272, %v1264
        %v1777 = vpack.c.b16 %v1273, %v1265
        %v1778 = vpack.c.b16 %v1274, %v1266
        %v1779 = vpack.c.b16 %v1275, %v1267
        %v1780 = vpack.c.b16 %v1276, %v1268
        %v1781 = vpack.c.b16 %v1285, %v1277
        %v1782 = vpack.c.b16 %v1286, %v1278
        %v1783 = vpack.c.b16 %v1287, %v1279
        %v1784 = vpack.c.b16 %v1288, %v1280
        %v1785 = vpack.c.b16 %v1289, %v1281
        %v1786 = vpack.c.b16 %v1290, %v1282
        %v1787 = vpack.c.b16 %v1291, %v1283
        %v1788 = vpack.c.b16 %v1292, %v1284
        %v1789 = vpack.c.b16 %v1301, %v1293
        %v1790 = vpack.c.b16 %v1302, %v1294
        %v1791 = vpack.c.b16 %v1303, %v1295
        %v1792 = vpack.c.b16 %v1304, %v1296
        %v1793 = vpack.c.b16 %v1305, %v1297
        %v1794 = vpack.c.b16 %v1306, %v1298
        %v1795 = vpack.c.b16 %v1307, %v1299
        %v1796 = vpack.c.b16 %v1308, %v1300
        %v1797 = vpack.c.b16 %v1317, %v1309
        %v1798 = vpack.c.b16 %v1318, %v1310
        %v1799 = vpack.c.b16 %v1319, %v1311
        %v1800 = vpack.c.b16 %v1320, %v1312
        %v1801 = vpack.c.b16 %v1321, %v1313
        %v1802 = vpack.c.b16 %v1322, %v1314
        %v1803 = vpack.c.b16 %v1323, %v1315
        %v1804 = vpack.c.b16 %v1324, %v1316
        %v1805 = vpack.c.b16 %v1333, %v1325
        %v1806 = vpack.c.b16 %v1334, %v1326
        %v1807 = vpack.c.b16 %v1335, %v1327
        %v1808 = vpack.c.b16 %v1336, %v1328
        %v1809 = vpack.c.b16 %v1337, %v1329
        %v1810 = vpack.c.b16 %v1338, %v1330
        %v1811 = vpack.c.b16 %v1339, %v1331
        %v1812 = vpack.c.b16 %v1340, %v1332
        %v1813 = vpack.c.b16 %v1349, %v1341
        %v1814 = vpack.c.b16 %v1350, %v1342
        %v1815 = vpack.c.b16 %v1351, %v1343
        %v1816 = vpack.c.b16 %v1352, %v1344
        %v1817 = vpack.c.b16 %v1353, %v1345
        %v1818 = vpack.c.b16 %v1354, %v1346
        %v1819 = vpack.c.b16 %v1355, %v1347
        %v1820 = vpack.c.b16 %v1356, %v1348
        %v1821 = vpack.c.b16 %v1365, %v1357
        %v1822 = vpack.c.b16 %v1366, %v1358
        %v1823 = vpack.c.b16 %v1367, %v1359
        %v1824 = vpack.c.b16 %v1368, %v1360
        %v1825 = vpack.c.b16 %v1369, %v1361
        %v1826 = vpack.c.b16 %v1370, %v1362
        %v1827 = vpack.c.b16 %v1371, %v1363
        %v1828 = vpack.c.b16 %v1372, %v1364
        %v1829 = vpack.c.b16 %v1381, %v1373
        %v1830 = vpack.c.b16 %v1382, %v1374
        %v1831 = vpack.c.b16 %v1383, %v1375
        %v1832 = vpack.c.b16 %v1384, %v1376
        %v1833 = vpack.c.b16 %v1385, %v1377
        %v1834 = vpack.c.b16 %v1386, %v1378
        %v1835 = vpack.c.b16 %v1387, %v1379
        %v1836 = vpack.c.b16 %v1388, %v1380
        %v1837 = vpack.c.b16 %v1397, %v1389
        %v1838 = vpack.c.b16 %v1398, %v1390
        %v1839 = vpack.c.b16 %v1399, %v1391
        %v1840 = vpack.c.b16 %v1400, %v1392
        %v1841 = vpack.c.b16 %v1401, %v1393
        %v1842 = vpack.c.b16 %v1402, %v1394
        %v1843 = vpack.c.b16 %v1403, %v1395
        %v1844 = vpack.c.b16 %v1404, %v1396
        %v1845 = vpack.c.b16 %v1413, %v1405
        %v1846 = vpack.c.b16 %v1414, %v1406
        %v1847 = vpack.c.b16 %v1415, %v1407
        %v1848 = vpack.c.b16 %v1416, %v1408
        %v1849 = vpack.c.b16 %v1417, %v1409
        %v1850 = vpack.c.b16 %v1418, %v1410
        %v1851 = vpack.c.b16 %v1419, %v1411
        %v1852 = vpack.c.b16 %v1420, %v1412
        %v1853 = vpack.c.b16 %v1429, %v1421
        %v1854 = vpack.c.b16 %v1430, %v1422
        %v1855 = vpack.c.b16 %v1431, %v1423
        %v1856 = vpack.c.b16 %v1432, %v1424
        %v1857 = vpack.c.b16 %v1433, %v1425
        %v1858 = vpack.c.b16 %v1434, %v1426
        %v1859 = vpack.c.b16 %v1435, %v1427
        %v1860 = vpack.c.b16 %v1436, %v1428
        %v1861 = vpack.c.b16 %v1445, %v1437
        %v1862 = vpack.c.b16 %v1446, %v1438
        %v1863 = vpack.c.b16 %v1447, %v1439
        %v1864 = vpack.c.b16 %v1448, %v1440
        %v1865 = vpack.c.b16 %v1449, %v1441
        %v1866 = vpack.c.b16 %v1450, %v1442
        %v1867 = vpack.c.b16 %v1451, %v1443
        %v1868 = vpack.c.b16 %v1452, %v1444
        %v1869 = vpack.c.b16 %v1461, %v1453
        %v1870 = vpack.c.b16 %v1462, %v1454
        %v1871 = vpack.c.b16 %v1463, %v1455
        %v1872 = vpack.c.b16 %v1464, %v1456
        %v1873 = vpack.c.b16 %v1465, %v1457
        %v1874 = vpack.c.b16 %v1466, %v1458
        %v1875 = vpack.c.b16 %v1467, %v1459
        %v1876 = vpack.c.b16 %v1468, %v1460
        %v1877 = vpack.c.b16 %v1477, %v1469
        %v1878 = vpack.c.b16 %v1478, %v1470
        %v1879 = vpack.c.b16 %v1479, %v1471
        %v1880 = vpack.c.b16 %v1480, %v1472
        %v1881 = vpack.c.b16 %v1481, %v1473
        %v1882 = vpack.c.b16 %v1482, %v1474
        %v1883 = vpack.c.b16 %v1483, %v1475
        %v1884 = vpack.c.b16 %v1484, %v1476
        %v1885 = vpack.c.b16 %v1493, %v1485
        %v1886 = vpack.c.b16 %v1494, %v1486
        %v1887 = vpack.c.b16 %v1495, %v1487
        %v1888 = vpack.c.b16 %v1496, %v1488
        %v1889 = vpack.c.b16 %v1497, %v1489
        %v1890 = vpack.c.b16 %v1498, %v1490
        %v1891 = vpack.c.b16 %v1499, %v1491
        %v1892 = vpack.c.b16 %v1500, %v1492
        %v1893 = vpack.c.b16 %v1509, %v1501
        %v1894 = vpack.c.b16 %v1510, %v1502
        %v1895 = vpack.c.b16 %v1511, %v1503
        %v1896 = vpack.c.b16 %v1512, %v1504
        %v1897 = vpack.c.b16 %v1513, %v1505
        %v1898 = vpack.c.b16 %v1514, %v1506
        %v1899 = vpack.c.b16 %v1515, %v1507
        %v1900 = vpack.c.b16 %v1516, %v1508
        %v1901 = vpack.c.b16 %v1525, %v1517
        %v1902 = vpack.c.b16 %v1526, %v1518
        %v1903 = vpack.c.b16 %v1527, %v1519
        %v1904 = vpack.c.b16 %v1528, %v1520
        %v1905 = vpack.c.b16 %v1529, %v1521
        %v1906 = vpack.c.b16 %v1530, %v1522
        %v1907 = vpack.c.b16 %v1531, %v1523
        %v1908 = vpack.c.b16 %v1532, %v1524
        %v1909 = vpack.c.b16 %v1541, %v1533
        %v1910 = vpack.c.b16 %v1542, %v1534
        %v1911 = vpack.c.b16 %v1543, %v1535
        %v1912 = vpack.c.b16 %v1544, %v1536
        %v1913 = vpack.c.b16 %v1545, %v1537
        %v1914 = vpack.c.b16 %v1546, %v1538
        %v1915 = vpack.c.b16 %v1547, %v1539
        %v1916 = vpack.c.b16 %v1548, %v1540
        %v1917 = vpack.c.b16 %v1557, %v1549
        %v1918 = vpack.c.b16 %v1558, %v1550
        %v1919 = vpack.c.b16 %v1559, %v1551
        %v1920 = vpack.c.b16 %v1560, %v1552
        %v1921 = vpack.c.b16 %v1561, %v1553
        %v1922 = vpack.c.b16 %v1562, %v1554
        %v1923 = vpack.c.b16 %v1563, %v1555
        %v1924 = vpack.c.b16 %v1564, %v1556
        %v1925 = vpack.c.b16 %v1573, %v1565
        %v1926 = vpack.c.b16 %v1574, %v1566
        %v1927 = vpack.c.b16 %v1575, %v1567
        %v1928 = vpack.c.b16 %v1576, %v1568
        %v1929 = vpack.c.b16 %v1577, %v1569
        %v1930 = vpack.c.b16 %v1578, %v1570
        %v1931 = vpack.c.b16 %v1579, %v1571
        %v1932 = vpack.c.b16 %v1580, %v1572
        %v1933 = vpack.c.b16 %v1589, %v1581
        %v1934 = vpack.c.b16 %v1590, %v1582
        %v1935 = vpack.c.b16 %v1591, %v1583
        %v1936 = vpack.c.b16 %v1592, %v1584
        %v1937 = vpack.c.b16 %v1593, %v1585
        %v1938 = vpack.c.b16 %v1594, %v1586
        %v1939 = vpack.c.b16 %v1595, %v1587
        %v1940 = vpack.c.b16 %v1596, %v1588
        %v1941 = vpack.c.b16 %v1605, %v1597
        %v1942 = vpack.c.b16 %v1606, %v1598
        %v1943 = vpack.c.b16 %v1607, %v1599
        %v1944 = vpack.c.b16 %v1608, %v1600
        %v1945 = vpack.c.b16 %v1609, %v1601
        %v1946 = vpack.c.b16 %v1610, %v1602
        %v1947 = vpack.c.b16 %v1611, %v1603
        %v1948 = vpack.c.b16 %v1612, %v1604
        %v1949 = vpack.c.b16 %v1621, %v1613
        %v1950 = vpack.c.b16 %v1622, %v1614
        %v1951 = vpack.c.b16 %v1623, %v1615
        %v1952 = vpack.c.b16 %v1624, %v1616
        %v1953 = vpack.c.b16 %v1625, %v1617
        %v1954 = vpack.c.b16 %v1626, %v1618
        %v1955 = vpack.c.b16 %v1627, %v1619
        %v1956 = vpack.c.b16 %v1628, %v1620
        %v1957 = vpack.c.b16 %v1637, %v1629
        %v1958 = vpack.c.b16 %v1638, %v1630
        %v1959 = vpack.c.b16 %v1639, %v1631
        %v1960 = vpack.c.b16 %v1640, %v1632
        %v1961 = vpack.c.b16 %v1641, %v1633
        %v1962 = vpack.c.b16 %v1642, %v1634
        %v1963 = vpack.c.b16 %v1643, %v1635
        %v1964 = vpack.c.b16 %v1644, %v1636
        %v1965 = vpack.c.b16 %v1653, %v1645
        %v1966 = vpack.c.b16 %v1654, %v1646
        %v1967 = vpack.c.b16 %v1655, %v1647
        %v1968 = vpack.c.b16 %v1656, %v1648
        %v1969 = vpack.c.b16 %v1657, %v1649
        %v1970 = vpack.c.b16 %v1658, %v1650
        %v1971 = vpack.c.b16 %v1659, %v1651
        %v1972 = vpack.c.b16 %v1660, %v1652
        %v1973 = vpack.c.b16 %v1669, %v1661
        %v1974 = vpack.c.b16 %v1670, %v1662
        %v1975 = vpack.c.b16 %v1671, %v1663
        %v1976 = vpack.c.b16 %v1672, %v1664
        %v1977 = vpack.c.b16 %v1673, %v1665
        %v1978 = vpack.c.b16 %v1674, %v1666
        %v1979 = vpack.c.b16 %v1675, %v1667
        %v1980 = vpack.c.b16 %v1676, %v1668
        %v1981 = vpack.c.b16 %v1685, %v1677
        %v1982 = vpack.c.b16 %v1686, %v1678
        %v1983 = vpack.c.b16 %v1687, %v1679
        %v1984 = vpack.c.b16 %v1688, %v1680
        %v1985 = vpack.c.b16 %v1689, %v1681
        %v1986 = vpack.c.b16 %v1690, %v1682
        %v1987 = vpack.c.b16 %v1691, %v1683
        %v1988 = vpack.c.b16 %v1692, %v1684
        %v1989 = vpack.c.b16 %v1701, %v1693
        %v1990 = vpack.c.b16 %v1702, %v1694
        %v1991 = vpack.c.b16 %v1703, %v1695
        %v1992 = vpack.c.b16 %v1704, %v1696
        %v1993 = vpack.c.b16 %v1705, %v1697
        %v1994 = vpack.c.b16 %v1706, %v1698
        %v1995 = vpack.c.b16 %v1707, %v1699
        %v1996 = vpack.c.b16 %v1708, %v1700
        %v1997 = vpack.c.b16 %v1717, %v1709
        %v1998 = vpack.c.b16 %v1718, %v1710
        %v1999 = vpack.c.b16 %v1719, %v1711
        %v2000 = vpack.c.b16 %v1720, %v1712
        %v2001 = vpack.c.b16 %v1721, %v1713
        %v2002 = vpack.c.b16 %v1722, %v1714
        %v2003 = vpack.c.b16 %v1723, %v1715
        %v2004 = vpack.c.b16 %v1724, %v1716
        %v2005 = vpack.c.b16 %v1733, %v1725
        %v2006 = vpack.c.b16 %v1734, %v1726
        %v2007 = vpack.c.b16 %v1735, %v1727
        %v2008 = vpack.c.b16 %v1736, %v1728
        %v2009 = vpack.c.b16 %v1737, %v1729
        %v2010 = vpack.c.b16 %v1738, %v1730
        %v2011 = vpack.c.b16 %v1739, %v1731
        %v2012 = vpack.c.b16 %v1740, %v1732
        %v2013 = vpack.c.b16 %v1749, %v1741
        %v2014 = vpack.c.b16 %v1750, %v1742
        %v2015 = vpack.c.b16 %v1751, %v1743
        %v2016 = vpack.c.b16 %v1752, %v1744
        %v2017 = vpack.c.b16 %v1753, %v1745
        %v2018 = vpack.c.b16 %v1754, %v1746
        %v2019 = vpack.c.b16 %v1755, %v1747
        %v2020 = vpack.c.b16 %v1756, %v1748
        %v2021 = vpack.c.b16 %v1765, %v1757
        %v2022 = vpack.c.b16 %v1766, %v1758
        %v2023 = vpack.c.b16 %v1767, %v1759
        %v2024 = vpack.c.b16 %v1768, %v1760
        %v2025 = vpack.c.b16 %v1769, %v1761
        %v2026 = vpack.c.b16 %v1770, %v1762
        %v2027 = vpack.c.b16 %v1771, %v1763
        %v2028 = vpack.c.b16 %v1772, %v1764
        %2285 = vmatprep.subr.bf16.mxu0 %v1774
        %2286 = vmatpush1.bf16.msra.mxu0 %v1773
        %2287 = vmatprep.subr.bf16.mxu0 %v1782
        %2288 = vmatpush1.bf16.msra.mxu0 %v1781
        %2289 = vmatprep.subr.bf16.mxu0 %v1790
        %2290 = vmatpush1.bf16.msra.mxu0 %v1789
        %2291 = vmatprep.subr.bf16.mxu0 %v1798
        %2292 = vmatpush1.bf16.msra.mxu0 %v1797
        %2293 = vmatprep.subr.bf16.mxu0 %v1806
        %2294 = vmatpush1.bf16.msra.mxu0 %v1805
        %2295 = vmatprep.subr.bf16.mxu0 %v1814
        %2296 = vmatpush1.bf16.msra.mxu0 %v1813
        %2297 = vmatprep.subr.bf16.mxu0 %v1822
        %2298 = vmatpush1.bf16.msra.mxu0 %v1821
        %2299 = vmatprep.subr.bf16.mxu0 %v1830
        %2300 = vmatpush1.bf16.msra.mxu0 %v1829
        %2301 = vmatprep.subr.bf16.mxu0 %v1838
        %2302 = vmatpush1.bf16.msra.mxu0 %v1837
        %2303 = vmatprep.subr.bf16.mxu0 %v1846
        %2304 = vmatpush1.bf16.msra.mxu0 %v1845
        %2305 = vmatprep.subr.bf16.mxu0 %v1854
        %2306 = vmatpush1.bf16.msra.mxu0 %v1853
        %2307 = vmatprep.subr.bf16.mxu0 %v1862
        %2308 = vmatpush1.bf16.msra.mxu0 %v1861
        %2309 = vmatprep.subr.bf16.mxu0 %v1870
        %2310 = vmatpush1.bf16.msra.mxu0 %v1869
        %2311 = vmatprep.subr.bf16.mxu0 %v1878
        %2312 = vmatpush1.bf16.msra.mxu0 %v1877
        %2313 = vmatprep.subr.bf16.mxu0 %v1886
        %2314 = vmatpush1.bf16.msra.mxu0 %v1885
        %2315 = vmatprep.subr.bf16.mxu0 %v1894
        %2316 = vmatpush1.bf16.msra.mxu0 %v1893
        %2317 = vmatprep.mubr.bf16.mxu0 %v998
        %2318 = vmatmul.mubr.bf16.gmra.mrb[0].mxu0 %v997
        %v2319 = vpop.f32.mrb[0].mxu0
        %v2320 = vadd.f32 0.0, %v2319
        %v2321 = vpop.f32.mrb[0].mxu0
        %v2322 = vadd.f32 0.0, %v2321
        %v2323 = vpop.f32.mrb[0].mxu0
        %v2324 = vpop.f32.mrb[0].mxu0
        %2325 = vdwg.mxu0
        %2326 = vmatprep.subr.bf16.mxu0 %v1902
        %2327 = vmatpush1.bf16.msra.mxu0 %v1901
        %2328 = vmatprep.subr.bf16.mxu0 %v1910
        %2329 = vmatpush1.bf16.msra.mxu0 %v1909
        %2330 = vmatprep.subr.bf16.mxu0 %v1918
        %2331 = vmatpush1.bf16.msra.mxu0 %v1917
        %2332 = vmatprep.subr.bf16.mxu0 %v1926
        %2333 = vmatpush1.bf16.msra.mxu0 %v1925
        %2334 = vmatprep.subr.bf16.mxu0 %v1934
        %2335 = vmatpush1.bf16.msra.mxu0 %v1933
        %2336 = vmatprep.subr.bf16.mxu0 %v1942
        %2337 = vmatpush1.bf16.msra.mxu0 %v1941
        %2338 = vmatprep.subr.bf16.mxu0 %v1950
        %2339 = vmatpush1.bf16.msra.mxu0 %v1949
        %2340 = vmatprep.subr.bf16.mxu0 %v1958
        %2341 = vmatpush1.bf16.msra.mxu0 %v1957
        %2342 = vmatprep.subr.bf16.mxu0 %v1966
        %2343 = vmatpush1.bf16.msra.mxu0 %v1965
        %2344 = vmatprep.subr.bf16.mxu0 %v1974
        %2345 = vmatpush1.bf16.msra.mxu0 %v1973
        %2346 = vmatprep.subr.bf16.mxu0 %v1982
        %2347 = vmatpush1.bf16.msra.mxu0 %v1981
        %2348 = vmatprep.subr.bf16.mxu0 %v1990
        %2349 = vmatpush1.bf16.msra.mxu0 %v1989
        %2350 = vmatprep.subr.bf16.mxu0 %v1998
        %2351 = vmatpush1.bf16.msra.mxu0 %v1997
        %2352 = vmatprep.subr.bf16.mxu0 %v2006
        %2353 = vmatpush1.bf16.msra.mxu0 %v2005
        %2354 = vmatprep.subr.bf16.mxu0 %v2014
        %2355 = vmatpush1.bf16.msra.mxu0 %v2013
        %2356 = vmatprep.subr.bf16.mxu0 %v2022
        %2357 = vmatpush1.bf16.msra.mxu0 %v2021
        %2358 = vmatprep.mubr.bf16.mxu0 %v1000
        %2359 = vmatmul.mubr.bf16.gmra.mrb[0].mxu0 %v999
        %v2360 = vpop.f32.mrb[0].mxu0
        %v2361 = vadd.f32 %v2320, %v2360
        %v2362 = vpop.f32.mrb[0].mxu0
        %v2363 = vadd.f32 %v2322, %v2362
        %v2364 = vpop.f32.mrb[0].mxu0
        %v2365 = vpop.f32.mrb[0].mxu0
        %2366 = vdwg.mxu0
        %2367 = vmatprep.subr.bf16.mxu0 %v1776
        %2368 = vmatpush1.bf16.msra.mxu0 %v1775
        %2369 = vmatprep.subr.bf16.mxu0 %v1784
        %2370 = vmatpush1.bf16.msra.mxu0 %v1783
        %2371 = vmatprep.subr.bf16.mxu0 %v1792
        %2372 = vmatpush1.bf16.msra.mxu0 %v1791
        %2373 = vmatprep.subr.bf16.mxu0 %v1800
        %2374 = vmatpush1.bf16.msra.mxu0 %v1799
        %2375 = vmatprep.subr.bf16.mxu0 %v1808
        %2376 = vmatpush1.bf16.msra.mxu0 %v1807
        %2377 = vmatprep.subr.bf16.mxu0 %v1816
        %2378 = vmatpush1.bf16.msra.mxu0 %v1815
        %2379 = vmatprep.subr.bf16.mxu0 %v1824
        %2380 = vmatpush1.bf16.msra.mxu0 %v1823
        %2381 = vmatprep.subr.bf16.mxu0 %v1832
        %2382 = vmatpush1.bf16.msra.mxu0 %v1831
        %2383 = vmatprep.subr.bf16.mxu0 %v1840
        %2384 = vmatpush1.bf16.msra.mxu0 %v1839
        %2385 = vmatprep.subr.bf16.mxu0 %v1848
        %2386 = vmatpush1.bf16.msra.mxu0 %v1847
        %2387 = vmatprep.subr.bf16.mxu0 %v1856
        %2388 = vmatpush1.bf16.msra.mxu0 %v1855
        %2389 = vmatprep.subr.bf16.mxu0 %v1864
        %2390 = vmatpush1.bf16.msra.mxu0 %v1863
        %2391 = vmatprep.subr.bf16.mxu0 %v1872
        %2392 = vmatpush1.bf16.msra.mxu0 %v1871
        %2393 = vmatprep.subr.bf16.mxu0 %v1880
        %2394 = vmatpush1.bf16.msra.mxu0 %v1879
        %2395 = vmatprep.subr.bf16.mxu0 %v1888
        %2396 = vmatpush1.bf16.msra.mxu0 %v1887
        %2397 = vmatprep.subr.bf16.mxu0 %v1896
        %2398 = vmatpush1.bf16.msra.mxu0 %v1895
        %2399 = vmatprep.mubr.bf16.mxu0 %v998
        %2400 = vmatmul.mubr.bf16.gmra.mrb[0].mxu0 %v997
        %v2401 = vpop.f32.mrb[0].mxu0
        %v2402 = vadd.f32 0.0, %v2401
        %v2403 = vpop.f32.mrb[0].mxu0
        %v2404 = vadd.f32 0.0, %v2403
        %v2405 = vpop.f32.mrb[0].mxu0
        %v2406 = vpop.f32.mrb[0].mxu0
        %2407 = vdwg.mxu0
        %2408 = vmatprep.subr.bf16.mxu0 %v1904
        %2409 = vmatpush1.bf16.msra.mxu0 %v1903
        %2410 = vmatprep.subr.bf16.mxu0 %v1912
        %2411 = vmatpush1.bf16.msra.mxu0 %v1911
        %2412 = vmatprep.subr.bf16.mxu0 %v1920
        %2413 = vmatpush1.bf16.msra.mxu0 %v1919
        %2414 = vmatprep.subr.bf16.mxu0 %v1928
        %2415 = vmatpush1.bf16.msra.mxu0 %v1927
        %2416 = vmatprep.subr.bf16.mxu0 %v1936
        %2417 = vmatpush1.bf16.msra.mxu0 %v1935
        %2418 = vmatprep.subr.bf16.mxu0 %v1944
        %2419 = vmatpush1.bf16.msra.mxu0 %v1943
        %2420 = vmatprep.subr.bf16.mxu0 %v1952
        %2421 = vmatpush1.bf16.msra.mxu0 %v1951
        %2422 = vmatprep.subr.bf16.mxu0 %v1960
        %2423 = vmatpush1.bf16.msra.mxu0 %v1959
        %2424 = vmatprep.subr.bf16.mxu0 %v1968
        %2425 = vmatpush1.bf16.msra.mxu0 %v1967
        %2426 = vmatprep.subr.bf16.mxu0 %v1976
        %2427 = vmatpush1.bf16.msra.mxu0 %v1975
        %2428 = vmatprep.subr.bf16.mxu0 %v1984
        %2429 = vmatpush1.bf16.msra.mxu0 %v1983
        %2430 = vmatprep.subr.bf16.mxu0 %v1992
        %2431 = vmatpush1.bf16.msra.mxu0 %v1991
        %2432 = vmatprep.subr.bf16.mxu0 %v2000
        %2433 = vmatpush1.bf16.msra.mxu0 %v1999
        %2434 = vmatprep.subr.bf16.mxu0 %v2008
        %2435 = vmatpush1.bf16.msra.mxu0 %v2007
        %2436 = vmatprep.subr.bf16.mxu0 %v2016
        %2437 = vmatpush1.bf16.msra.mxu0 %v2015
        %2438 = vmatprep.subr.bf16.mxu0 %v2024
        %2439 = vmatpush1.bf16.msra.mxu0 %v2023
        %2440 = vmatprep.mubr.bf16.mxu0 %v1000
        %2441 = vmatmul.mubr.bf16.gmra.mrb[0].mxu0 %v999
        %v2442 = vpop.f32.mrb[0].mxu0
        %v2443 = vadd.f32 %v2402, %v2442
        %v2444 = vpop.f32.mrb[0].mxu0
        %v2445 = vadd.f32 %v2404, %v2444
        %v2446 = vpop.f32.mrb[0].mxu0
        %v2447 = vpop.f32.mrb[0].mxu0
        %2448 = vdwg.mxu0
        %2449 = vmatprep.subr.bf16.mxu0 %v1778
        %2450 = vmatpush1.bf16.msra.mxu0 %v1777
        %2451 = vmatprep.subr.bf16.mxu0 %v1786
        %2452 = vmatpush1.bf16.msra.mxu0 %v1785
        %2453 = vmatprep.subr.bf16.mxu0 %v1794
        %2454 = vmatpush1.bf16.msra.mxu0 %v1793
        %2455 = vmatprep.subr.bf16.mxu0 %v1802
        %2456 = vmatpush1.bf16.msra.mxu0 %v1801
        %2457 = vmatprep.subr.bf16.mxu0 %v1810
        %2458 = vmatpush1.bf16.msra.mxu0 %v1809
        %2459 = vmatprep.subr.bf16.mxu0 %v1818
        %2460 = vmatpush1.bf16.msra.mxu0 %v1817
        %2461 = vmatprep.subr.bf16.mxu0 %v1826
        %2462 = vmatpush1.bf16.msra.mxu0 %v1825
        %2463 = vmatprep.subr.bf16.mxu0 %v1834
        %2464 = vmatpush1.bf16.msra.mxu0 %v1833
        %2465 = vmatprep.subr.bf16.mxu0 %v1842
        %2466 = vmatpush1.bf16.msra.mxu0 %v1841
        %2467 = vmatprep.subr.bf16.mxu0 %v1850
        %2468 = vmatpush1.bf16.msra.mxu0 %v1849
        %2469 = vmatprep.subr.bf16.mxu0 %v1858
        %2470 = vmatpush1.bf16.msra.mxu0 %v1857
        %2471 = vmatprep.subr.bf16.mxu0 %v1866
        %2472 = vmatpush1.bf16.msra.mxu0 %v1865
        %2473 = vmatprep.subr.bf16.mxu0 %v1874
        %2474 = vmatpush1.bf16.msra.mxu0 %v1873
        %2475 = vmatprep.subr.bf16.mxu0 %v1882
        %2476 = vmatpush1.bf16.msra.mxu0 %v1881
        %2477 = vmatprep.subr.bf16.mxu0 %v1890
        %2478 = vmatpush1.bf16.msra.mxu0 %v1889
        %2479 = vmatprep.subr.bf16.mxu0 %v1898
        %2480 = vmatpush1.bf16.msra.mxu0 %v1897
        %2481 = vmatprep.mubr.bf16.mxu0 %v998
        %2482 = vmatmul.mubr.bf16.gmra.mrb[0].mxu0 %v997
        %v2483 = vpop.f32.mrb[0].mxu0
        %v2484 = vadd.f32 0.0, %v2483
        %v2485 = vpop.f32.mrb[0].mxu0
        %v2486 = vadd.f32 0.0, %v2485
        %v2487 = vpop.f32.mrb[0].mxu0
        %v2488 = vpop.f32.mrb[0].mxu0
        %2489 = vdwg.mxu0
        %2490 = vmatprep.subr.bf16.mxu0 %v1906
        %2491 = vmatpush1.bf16.msra.mxu0 %v1905
        %2492 = vmatprep.subr.bf16.mxu0 %v1914
        %2493 = vmatpush1.bf16.msra.mxu0 %v1913
        %2494 = vmatprep.subr.bf16.mxu0 %v1922
        %2495 = vmatpush1.bf16.msra.mxu0 %v1921
        %2496 = vmatprep.subr.bf16.mxu0 %v1930
        %2497 = vmatpush1.bf16.msra.mxu0 %v1929
        %2498 = vmatprep.subr.bf16.mxu0 %v1938
        %2499 = vmatpush1.bf16.msra.mxu0 %v1937
        %2500 = vmatprep.subr.bf16.mxu0 %v1946
        %2501 = vmatpush1.bf16.msra.mxu0 %v1945
        %2502 = vmatprep.subr.bf16.mxu0 %v1954
        %2503 = vmatpush1.bf16.msra.mxu0 %v1953
        %2504 = vmatprep.subr.bf16.mxu0 %v1962
        %2505 = vmatpush1.bf16.msra.mxu0 %v1961
        %2506 = vmatprep.subr.bf16.mxu0 %v1970
        %2507 = vmatpush1.bf16.msra.mxu0 %v1969
        %2508 = vmatprep.subr.bf16.mxu0 %v1978
        %2509 = vmatpush1.bf16.msra.mxu0 %v1977
        %2510 = vmatprep.subr.bf16.mxu0 %v1986
        %2511 = vmatpush1.bf16.msra.mxu0 %v1985
        %2512 = vmatprep.subr.bf16.mxu0 %v1994
        %2513 = vmatpush1.bf16.msra.mxu0 %v1993
        %2514 = vmatprep.subr.bf16.mxu0 %v2002
        %2515 = vmatpush1.bf16.msra.mxu0 %v2001
        %2516 = vmatprep.subr.bf16.mxu0 %v2010
        %2517 = vmatpush1.bf16.msra.mxu0 %v2009
        %2518 = vmatprep.subr.bf16.mxu0 %v2018
        %2519 = vmatpush1.bf16.msra.mxu0 %v2017
        %2520 = vmatprep.subr.bf16.mxu0 %v2026
        %2521 = vmatpush1.bf16.msra.mxu0 %v2025
        %2522 = vmatprep.mubr.bf16.mxu0 %v1000
        %2523 = vmatmul.mubr.bf16.gmra.mrb[0].mxu0 %v999
        %v2524 = vpop.f32.mrb[0].mxu0
        %v2525 = vadd.f32 %v2484, %v2524
        %v2526 = vpop.f32.mrb[0].mxu0
        %v2527 = vadd.f32 %v2486, %v2526
        %v2528 = vpop.f32.mrb[0].mxu0
        %v2529 = vpop.f32.mrb[0].mxu0
        %2530 = vdwg.mxu0
        %2531 = vmatprep.subr.bf16.mxu0 %v1780
        %2532 = vmatpush1.bf16.msra.mxu0 %v1779
        %2533 = vmatprep.subr.bf16.mxu0 %v1788
        %2534 = vmatpush1.bf16.msra.mxu0 %v1787
        %2535 = vmatprep.subr.bf16.mxu0 %v1796
        %2536 = vmatpush1.bf16.msra.mxu0 %v1795
        %2537 = vmatprep.subr.bf16.mxu0 %v1804
        %2538 = vmatpush1.bf16.msra.mxu0 %v1803
        %2539 = vmatprep.subr.bf16.mxu0 %v1812
        %2540 = vmatpush1.bf16.msra.mxu0 %v1811
        %2541 = vmatprep.subr.bf16.mxu0 %v1820
        %2542 = vmatpush1.bf16.msra.mxu0 %v1819
        %2543 = vmatprep.subr.bf16.mxu0 %v1828
        %2544 = vmatpush1.bf16.msra.mxu0 %v1827
        %2545 = vmatprep.subr.bf16.mxu0 %v1836
        %2546 = vmatpush1.bf16.msra.mxu0 %v1835
        %2547 = vmatprep.subr.bf16.mxu0 %v1844
        %2548 = vmatpush1.bf16.msra.mxu0 %v1843
        %2549 = vmatprep.subr.bf16.mxu0 %v1852
        %2550 = vmatpush1.bf16.msra.mxu0 %v1851
        %2551 = vmatprep.subr.bf16.mxu0 %v1860
        %2552 = vmatpush1.bf16.msra.mxu0 %v1859
        %2553 = vmatprep.subr.bf16.mxu0 %v1868
        %2554 = vmatpush1.bf16.msra.mxu0 %v1867
        %2555 = vmatprep.subr.bf16.mxu0 %v1876
        %2556 = vmatpush1.bf16.msra.mxu0 %v1875
        %2557 = vmatprep.subr.bf16.mxu0 %v1884
        %2558 = vmatpush1.bf16.msra.mxu0 %v1883
        %2559 = vmatprep.subr.bf16.mxu0 %v1892
        %2560 = vmatpush1.bf16.msra.mxu0 %v1891
        %2561 = vmatprep.subr.bf16.mxu0 %v1900
        %2562 = vmatpush1.bf16.msra.mxu0 %v1899
        %2563 = vmatprep.mubr.bf16.mxu0 %v998
        %2564 = vmatmul.mubr.bf16.gmra.mrb[0].mxu0 %v997
        %v2565 = vpop.f32.mrb[0].mxu0
        %v2566 = vadd.f32 0.0, %v2565
        %v2567 = vpop.f32.mrb[0].mxu0
        %v2568 = vadd.f32 0.0, %v2567
        %v2569 = vpop.f32.mrb[0].mxu0
        %v2570 = vpop.f32.mrb[0].mxu0
        %2571 = vdwg.mxu0
        %2572 = vmatprep.subr.bf16.mxu0 %v1908
        %2573 = vmatpush1.bf16.msra.mxu0 %v1907
        %2574 = vmatprep.subr.bf16.mxu0 %v1916
        %2575 = vmatpush1.bf16.msra.mxu0 %v1915
        %2576 = vmatprep.subr.bf16.mxu0 %v1924
        %2577 = vmatpush1.bf16.msra.mxu0 %v1923
        %2578 = vmatprep.subr.bf16.mxu0 %v1932
        %2579 = vmatpush1.bf16.msra.mxu0 %v1931
        %2580 = vmatprep.subr.bf16.mxu0 %v1940
        %2581 = vmatpush1.bf16.msra.mxu0 %v1939
        %2582 = vmatprep.subr.bf16.mxu0 %v1948
        %2583 = vmatpush1.bf16.msra.mxu0 %v1947
        %2584 = vmatprep.subr.bf16.mxu0 %v1956
        %2585 = vmatpush1.bf16.msra.mxu0 %v1955
        %2586 = vmatprep.subr.bf16.mxu0 %v1964
        %2587 = vmatpush1.bf16.msra.mxu0 %v1963
        %2588 = vmatprep.subr.bf16.mxu0 %v1972
        %2589 = vmatpush1.bf16.msra.mxu0 %v1971
        %2590 = vmatprep.subr.bf16.mxu0 %v1980
        %2591 = vmatpush1.bf16.msra.mxu0 %v1979
        %2592 = vmatprep.subr.bf16.mxu0 %v1988
        %2593 = vmatpush1.bf16.msra.mxu0 %v1987
        %2594 = vmatprep.subr.bf16.mxu0 %v1996
        %2595 = vmatpush1.bf16.msra.mxu0 %v1995
        %2596 = vmatprep.subr.bf16.mxu0 %v2004
        %2597 = vmatpush1.bf16.msra.mxu0 %v2003
        %2598 = vmatprep.subr.bf16.mxu0 %v2012
        %2599 = vmatpush1.bf16.msra.mxu0 %v2011
        %2600 = vmatprep.subr.bf16.mxu0 %v2020
        %2601 = vmatpush1.bf16.msra.mxu0 %v2019
        %2602 = vmatprep.subr.bf16.mxu0 %v2028
        %2603 = vmatpush1.bf16.msra.mxu0 %v2027
        %2604 = vmatprep.mubr.bf16.mxu0 %v1000
        %2605 = vmatmul.mubr.bf16.gmra.mrb[0].mxu0 %v999
        %v2606 = vpop.f32.mrb[0].mxu0
        %v2607 = vadd.f32 %v2566, %v2606
        %v2608 = vpop.f32.mrb[0].mxu0
        %v2609 = vadd.f32 %v2568, %v2608
        %v2610 = vpop.f32.mrb[0].mxu0
        %v2611 = vpop.f32.mrb[0].mxu0
        %2612 = vdwg.mxu0
        %v2613 = vadd.f32 %v725, %v2361
        %v2614 = vadd.f32 %v726, %v2363
        %v2615 = vadd.f32 %v727, %v2443
        %v2616 = vadd.f32 %v728, %v2445
        %v2617 = vadd.f32 %v729, %v2525
        %v2618 = vadd.f32 %v730, %v2527
        %v2619 = vadd.f32 %v731, %v2607
        %v2620 = vadd.f32 %v732, %v2609
        %2621 = vst [vmem:[#allocation2] sm:$0xff] %v2613
        %2622 = vst [vmem:[#allocation2 + $0x8] sm:$0xff] %v2614
        %2623 = vst [vmem:[#allocation2 + $0x10] sm:$0xff] %v2615
        %2624 = vst [vmem:[#allocation2 + $0x18] sm:$0xff] %v2616
        %2625 = vst [vmem:[#allocation2 + $0x20] sm:$0xff] %v2617
        %2626 = vst [vmem:[#allocation2 + $0x28] sm:$0xff] %v2618
        %2627 = vst [vmem:[#allocation2 + $0x30] sm:$0xff] %v2619
        %2628 = vst [vmem:[#allocation2 + $0x38] sm:$0xff] %v2620
        %p2629 = scmp.eq.s32.totalorder %s39, 3
        // Predicated region
        $region145: #{tpu_custom_call.1} parent=79 // pred_check
          %p2630 = pneg %p2629
        $region146: #{tpu_custom_call.1} parent=79 // pred_check_branch
          %2632 = sbr.rel (%p2630) target = $region148
        $region147: #{tpu_custom_call.1} parent=79 // pred_region
          %v2633 = vld [vmem:[#allocation2] sm:$0xff]
          %v2634 = vld [vmem:[#allocation2 + $0x8] sm:$0xff]
          %v2635 = vld [vmem:[#allocation2 + $0x10] sm:$0xff]
          %v2636 = vld [vmem:[#allocation2 + $0x18] sm:$0xff]
          %v2637 = vld [vmem:[#allocation2 + $0x20] sm:$0xff]
          %v2638 = vld [vmem:[#allocation2 + $0x28] sm:$0xff]
          %v2639 = vld [vmem:[#allocation2 + $0x30] sm:$0xff]
          %v2640 = vld [vmem:[#allocation2 + $0x38] sm:$0xff]
          %v2641 = vld [vmem:[#allocation8] sm:$0xff]
          %v2643 = vlaneseq
          %v2644 = vshrl.u32 %v2643, 7
          %v2645 = vsub.s32 0, %v2644
          %v2646 = vrot.slane %v2641, %v2645
          %v2647 = vlaneseq
          %v2648 = vshrl.u32 %v2647, 7
          %v2649 = vsub.s32 1, %v2648
          %v2650 = vrot.slane %v2641, %v2649
          %v2651 = vlaneseq
          %v2652 = vshrl.u32 %v2651, 7
          %v2653 = vsub.s32 2, %v2652
          %v2654 = vrot.slane %v2641, %v2653
          %v2655 = vlaneseq
          %v2656 = vshrl.u32 %v2655, 7
          %v2657 = vsub.s32 3, %v2656
          %v2658 = vrot.slane %v2641, %v2657
          %v2659 = vlaneseq
          %v2660 = vshrl.u32 %v2659, 7
          %v2661 = vsub.s32 4, %v2660
          %v2662 = vrot.slane %v2641, %v2661
          %v2663 = vlaneseq
          %v2664 = vshrl.u32 %v2663, 7
          %v2665 = vsub.s32 5, %v2664
          %v2666 = vrot.slane %v2641, %v2665
          %v2667 = vlaneseq
          %v2668 = vshrl.u32 %v2667, 7
          %v2669 = vsub.s32 6, %v2668
          %v2670 = vrot.slane %v2641, %v2669
          %v2671 = vlaneseq
          %v2672 = vshrl.u32 %v2671, 7
          %v2673 = vsub.s32 7, %v2672
          %v2674 = vrot.slane %v2641, %v2673
          %v2683 = vadd.f32 %v2633, %v2646
          %v2684 = vadd.f32 %v2634, %v2650
          %v2685 = vadd.f32 %v2635, %v2654
          %v2686 = vadd.f32 %v2636, %v2658
          %v2687 = vadd.f32 %v2637, %v2662
          %v2688 = vadd.f32 %v2638, %v2666
          %v2689 = vadd.f32 %v2639, %v2670
          %v2690 = vadd.f32 %v2640, %v2674
          %vm2691 = vcmp.gt.f32.partialorder %v2683, 0.0
          %vm2692 = vcmp.gt.f32.partialorder %v2684, 0.0
          %vm2693 = vcmp.gt.f32.partialorder %v2685, 0.0
          %vm2694 = vcmp.gt.f32.partialorder %v2686, 0.0
          %vm2695 = vcmp.gt.f32.partialorder %v2687, 0.0
          %vm2696 = vcmp.gt.f32.partialorder %v2688, 0.0
          %vm2697 = vcmp.gt.f32.partialorder %v2689, 0.0
          %vm2698 = vcmp.gt.f32.partialorder %v2690, 0.0
          %v2699 = vmul.f32 %v2683, 1.442695
          %v2700 = vpow.pop %v2699
          %v2701 = vmul.f32 %v2684, 1.442695
          %v2702 = vpow.pop %v2701
          %v2703 = vmul.f32 %v2685, 1.442695
          %v2704 = vpow.pop %v2703
          %v2705 = vmul.f32 %v2686, 1.442695
          %v2706 = vpow.pop %v2705
          %v2707 = vmul.f32 %v2687, 1.442695
          %v2708 = vpow.pop %v2707
          %v2709 = vmul.f32 %v2688, 1.442695
          %v2710 = vpow.pop %v2709
          %v2711 = vmul.f32 %v2689, 1.442695
          %v2712 = vpow.pop %v2711
          %v2713 = vmul.f32 %v2690, 1.442695
          %v2714 = vpow.pop %v2713
          %v2715 = vsub.f32 %v2700, 1.0
          %v2716 = vsub.f32 %v2702, 1.0
          %v2717 = vsub.f32 %v2704, 1.0
          %v2718 = vsub.f32 %v2706, 1.0
          %v2719 = vsub.f32 %v2708, 1.0
          %v2720 = vsub.f32 %v2710, 1.0
          %v2721 = vsub.f32 %v2712, 1.0
          %v2722 = vsub.f32 %v2714, 1.0
          %v2723 = vsel %vm2691, %v2683, %v2715
          %v2724 = vsel %vm2692, %v2684, %v2716
          %v2725 = vsel %vm2693, %v2685, %v2717
          %v2726 = vsel %vm2694, %v2686, %v2718
          %v2727 = vsel %vm2695, %v2687, %v2719
          %v2728 = vsel %vm2696, %v2688, %v2720
          %v2729 = vsel %vm2697, %v2689, %v2721
          %v2730 = vsel %vm2698, %v2690, %v2722
          %v2731 = vpack.c.bf16 %v2723, %v2723
          %v2732 = vpack.c.bf16 %v2724, %v2724
          %v2733 = vpack.c.bf16 %v2725, %v2725
          %v2734 = vpack.c.bf16 %v2726, %v2726
          %v2735 = vpack.c.bf16 %v2727, %v2727
          %v2736 = vpack.c.bf16 %v2728, %v2728
          %v2737 = vpack.c.bf16 %v2729, %v2729
          %v2738 = vpack.c.bf16 %v2730, %v2730
          %v2739 = vld [vmem:[#allocation9] sm:$0xff]
          %v2740 = vld [vmem:[#allocation9 + $0x8] sm:$0xff]
          %v2741 = vld [vmem:[#allocation9 + $0x10] sm:$0xff]
          %v2742 = vld [vmem:[#allocation9 + $0x18] sm:$0xff]
          %v2743 = vld [vmem:[#allocation9 + $0x20] sm:$0xff]
          %v2744 = vld [vmem:[#allocation9 + $0x28] sm:$0xff]
          %v2745 = vld [vmem:[#allocation9 + $0x30] sm:$0xff]
          %v2746 = vld [vmem:[#allocation9 + $0x38] sm:$0xff]
          %v2747 = vld [vmem:[#allocation9 + $0x40] sm:$0xff]
          %v2748 = vld [vmem:[#allocation9 + $0x48] sm:$0xff]
          %v2749 = vld [vmem:[#allocation9 + $0x50] sm:$0xff]
          %v2750 = vld [vmem:[#allocation9 + $0x58] sm:$0xff]
          %v2751 = vld [vmem:[#allocation9 + $0x60] sm:$0xff]
          %v2752 = vld [vmem:[#allocation9 + $0x68] sm:$0xff]
          %v2753 = vld [vmem:[#allocation9 + $0x70] sm:$0xff]
          %v2754 = vld [vmem:[#allocation9 + $0x78] sm:$0xff]
          %v2755 = vld [vmem:[#allocation9 + $0x80] sm:$0xff]
          %v2756 = vld [vmem:[#allocation9 + $0x88] sm:$0xff]
          %v2757 = vld [vmem:[#allocation9 + $0x90] sm:$0xff]
          %v2758 = vld [vmem:[#allocation9 + $0x98] sm:$0xff]
          %v2759 = vld [vmem:[#allocation9 + $0xa0] sm:$0xff]
          %v2760 = vld [vmem:[#allocation9 + $0xa8] sm:$0xff]
          %v2761 = vld [vmem:[#allocation9 + $0xb0] sm:$0xff]
          %v2762 = vld [vmem:[#allocation9 + $0xb8] sm:$0xff]
          %v2763 = vld [vmem:[#allocation9 + $0xc0] sm:$0xff]
          %v2764 = vld [vmem:[#allocation9 + $0xc8] sm:$0xff]
          %v2765 = vld [vmem:[#allocation9 + $0xd0] sm:$0xff]
          %v2766 = vld [vmem:[#allocation9 + $0xd8] sm:$0xff]
          %v2767 = vld [vmem:[#allocation9 + $0xe0] sm:$0xff]
          %v2768 = vld [vmem:[#allocation9 + $0xe8] sm:$0xff]
          %v2769 = vld [vmem:[#allocation9 + $0xf0] sm:$0xff]
          %v2770 = vld [vmem:[#allocation9 + $0xf8] sm:$0xff]
          %v2771 = vld [vmem:[#allocation9 + $0x100] sm:$0xff]
          %v2772 = vld [vmem:[#allocation9 + $0x108] sm:$0xff]
          %v2773 = vld [vmem:[#allocation9 + $0x110] sm:$0xff]
          %v2774 = vld [vmem:[#allocation9 + $0x118] sm:$0xff]
          %v2775 = vld [vmem:[#allocation9 + $0x120] sm:$0xff]
          %v2776 = vld [vmem:[#allocation9 + $0x128] sm:$0xff]
          %v2777 = vld [vmem:[#allocation9 + $0x130] sm:$0xff]
          %v2778 = vld [vmem:[#allocation9 + $0x138] sm:$0xff]
          %v2779 = vld [vmem:[#allocation9 + $0x140] sm:$0xff]
          %v2780 = vld [vmem:[#allocation9 + $0x148] sm:$0xff]
          %v2781 = vld [vmem:[#allocation9 + $0x150] sm:$0xff]
          %v2782 = vld [vmem:[#allocation9 + $0x158] sm:$0xff]
          %v2783 = vld [vmem:[#allocation9 + $0x160] sm:$0xff]
          %v2784 = vld [vmem:[#allocation9 + $0x168] sm:$0xff]
          %v2785 = vld [vmem:[#allocation9 + $0x170] sm:$0xff]
          %v2786 = vld [vmem:[#allocation9 + $0x178] sm:$0xff]
          %v2787 = vld [vmem:[#allocation9 + $0x180] sm:$0xff]
          %v2788 = vld [vmem:[#allocation9 + $0x188] sm:$0xff]
          %v2789 = vld [vmem:[#allocation9 + $0x190] sm:$0xff]
          %v2790 = vld [vmem:[#allocation9 + $0x198] sm:$0xff]
          %v2791 = vld [vmem:[#allocation9 + $0x1a0] sm:$0xff]
          %v2792 = vld [vmem:[#allocation9 + $0x1a8] sm:$0xff]
          %v2793 = vld [vmem:[#allocation9 + $0x1b0] sm:$0xff]
          %v2794 = vld [vmem:[#allocation9 + $0x1b8] sm:$0xff]
          %v2795 = vld [vmem:[#allocation9 + $0x1c0] sm:$0xff]
          %v2796 = vld [vmem:[#allocation9 + $0x1c8] sm:$0xff]
          %v2797 = vld [vmem:[#allocation9 + $0x1d0] sm:$0xff]
          %v2798 = vld [vmem:[#allocation9 + $0x1d8] sm:$0xff]
          %v2799 = vld [vmem:[#allocation9 + $0x1e0] sm:$0xff]
          %v2800 = vld [vmem:[#allocation9 + $0x1e8] sm:$0xff]
          %v2801 = vld [vmem:[#allocation9 + $0x1f0] sm:$0xff]
          %v2802 = vld [vmem:[#allocation9 + $0x1f8] sm:$0xff]
          %v2803 = vld [vmem:[#allocation9 + $0x200] sm:$0xff]
          %v2804 = vld [vmem:[#allocation9 + $0x208] sm:$0xff]
          %v2805 = vld [vmem:[#allocation9 + $0x210] sm:$0xff]
          %v2806 = vld [vmem:[#allocation9 + $0x218] sm:$0xff]
          %v2807 = vld [vmem:[#allocation9 + $0x220] sm:$0xff]
          %v2808 = vld [vmem:[#allocation9 + $0x228] sm:$0xff]
          %v2809 = vld [vmem:[#allocation9 + $0x230] sm:$0xff]
          %v2810 = vld [vmem:[#allocation9 + $0x238] sm:$0xff]
          %v2811 = vld [vmem:[#allocation9 + $0x240] sm:$0xff]
          %v2812 = vld [vmem:[#allocation9 + $0x248] sm:$0xff]
          %v2813 = vld [vmem:[#allocation9 + $0x250] sm:$0xff]
          %v2814 = vld [vmem:[#allocation9 + $0x258] sm:$0xff]
          %v2815 = vld [vmem:[#allocation9 + $0x260] sm:$0xff]
          %v2816 = vld [vmem:[#allocation9 + $0x268] sm:$0xff]
          %v2817 = vld [vmem:[#allocation9 + $0x270] sm:$0xff]
          %v2818 = vld [vmem:[#allocation9 + $0x278] sm:$0xff]
          %v2819 = vld [vmem:[#allocation9 + $0x280] sm:$0xff]
          %v2820 = vld [vmem:[#allocation9 + $0x288] sm:$0xff]
          %v2821 = vld [vmem:[#allocation9 + $0x290] sm:$0xff]
          %v2822 = vld [vmem:[#allocation9 + $0x298] sm:$0xff]
          %v2823 = vld [vmem:[#allocation9 + $0x2a0] sm:$0xff]
          %v2824 = vld [vmem:[#allocation9 + $0x2a8] sm:$0xff]
          %v2825 = vld [vmem:[#allocation9 + $0x2b0] sm:$0xff]
          %v2826 = vld [vmem:[#allocation9 + $0x2b8] sm:$0xff]
          %v2827 = vld [vmem:[#allocation9 + $0x2c0] sm:$0xff]
          %v2828 = vld [vmem:[#allocation9 + $0x2c8] sm:$0xff]
          %v2829 = vld [vmem:[#allocation9 + $0x2d0] sm:$0xff]
          %v2830 = vld [vmem:[#allocation9 + $0x2d8] sm:$0xff]
          %v2831 = vld [vmem:[#allocation9 + $0x2e0] sm:$0xff]
          %v2832 = vld [vmem:[#allocation9 + $0x2e8] sm:$0xff]
          %v2833 = vld [vmem:[#allocation9 + $0x2f0] sm:$0xff]
          %v2834 = vld [vmem:[#allocation9 + $0x2f8] sm:$0xff]
          %v2835 = vld [vmem:[#allocation9 + $0x300] sm:$0xff]
          %v2836 = vld [vmem:[#allocation9 + $0x308] sm:$0xff]
          %v2837 = vld [vmem:[#allocation9 + $0x310] sm:$0xff]
          %v2838 = vld [vmem:[#allocation9 + $0x318] sm:$0xff]
          %v2839 = vld [vmem:[#allocation9 + $0x320] sm:$0xff]
          %v2840 = vld [vmem:[#allocation9 + $0x328] sm:$0xff]
          %v2841 = vld [vmem:[#allocation9 + $0x330] sm:$0xff]
          %v2842 = vld [vmem:[#allocation9 + $0x338] sm:$0xff]
          %v2843 = vld [vmem:[#allocation9 + $0x340] sm:$0xff]
          %v2844 = vld [vmem:[#allocation9 + $0x348] sm:$0xff]
          %v2845 = vld [vmem:[#allocation9 + $0x350] sm:$0xff]
          %v2846 = vld [vmem:[#allocation9 + $0x358] sm:$0xff]
          %v2847 = vld [vmem:[#allocation9 + $0x360] sm:$0xff]
          %v2848 = vld [vmem:[#allocation9 + $0x368] sm:$0xff]
          %v2849 = vld [vmem:[#allocation9 + $0x370] sm:$0xff]
          %v2850 = vld [vmem:[#allocation9 + $0x378] sm:$0xff]
          %v2851 = vld [vmem:[#allocation9 + $0x380] sm:$0xff]
          %v2852 = vld [vmem:[#allocation9 + $0x388] sm:$0xff]
          %v2853 = vld [vmem:[#allocation9 + $0x390] sm:$0xff]
          %v2854 = vld [vmem:[#allocation9 + $0x398] sm:$0xff]
          %v2855 = vld [vmem:[#allocation9 + $0x3a0] sm:$0xff]
          %v2856 = vld [vmem:[#allocation9 + $0x3a8] sm:$0xff]
          %v2857 = vld [vmem:[#allocation9 + $0x3b0] sm:$0xff]
          %v2858 = vld [vmem:[#allocation9 + $0x3b8] sm:$0xff]
          %v2859 = vld [vmem:[#allocation9 + $0x3c0] sm:$0xff]
          %v2860 = vld [vmem:[#allocation9 + $0x3c8] sm:$0xff]
          %v2861 = vld [vmem:[#allocation9 + $0x3d0] sm:$0xff]
          %v2862 = vld [vmem:[#allocation9 + $0x3d8] sm:$0xff]
          %v2863 = vld [vmem:[#allocation9 + $0x3e0] sm:$0xff]
          %v2864 = vld [vmem:[#allocation9 + $0x3e8] sm:$0xff]
          %v2865 = vld [vmem:[#allocation9 + $0x3f0] sm:$0xff]
          %v2866 = vld [vmem:[#allocation9 + $0x3f8] sm:$0xff]
          %v2867 = vld [vmem:[#allocation9 + $0x400] sm:$0xff]
          %v2868 = vld [vmem:[#allocation9 + $0x408] sm:$0xff]
          %v2869 = vld [vmem:[#allocation9 + $0x410] sm:$0xff]
          %v2870 = vld [vmem:[#allocation9 + $0x418] sm:$0xff]
          %v2871 = vld [vmem:[#allocation9 + $0x420] sm:$0xff]
          %v2872 = vld [vmem:[#allocation9 + $0x428] sm:$0xff]
          %v2873 = vld [vmem:[#allocation9 + $0x430] sm:$0xff]
          %v2874 = vld [vmem:[#allocation9 + $0x438] sm:$0xff]
          %v2875 = vld [vmem:[#allocation9 + $0x440] sm:$0xff]
          %v2876 = vld [vmem:[#allocation9 + $0x448] sm:$0xff]
          %v2877 = vld [vmem:[#allocation9 + $0x450] sm:$0xff]
          %v2878 = vld [vmem:[#allocation9 + $0x458] sm:$0xff]
          %v2879 = vld [vmem:[#allocation9 + $0x460] sm:$0xff]
          %v2880 = vld [vmem:[#allocation9 + $0x468] sm:$0xff]
          %v2881 = vld [vmem:[#allocation9 + $0x470] sm:$0xff]
          %v2882 = vld [vmem:[#allocation9 + $0x478] sm:$0xff]
          %v2883 = vld [vmem:[#allocation9 + $0x480] sm:$0xff]
          %v2884 = vld [vmem:[#allocation9 + $0x488] sm:$0xff]
          %v2885 = vld [vmem:[#allocation9 + $0x490] sm:$0xff]
          %v2886 = vld [vmem:[#allocation9 + $0x498] sm:$0xff]
          %v2887 = vld [vmem:[#allocation9 + $0x4a0] sm:$0xff]
          %v2888 = vld [vmem:[#allocation9 + $0x4a8] sm:$0xff]
          %v2889 = vld [vmem:[#allocation9 + $0x4b0] sm:$0xff]
          %v2890 = vld [vmem:[#allocation9 + $0x4b8] sm:$0xff]
          %v2891 = vld [vmem:[#allocation9 + $0x4c0] sm:$0xff]
          %v2892 = vld [vmem:[#allocation9 + $0x4c8] sm:$0xff]
          %v2893 = vld [vmem:[#allocation9 + $0x4d0] sm:$0xff]
          %v2894 = vld [vmem:[#allocation9 + $0x4d8] sm:$0xff]
          %v2895 = vld [vmem:[#allocation9 + $0x4e0] sm:$0xff]
          %v2896 = vld [vmem:[#allocation9 + $0x4e8] sm:$0xff]
          %v2897 = vld [vmem:[#allocation9 + $0x4f0] sm:$0xff]
          %v2898 = vld [vmem:[#allocation9 + $0x4f8] sm:$0xff]
          %v2899 = vld [vmem:[#allocation9 + $0x500] sm:$0xff]
          %v2900 = vld [vmem:[#allocation9 + $0x508] sm:$0xff]
          %v2901 = vld [vmem:[#allocation9 + $0x510] sm:$0xff]
          %v2902 = vld [vmem:[#allocation9 + $0x518] sm:$0xff]
          %v2903 = vld [vmem:[#allocation9 + $0x520] sm:$0xff]
          %v2904 = vld [vmem:[#allocation9 + $0x528] sm:$0xff]
          %v2905 = vld [vmem:[#allocation9 + $0x530] sm:$0xff]
          %v2906 = vld [vmem:[#allocation9 + $0x538] sm:$0xff]
          %v2907 = vld [vmem:[#allocation9 + $0x540] sm:$0xff]
          %v2908 = vld [vmem:[#allocation9 + $0x548] sm:$0xff]
          %v2909 = vld [vmem:[#allocation9 + $0x550] sm:$0xff]
          %v2910 = vld [vmem:[#allocation9 + $0x558] sm:$0xff]
          %v2911 = vld [vmem:[#allocation9 + $0x560] sm:$0xff]
          %v2912 = vld [vmem:[#allocation9 + $0x568] sm:$0xff]
          %v2913 = vld [vmem:[#allocation9 + $0x570] sm:$0xff]
          %v2914 = vld [vmem:[#allocation9 + $0x578] sm:$0xff]
          %v2915 = vld [vmem:[#allocation9 + $0x580] sm:$0xff]
          %v2916 = vld [vmem:[#allocation9 + $0x588] sm:$0xff]
          %v2917 = vld [vmem:[#allocation9 + $0x590] sm:$0xff]
          %v2918 = vld [vmem:[#allocation9 + $0x598] sm:$0xff]
          %v2919 = vld [vmem:[#allocation9 + $0x5a0] sm:$0xff]
          %v2920 = vld [vmem:[#allocation9 + $0x5a8] sm:$0xff]
          %v2921 = vld [vmem:[#allocation9 + $0x5b0] sm:$0xff]
          %v2922 = vld [vmem:[#allocation9 + $0x5b8] sm:$0xff]
          %v2923 = vld [vmem:[#allocation9 + $0x5c0] sm:$0xff]
          %v2924 = vld [vmem:[#allocation9 + $0x5c8] sm:$0xff]
          %v2925 = vld [vmem:[#allocation9 + $0x5d0] sm:$0xff]
          %v2926 = vld [vmem:[#allocation9 + $0x5d8] sm:$0xff]
          %v2927 = vld [vmem:[#allocation9 + $0x5e0] sm:$0xff]
          %v2928 = vld [vmem:[#allocation9 + $0x5e8] sm:$0xff]
          %v2929 = vld [vmem:[#allocation9 + $0x5f0] sm:$0xff]
          %v2930 = vld [vmem:[#allocation9 + $0x5f8] sm:$0xff]
          %v2931 = vld [vmem:[#allocation9 + $0x600] sm:$0xff]
          %v2932 = vld [vmem:[#allocation9 + $0x608] sm:$0xff]
          %v2933 = vld [vmem:[#allocation9 + $0x610] sm:$0xff]
          %v2934 = vld [vmem:[#allocation9 + $0x618] sm:$0xff]
          %v2935 = vld [vmem:[#allocation9 + $0x620] sm:$0xff]
          %v2936 = vld [vmem:[#allocation9 + $0x628] sm:$0xff]
          %v2937 = vld [vmem:[#allocation9 + $0x630] sm:$0xff]
          %v2938 = vld [vmem:[#allocation9 + $0x638] sm:$0xff]
          %v2939 = vld [vmem:[#allocation9 + $0x640] sm:$0xff]
          %v2940 = vld [vmem:[#allocation9 + $0x648] sm:$0xff]
          %v2941 = vld [vmem:[#allocation9 + $0x650] sm:$0xff]
          %v2942 = vld [vmem:[#allocation9 + $0x658] sm:$0xff]
          %v2943 = vld [vmem:[#allocation9 + $0x660] sm:$0xff]
          %v2944 = vld [vmem:[#allocation9 + $0x668] sm:$0xff]
          %v2945 = vld [vmem:[#allocation9 + $0x670] sm:$0xff]
          %v2946 = vld [vmem:[#allocation9 + $0x678] sm:$0xff]
          %v2947 = vld [vmem:[#allocation9 + $0x680] sm:$0xff]
          %v2948 = vld [vmem:[#allocation9 + $0x688] sm:$0xff]
          %v2949 = vld [vmem:[#allocation9 + $0x690] sm:$0xff]
          %v2950 = vld [vmem:[#allocation9 + $0x698] sm:$0xff]
          %v2951 = vld [vmem:[#allocation9 + $0x6a0] sm:$0xff]
          %v2952 = vld [vmem:[#allocation9 + $0x6a8] sm:$0xff]
          %v2953 = vld [vmem:[#allocation9 + $0x6b0] sm:$0xff]
          %v2954 = vld [vmem:[#allocation9 + $0x6b8] sm:$0xff]
          %v2955 = vld [vmem:[#allocation9 + $0x6c0] sm:$0xff]
          %v2956 = vld [vmem:[#allocation9 + $0x6c8] sm:$0xff]
          %v2957 = vld [vmem:[#allocation9 + $0x6d0] sm:$0xff]
          %v2958 = vld [vmem:[#allocation9 + $0x6d8] sm:$0xff]
          %v2959 = vld [vmem:[#allocation9 + $0x6e0] sm:$0xff]
          %v2960 = vld [vmem:[#allocation9 + $0x6e8] sm:$0xff]
          %v2961 = vld [vmem:[#allocation9 + $0x6f0] sm:$0xff]
          %v2962 = vld [vmem:[#allocation9 + $0x6f8] sm:$0xff]
          %v2963 = vld [vmem:[#allocation9 + $0x700] sm:$0xff]
          %v2964 = vld [vmem:[#allocation9 + $0x708] sm:$0xff]
          %v2965 = vld [vmem:[#allocation9 + $0x710] sm:$0xff]
          %v2966 = vld [vmem:[#allocation9 + $0x718] sm:$0xff]
          %v2967 = vld [vmem:[#allocation9 + $0x720] sm:$0xff]
          %v2968 = vld [vmem:[#allocation9 + $0x728] sm:$0xff]
          %v2969 = vld [vmem:[#allocation9 + $0x730] sm:$0xff]
          %v2970 = vld [vmem:[#allocation9 + $0x738] sm:$0xff]
          %v2971 = vld [vmem:[#allocation9 + $0x740] sm:$0xff]
          %v2972 = vld [vmem:[#allocation9 + $0x748] sm:$0xff]
          %v2973 = vld [vmem:[#allocation9 + $0x750] sm:$0xff]
          %v2974 = vld [vmem:[#allocation9 + $0x758] sm:$0xff]
          %v2975 = vld [vmem:[#allocation9 + $0x760] sm:$0xff]
          %v2976 = vld [vmem:[#allocation9 + $0x768] sm:$0xff]
          %v2977 = vld [vmem:[#allocation9 + $0x770] sm:$0xff]
          %v2978 = vld [vmem:[#allocation9 + $0x778] sm:$0xff]
          %v2979 = vld [vmem:[#allocation9 + $0x780] sm:$0xff]
          %v2980 = vld [vmem:[#allocation9 + $0x788] sm:$0xff]
          %v2981 = vld [vmem:[#allocation9 + $0x790] sm:$0xff]
          %v2982 = vld [vmem:[#allocation9 + $0x798] sm:$0xff]
          %v2983 = vld [vmem:[#allocation9 + $0x7a0] sm:$0xff]
          %v2984 = vld [vmem:[#allocation9 + $0x7a8] sm:$0xff]
          %v2985 = vld [vmem:[#allocation9 + $0x7b0] sm:$0xff]
          %v2986 = vld [vmem:[#allocation9 + $0x7b8] sm:$0xff]
          %v2987 = vld [vmem:[#allocation9 + $0x7c0] sm:$0xff]
          %v2988 = vld [vmem:[#allocation9 + $0x7c8] sm:$0xff]
          %v2989 = vld [vmem:[#allocation9 + $0x7d0] sm:$0xff]
          %v2990 = vld [vmem:[#allocation9 + $0x7d8] sm:$0xff]
          %v2991 = vld [vmem:[#allocation9 + $0x7e0] sm:$0xff]
          %v2992 = vld [vmem:[#allocation9 + $0x7e8] sm:$0xff]
          %v2993 = vld [vmem:[#allocation9 + $0x7f0] sm:$0xff]
          %v2994 = vld [vmem:[#allocation9 + $0x7f8] sm:$0xff]
          %v2995 = vld [vmem:[#allocation9 + $0x800] sm:$0xff]
          %v2996 = vld [vmem:[#allocation9 + $0x808] sm:$0xff]
          %v2997 = vld [vmem:[#allocation9 + $0x810] sm:$0xff]
          %v2998 = vld [vmem:[#allocation9 + $0x818] sm:$0xff]
          %v2999 = vld [vmem:[#allocation9 + $0x820] sm:$0xff]
          %v3000 = vld [vmem:[#allocation9 + $0x828] sm:$0xff]
          %v3001 = vld [vmem:[#allocation9 + $0x830] sm:$0xff]
          %v3002 = vld [vmem:[#allocation9 + $0x838] sm:$0xff]
          %v3003 = vld [vmem:[#allocation9 + $0x840] sm:$0xff]
          %v3004 = vld [vmem:[#allocation9 + $0x848] sm:$0xff]
          %v3005 = vld [vmem:[#allocation9 + $0x850] sm:$0xff]
          %v3006 = vld [vmem:[#allocation9 + $0x858] sm:$0xff]
          %v3007 = vld [vmem:[#allocation9 + $0x860] sm:$0xff]
          %v3008 = vld [vmem:[#allocation9 + $0x868] sm:$0xff]
          %v3009 = vld [vmem:[#allocation9 + $0x870] sm:$0xff]
          %v3010 = vld [vmem:[#allocation9 + $0x878] sm:$0xff]
          %v3011 = vld [vmem:[#allocation9 + $0x880] sm:$0xff]
          %v3012 = vld [vmem:[#allocation9 + $0x888] sm:$0xff]
          %v3013 = vld [vmem:[#allocation9 + $0x890] sm:$0xff]
          %v3014 = vld [vmem:[#allocation9 + $0x898] sm:$0xff]
          %v3015 = vld [vmem:[#allocation9 + $0x8a0] sm:$0xff]
          %v3016 = vld [vmem:[#allocation9 + $0x8a8] sm:$0xff]
          %v3017 = vld [vmem:[#allocation9 + $0x8b0] sm:$0xff]
          %v3018 = vld [vmem:[#allocation9 + $0x8b8] sm:$0xff]
          %v3019 = vld [vmem:[#allocation9 + $0x8c0] sm:$0xff]
          %v3020 = vld [vmem:[#allocation9 + $0x8c8] sm:$0xff]
          %v3021 = vld [vmem:[#allocation9 + $0x8d0] sm:$0xff]
          %v3022 = vld [vmem:[#allocation9 + $0x8d8] sm:$0xff]
          %v3023 = vld [vmem:[#allocation9 + $0x8e0] sm:$0xff]
          %v3024 = vld [vmem:[#allocation9 + $0x8e8] sm:$0xff]
          %v3025 = vld [vmem:[#allocation9 + $0x8f0] sm:$0xff]
          %v3026 = vld [vmem:[#allocation9 + $0x8f8] sm:$0xff]
          %v3027 = vld [vmem:[#allocation9 + $0x900] sm:$0xff]
          %v3028 = vld [vmem:[#allocation9 + $0x908] sm:$0xff]
          %v3029 = vld [vmem:[#allocation9 + $0x910] sm:$0xff]
          %v3030 = vld [vmem:[#allocation9 + $0x918] sm:$0xff]
          %v3031 = vld [vmem:[#allocation9 + $0x920] sm:$0xff]
          %v3032 = vld [vmem:[#allocation9 + $0x928] sm:$0xff]
          %v3033 = vld [vmem:[#allocation9 + $0x930] sm:$0xff]
          %v3034 = vld [vmem:[#allocation9 + $0x938] sm:$0xff]
          %v3035 = vld [vmem:[#allocation9 + $0x940] sm:$0xff]
          %v3036 = vld [vmem:[#allocation9 + $0x948] sm:$0xff]
          %v3037 = vld [vmem:[#allocation9 + $0x950] sm:$0xff]
          %v3038 = vld [vmem:[#allocation9 + $0x958] sm:$0xff]
          %v3039 = vld [vmem:[#allocation9 + $0x960] sm:$0xff]
          %v3040 = vld [vmem:[#allocation9 + $0x968] sm:$0xff]
          %v3041 = vld [vmem:[#allocation9 + $0x970] sm:$0xff]
          %v3042 = vld [vmem:[#allocation9 + $0x978] sm:$0xff]
          %v3043 = vld [vmem:[#allocation9 + $0x980] sm:$0xff]
          %v3044 = vld [vmem:[#allocation9 + $0x988] sm:$0xff]
          %v3045 = vld [vmem:[#allocation9 + $0x990] sm:$0xff]
          %v3046 = vld [vmem:[#allocation9 + $0x998] sm:$0xff]
          %v3047 = vld [vmem:[#allocation9 + $0x9a0] sm:$0xff]
          %v3048 = vld [vmem:[#allocation9 + $0x9a8] sm:$0xff]
          %v3049 = vld [vmem:[#allocation9 + $0x9b0] sm:$0xff]
          %v3050 = vld [vmem:[#allocation9 + $0x9b8] sm:$0xff]
          %v3051 = vld [vmem:[#allocation9 + $0x9c0] sm:$0xff]
          %v3052 = vld [vmem:[#allocation9 + $0x9c8] sm:$0xff]
          %v3053 = vld [vmem:[#allocation9 + $0x9d0] sm:$0xff]
          %v3054 = vld [vmem:[#allocation9 + $0x9d8] sm:$0xff]
          %v3055 = vld [vmem:[#allocation9 + $0x9e0] sm:$0xff]
          %v3056 = vld [vmem:[#allocation9 + $0x9e8] sm:$0xff]
          %v3057 = vld [vmem:[#allocation9 + $0x9f0] sm:$0xff]
          %v3058 = vld [vmem:[#allocation9 + $0x9f8] sm:$0xff]
          %v3059 = vld [vmem:[#allocation9 + $0xa00] sm:$0xff]
          %v3060 = vld [vmem:[#allocation9 + $0xa08] sm:$0xff]
          %v3061 = vld [vmem:[#allocation9 + $0xa10] sm:$0xff]
          %v3062 = vld [vmem:[#allocation9 + $0xa18] sm:$0xff]
          %v3063 = vld [vmem:[#allocation9 + $0xa20] sm:$0xff]
          %v3064 = vld [vmem:[#allocation9 + $0xa28] sm:$0xff]
          %v3065 = vld [vmem:[#allocation9 + $0xa30] sm:$0xff]
          %v3066 = vld [vmem:[#allocation9 + $0xa38] sm:$0xff]
          %v3067 = vld [vmem:[#allocation9 + $0xa40] sm:$0xff]
          %v3068 = vld [vmem:[#allocation9 + $0xa48] sm:$0xff]
          %v3069 = vld [vmem:[#allocation9 + $0xa50] sm:$0xff]
          %v3070 = vld [vmem:[#allocation9 + $0xa58] sm:$0xff]
          %v3071 = vld [vmem:[#allocation9 + $0xa60] sm:$0xff]
          %v3072 = vld [vmem:[#allocation9 + $0xa68] sm:$0xff]
          %v3073 = vld [vmem:[#allocation9 + $0xa70] sm:$0xff]
          %v3074 = vld [vmem:[#allocation9 + $0xa78] sm:$0xff]
          %v3075 = vld [vmem:[#allocation9 + $0xa80] sm:$0xff]
          %v3076 = vld [vmem:[#allocation9 + $0xa88] sm:$0xff]
          %v3077 = vld [vmem:[#allocation9 + $0xa90] sm:$0xff]
          %v3078 = vld [vmem:[#allocation9 + $0xa98] sm:$0xff]
          %v3079 = vld [vmem:[#allocation9 + $0xaa0] sm:$0xff]
          %v3080 = vld [vmem:[#allocation9 + $0xaa8] sm:$0xff]
          %v3081 = vld [vmem:[#allocation9 + $0xab0] sm:$0xff]
          %v3082 = vld [vmem:[#allocation9 + $0xab8] sm:$0xff]
          %v3083 = vld [vmem:[#allocation9 + $0xac0] sm:$0xff]
          %v3084 = vld [vmem:[#allocation9 + $0xac8] sm:$0xff]
          %v3085 = vld [vmem:[#allocation9 + $0xad0] sm:$0xff]
          %v3086 = vld [vmem:[#allocation9 + $0xad8] sm:$0xff]
          %v3087 = vld [vmem:[#allocation9 + $0xae0] sm:$0xff]
          %v3088 = vld [vmem:[#allocation9 + $0xae8] sm:$0xff]
          %v3089 = vld [vmem:[#allocation9 + $0xaf0] sm:$0xff]
          %v3090 = vld [vmem:[#allocation9 + $0xaf8] sm:$0xff]
          %v3091 = vld [vmem:[#allocation9 + $0xb00] sm:$0xff]
          %v3092 = vld [vmem:[#allocation9 + $0xb08] sm:$0xff]
          %v3093 = vld [vmem:[#allocation9 + $0xb10] sm:$0xff]
          %v3094 = vld [vmem:[#allocation9 + $0xb18] sm:$0xff]
          %v3095 = vld [vmem:[#allocation9 + $0xb20] sm:$0xff]
          %v3096 = vld [vmem:[#allocation9 + $0xb28] sm:$0xff]
          %v3097 = vld [vmem:[#allocation9 + $0xb30] sm:$0xff]
          %v3098 = vld [vmem:[#allocation9 + $0xb38] sm:$0xff]
          %v3099 = vld [vmem:[#allocation9 + $0xb40] sm:$0xff]
          %v3100 = vld [vmem:[#allocation9 + $0xb48] sm:$0xff]
          %v3101 = vld [vmem:[#allocation9 + $0xb50] sm:$0xff]
          %v3102 = vld [vmem:[#allocation9 + $0xb58] sm:$0xff]
          %v3103 = vld [vmem:[#allocation9 + $0xb60] sm:$0xff]
          %v3104 = vld [vmem:[#allocation9 + $0xb68] sm:$0xff]
          %v3105 = vld [vmem:[#allocation9 + $0xb70] sm:$0xff]
          %v3106 = vld [vmem:[#allocation9 + $0xb78] sm:$0xff]
          %v3107 = vld [vmem:[#allocation9 + $0xb80] sm:$0xff]
          %v3108 = vld [vmem:[#allocation9 + $0xb88] sm:$0xff]
          %v3109 = vld [vmem:[#allocation9 + $0xb90] sm:$0xff]
          %v3110 = vld [vmem:[#allocation9 + $0xb98] sm:$0xff]
          %v3111 = vld [vmem:[#allocation9 + $0xba0] sm:$0xff]
          %v3112 = vld [vmem:[#allocation9 + $0xba8] sm:$0xff]
          %v3113 = vld [vmem:[#allocation9 + $0xbb0] sm:$0xff]
          %v3114 = vld [vmem:[#allocation9 + $0xbb8] sm:$0xff]
          %v3115 = vld [vmem:[#allocation9 + $0xbc0] sm:$0xff]
          %v3116 = vld [vmem:[#allocation9 + $0xbc8] sm:$0xff]
          %v3117 = vld [vmem:[#allocation9 + $0xbd0] sm:$0xff]
          %v3118 = vld [vmem:[#allocation9 + $0xbd8] sm:$0xff]
          %v3119 = vld [vmem:[#allocation9 + $0xbe0] sm:$0xff]
          %v3120 = vld [vmem:[#allocation9 + $0xbe8] sm:$0xff]
          %v3121 = vld [vmem:[#allocation9 + $0xbf0] sm:$0xff]
          %v3122 = vld [vmem:[#allocation9 + $0xbf8] sm:$0xff]
          %v3123 = vld [vmem:[#allocation9 + $0xc00] sm:$0xff]
          %v3124 = vld [vmem:[#allocation9 + $0xc08] sm:$0xff]
          %v3125 = vld [vmem:[#allocation9 + $0xc10] sm:$0xff]
          %v3126 = vld [vmem:[#allocation9 + $0xc18] sm:$0xff]
          %v3127 = vld [vmem:[#allocation9 + $0xc20] sm:$0xff]
          %v3128 = vld [vmem:[#allocation9 + $0xc28] sm:$0xff]
          %v3129 = vld [vmem:[#allocation9 + $0xc30] sm:$0xff]
          %v3130 = vld [vmem:[#allocation9 + $0xc38] sm:$0xff]
          %v3131 = vld [vmem:[#allocation9 + $0xc40] sm:$0xff]
          %v3132 = vld [vmem:[#allocation9 + $0xc48] sm:$0xff]
          %v3133 = vld [vmem:[#allocation9 + $0xc50] sm:$0xff]
          %v3134 = vld [vmem:[#allocation9 + $0xc58] sm:$0xff]
          %v3135 = vld [vmem:[#allocation9 + $0xc60] sm:$0xff]
          %v3136 = vld [vmem:[#allocation9 + $0xc68] sm:$0xff]
          %v3137 = vld [vmem:[#allocation9 + $0xc70] sm:$0xff]
          %v3138 = vld [vmem:[#allocation9 + $0xc78] sm:$0xff]
          %v3139 = vld [vmem:[#allocation9 + $0xc80] sm:$0xff]
          %v3140 = vld [vmem:[#allocation9 + $0xc88] sm:$0xff]
          %v3141 = vld [vmem:[#allocation9 + $0xc90] sm:$0xff]
          %v3142 = vld [vmem:[#allocation9 + $0xc98] sm:$0xff]
          %v3143 = vld [vmem:[#allocation9 + $0xca0] sm:$0xff]
          %v3144 = vld [vmem:[#allocation9 + $0xca8] sm:$0xff]
          %v3145 = vld [vmem:[#allocation9 + $0xcb0] sm:$0xff]
          %v3146 = vld [vmem:[#allocation9 + $0xcb8] sm:$0xff]
          %v3147 = vld [vmem:[#allocation9 + $0xcc0] sm:$0xff]
          %v3148 = vld [vmem:[#allocation9 + $0xcc8] sm:$0xff]
          %v3149 = vld [vmem:[#allocation9 + $0xcd0] sm:$0xff]
          %v3150 = vld [vmem:[#allocation9 + $0xcd8] sm:$0xff]
          %v3151 = vld [vmem:[#allocation9 + $0xce0] sm:$0xff]
          %v3152 = vld [vmem:[#allocation9 + $0xce8] sm:$0xff]
          %v3153 = vld [vmem:[#allocation9 + $0xcf0] sm:$0xff]
          %v3154 = vld [vmem:[#allocation9 + $0xcf8] sm:$0xff]
          %v3155 = vld [vmem:[#allocation9 + $0xd00] sm:$0xff]
          %v3156 = vld [vmem:[#allocation9 + $0xd08] sm:$0xff]
          %v3157 = vld [vmem:[#allocation9 + $0xd10] sm:$0xff]
          %v3158 = vld [vmem:[#allocation9 + $0xd18] sm:$0xff]
          %v3159 = vld [vmem:[#allocation9 + $0xd20] sm:$0xff]
          %v3160 = vld [vmem:[#allocation9 + $0xd28] sm:$0xff]
          %v3161 = vld [vmem:[#allocation9 + $0xd30] sm:$0xff]
          %v3162 = vld [vmem:[#allocation9 + $0xd38] sm:$0xff]
          %v3163 = vld [vmem:[#allocation9 + $0xd40] sm:$0xff]
          %v3164 = vld [vmem:[#allocation9 + $0xd48] sm:$0xff]
          %v3165 = vld [vmem:[#allocation9 + $0xd50] sm:$0xff]
          %v3166 = vld [vmem:[#allocation9 + $0xd58] sm:$0xff]
          %v3167 = vld [vmem:[#allocation9 + $0xd60] sm:$0xff]
          %v3168 = vld [vmem:[#allocation9 + $0xd68] sm:$0xff]
          %v3169 = vld [vmem:[#allocation9 + $0xd70] sm:$0xff]
          %v3170 = vld [vmem:[#allocation9 + $0xd78] sm:$0xff]
          %v3171 = vld [vmem:[#allocation9 + $0xd80] sm:$0xff]
          %v3172 = vld [vmem:[#allocation9 + $0xd88] sm:$0xff]
          %v3173 = vld [vmem:[#allocation9 + $0xd90] sm:$0xff]
          %v3174 = vld [vmem:[#allocation9 + $0xd98] sm:$0xff]
          %v3175 = vld [vmem:[#allocation9 + $0xda0] sm:$0xff]
          %v3176 = vld [vmem:[#allocation9 + $0xda8] sm:$0xff]
          %v3177 = vld [vmem:[#allocation9 + $0xdb0] sm:$0xff]
          %v3178 = vld [vmem:[#allocation9 + $0xdb8] sm:$0xff]
          %v3179 = vld [vmem:[#allocation9 + $0xdc0] sm:$0xff]
          %v3180 = vld [vmem:[#allocation9 + $0xdc8] sm:$0xff]
          %v3181 = vld [vmem:[#allocation9 + $0xdd0] sm:$0xff]
          %v3182 = vld [vmem:[#allocation9 + $0xdd8] sm:$0xff]
          %v3183 = vld [vmem:[#allocation9 + $0xde0] sm:$0xff]
          %v3184 = vld [vmem:[#allocation9 + $0xde8] sm:$0xff]
          %v3185 = vld [vmem:[#allocation9 + $0xdf0] sm:$0xff]
          %v3186 = vld [vmem:[#allocation9 + $0xdf8] sm:$0xff]
          %v3187 = vld [vmem:[#allocation9 + $0xe00] sm:$0xff]
          %v3188 = vld [vmem:[#allocation9 + $0xe08] sm:$0xff]
          %v3189 = vld [vmem:[#allocation9 + $0xe10] sm:$0xff]
          %v3190 = vld [vmem:[#allocation9 + $0xe18] sm:$0xff]
          %v3191 = vld [vmem:[#allocation9 + $0xe20] sm:$0xff]
          %v3192 = vld [vmem:[#allocation9 + $0xe28] sm:$0xff]
          %v3193 = vld [vmem:[#allocation9 + $0xe30] sm:$0xff]
          %v3194 = vld [vmem:[#allocation9 + $0xe38] sm:$0xff]
          %v3195 = vld [vmem:[#allocation9 + $0xe40] sm:$0xff]
          %v3196 = vld [vmem:[#allocation9 + $0xe48] sm:$0xff]
          %v3197 = vld [vmem:[#allocation9 + $0xe50] sm:$0xff]
          %v3198 = vld [vmem:[#allocation9 + $0xe58] sm:$0xff]
          %v3199 = vld [vmem:[#allocation9 + $0xe60] sm:$0xff]
          %v3200 = vld [vmem:[#allocation9 + $0xe68] sm:$0xff]
          %v3201 = vld [vmem:[#allocation9 + $0xe70] sm:$0xff]
          %v3202 = vld [vmem:[#allocation9 + $0xe78] sm:$0xff]
          %v3203 = vld [vmem:[#allocation9 + $0xe80] sm:$0xff]
          %v3204 = vld [vmem:[#allocation9 + $0xe88] sm:$0xff]
          %v3205 = vld [vmem:[#allocation9 + $0xe90] sm:$0xff]
          %v3206 = vld [vmem:[#allocation9 + $0xe98] sm:$0xff]
          %v3207 = vld [vmem:[#allocation9 + $0xea0] sm:$0xff]
          %v3208 = vld [vmem:[#allocation9 + $0xea8] sm:$0xff]
          %v3209 = vld [vmem:[#allocation9 + $0xeb0] sm:$0xff]
          %v3210 = vld [vmem:[#allocation9 + $0xeb8] sm:$0xff]
          %v3211 = vld [vmem:[#allocation9 + $0xec0] sm:$0xff]
          %v3212 = vld [vmem:[#allocation9 + $0xec8] sm:$0xff]
          %v3213 = vld [vmem:[#allocation9 + $0xed0] sm:$0xff]
          %v3214 = vld [vmem:[#allocation9 + $0xed8] sm:$0xff]
          %v3215 = vld [vmem:[#allocation9 + $0xee0] sm:$0xff]
          %v3216 = vld [vmem:[#allocation9 + $0xee8] sm:$0xff]
          %v3217 = vld [vmem:[#allocation9 + $0xef0] sm:$0xff]
          %v3218 = vld [vmem:[#allocation9 + $0xef8] sm:$0xff]
          %v3219 = vld [vmem:[#allocation9 + $0xf00] sm:$0xff]
          %v3220 = vld [vmem:[#allocation9 + $0xf08] sm:$0xff]
          %v3221 = vld [vmem:[#allocation9 + $0xf10] sm:$0xff]
          %v3222 = vld [vmem:[#allocation9 + $0xf18] sm:$0xff]
          %v3223 = vld [vmem:[#allocation9 + $0xf20] sm:$0xff]
          %v3224 = vld [vmem:[#allocation9 + $0xf28] sm:$0xff]
          %v3225 = vld [vmem:[#allocation9 + $0xf30] sm:$0xff]
          %v3226 = vld [vmem:[#allocation9 + $0xf38] sm:$0xff]
          %v3227 = vld [vmem:[#allocation9 + $0xf40] sm:$0xff]
          %v3228 = vld [vmem:[#allocation9 + $0xf48] sm:$0xff]
          %v3229 = vld [vmem:[#allocation9 + $0xf50] sm:$0xff]
          %v3230 = vld [vmem:[#allocation9 + $0xf58] sm:$0xff]
          %v3231 = vld [vmem:[#allocation9 + $0xf60] sm:$0xff]
          %v3232 = vld [vmem:[#allocation9 + $0xf68] sm:$0xff]
          %v3233 = vld [vmem:[#allocation9 + $0xf70] sm:$0xff]
          %v3234 = vld [vmem:[#allocation9 + $0xf78] sm:$0xff]
          %v3235 = vld [vmem:[#allocation9 + $0xf80] sm:$0xff]
          %v3236 = vld [vmem:[#allocation9 + $0xf88] sm:$0xff]
          %v3237 = vld [vmem:[#allocation9 + $0xf90] sm:$0xff]
          %v3238 = vld [vmem:[#allocation9 + $0xf98] sm:$0xff]
          %v3239 = vld [vmem:[#allocation9 + $0xfa0] sm:$0xff]
          %v3240 = vld [vmem:[#allocation9 + $0xfa8] sm:$0xff]
          %v3241 = vld [vmem:[#allocation9 + $0xfb0] sm:$0xff]
          %v3242 = vld [vmem:[#allocation9 + $0xfb8] sm:$0xff]
          %v3243 = vld [vmem:[#allocation9 + $0xfc0] sm:$0xff]
          %v3244 = vld [vmem:[#allocation9 + $0xfc8] sm:$0xff]
          %v3245 = vld [vmem:[#allocation9 + $0xfd0] sm:$0xff]
          %v3246 = vld [vmem:[#allocation9 + $0xfd8] sm:$0xff]
          %v3247 = vld [vmem:[#allocation9 + $0xfe0] sm:$0xff]
          %v3248 = vld [vmem:[#allocation9 + $0xfe8] sm:$0xff]
          %v3249 = vld [vmem:[#allocation9 + $0xff0] sm:$0xff]
          %v3250 = vld [vmem:[#allocation9 + $0xff8] sm:$0xff]
          %v3251 = vld [vmem:[#allocation11] sm:$0xff]
          %v3253 = vlaneseq
          %v3254 = vshrl.u32 %v3253, 7
          %v3255 = vsub.s32 0, %v3254
          %v3256 = vrot.slane %v3251, %v3255
          %v3257 = vlaneseq
          %v3258 = vshrl.u32 %v3257, 7
          %v3259 = vsub.s32 1, %v3258
          %v3260 = vrot.slane %v3251, %v3259
          %v3261 = vlaneseq
          %v3262 = vshrl.u32 %v3261, 7
          %v3263 = vsub.s32 2, %v3262
          %v3264 = vrot.slane %v3251, %v3263
          %v3265 = vlaneseq
          %v3266 = vshrl.u32 %v3265, 7
          %v3267 = vsub.s32 3, %v3266
          %v3268 = vrot.slane %v3251, %v3267
          %v3269 = vlaneseq
          %v3270 = vshrl.u32 %v3269, 7
          %v3271 = vsub.s32 4, %v3270
          %v3272 = vrot.slane %v3251, %v3271
          %v3273 = vlaneseq
          %v3274 = vshrl.u32 %v3273, 7
          %v3275 = vsub.s32 5, %v3274
          %v3276 = vrot.slane %v3251, %v3275
          %v3277 = vlaneseq
          %v3278 = vshrl.u32 %v3277, 7
          %v3279 = vsub.s32 6, %v3278
          %v3280 = vrot.slane %v3251, %v3279
          %v3281 = vlaneseq
          %v3282 = vshrl.u32 %v3281, 7
          %v3283 = vsub.s32 7, %v3282
          %v3284 = vrot.slane %v3251, %v3283
          %v3805 = vunpack.c.l.b16 %v2739
          %v3806 = vunpack.c.h.b16 %v2739
          %v3807 = vunpack.c.l.b16 %v2740
          %v3808 = vunpack.c.h.b16 %v2740
          %v3809 = vunpack.c.l.b16 %v2741
          %v3810 = vunpack.c.h.b16 %v2741
          %v3811 = vunpack.c.l.b16 %v2742
          %v3812 = vunpack.c.h.b16 %v2742
          %v3813 = vunpack.c.l.b16 %v2743
          %v3814 = vunpack.c.h.b16 %v2743
          %v3815 = vunpack.c.l.b16 %v2744
          %v3816 = vunpack.c.h.b16 %v2744
          %v3817 = vunpack.c.l.b16 %v2745
          %v3818 = vunpack.c.h.b16 %v2745
          %v3819 = vunpack.c.l.b16 %v2746
          %v3820 = vunpack.c.h.b16 %v2746
          %v3821 = vunpack.c.l.b16 %v2747
          %v3822 = vunpack.c.h.b16 %v2747
          %v3823 = vunpack.c.l.b16 %v2748
          %v3824 = vunpack.c.h.b16 %v2748
          %v3825 = vunpack.c.l.b16 %v2749
          %v3826 = vunpack.c.h.b16 %v2749
          %v3827 = vunpack.c.l.b16 %v2750
          %v3828 = vunpack.c.h.b16 %v2750
          %v3829 = vunpack.c.l.b16 %v2751
          %v3830 = vunpack.c.h.b16 %v2751
          %v3831 = vunpack.c.l.b16 %v2752
          %v3832 = vunpack.c.h.b16 %v2752
          %v3833 = vunpack.c.l.b16 %v2753
          %v3834 = vunpack.c.h.b16 %v2753
          %v3835 = vunpack.c.l.b16 %v2754
          %v3836 = vunpack.c.h.b16 %v2754
          %v3837 = vunpack.c.l.b16 %v2755
          %v3838 = vunpack.c.h.b16 %v2755
          %v3839 = vunpack.c.l.b16 %v2756
          %v3840 = vunpack.c.h.b16 %v2756
          %v3841 = vunpack.c.l.b16 %v2757
          %v3842 = vunpack.c.h.b16 %v2757
          %v3843 = vunpack.c.l.b16 %v2758
          %v3844 = vunpack.c.h.b16 %v2758
          %v3845 = vunpack.c.l.b16 %v2759
          %v3846 = vunpack.c.h.b16 %v2759
          %v3847 = vunpack.c.l.b16 %v2760
          %v3848 = vunpack.c.h.b16 %v2760
          %v3849 = vunpack.c.l.b16 %v2761
          %v3850 = vunpack.c.h.b16 %v2761
          %v3851 = vunpack.c.l.b16 %v2762
          %v3852 = vunpack.c.h.b16 %v2762
          %v3853 = vunpack.c.l.b16 %v2763
          %v3854 = vunpack.c.h.b16 %v2763
          %v3855 = vunpack.c.l.b16 %v2764
          %v3856 = vunpack.c.h.b16 %v2764
          %v3857 = vunpack.c.l.b16 %v2765
          %v3858 = vunpack.c.h.b16 %v2765
          %v3859 = vunpack.c.l.b16 %v2766
          %v3860 = vunpack.c.h.b16 %v2766
          %v3861 = vunpack.c.l.b16 %v2767
          %v3862 = vunpack.c.h.b16 %v2767
          %v3863 = vunpack.c.l.b16 %v2768
          %v3864 = vunpack.c.h.b16 %v2768
          %v3865 = vunpack.c.l.b16 %v2769
          %v3866 = vunpack.c.h.b16 %v2769
          %v3867 = vunpack.c.l.b16 %v2770
          %v3868 = vunpack.c.h.b16 %v2770
          %v3869 = vunpack.c.l.b16 %v2771
          %v3870 = vunpack.c.h.b16 %v2771
          %v3871 = vunpack.c.l.b16 %v2772
          %v3872 = vunpack.c.h.b16 %v2772
          %v3873 = vunpack.c.l.b16 %v2773
          %v3874 = vunpack.c.h.b16 %v2773
          %v3875 = vunpack.c.l.b16 %v2774
          %v3876 = vunpack.c.h.b16 %v2774
          %v3877 = vunpack.c.l.b16 %v2775
          %v3878 = vunpack.c.h.b16 %v2775
          %v3879 = vunpack.c.l.b16 %v2776
          %v3880 = vunpack.c.h.b16 %v2776
          %v3881 = vunpack.c.l.b16 %v2777
          %v3882 = vunpack.c.h.b16 %v2777
          %v3883 = vunpack.c.l.b16 %v2778
          %v3884 = vunpack.c.h.b16 %v2778
          %v3885 = vunpack.c.l.b16 %v2779
          %v3886 = vunpack.c.h.b16 %v2779
          %v3887 = vunpack.c.l.b16 %v2780
          %v3888 = vunpack.c.h.b16 %v2780
          %v3889 = vunpack.c.l.b16 %v2781
          %v3890 = vunpack.c.h.b16 %v2781
          %v3891 = vunpack.c.l.b16 %v2782
          %v3892 = vunpack.c.h.b16 %v2782
          %v3893 = vunpack.c.l.b16 %v2783
          %v3894 = vunpack.c.h.b16 %v2783
          %v3895 = vunpack.c.l.b16 %v2784
          %v3896 = vunpack.c.h.b16 %v2784
          %v3897 = vunpack.c.l.b16 %v2785
          %v3898 = vunpack.c.h.b16 %v2785
          %v3899 = vunpack.c.l.b16 %v2786
          %v3900 = vunpack.c.h.b16 %v2786
          %v3901 = vunpack.c.l.b16 %v2787
          %v3902 = vunpack.c.h.b16 %v2787
          %v3903 = vunpack.c.l.b16 %v2788
          %v3904 = vunpack.c.h.b16 %v2788
          %v3905 = vunpack.c.l.b16 %v2789
          %v3906 = vunpack.c.h.b16 %v2789
          %v3907 = vunpack.c.l.b16 %v2790
          %v3908 = vunpack.c.h.b16 %v2790
          %v3909 = vunpack.c.l.b16 %v2791
          %v3910 = vunpack.c.h.b16 %v2791
          %v3911 = vunpack.c.l.b16 %v2792
          %v3912 = vunpack.c.h.b16 %v2792
          %v3913 = vunpack.c.l.b16 %v2793
          %v3914 = vunpack.c.h.b16 %v2793
          %v3915 = vunpack.c.l.b16 %v2794
          %v3916 = vunpack.c.h.b16 %v2794
          %v3917 = vunpack.c.l.b16 %v2795
          %v3918 = vunpack.c.h.b16 %v2795
          %v3919 = vunpack.c.l.b16 %v2796
          %v3920 = vunpack.c.h.b16 %v2796
          %v3921 = vunpack.c.l.b16 %v2797
          %v3922 = vunpack.c.h.b16 %v2797
          %v3923 = vunpack.c.l.b16 %v2798
          %v3924 = vunpack.c.h.b16 %v2798
          %v3925 = vunpack.c.l.b16 %v2799
          %v3926 = vunpack.c.h.b16 %v2799
          %v3927 = vunpack.c.l.b16 %v2800
          %v3928 = vunpack.c.h.b16 %v2800
          %v3929 = vunpack.c.l.b16 %v2801
          %v3930 = vunpack.c.h.b16 %v2801
          %v3931 = vunpack.c.l.b16 %v2802
          %v3932 = vunpack.c.h.b16 %v2802
          %v3933 = vunpack.c.l.b16 %v2803
          %v3934 = vunpack.c.h.b16 %v2803
          %v3935 = vunpack.c.l.b16 %v2804
          %v3936 = vunpack.c.h.b16 %v2804
          %v3937 = vunpack.c.l.b16 %v2805
          %v3938 = vunpack.c.h.b16 %v2805
          %v3939 = vunpack.c.l.b16 %v2806
          %v3940 = vunpack.c.h.b16 %v2806
          %v3941 = vunpack.c.l.b16 %v2807
          %v3942 = vunpack.c.h.b16 %v2807
          %v3943 = vunpack.c.l.b16 %v2808
          %v3944 = vunpack.c.h.b16 %v2808
          %v3945 = vunpack.c.l.b16 %v2809
          %v3946 = vunpack.c.h.b16 %v2809
          %v3947 = vunpack.c.l.b16 %v2810
          %v3948 = vunpack.c.h.b16 %v2810
          %v3949 = vunpack.c.l.b16 %v2811
          %v3950 = vunpack.c.h.b16 %v2811
          %v3951 = vunpack.c.l.b16 %v2812
          %v3952 = vunpack.c.h.b16 %v2812
          %v3953 = vunpack.c.l.b16 %v2813
          %v3954 = vunpack.c.h.b16 %v2813
          %v3955 = vunpack.c.l.b16 %v2814
          %v3956 = vunpack.c.h.b16 %v2814
          %v3957 = vunpack.c.l.b16 %v2815
          %v3958 = vunpack.c.h.b16 %v2815
          %v3959 = vunpack.c.l.b16 %v2816
          %v3960 = vunpack.c.h.b16 %v2816
          %v3961 = vunpack.c.l.b16 %v2817
          %v3962 = vunpack.c.h.b16 %v2817
          %v3963 = vunpack.c.l.b16 %v2818
          %v3964 = vunpack.c.h.b16 %v2818
          %v3965 = vunpack.c.l.b16 %v2819
          %v3966 = vunpack.c.h.b16 %v2819
          %v3967 = vunpack.c.l.b16 %v2820
          %v3968 = vunpack.c.h.b16 %v2820
          %v3969 = vunpack.c.l.b16 %v2821
          %v3970 = vunpack.c.h.b16 %v2821
          %v3971 = vunpack.c.l.b16 %v2822
          %v3972 = vunpack.c.h.b16 %v2822
          %v3973 = vunpack.c.l.b16 %v2823
          %v3974 = vunpack.c.h.b16 %v2823
          %v3975 = vunpack.c.l.b16 %v2824
          %v3976 = vunpack.c.h.b16 %v2824
          %v3977 = vunpack.c.l.b16 %v2825
          %v3978 = vunpack.c.h.b16 %v2825
          %v3979 = vunpack.c.l.b16 %v2826
          %v3980 = vunpack.c.h.b16 %v2826
          %v3981 = vunpack.c.l.b16 %v2827
          %v3982 = vunpack.c.h.b16 %v2827
          %v3983 = vunpack.c.l.b16 %v2828
          %v3984 = vunpack.c.h.b16 %v2828
          %v3985 = vunpack.c.l.b16 %v2829
          %v3986 = vunpack.c.h.b16 %v2829
          %v3987 = vunpack.c.l.b16 %v2830
          %v3988 = vunpack.c.h.b16 %v2830
          %v3989 = vunpack.c.l.b16 %v2831
          %v3990 = vunpack.c.h.b16 %v2831
          %v3991 = vunpack.c.l.b16 %v2832
          %v3992 = vunpack.c.h.b16 %v2832
          %v3993 = vunpack.c.l.b16 %v2833
          %v3994 = vunpack.c.h.b16 %v2833
          %v3995 = vunpack.c.l.b16 %v2834
          %v3996 = vunpack.c.h.b16 %v2834
          %v3997 = vunpack.c.l.b16 %v2835
          %v3998 = vunpack.c.h.b16 %v2835
          %v3999 = vunpack.c.l.b16 %v2836
          %v4000 = vunpack.c.h.b16 %v2836
          %v4001 = vunpack.c.l.b16 %v2837
          %v4002 = vunpack.c.h.b16 %v2837
          %v4003 = vunpack.c.l.b16 %v2838
          %v4004 = vunpack.c.h.b16 %v2838
          %v4005 = vunpack.c.l.b16 %v2839
          %v4006 = vunpack.c.h.b16 %v2839
          %v4007 = vunpack.c.l.b16 %v2840
          %v4008 = vunpack.c.h.b16 %v2840
          %v4009 = vunpack.c.l.b16 %v2841
          %v4010 = vunpack.c.h.b16 %v2841
          %v4011 = vunpack.c.l.b16 %v2842
          %v4012 = vunpack.c.h.b16 %v2842
          %v4013 = vunpack.c.l.b16 %v2843
          %v4014 = vunpack.c.h.b16 %v2843
          %v4015 = vunpack.c.l.b16 %v2844
          %v4016 = vunpack.c.h.b16 %v2844
          %v4017 = vunpack.c.l.b16 %v2845
          %v4018 = vunpack.c.h.b16 %v2845
          %v4019 = vunpack.c.l.b16 %v2846
          %v4020 = vunpack.c.h.b16 %v2846
          %v4021 = vunpack.c.l.b16 %v2847
          %v4022 = vunpack.c.h.b16 %v2847
          %v4023 = vunpack.c.l.b16 %v2848
          %v4024 = vunpack.c.h.b16 %v2848
          %v4025 = vunpack.c.l.b16 %v2849
          %v4026 = vunpack.c.h.b16 %v2849
          %v4027 = vunpack.c.l.b16 %v2850
          %v4028 = vunpack.c.h.b16 %v2850
          %v4029 = vunpack.c.l.b16 %v2851
          %v4030 = vunpack.c.h.b16 %v2851
          %v4031 = vunpack.c.l.b16 %v2852
          %v4032 = vunpack.c.h.b16 %v2852
          %v4033 = vunpack.c.l.b16 %v2853
          %v4034 = vunpack.c.h.b16 %v2853
          %v4035 = vunpack.c.l.b16 %v2854
          %v4036 = vunpack.c.h.b16 %v2854
          %v4037 = vunpack.c.l.b16 %v2855
          %v4038 = vunpack.c.h.b16 %v2855
          %v4039 = vunpack.c.l.b16 %v2856
          %v4040 = vunpack.c.h.b16 %v2856
          %v4041 = vunpack.c.l.b16 %v2857
          %v4042 = vunpack.c.h.b16 %v2857
          %v4043 = vunpack.c.l.b16 %v2858
          %v4044 = vunpack.c.h.b16 %v2858
          %v4045 = vunpack.c.l.b16 %v2859
          %v4046 = vunpack.c.h.b16 %v2859
          %v4047 = vunpack.c.l.b16 %v2860
          %v4048 = vunpack.c.h.b16 %v2860
          %v4049 = vunpack.c.l.b16 %v2861
          %v4050 = vunpack.c.h.b16 %v2861
          %v4051 = vunpack.c.l.b16 %v2862
          %v4052 = vunpack.c.h.b16 %v2862
          %v4053 = vunpack.c.l.b16 %v2863
          %v4054 = vunpack.c.h.b16 %v2863
          %v4055 = vunpack.c.l.b16 %v2864
          %v4056 = vunpack.c.h.b16 %v2864
          %v4057 = vunpack.c.l.b16 %v2865
          %v4058 = vunpack.c.h.b16 %v2865
          %v4059 = vunpack.c.l.b16 %v2866
          %v4060 = vunpack.c.h.b16 %v2866
          %v4061 = vunpack.c.l.b16 %v2867
          %v4062 = vunpack.c.h.b16 %v2867
          %v4063 = vunpack.c.l.b16 %v2868
          %v4064 = vunpack.c.h.b16 %v2868
          %v4065 = vunpack.c.l.b16 %v2869
          %v4066 = vunpack.c.h.b16 %v2869
          %v4067 = vunpack.c.l.b16 %v2870
          %v4068 = vunpack.c.h.b16 %v2870
          %v4069 = vunpack.c.l.b16 %v2871
          %v4070 = vunpack.c.h.b16 %v2871
          %v4071 = vunpack.c.l.b16 %v2872
          %v4072 = vunpack.c.h.b16 %v2872
          %v4073 = vunpack.c.l.b16 %v2873
          %v4074 = vunpack.c.h.b16 %v2873
          %v4075 = vunpack.c.l.b16 %v2874
          %v4076 = vunpack.c.h.b16 %v2874
          %v4077 = vunpack.c.l.b16 %v2875
          %v4078 = vunpack.c.h.b16 %v2875
          %v4079 = vunpack.c.l.b16 %v2876
          %v4080 = vunpack.c.h.b16 %v2876
          %v4081 = vunpack.c.l.b16 %v2877
          %v4082 = vunpack.c.h.b16 %v2877
          %v4083 = vunpack.c.l.b16 %v2878
          %v4084 = vunpack.c.h.b16 %v2878
          %v4085 = vunpack.c.l.b16 %v2879
          %v4086 = vunpack.c.h.b16 %v2879
          %v4087 = vunpack.c.l.b16 %v2880
          %v4088 = vunpack.c.h.b16 %v2880
          %v4089 = vunpack.c.l.b16 %v2881
          %v4090 = vunpack.c.h.b16 %v2881
          %v4091 = vunpack.c.l.b16 %v2882
          %v4092 = vunpack.c.h.b16 %v2882
          %v4093 = vunpack.c.l.b16 %v2883
          %v4094 = vunpack.c.h.b16 %v2883
          %v4095 = vunpack.c.l.b16 %v2884
          %v4096 = vunpack.c.h.b16 %v2884
          %v4097 = vunpack.c.l.b16 %v2885
          %v4098 = vunpack.c.h.b16 %v2885
          %v4099 = vunpack.c.l.b16 %v2886
          %v4100 = vunpack.c.h.b16 %v2886
          %v4101 = vunpack.c.l.b16 %v2887
          %v4102 = vunpack.c.h.b16 %v2887
          %v4103 = vunpack.c.l.b16 %v2888
          %v4104 = vunpack.c.h.b16 %v2888
          %v4105 = vunpack.c.l.b16 %v2889
          %v4106 = vunpack.c.h.b16 %v2889
          %v4107 = vunpack.c.l.b16 %v2890
          %v4108 = vunpack.c.h.b16 %v2890
          %v4109 = vunpack.c.l.b16 %v2891
          %v4110 = vunpack.c.h.b16 %v2891
          %v4111 = vunpack.c.l.b16 %v2892
          %v4112 = vunpack.c.h.b16 %v2892
          %v4113 = vunpack.c.l.b16 %v2893
          %v4114 = vunpack.c.h.b16 %v2893
          %v4115 = vunpack.c.l.b16 %v2894
          %v4116 = vunpack.c.h.b16 %v2894
          %v4117 = vunpack.c.l.b16 %v2895
          %v4118 = vunpack.c.h.b16 %v2895
          %v4119 = vunpack.c.l.b16 %v2896
          %v4120 = vunpack.c.h.b16 %v2896
          %v4121 = vunpack.c.l.b16 %v2897
          %v4122 = vunpack.c.h.b16 %v2897
          %v4123 = vunpack.c.l.b16 %v2898
          %v4124 = vunpack.c.h.b16 %v2898
          %v4125 = vunpack.c.l.b16 %v2899
          %v4126 = vunpack.c.h.b16 %v2899
          %v4127 = vunpack.c.l.b16 %v2900
          %v4128 = vunpack.c.h.b16 %v2900
          %v4129 = vunpack.c.l.b16 %v2901
          %v4130 = vunpack.c.h.b16 %v2901
          %v4131 = vunpack.c.l.b16 %v2902
          %v4132 = vunpack.c.h.b16 %v2902
          %v4133 = vunpack.c.l.b16 %v2903
          %v4134 = vunpack.c.h.b16 %v2903
          %v4135 = vunpack.c.l.b16 %v2904
          %v4136 = vunpack.c.h.b16 %v2904
          %v4137 = vunpack.c.l.b16 %v2905
          %v4138 = vunpack.c.h.b16 %v2905
          %v4139 = vunpack.c.l.b16 %v2906
          %v4140 = vunpack.c.h.b16 %v2906
          %v4141 = vunpack.c.l.b16 %v2907
          %v4142 = vunpack.c.h.b16 %v2907
          %v4143 = vunpack.c.l.b16 %v2908
          %v4144 = vunpack.c.h.b16 %v2908
          %v4145 = vunpack.c.l.b16 %v2909
          %v4146 = vunpack.c.h.b16 %v2909
          %v4147 = vunpack.c.l.b16 %v2910
          %v4148 = vunpack.c.h.b16 %v2910
          %v4149 = vunpack.c.l.b16 %v2911
          %v4150 = vunpack.c.h.b16 %v2911
          %v4151 = vunpack.c.l.b16 %v2912
          %v4152 = vunpack.c.h.b16 %v2912
          %v4153 = vunpack.c.l.b16 %v2913
          %v4154 = vunpack.c.h.b16 %v2913
          %v4155 = vunpack.c.l.b16 %v2914
          %v4156 = vunpack.c.h.b16 %v2914
          %v4157 = vunpack.c.l.b16 %v2915
          %v4158 = vunpack.c.h.b16 %v2915
          %v4159 = vunpack.c.l.b16 %v2916
          %v4160 = vunpack.c.h.b16 %v2916
          %v4161 = vunpack.c.l.b16 %v2917
          %v4162 = vunpack.c.h.b16 %v2917
          %v4163 = vunpack.c.l.b16 %v2918
          %v4164 = vunpack.c.h.b16 %v2918
          %v4165 = vunpack.c.l.b16 %v2919
          %v4166 = vunpack.c.h.b16 %v2919
          %v4167 = vunpack.c.l.b16 %v2920
          %v4168 = vunpack.c.h.b16 %v2920
          %v4169 = vunpack.c.l.b16 %v2921
          %v4170 = vunpack.c.h.b16 %v2921
          %v4171 = vunpack.c.l.b16 %v2922
          %v4172 = vunpack.c.h.b16 %v2922
          %v4173 = vunpack.c.l.b16 %v2923
          %v4174 = vunpack.c.h.b16 %v2923
          %v4175 = vunpack.c.l.b16 %v2924
          %v4176 = vunpack.c.h.b16 %v2924
          %v4177 = vunpack.c.l.b16 %v2925
          %v4178 = vunpack.c.h.b16 %v2925
          %v4179 = vunpack.c.l.b16 %v2926
          %v4180 = vunpack.c.h.b16 %v2926
          %v4181 = vunpack.c.l.b16 %v2927
          %v4182 = vunpack.c.h.b16 %v2927
          %v4183 = vunpack.c.l.b16 %v2928
          %v4184 = vunpack.c.h.b16 %v2928
          %v4185 = vunpack.c.l.b16 %v2929
          %v4186 = vunpack.c.h.b16 %v2929
          %v4187 = vunpack.c.l.b16 %v2930
          %v4188 = vunpack.c.h.b16 %v2930
          %v4189 = vunpack.c.l.b16 %v2931
          %v4190 = vunpack.c.h.b16 %v2931
          %v4191 = vunpack.c.l.b16 %v2932
          %v4192 = vunpack.c.h.b16 %v2932
          %v4193 = vunpack.c.l.b16 %v2933
          %v4194 = vunpack.c.h.b16 %v2933
          %v4195 = vunpack.c.l.b16 %v2934
          %v4196 = vunpack.c.h.b16 %v2934
          %v4197 = vunpack.c.l.b16 %v2935
          %v4198 = vunpack.c.h.b16 %v2935
          %v4199 = vunpack.c.l.b16 %v2936
          %v4200 = vunpack.c.h.b16 %v2936
          %v4201 = vunpack.c.l.b16 %v2937
          %v4202 = vunpack.c.h.b16 %v2937
          %v4203 = vunpack.c.l.b16 %v2938
          %v4204 = vunpack.c.h.b16 %v2938
          %v4205 = vunpack.c.l.b16 %v2939
          %v4206 = vunpack.c.h.b16 %v2939
          %v4207 = vunpack.c.l.b16 %v2940
          %v4208 = vunpack.c.h.b16 %v2940
          %v4209 = vunpack.c.l.b16 %v2941
          %v4210 = vunpack.c.h.b16 %v2941
          %v4211 = vunpack.c.l.b16 %v2942
          %v4212 = vunpack.c.h.b16 %v2942
          %v4213 = vunpack.c.l.b16 %v2943
          %v4214 = vunpack.c.h.b16 %v2943
          %v4215 = vunpack.c.l.b16 %v2944
          %v4216 = vunpack.c.h.b16 %v2944
          %v4217 = vunpack.c.l.b16 %v2945
          %v4218 = vunpack.c.h.b16 %v2945
          %v4219 = vunpack.c.l.b16 %v2946
          %v4220 = vunpack.c.h.b16 %v2946
          %v4221 = vunpack.c.l.b16 %v2947
          %v4222 = vunpack.c.h.b16 %v2947
          %v4223 = vunpack.c.l.b16 %v2948
          %v4224 = vunpack.c.h.b16 %v2948
          %v4225 = vunpack.c.l.b16 %v2949
          %v4226 = vunpack.c.h.b16 %v2949
          %v4227 = vunpack.c.l.b16 %v2950
          %v4228 = vunpack.c.h.b16 %v2950
          %v4229 = vunpack.c.l.b16 %v2951
          %v4230 = vunpack.c.h.b16 %v2951
          %v4231 = vunpack.c.l.b16 %v2952
          %v4232 = vunpack.c.h.b16 %v2952
          %v4233 = vunpack.c.l.b16 %v2953
          %v4234 = vunpack.c.h.b16 %v2953
          %v4235 = vunpack.c.l.b16 %v2954
          %v4236 = vunpack.c.h.b16 %v2954
          %v4237 = vunpack.c.l.b16 %v2955
          %v4238 = vunpack.c.h.b16 %v2955
          %v4239 = vunpack.c.l.b16 %v2956
          %v4240 = vunpack.c.h.b16 %v2956
          %v4241 = vunpack.c.l.b16 %v2957
          %v4242 = vunpack.c.h.b16 %v2957
          %v4243 = vunpack.c.l.b16 %v2958
          %v4244 = vunpack.c.h.b16 %v2958
          %v4245 = vunpack.c.l.b16 %v2959
          %v4246 = vunpack.c.h.b16 %v2959
          %v4247 = vunpack.c.l.b16 %v2960
          %v4248 = vunpack.c.h.b16 %v2960
          %v4249 = vunpack.c.l.b16 %v2961
          %v4250 = vunpack.c.h.b16 %v2961
          %v4251 = vunpack.c.l.b16 %v2962
          %v4252 = vunpack.c.h.b16 %v2962
          %v4253 = vunpack.c.l.b16 %v2963
          %v4254 = vunpack.c.h.b16 %v2963
          %v4255 = vunpack.c.l.b16 %v2964
          %v4256 = vunpack.c.h.b16 %v2964
          %v4257 = vunpack.c.l.b16 %v2965
          %v4258 = vunpack.c.h.b16 %v2965
          %v4259 = vunpack.c.l.b16 %v2966
          %v4260 = vunpack.c.h.b16 %v2966
          %v4261 = vunpack.c.l.b16 %v2967
          %v4262 = vunpack.c.h.b16 %v2967
          %v4263 = vunpack.c.l.b16 %v2968
          %v4264 = vunpack.c.h.b16 %v2968
          %v4265 = vunpack.c.l.b16 %v2969
          %v4266 = vunpack.c.h.b16 %v2969
          %v4267 = vunpack.c.l.b16 %v2970
          %v4268 = vunpack.c.h.b16 %v2970
          %v4269 = vunpack.c.l.b16 %v2971
          %v4270 = vunpack.c.h.b16 %v2971
          %v4271 = vunpack.c.l.b16 %v2972
          %v4272 = vunpack.c.h.b16 %v2972
          %v4273 = vunpack.c.l.b16 %v2973
          %v4274 = vunpack.c.h.b16 %v2973
          %v4275 = vunpack.c.l.b16 %v2974
          %v4276 = vunpack.c.h.b16 %v2974
          %v4277 = vunpack.c.l.b16 %v2975
          %v4278 = vunpack.c.h.b16 %v2975
          %v4279 = vunpack.c.l.b16 %v2976
          %v4280 = vunpack.c.h.b16 %v2976
          %v4281 = vunpack.c.l.b16 %v2977
          %v4282 = vunpack.c.h.b16 %v2977
          %v4283 = vunpack.c.l.b16 %v2978
          %v4284 = vunpack.c.h.b16 %v2978
          %v4285 = vunpack.c.l.b16 %v2979
          %v4286 = vunpack.c.h.b16 %v2979
          %v4287 = vunpack.c.l.b16 %v2980
          %v4288 = vunpack.c.h.b16 %v2980
          %v4289 = vunpack.c.l.b16 %v2981
          %v4290 = vunpack.c.h.b16 %v2981
          %v4291 = vunpack.c.l.b16 %v2982
          %v4292 = vunpack.c.h.b16 %v2982
          %v4293 = vunpack.c.l.b16 %v2983
          %v4294 = vunpack.c.h.b16 %v2983
          %v4295 = vunpack.c.l.b16 %v2984
          %v4296 = vunpack.c.h.b16 %v2984
          %v4297 = vunpack.c.l.b16 %v2985
          %v4298 = vunpack.c.h.b16 %v2985
          %v4299 = vunpack.c.l.b16 %v2986
          %v4300 = vunpack.c.h.b16 %v2986
          %v4301 = vunpack.c.l.b16 %v2987
          %v4302 = vunpack.c.h.b16 %v2987
          %v4303 = vunpack.c.l.b16 %v2988
          %v4304 = vunpack.c.h.b16 %v2988
          %v4305 = vunpack.c.l.b16 %v2989
          %v4306 = vunpack.c.h.b16 %v2989
          %v4307 = vunpack.c.l.b16 %v2990
          %v4308 = vunpack.c.h.b16 %v2990
          %v4309 = vunpack.c.l.b16 %v2991
          %v4310 = vunpack.c.h.b16 %v2991
          %v4311 = vunpack.c.l.b16 %v2992
          %v4312 = vunpack.c.h.b16 %v2992
          %v4313 = vunpack.c.l.b16 %v2993
          %v4314 = vunpack.c.h.b16 %v2993
          %v4315 = vunpack.c.l.b16 %v2994
          %v4316 = vunpack.c.h.b16 %v2994
          %v4317 = vunpack.c.l.b16 %v2995
          %v4318 = vunpack.c.h.b16 %v2995
          %v4319 = vunpack.c.l.b16 %v2996
          %v4320 = vunpack.c.h.b16 %v2996
          %v4321 = vunpack.c.l.b16 %v2997
          %v4322 = vunpack.c.h.b16 %v2997
          %v4323 = vunpack.c.l.b16 %v2998
          %v4324 = vunpack.c.h.b16 %v2998
          %v4325 = vunpack.c.l.b16 %v2999
          %v4326 = vunpack.c.h.b16 %v2999
          %v4327 = vunpack.c.l.b16 %v3000
          %v4328 = vunpack.c.h.b16 %v3000
          %v4329 = vunpack.c.l.b16 %v3001
          %v4330 = vunpack.c.h.b16 %v3001
          %v4331 = vunpack.c.l.b16 %v3002
          %v4332 = vunpack.c.h.b16 %v3002
          %v4333 = vunpack.c.l.b16 %v3003
          %v4334 = vunpack.c.h.b16 %v3003
          %v4335 = vunpack.c.l.b16 %v3004
          %v4336 = vunpack.c.h.b16 %v3004
          %v4337 = vunpack.c.l.b16 %v3005
          %v4338 = vunpack.c.h.b16 %v3005
          %v4339 = vunpack.c.l.b16 %v3006
          %v4340 = vunpack.c.h.b16 %v3006
          %v4341 = vunpack.c.l.b16 %v3007
          %v4342 = vunpack.c.h.b16 %v3007
          %v4343 = vunpack.c.l.b16 %v3008
          %v4344 = vunpack.c.h.b16 %v3008
          %v4345 = vunpack.c.l.b16 %v3009
          %v4346 = vunpack.c.h.b16 %v3009
          %v4347 = vunpack.c.l.b16 %v3010
          %v4348 = vunpack.c.h.b16 %v3010
          %v4349 = vunpack.c.l.b16 %v3011
          %v4350 = vunpack.c.h.b16 %v3011
          %v4351 = vunpack.c.l.b16 %v3012
          %v4352 = vunpack.c.h.b16 %v3012
          %v4353 = vunpack.c.l.b16 %v3013
          %v4354 = vunpack.c.h.b16 %v3013
          %v4355 = vunpack.c.l.b16 %v3014
          %v4356 = vunpack.c.h.b16 %v3014
          %v4357 = vunpack.c.l.b16 %v3015
          %v4358 = vunpack.c.h.b16 %v3015
          %v4359 = vunpack.c.l.b16 %v3016
          %v4360 = vunpack.c.h.b16 %v3016
          %v4361 = vunpack.c.l.b16 %v3017
          %v4362 = vunpack.c.h.b16 %v3017
          %v4363 = vunpack.c.l.b16 %v3018
          %v4364 = vunpack.c.h.b16 %v3018
          %v4365 = vunpack.c.l.b16 %v3019
          %v4366 = vunpack.c.h.b16 %v3019
          %v4367 = vunpack.c.l.b16 %v3020
          %v4368 = vunpack.c.h.b16 %v3020
          %v4369 = vunpack.c.l.b16 %v3021
          %v4370 = vunpack.c.h.b16 %v3021
          %v4371 = vunpack.c.l.b16 %v3022
          %v4372 = vunpack.c.h.b16 %v3022
          %v4373 = vunpack.c.l.b16 %v3023
          %v4374 = vunpack.c.h.b16 %v3023
          %v4375 = vunpack.c.l.b16 %v3024
          %v4376 = vunpack.c.h.b16 %v3024
          %v4377 = vunpack.c.l.b16 %v3025
          %v4378 = vunpack.c.h.b16 %v3025
          %v4379 = vunpack.c.l.b16 %v3026
          %v4380 = vunpack.c.h.b16 %v3026
          %v4381 = vunpack.c.l.b16 %v3027
          %v4382 = vunpack.c.h.b16 %v3027
          %v4383 = vunpack.c.l.b16 %v3028
          %v4384 = vunpack.c.h.b16 %v3028
          %v4385 = vunpack.c.l.b16 %v3029
          %v4386 = vunpack.c.h.b16 %v3029
          %v4387 = vunpack.c.l.b16 %v3030
          %v4388 = vunpack.c.h.b16 %v3030
          %v4389 = vunpack.c.l.b16 %v3031
          %v4390 = vunpack.c.h.b16 %v3031
          %v4391 = vunpack.c.l.b16 %v3032
          %v4392 = vunpack.c.h.b16 %v3032
          %v4393 = vunpack.c.l.b16 %v3033
          %v4394 = vunpack.c.h.b16 %v3033
          %v4395 = vunpack.c.l.b16 %v3034
          %v4396 = vunpack.c.h.b16 %v3034
          %v4397 = vunpack.c.l.b16 %v3035
          %v4398 = vunpack.c.h.b16 %v3035
          %v4399 = vunpack.c.l.b16 %v3036
          %v4400 = vunpack.c.h.b16 %v3036
          %v4401 = vunpack.c.l.b16 %v3037
          %v4402 = vunpack.c.h.b16 %v3037
          %v4403 = vunpack.c.l.b16 %v3038
          %v4404 = vunpack.c.h.b16 %v3038
          %v4405 = vunpack.c.l.b16 %v3039
          %v4406 = vunpack.c.h.b16 %v3039
          %v4407 = vunpack.c.l.b16 %v3040
          %v4408 = vunpack.c.h.b16 %v3040
          %v4409 = vunpack.c.l.b16 %v3041
          %v4410 = vunpack.c.h.b16 %v3041
          %v4411 = vunpack.c.l.b16 %v3042
          %v4412 = vunpack.c.h.b16 %v3042
          %v4413 = vunpack.c.l.b16 %v3043
          %v4414 = vunpack.c.h.b16 %v3043
          %v4415 = vunpack.c.l.b16 %v3044
          %v4416 = vunpack.c.h.b16 %v3044
          %v4417 = vunpack.c.l.b16 %v3045
          %v4418 = vunpack.c.h.b16 %v3045
          %v4419 = vunpack.c.l.b16 %v3046
          %v4420 = vunpack.c.h.b16 %v3046
          %v4421 = vunpack.c.l.b16 %v3047
          %v4422 = vunpack.c.h.b16 %v3047
          %v4423 = vunpack.c.l.b16 %v3048
          %v4424 = vunpack.c.h.b16 %v3048
          %v4425 = vunpack.c.l.b16 %v3049
          %v4426 = vunpack.c.h.b16 %v3049
          %v4427 = vunpack.c.l.b16 %v3050
          %v4428 = vunpack.c.h.b16 %v3050
          %v4429 = vunpack.c.l.b16 %v3051
          %v4430 = vunpack.c.h.b16 %v3051
          %v4431 = vunpack.c.l.b16 %v3052
          %v4432 = vunpack.c.h.b16 %v3052
          %v4433 = vunpack.c.l.b16 %v3053
          %v4434 = vunpack.c.h.b16 %v3053
          %v4435 = vunpack.c.l.b16 %v3054
          %v4436 = vunpack.c.h.b16 %v3054
          %v4437 = vunpack.c.l.b16 %v3055
          %v4438 = vunpack.c.h.b16 %v3055
          %v4439 = vunpack.c.l.b16 %v3056
          %v4440 = vunpack.c.h.b16 %v3056
          %v4441 = vunpack.c.l.b16 %v3057
          %v4442 = vunpack.c.h.b16 %v3057
          %v4443 = vunpack.c.l.b16 %v3058
          %v4444 = vunpack.c.h.b16 %v3058
          %v4445 = vunpack.c.l.b16 %v3059
          %v4446 = vunpack.c.h.b16 %v3059
          %v4447 = vunpack.c.l.b16 %v3060
          %v4448 = vunpack.c.h.b16 %v3060
          %v4449 = vunpack.c.l.b16 %v3061
          %v4450 = vunpack.c.h.b16 %v3061
          %v4451 = vunpack.c.l.b16 %v3062
          %v4452 = vunpack.c.h.b16 %v3062
          %v4453 = vunpack.c.l.b16 %v3063
          %v4454 = vunpack.c.h.b16 %v3063
          %v4455 = vunpack.c.l.b16 %v3064
          %v4456 = vunpack.c.h.b16 %v3064
          %v4457 = vunpack.c.l.b16 %v3065
          %v4458 = vunpack.c.h.b16 %v3065
          %v4459 = vunpack.c.l.b16 %v3066
          %v4460 = vunpack.c.h.b16 %v3066
          %v4461 = vunpack.c.l.b16 %v3067
          %v4462 = vunpack.c.h.b16 %v3067
          %v4463 = vunpack.c.l.b16 %v3068
          %v4464 = vunpack.c.h.b16 %v3068
          %v4465 = vunpack.c.l.b16 %v3069
          %v4466 = vunpack.c.h.b16 %v3069
          %v4467 = vunpack.c.l.b16 %v3070
          %v4468 = vunpack.c.h.b16 %v3070
          %v4469 = vunpack.c.l.b16 %v3071
          %v4470 = vunpack.c.h.b16 %v3071
          %v4471 = vunpack.c.l.b16 %v3072
          %v4472 = vunpack.c.h.b16 %v3072
          %v4473 = vunpack.c.l.b16 %v3073
          %v4474 = vunpack.c.h.b16 %v3073
          %v4475 = vunpack.c.l.b16 %v3074
          %v4476 = vunpack.c.h.b16 %v3074
          %v4477 = vunpack.c.l.b16 %v3075
          %v4478 = vunpack.c.h.b16 %v3075
          %v4479 = vunpack.c.l.b16 %v3076
          %v4480 = vunpack.c.h.b16 %v3076
          %v4481 = vunpack.c.l.b16 %v3077
          %v4482 = vunpack.c.h.b16 %v3077
          %v4483 = vunpack.c.l.b16 %v3078
          %v4484 = vunpack.c.h.b16 %v3078
          %v4485 = vunpack.c.l.b16 %v3079
          %v4486 = vunpack.c.h.b16 %v3079
          %v4487 = vunpack.c.l.b16 %v3080
          %v4488 = vunpack.c.h.b16 %v3080
          %v4489 = vunpack.c.l.b16 %v3081
          %v4490 = vunpack.c.h.b16 %v3081
          %v4491 = vunpack.c.l.b16 %v3082
          %v4492 = vunpack.c.h.b16 %v3082
          %v4493 = vunpack.c.l.b16 %v3083
          %v4494 = vunpack.c.h.b16 %v3083
          %v4495 = vunpack.c.l.b16 %v3084
          %v4496 = vunpack.c.h.b16 %v3084
          %v4497 = vunpack.c.l.b16 %v3085
          %v4498 = vunpack.c.h.b16 %v3085
          %v4499 = vunpack.c.l.b16 %v3086
          %v4500 = vunpack.c.h.b16 %v3086
          %v4501 = vunpack.c.l.b16 %v3087
          %v4502 = vunpack.c.h.b16 %v3087
          %v4503 = vunpack.c.l.b16 %v3088
          %v4504 = vunpack.c.h.b16 %v3088
          %v4505 = vunpack.c.l.b16 %v3089
          %v4506 = vunpack.c.h.b16 %v3089
          %v4507 = vunpack.c.l.b16 %v3090
          %v4508 = vunpack.c.h.b16 %v3090
          %v4509 = vunpack.c.l.b16 %v3091
          %v4510 = vunpack.c.h.b16 %v3091
          %v4511 = vunpack.c.l.b16 %v3092
          %v4512 = vunpack.c.h.b16 %v3092
          %v4513 = vunpack.c.l.b16 %v3093
          %v4514 = vunpack.c.h.b16 %v3093
          %v4515 = vunpack.c.l.b16 %v3094
          %v4516 = vunpack.c.h.b16 %v3094
          %v4517 = vunpack.c.l.b16 %v3095
          %v4518 = vunpack.c.h.b16 %v3095
          %v4519 = vunpack.c.l.b16 %v3096
          %v4520 = vunpack.c.h.b16 %v3096
          %v4521 = vunpack.c.l.b16 %v3097
          %v4522 = vunpack.c.h.b16 %v3097
          %v4523 = vunpack.c.l.b16 %v3098
          %v4524 = vunpack.c.h.b16 %v3098
          %v4525 = vunpack.c.l.b16 %v3099
          %v4526 = vunpack.c.h.b16 %v3099
          %v4527 = vunpack.c.l.b16 %v3100
          %v4528 = vunpack.c.h.b16 %v3100
          %v4529 = vunpack.c.l.b16 %v3101
          %v4530 = vunpack.c.h.b16 %v3101
          %v4531 = vunpack.c.l.b16 %v3102
          %v4532 = vunpack.c.h.b16 %v3102
          %v4533 = vunpack.c.l.b16 %v3103
          %v4534 = vunpack.c.h.b16 %v3103
          %v4535 = vunpack.c.l.b16 %v3104
          %v4536 = vunpack.c.h.b16 %v3104
          %v4537 = vunpack.c.l.b16 %v3105
          %v4538 = vunpack.c.h.b16 %v3105
          %v4539 = vunpack.c.l.b16 %v3106
          %v4540 = vunpack.c.h.b16 %v3106
          %v4541 = vunpack.c.l.b16 %v3107
          %v4542 = vunpack.c.h.b16 %v3107
          %v4543 = vunpack.c.l.b16 %v3108
          %v4544 = vunpack.c.h.b16 %v3108
          %v4545 = vunpack.c.l.b16 %v3109
          %v4546 = vunpack.c.h.b16 %v3109
          %v4547 = vunpack.c.l.b16 %v3110
          %v4548 = vunpack.c.h.b16 %v3110
          %v4549 = vunpack.c.l.b16 %v3111
          %v4550 = vunpack.c.h.b16 %v3111
          %v4551 = vunpack.c.l.b16 %v3112
          %v4552 = vunpack.c.h.b16 %v3112
          %v4553 = vunpack.c.l.b16 %v3113
          %v4554 = vunpack.c.h.b16 %v3113
          %v4555 = vunpack.c.l.b16 %v3114
          %v4556 = vunpack.c.h.b16 %v3114
          %v4557 = vunpack.c.l.b16 %v3115
          %v4558 = vunpack.c.h.b16 %v3115
          %v4559 = vunpack.c.l.b16 %v3116
          %v4560 = vunpack.c.h.b16 %v3116
          %v4561 = vunpack.c.l.b16 %v3117
          %v4562 = vunpack.c.h.b16 %v3117
          %v4563 = vunpack.c.l.b16 %v3118
          %v4564 = vunpack.c.h.b16 %v3118
          %v4565 = vunpack.c.l.b16 %v3119
          %v4566 = vunpack.c.h.b16 %v3119
          %v4567 = vunpack.c.l.b16 %v3120
          %v4568 = vunpack.c.h.b16 %v3120
          %v4569 = vunpack.c.l.b16 %v3121
          %v4570 = vunpack.c.h.b16 %v3121
          %v4571 = vunpack.c.l.b16 %v3122
          %v4572 = vunpack.c.h.b16 %v3122
          %v4573 = vunpack.c.l.b16 %v3123
          %v4574 = vunpack.c.h.b16 %v3123
          %v4575 = vunpack.c.l.b16 %v3124
          %v4576 = vunpack.c.h.b16 %v3124
          %v4577 = vunpack.c.l.b16 %v3125
          %v4578 = vunpack.c.h.b16 %v3125
          %v4579 = vunpack.c.l.b16 %v3126
          %v4580 = vunpack.c.h.b16 %v3126
          %v4581 = vunpack.c.l.b16 %v3127
          %v4582 = vunpack.c.h.b16 %v3127
          %v4583 = vunpack.c.l.b16 %v3128
          %v4584 = vunpack.c.h.b16 %v3128
          %v4585 = vunpack.c.l.b16 %v3129
          %v4586 = vunpack.c.h.b16 %v3129
          %v4587 = vunpack.c.l.b16 %v3130
          %v4588 = vunpack.c.h.b16 %v3130
          %v4589 = vunpack.c.l.b16 %v3131
          %v4590 = vunpack.c.h.b16 %v3131
          %v4591 = vunpack.c.l.b16 %v3132
          %v4592 = vunpack.c.h.b16 %v3132
          %v4593 = vunpack.c.l.b16 %v3133
          %v4594 = vunpack.c.h.b16 %v3133
          %v4595 = vunpack.c.l.b16 %v3134
          %v4596 = vunpack.c.h.b16 %v3134
          %v4597 = vunpack.c.l.b16 %v3135
          %v4598 = vunpack.c.h.b16 %v3135
          %v4599 = vunpack.c.l.b16 %v3136
          %v4600 = vunpack.c.h.b16 %v3136
          %v4601 = vunpack.c.l.b16 %v3137
          %v4602 = vunpack.c.h.b16 %v3137
          %v4603 = vunpack.c.l.b16 %v3138
          %v4604 = vunpack.c.h.b16 %v3138
          %v4605 = vunpack.c.l.b16 %v3139
          %v4606 = vunpack.c.h.b16 %v3139
          %v4607 = vunpack.c.l.b16 %v3140
          %v4608 = vunpack.c.h.b16 %v3140
          %v4609 = vunpack.c.l.b16 %v3141
          %v4610 = vunpack.c.h.b16 %v3141
          %v4611 = vunpack.c.l.b16 %v3142
          %v4612 = vunpack.c.h.b16 %v3142
          %v4613 = vunpack.c.l.b16 %v3143
          %v4614 = vunpack.c.h.b16 %v3143
          %v4615 = vunpack.c.l.b16 %v3144
          %v4616 = vunpack.c.h.b16 %v3144
          %v4617 = vunpack.c.l.b16 %v3145
          %v4618 = vunpack.c.h.b16 %v3145
          %v4619 = vunpack.c.l.b16 %v3146
          %v4620 = vunpack.c.h.b16 %v3146
          %v4621 = vunpack.c.l.b16 %v3147
          %v4622 = vunpack.c.h.b16 %v3147
          %v4623 = vunpack.c.l.b16 %v3148
          %v4624 = vunpack.c.h.b16 %v3148
          %v4625 = vunpack.c.l.b16 %v3149
          %v4626 = vunpack.c.h.b16 %v3149
          %v4627 = vunpack.c.l.b16 %v3150
          %v4628 = vunpack.c.h.b16 %v3150
          %v4629 = vunpack.c.l.b16 %v3151
          %v4630 = vunpack.c.h.b16 %v3151
          %v4631 = vunpack.c.l.b16 %v3152
          %v4632 = vunpack.c.h.b16 %v3152
          %v4633 = vunpack.c.l.b16 %v3153
          %v4634 = vunpack.c.h.b16 %v3153
          %v4635 = vunpack.c.l.b16 %v3154
          %v4636 = vunpack.c.h.b16 %v3154
          %v4637 = vunpack.c.l.b16 %v3155
          %v4638 = vunpack.c.h.b16 %v3155
          %v4639 = vunpack.c.l.b16 %v3156
          %v4640 = vunpack.c.h.b16 %v3156
          %v4641 = vunpack.c.l.b16 %v3157
          %v4642 = vunpack.c.h.b16 %v3157
          %v4643 = vunpack.c.l.b16 %v3158
          %v4644 = vunpack.c.h.b16 %v3158
          %v4645 = vunpack.c.l.b16 %v3159
          %v4646 = vunpack.c.h.b16 %v3159
          %v4647 = vunpack.c.l.b16 %v3160
          %v4648 = vunpack.c.h.b16 %v3160
          %v4649 = vunpack.c.l.b16 %v3161
          %v4650 = vunpack.c.h.b16 %v3161
          %v4651 = vunpack.c.l.b16 %v3162
          %v4652 = vunpack.c.h.b16 %v3162
          %v4653 = vunpack.c.l.b16 %v3163
          %v4654 = vunpack.c.h.b16 %v3163
          %v4655 = vunpack.c.l.b16 %v3164
          %v4656 = vunpack.c.h.b16 %v3164
          %v4657 = vunpack.c.l.b16 %v3165
          %v4658 = vunpack.c.h.b16 %v3165
          %v4659 = vunpack.c.l.b16 %v3166
          %v4660 = vunpack.c.h.b16 %v3166
          %v4661 = vunpack.c.l.b16 %v3167
          %v4662 = vunpack.c.h.b16 %v3167
          %v4663 = vunpack.c.l.b16 %v3168
          %v4664 = vunpack.c.h.b16 %v3168
          %v4665 = vunpack.c.l.b16 %v3169
          %v4666 = vunpack.c.h.b16 %v3169
          %v4667 = vunpack.c.l.b16 %v3170
          %v4668 = vunpack.c.h.b16 %v3170
          %v4669 = vunpack.c.l.b16 %v3171
          %v4670 = vunpack.c.h.b16 %v3171
          %v4671 = vunpack.c.l.b16 %v3172
          %v4672 = vunpack.c.h.b16 %v3172
          %v4673 = vunpack.c.l.b16 %v3173
          %v4674 = vunpack.c.h.b16 %v3173
          %v4675 = vunpack.c.l.b16 %v3174
          %v4676 = vunpack.c.h.b16 %v3174
          %v4677 = vunpack.c.l.b16 %v3175
          %v4678 = vunpack.c.h.b16 %v3175
          %v4679 = vunpack.c.l.b16 %v3176
          %v4680 = vunpack.c.h.b16 %v3176
          %v4681 = vunpack.c.l.b16 %v3177
          %v4682 = vunpack.c.h.b16 %v3177
          %v4683 = vunpack.c.l.b16 %v3178
          %v4684 = vunpack.c.h.b16 %v3178
          %v4685 = vunpack.c.l.b16 %v3179
          %v4686 = vunpack.c.h.b16 %v3179
          %v4687 = vunpack.c.l.b16 %v3180
          %v4688 = vunpack.c.h.b16 %v3180
          %v4689 = vunpack.c.l.b16 %v3181
          %v4690 = vunpack.c.h.b16 %v3181
          %v4691 = vunpack.c.l.b16 %v3182
          %v4692 = vunpack.c.h.b16 %v3182
          %v4693 = vunpack.c.l.b16 %v3183
          %v4694 = vunpack.c.h.b16 %v3183
          %v4695 = vunpack.c.l.b16 %v3184
          %v4696 = vunpack.c.h.b16 %v3184
          %v4697 = vunpack.c.l.b16 %v3185
          %v4698 = vunpack.c.h.b16 %v3185
          %v4699 = vunpack.c.l.b16 %v3186
          %v4700 = vunpack.c.h.b16 %v3186
          %v4701 = vunpack.c.l.b16 %v3187
          %v4702 = vunpack.c.h.b16 %v3187
          %v4703 = vunpack.c.l.b16 %v3188
          %v4704 = vunpack.c.h.b16 %v3188
          %v4705 = vunpack.c.l.b16 %v3189
          %v4706 = vunpack.c.h.b16 %v3189
          %v4707 = vunpack.c.l.b16 %v3190
          %v4708 = vunpack.c.h.b16 %v3190
          %v4709 = vunpack.c.l.b16 %v3191
          %v4710 = vunpack.c.h.b16 %v3191
          %v4711 = vunpack.c.l.b16 %v3192
          %v4712 = vunpack.c.h.b16 %v3192
          %v4713 = vunpack.c.l.b16 %v3193
          %v4714 = vunpack.c.h.b16 %v3193
          %v4715 = vunpack.c.l.b16 %v3194
          %v4716 = vunpack.c.h.b16 %v3194
          %v4717 = vunpack.c.l.b16 %v3195
          %v4718 = vunpack.c.h.b16 %v3195
          %v4719 = vunpack.c.l.b16 %v3196
          %v4720 = vunpack.c.h.b16 %v3196
          %v4721 = vunpack.c.l.b16 %v3197
          %v4722 = vunpack.c.h.b16 %v3197
          %v4723 = vunpack.c.l.b16 %v3198
          %v4724 = vunpack.c.h.b16 %v3198
          %v4725 = vunpack.c.l.b16 %v3199
          %v4726 = vunpack.c.h.b16 %v3199
          %v4727 = vunpack.c.l.b16 %v3200
          %v4728 = vunpack.c.h.b16 %v3200
          %v4729 = vunpack.c.l.b16 %v3201
          %v4730 = vunpack.c.h.b16 %v3201
          %v4731 = vunpack.c.l.b16 %v3202
          %v4732 = vunpack.c.h.b16 %v3202
          %v4733 = vunpack.c.l.b16 %v3203
          %v4734 = vunpack.c.h.b16 %v3203
          %v4735 = vunpack.c.l.b16 %v3204
          %v4736 = vunpack.c.h.b16 %v3204
          %v4737 = vunpack.c.l.b16 %v3205
          %v4738 = vunpack.c.h.b16 %v3205
          %v4739 = vunpack.c.l.b16 %v3206
          %v4740 = vunpack.c.h.b16 %v3206
          %v4741 = vunpack.c.l.b16 %v3207
          %v4742 = vunpack.c.h.b16 %v3207
          %v4743 = vunpack.c.l.b16 %v3208
          %v4744 = vunpack.c.h.b16 %v3208
          %v4745 = vunpack.c.l.b16 %v3209
          %v4746 = vunpack.c.h.b16 %v3209
          %v4747 = vunpack.c.l.b16 %v3210
          %v4748 = vunpack.c.h.b16 %v3210
          %v4749 = vunpack.c.l.b16 %v3211
          %v4750 = vunpack.c.h.b16 %v3211
          %v4751 = vunpack.c.l.b16 %v3212
          %v4752 = vunpack.c.h.b16 %v3212
          %v4753 = vunpack.c.l.b16 %v3213
          %v4754 = vunpack.c.h.b16 %v3213
          %v4755 = vunpack.c.l.b16 %v3214
          %v4756 = vunpack.c.h.b16 %v3214
          %v4757 = vunpack.c.l.b16 %v3215
          %v4758 = vunpack.c.h.b16 %v3215
          %v4759 = vunpack.c.l.b16 %v3216
          %v4760 = vunpack.c.h.b16 %v3216
          %v4761 = vunpack.c.l.b16 %v3217
          %v4762 = vunpack.c.h.b16 %v3217
          %v4763 = vunpack.c.l.b16 %v3218
          %v4764 = vunpack.c.h.b16 %v3218
          %v4765 = vunpack.c.l.b16 %v3219
          %v4766 = vunpack.c.h.b16 %v3219
          %v4767 = vunpack.c.l.b16 %v3220
          %v4768 = vunpack.c.h.b16 %v3220
          %v4769 = vunpack.c.l.b16 %v3221
          %v4770 = vunpack.c.h.b16 %v3221
          %v4771 = vunpack.c.l.b16 %v3222
          %v4772 = vunpack.c.h.b16 %v3222
          %v4773 = vunpack.c.l.b16 %v3223
          %v4774 = vunpack.c.h.b16 %v3223
          %v4775 = vunpack.c.l.b16 %v3224
          %v4776 = vunpack.c.h.b16 %v3224
          %v4777 = vunpack.c.l.b16 %v3225
          %v4778 = vunpack.c.h.b16 %v3225
          %v4779 = vunpack.c.l.b16 %v3226
          %v4780 = vunpack.c.h.b16 %v3226
          %v4781 = vunpack.c.l.b16 %v3227
          %v4782 = vunpack.c.h.b16 %v3227
          %v4783 = vunpack.c.l.b16 %v3228
          %v4784 = vunpack.c.h.b16 %v3228
          %v4785 = vunpack.c.l.b16 %v3229
          %v4786 = vunpack.c.h.b16 %v3229
          %v4787 = vunpack.c.l.b16 %v3230
          %v4788 = vunpack.c.h.b16 %v3230
          %v4789 = vunpack.c.l.b16 %v3231
          %v4790 = vunpack.c.h.b16 %v3231
          %v4791 = vunpack.c.l.b16 %v3232
          %v4792 = vunpack.c.h.b16 %v3232
          %v4793 = vunpack.c.l.b16 %v3233
          %v4794 = vunpack.c.h.b16 %v3233
          %v4795 = vunpack.c.l.b16 %v3234
          %v4796 = vunpack.c.h.b16 %v3234
          %v4797 = vunpack.c.l.b16 %v3235
          %v4798 = vunpack.c.h.b16 %v3235
          %v4799 = vunpack.c.l.b16 %v3236
          %v4800 = vunpack.c.h.b16 %v3236
          %v4801 = vunpack.c.l.b16 %v3237
          %v4802 = vunpack.c.h.b16 %v3237
          %v4803 = vunpack.c.l.b16 %v3238
          %v4804 = vunpack.c.h.b16 %v3238
          %v4805 = vunpack.c.l.b16 %v3239
          %v4806 = vunpack.c.h.b16 %v3239
          %v4807 = vunpack.c.l.b16 %v3240
          %v4808 = vunpack.c.h.b16 %v3240
          %v4809 = vunpack.c.l.b16 %v3241
          %v4810 = vunpack.c.h.b16 %v3241
          %v4811 = vunpack.c.l.b16 %v3242
          %v4812 = vunpack.c.h.b16 %v3242
          %v4813 = vunpack.c.l.b16 %v3243
          %v4814 = vunpack.c.h.b16 %v3243
          %v4815 = vunpack.c.l.b16 %v3244
          %v4816 = vunpack.c.h.b16 %v3244
          %v4817 = vunpack.c.l.b16 %v3245
          %v4818 = vunpack.c.h.b16 %v3245
          %v4819 = vunpack.c.l.b16 %v3246
          %v4820 = vunpack.c.h.b16 %v3246
          %v4821 = vunpack.c.l.b16 %v3247
          %v4822 = vunpack.c.h.b16 %v3247
          %v4823 = vunpack.c.l.b16 %v3248
          %v4824 = vunpack.c.h.b16 %v3248
          %v4825 = vunpack.c.l.b16 %v3249
          %v4826 = vunpack.c.h.b16 %v3249
          %v4827 = vunpack.c.l.b16 %v3250
          %v4828 = vunpack.c.h.b16 %v3250
          %v4829 = vpack.c.b16 %v3813, %v3805
          %v4830 = vpack.c.b16 %v3814, %v3806
          %v4831 = vpack.c.b16 %v3815, %v3807
          %v4832 = vpack.c.b16 %v3816, %v3808
          %v4833 = vpack.c.b16 %v3817, %v3809
          %v4834 = vpack.c.b16 %v3818, %v3810
          %v4835 = vpack.c.b16 %v3819, %v3811
          %v4836 = vpack.c.b16 %v3820, %v3812
          %v4837 = vpack.c.b16 %v3829, %v3821
          %v4838 = vpack.c.b16 %v3830, %v3822
          %v4839 = vpack.c.b16 %v3831, %v3823
          %v4840 = vpack.c.b16 %v3832, %v3824
          %v4841 = vpack.c.b16 %v3833, %v3825
          %v4842 = vpack.c.b16 %v3834, %v3826
          %v4843 = vpack.c.b16 %v3835, %v3827
          %v4844 = vpack.c.b16 %v3836, %v3828
          %v4845 = vpack.c.b16 %v3845, %v3837
          %v4846 = vpack.c.b16 %v3846, %v3838
          %v4847 = vpack.c.b16 %v3847, %v3839
          %v4848 = vpack.c.b16 %v3848, %v3840
          %v4849 = vpack.c.b16 %v3849, %v3841
          %v4850 = vpack.c.b16 %v3850, %v3842
          %v4851 = vpack.c.b16 %v3851, %v3843
          %v4852 = vpack.c.b16 %v3852, %v3844
          %v4853 = vpack.c.b16 %v3861, %v3853
          %v4854 = vpack.c.b16 %v3862, %v3854
          %v4855 = vpack.c.b16 %v3863, %v3855
          %v4856 = vpack.c.b16 %v3864, %v3856
          %v4857 = vpack.c.b16 %v3865, %v3857
          %v4858 = vpack.c.b16 %v3866, %v3858
          %v4859 = vpack.c.b16 %v3867, %v3859
          %v4860 = vpack.c.b16 %v3868, %v3860
          %v4861 = vpack.c.b16 %v3877, %v3869
          %v4862 = vpack.c.b16 %v3878, %v3870
          %v4863 = vpack.c.b16 %v3879, %v3871
          %v4864 = vpack.c.b16 %v3880, %v3872
          %v4865 = vpack.c.b16 %v3881, %v3873
          %v4866 = vpack.c.b16 %v3882, %v3874
          %v4867 = vpack.c.b16 %v3883, %v3875
          %v4868 = vpack.c.b16 %v3884, %v3876
          %v4869 = vpack.c.b16 %v3893, %v3885
          %v4870 = vpack.c.b16 %v3894, %v3886
          %v4871 = vpack.c.b16 %v3895, %v3887
          %v4872 = vpack.c.b16 %v3896, %v3888
          %v4873 = vpack.c.b16 %v3897, %v3889
          %v4874 = vpack.c.b16 %v3898, %v3890
          %v4875 = vpack.c.b16 %v3899, %v3891
          %v4876 = vpack.c.b16 %v3900, %v3892
          %v4877 = vpack.c.b16 %v3909, %v3901
          %v4878 = vpack.c.b16 %v3910, %v3902
          %v4879 = vpack.c.b16 %v3911, %v3903
          %v4880 = vpack.c.b16 %v3912, %v3904
          %v4881 = vpack.c.b16 %v3913, %v3905
          %v4882 = vpack.c.b16 %v3914, %v3906
          %v4883 = vpack.c.b16 %v3915, %v3907
          %v4884 = vpack.c.b16 %v3916, %v3908
          %v4885 = vpack.c.b16 %v3925, %v3917
          %v4886 = vpack.c.b16 %v3926, %v3918
          %v4887 = vpack.c.b16 %v3927, %v3919
          %v4888 = vpack.c.b16 %v3928, %v3920
          %v4889 = vpack.c.b16 %v3929, %v3921
          %v4890 = vpack.c.b16 %v3930, %v3922
          %v4891 = vpack.c.b16 %v3931, %v3923
          %v4892 = vpack.c.b16 %v3932, %v3924
          %v4893 = vpack.c.b16 %v3941, %v3933
          %v4894 = vpack.c.b16 %v3942, %v3934
          %v4895 = vpack.c.b16 %v3943, %v3935
          %v4896 = vpack.c.b16 %v3944, %v3936
          %v4897 = vpack.c.b16 %v3945, %v3937
          %v4898 = vpack.c.b16 %v3946, %v3938
          %v4899 = vpack.c.b16 %v3947, %v3939
          %v4900 = vpack.c.b16 %v3948, %v3940
          %v4901 = vpack.c.b16 %v3957, %v3949
          %v4902 = vpack.c.b16 %v3958, %v3950
          %v4903 = vpack.c.b16 %v3959, %v3951
          %v4904 = vpack.c.b16 %v3960, %v3952
          %v4905 = vpack.c.b16 %v3961, %v3953
          %v4906 = vpack.c.b16 %v3962, %v3954
          %v4907 = vpack.c.b16 %v3963, %v3955
          %v4908 = vpack.c.b16 %v3964, %v3956
          %v4909 = vpack.c.b16 %v3973, %v3965
          %v4910 = vpack.c.b16 %v3974, %v3966
          %v4911 = vpack.c.b16 %v3975, %v3967
          %v4912 = vpack.c.b16 %v3976, %v3968
          %v4913 = vpack.c.b16 %v3977, %v3969
          %v4914 = vpack.c.b16 %v3978, %v3970
          %v4915 = vpack.c.b16 %v3979, %v3971
          %v4916 = vpack.c.b16 %v3980, %v3972
          %v4917 = vpack.c.b16 %v3989, %v3981
          %v4918 = vpack.c.b16 %v3990, %v3982
          %v4919 = vpack.c.b16 %v3991, %v3983
          %v4920 = vpack.c.b16 %v3992, %v3984
          %v4921 = vpack.c.b16 %v3993, %v3985
          %v4922 = vpack.c.b16 %v3994, %v3986
          %v4923 = vpack.c.b16 %v3995, %v3987
          %v4924 = vpack.c.b16 %v3996, %v3988
          %v4925 = vpack.c.b16 %v4005, %v3997
          %v4926 = vpack.c.b16 %v4006, %v3998
          %v4927 = vpack.c.b16 %v4007, %v3999
          %v4928 = vpack.c.b16 %v4008, %v4000
          %v4929 = vpack.c.b16 %v4009, %v4001
          %v4930 = vpack.c.b16 %v4010, %v4002
          %v4931 = vpack.c.b16 %v4011, %v4003
          %v4932 = vpack.c.b16 %v4012, %v4004
          %v4933 = vpack.c.b16 %v4021, %v4013
          %v4934 = vpack.c.b16 %v4022, %v4014
          %v4935 = vpack.c.b16 %v4023, %v4015
          %v4936 = vpack.c.b16 %v4024, %v4016
          %v4937 = vpack.c.b16 %v4025, %v4017
          %v4938 = vpack.c.b16 %v4026, %v4018
          %v4939 = vpack.c.b16 %v4027, %v4019
          %v4940 = vpack.c.b16 %v4028, %v4020
          %v4941 = vpack.c.b16 %v4037, %v4029
          %v4942 = vpack.c.b16 %v4038, %v4030
          %v4943 = vpack.c.b16 %v4039, %v4031
          %v4944 = vpack.c.b16 %v4040, %v4032
          %v4945 = vpack.c.b16 %v4041, %v4033
          %v4946 = vpack.c.b16 %v4042, %v4034
          %v4947 = vpack.c.b16 %v4043, %v4035
          %v4948 = vpack.c.b16 %v4044, %v4036
          %v4949 = vpack.c.b16 %v4053, %v4045
          %v4950 = vpack.c.b16 %v4054, %v4046
          %v4951 = vpack.c.b16 %v4055, %v4047
          %v4952 = vpack.c.b16 %v4056, %v4048
          %v4953 = vpack.c.b16 %v4057, %v4049
          %v4954 = vpack.c.b16 %v4058, %v4050
          %v4955 = vpack.c.b16 %v4059, %v4051
          %v4956 = vpack.c.b16 %v4060, %v4052
          %v4957 = vpack.c.b16 %v4069, %v4061
          %v4958 = vpack.c.b16 %v4070, %v4062
          %v4959 = vpack.c.b16 %v4071, %v4063
          %v4960 = vpack.c.b16 %v4072, %v4064
          %v4961 = vpack.c.b16 %v4073, %v4065
          %v4962 = vpack.c.b16 %v4074, %v4066
          %v4963 = vpack.c.b16 %v4075, %v4067
          %v4964 = vpack.c.b16 %v4076, %v4068
          %v4965 = vpack.c.b16 %v4085, %v4077
          %v4966 = vpack.c.b16 %v4086, %v4078
          %v4967 = vpack.c.b16 %v4087, %v4079
          %v4968 = vpack.c.b16 %v4088, %v4080
          %v4969 = vpack.c.b16 %v4089, %v4081
          %v4970 = vpack.c.b16 %v4090, %v4082
          %v4971 = vpack.c.b16 %v4091, %v4083
          %v4972 = vpack.c.b16 %v4092, %v4084
          %v4973 = vpack.c.b16 %v4101, %v4093
          %v4974 = vpack.c.b16 %v4102, %v4094
          %v4975 = vpack.c.b16 %v4103, %v4095
          %v4976 = vpack.c.b16 %v4104, %v4096
          %v4977 = vpack.c.b16 %v4105, %v4097
          %v4978 = vpack.c.b16 %v4106, %v4098
          %v4979 = vpack.c.b16 %v4107, %v4099
          %v4980 = vpack.c.b16 %v4108, %v4100
          %v4981 = vpack.c.b16 %v4117, %v4109
          %v4982 = vpack.c.b16 %v4118, %v4110
          %v4983 = vpack.c.b16 %v4119, %v4111
          %v4984 = vpack.c.b16 %v4120, %v4112
          %v4985 = vpack.c.b16 %v4121, %v4113
          %v4986 = vpack.c.b16 %v4122, %v4114
          %v4987 = vpack.c.b16 %v4123, %v4115
          %v4988 = vpack.c.b16 %v4124, %v4116
          %v4989 = vpack.c.b16 %v4133, %v4125
          %v4990 = vpack.c.b16 %v4134, %v4126
          %v4991 = vpack.c.b16 %v4135, %v4127
          %v4992 = vpack.c.b16 %v4136, %v4128
          %v4993 = vpack.c.b16 %v4137, %v4129
          %v4994 = vpack.c.b16 %v4138, %v4130
          %v4995 = vpack.c.b16 %v4139, %v4131
          %v4996 = vpack.c.b16 %v4140, %v4132
          %v4997 = vpack.c.b16 %v4149, %v4141
          %v4998 = vpack.c.b16 %v4150, %v4142
          %v4999 = vpack.c.b16 %v4151, %v4143
          %v5000 = vpack.c.b16 %v4152, %v4144
          %v5001 = vpack.c.b16 %v4153, %v4145
          %v5002 = vpack.c.b16 %v4154, %v4146
          %v5003 = vpack.c.b16 %v4155, %v4147
          %v5004 = vpack.c.b16 %v4156, %v4148
          %v5005 = vpack.c.b16 %v4165, %v4157
          %v5006 = vpack.c.b16 %v4166, %v4158
          %v5007 = vpack.c.b16 %v4167, %v4159
          %v5008 = vpack.c.b16 %v4168, %v4160
          %v5009 = vpack.c.b16 %v4169, %v4161
          %v5010 = vpack.c.b16 %v4170, %v4162
          %v5011 = vpack.c.b16 %v4171, %v4163
          %v5012 = vpack.c.b16 %v4172, %v4164
          %v5013 = vpack.c.b16 %v4181, %v4173
          %v5014 = vpack.c.b16 %v4182, %v4174
          %v5015 = vpack.c.b16 %v4183, %v4175
          %v5016 = vpack.c.b16 %v4184, %v4176
          %v5017 = vpack.c.b16 %v4185, %v4177
          %v5018 = vpack.c.b16 %v4186, %v4178
          %v5019 = vpack.c.b16 %v4187, %v4179
          %v5020 = vpack.c.b16 %v4188, %v4180
          %v5021 = vpack.c.b16 %v4197, %v4189
          %v5022 = vpack.c.b16 %v4198, %v4190
          %v5023 = vpack.c.b16 %v4199, %v4191
          %v5024 = vpack.c.b16 %v4200, %v4192
          %v5025 = vpack.c.b16 %v4201, %v4193
          %v5026 = vpack.c.b16 %v4202, %v4194
          %v5027 = vpack.c.b16 %v4203, %v4195
          %v5028 = vpack.c.b16 %v4204, %v4196
          %v5029 = vpack.c.b16 %v4213, %v4205
          %v5030 = vpack.c.b16 %v4214, %v4206
          %v5031 = vpack.c.b16 %v4215, %v4207
          %v5032 = vpack.c.b16 %v4216, %v4208
          %v5033 = vpack.c.b16 %v4217, %v4209
          %v5034 = vpack.c.b16 %v4218, %v4210
          %v5035 = vpack.c.b16 %v4219, %v4211
          %v5036 = vpack.c.b16 %v4220, %v4212
          %v5037 = vpack.c.b16 %v4229, %v4221
          %v5038 = vpack.c.b16 %v4230, %v4222
          %v5039 = vpack.c.b16 %v4231, %v4223
          %v5040 = vpack.c.b16 %v4232, %v4224
          %v5041 = vpack.c.b16 %v4233, %v4225
          %v5042 = vpack.c.b16 %v4234, %v4226
          %v5043 = vpack.c.b16 %v4235, %v4227
          %v5044 = vpack.c.b16 %v4236, %v4228
          %v5045 = vpack.c.b16 %v4245, %v4237
          %v5046 = vpack.c.b16 %v4246, %v4238
          %v5047 = vpack.c.b16 %v4247, %v4239
          %v5048 = vpack.c.b16 %v4248, %v4240
          %v5049 = vpack.c.b16 %v4249, %v4241
          %v5050 = vpack.c.b16 %v4250, %v4242
          %v5051 = vpack.c.b16 %v4251, %v4243
          %v5052 = vpack.c.b16 %v4252, %v4244
          %v5053 = vpack.c.b16 %v4261, %v4253
          %v5054 = vpack.c.b16 %v4262, %v4254
          %v5055 = vpack.c.b16 %v4263, %v4255
          %v5056 = vpack.c.b16 %v4264, %v4256
          %v5057 = vpack.c.b16 %v4265, %v4257
          %v5058 = vpack.c.b16 %v4266, %v4258
          %v5059 = vpack.c.b16 %v4267, %v4259
          %v5060 = vpack.c.b16 %v4268, %v4260
          %v5061 = vpack.c.b16 %v4277, %v4269
          %v5062 = vpack.c.b16 %v4278, %v4270
          %v5063 = vpack.c.b16 %v4279, %v4271
          %v5064 = vpack.c.b16 %v4280, %v4272
          %v5065 = vpack.c.b16 %v4281, %v4273
          %v5066 = vpack.c.b16 %v4282, %v4274
          %v5067 = vpack.c.b16 %v4283, %v4275
          %v5068 = vpack.c.b16 %v4284, %v4276
          %v5069 = vpack.c.b16 %v4293, %v4285
          %v5070 = vpack.c.b16 %v4294, %v4286
          %v5071 = vpack.c.b16 %v4295, %v4287
          %v5072 = vpack.c.b16 %v4296, %v4288
          %v5073 = vpack.c.b16 %v4297, %v4289
          %v5074 = vpack.c.b16 %v4298, %v4290
          %v5075 = vpack.c.b16 %v4299, %v4291
          %v5076 = vpack.c.b16 %v4300, %v4292
          %v5077 = vpack.c.b16 %v4309, %v4301
          %v5078 = vpack.c.b16 %v4310, %v4302
          %v5079 = vpack.c.b16 %v4311, %v4303
          %v5080 = vpack.c.b16 %v4312, %v4304
          %v5081 = vpack.c.b16 %v4313, %v4305
          %v5082 = vpack.c.b16 %v4314, %v4306
          %v5083 = vpack.c.b16 %v4315, %v4307
          %v5084 = vpack.c.b16 %v4316, %v4308
          %v5085 = vpack.c.b16 %v4325, %v4317
          %v5086 = vpack.c.b16 %v4326, %v4318
          %v5087 = vpack.c.b16 %v4327, %v4319
          %v5088 = vpack.c.b16 %v4328, %v4320
          %v5089 = vpack.c.b16 %v4329, %v4321
          %v5090 = vpack.c.b16 %v4330, %v4322
          %v5091 = vpack.c.b16 %v4331, %v4323
          %v5092 = vpack.c.b16 %v4332, %v4324
          %v5093 = vpack.c.b16 %v4341, %v4333
          %v5094 = vpack.c.b16 %v4342, %v4334
          %v5095 = vpack.c.b16 %v4343, %v4335
          %v5096 = vpack.c.b16 %v4344, %v4336
          %v5097 = vpack.c.b16 %v4345, %v4337
          %v5098 = vpack.c.b16 %v4346, %v4338
          %v5099 = vpack.c.b16 %v4347, %v4339
          %v5100 = vpack.c.b16 %v4348, %v4340
          %v5101 = vpack.c.b16 %v4357, %v4349
          %v5102 = vpack.c.b16 %v4358, %v4350
          %v5103 = vpack.c.b16 %v4359, %v4351
          %v5104 = vpack.c.b16 %v4360, %v4352
          %v5105 = vpack.c.b16 %v4361, %v4353
          %v5106 = vpack.c.b16 %v4362, %v4354
          %v5107 = vpack.c.b16 %v4363, %v4355
          %v5108 = vpack.c.b16 %v4364, %v4356
          %v5109 = vpack.c.b16 %v4373, %v4365
          %v5110 = vpack.c.b16 %v4374, %v4366
          %v5111 = vpack.c.b16 %v4375, %v4367
          %v5112 = vpack.c.b16 %v4376, %v4368
          %v5113 = vpack.c.b16 %v4377, %v4369
          %v5114 = vpack.c.b16 %v4378, %v4370
          %v5115 = vpack.c.b16 %v4379, %v4371
          %v5116 = vpack.c.b16 %v4380, %v4372
          %v5117 = vpack.c.b16 %v4389, %v4381
          %v5118 = vpack.c.b16 %v4390, %v4382
          %v5119 = vpack.c.b16 %v4391, %v4383
          %v5120 = vpack.c.b16 %v4392, %v4384
          %v5121 = vpack.c.b16 %v4393, %v4385
          %v5122 = vpack.c.b16 %v4394, %v4386
          %v5123 = vpack.c.b16 %v4395, %v4387
          %v5124 = vpack.c.b16 %v4396, %v4388
          %v5125 = vpack.c.b16 %v4405, %v4397
          %v5126 = vpack.c.b16 %v4406, %v4398
          %v5127 = vpack.c.b16 %v4407, %v4399
          %v5128 = vpack.c.b16 %v4408, %v4400
          %v5129 = vpack.c.b16 %v4409, %v4401
          %v5130 = vpack.c.b16 %v4410, %v4402
          %v5131 = vpack.c.b16 %v4411, %v4403
          %v5132 = vpack.c.b16 %v4412, %v4404
          %v5133 = vpack.c.b16 %v4421, %v4413
          %v5134 = vpack.c.b16 %v4422, %v4414
          %v5135 = vpack.c.b16 %v4423, %v4415
          %v5136 = vpack.c.b16 %v4424, %v4416
          %v5137 = vpack.c.b16 %v4425, %v4417
          %v5138 = vpack.c.b16 %v4426, %v4418
          %v5139 = vpack.c.b16 %v4427, %v4419
          %v5140 = vpack.c.b16 %v4428, %v4420
          %v5141 = vpack.c.b16 %v4437, %v4429
          %v5142 = vpack.c.b16 %v4438, %v4430
          %v5143 = vpack.c.b16 %v4439, %v4431
          %v5144 = vpack.c.b16 %v4440, %v4432
          %v5145 = vpack.c.b16 %v4441, %v4433
          %v5146 = vpack.c.b16 %v4442, %v4434
          %v5147 = vpack.c.b16 %v4443, %v4435
          %v5148 = vpack.c.b16 %v4444, %v4436
          %v5149 = vpack.c.b16 %v4453, %v4445
          %v5150 = vpack.c.b16 %v4454, %v4446
          %v5151 = vpack.c.b16 %v4455, %v4447
          %v5152 = vpack.c.b16 %v4456, %v4448
          %v5153 = vpack.c.b16 %v4457, %v4449
          %v5154 = vpack.c.b16 %v4458, %v4450
          %v5155 = vpack.c.b16 %v4459, %v4451
          %v5156 = vpack.c.b16 %v4460, %v4452
          %v5157 = vpack.c.b16 %v4469, %v4461
          %v5158 = vpack.c.b16 %v4470, %v4462
          %v5159 = vpack.c.b16 %v4471, %v4463
          %v5160 = vpack.c.b16 %v4472, %v4464
          %v5161 = vpack.c.b16 %v4473, %v4465
          %v5162 = vpack.c.b16 %v4474, %v4466
          %v5163 = vpack.c.b16 %v4475, %v4467
          %v5164 = vpack.c.b16 %v4476, %v4468
          %v5165 = vpack.c.b16 %v4485, %v4477
          %v5166 = vpack.c.b16 %v4486, %v4478
          %v5167 = vpack.c.b16 %v4487, %v4479
          %v5168 = vpack.c.b16 %v4488, %v4480
          %v5169 = vpack.c.b16 %v4489, %v4481
          %v5170 = vpack.c.b16 %v4490, %v4482
          %v5171 = vpack.c.b16 %v4491, %v4483
          %v5172 = vpack.c.b16 %v4492, %v4484
          %v5173 = vpack.c.b16 %v4501, %v4493
          %v5174 = vpack.c.b16 %v4502, %v4494
          %v5175 = vpack.c.b16 %v4503, %v4495
          %v5176 = vpack.c.b16 %v4504, %v4496
          %v5177 = vpack.c.b16 %v4505, %v4497
          %v5178 = vpack.c.b16 %v4506, %v4498
          %v5179 = vpack.c.b16 %v4507, %v4499
          %v5180 = vpack.c.b16 %v4508, %v4500
          %v5181 = vpack.c.b16 %v4517, %v4509
          %v5182 = vpack.c.b16 %v4518, %v4510
          %v5183 = vpack.c.b16 %v4519, %v4511
          %v5184 = vpack.c.b16 %v4520, %v4512
          %v5185 = vpack.c.b16 %v4521, %v4513
          %v5186 = vpack.c.b16 %v4522, %v4514
          %v5187 = vpack.c.b16 %v4523, %v4515
          %v5188 = vpack.c.b16 %v4524, %v4516
          %v5189 = vpack.c.b16 %v4533, %v4525
          %v5190 = vpack.c.b16 %v4534, %v4526
          %v5191 = vpack.c.b16 %v4535, %v4527
          %v5192 = vpack.c.b16 %v4536, %v4528
          %v5193 = vpack.c.b16 %v4537, %v4529
          %v5194 = vpack.c.b16 %v4538, %v4530
          %v5195 = vpack.c.b16 %v4539, %v4531
          %v5196 = vpack.c.b16 %v4540, %v4532
          %v5197 = vpack.c.b16 %v4549, %v4541
          %v5198 = vpack.c.b16 %v4550, %v4542
          %v5199 = vpack.c.b16 %v4551, %v4543
          %v5200 = vpack.c.b16 %v4552, %v4544
          %v5201 = vpack.c.b16 %v4553, %v4545
          %v5202 = vpack.c.b16 %v4554, %v4546
          %v5203 = vpack.c.b16 %v4555, %v4547
          %v5204 = vpack.c.b16 %v4556, %v4548
          %v5205 = vpack.c.b16 %v4565, %v4557
          %v5206 = vpack.c.b16 %v4566, %v4558
          %v5207 = vpack.c.b16 %v4567, %v4559
          %v5208 = vpack.c.b16 %v4568, %v4560
          %v5209 = vpack.c.b16 %v4569, %v4561
          %v5210 = vpack.c.b16 %v4570, %v4562
          %v5211 = vpack.c.b16 %v4571, %v4563
          %v5212 = vpack.c.b16 %v4572, %v4564
          %v5213 = vpack.c.b16 %v4581, %v4573
          %v5214 = vpack.c.b16 %v4582, %v4574
          %v5215 = vpack.c.b16 %v4583, %v4575
          %v5216 = vpack.c.b16 %v4584, %v4576
          %v5217 = vpack.c.b16 %v4585, %v4577
          %v5218 = vpack.c.b16 %v4586, %v4578
          %v5219 = vpack.c.b16 %v4587, %v4579
          %v5220 = vpack.c.b16 %v4588, %v4580
          %v5221 = vpack.c.b16 %v4597, %v4589
          %v5222 = vpack.c.b16 %v4598, %v4590
          %v5223 = vpack.c.b16 %v4599, %v4591
          %v5224 = vpack.c.b16 %v4600, %v4592
          %v5225 = vpack.c.b16 %v4601, %v4593
          %v5226 = vpack.c.b16 %v4602, %v4594
          %v5227 = vpack.c.b16 %v4603, %v4595
          %v5228 = vpack.c.b16 %v4604, %v4596
          %v5229 = vpack.c.b16 %v4613, %v4605
          %v5230 = vpack.c.b16 %v4614, %v4606
          %v5231 = vpack.c.b16 %v4615, %v4607
          %v5232 = vpack.c.b16 %v4616, %v4608
          %v5233 = vpack.c.b16 %v4617, %v4609
          %v5234 = vpack.c.b16 %v4618, %v4610
          %v5235 = vpack.c.b16 %v4619, %v4611
          %v5236 = vpack.c.b16 %v4620, %v4612
          %v5237 = vpack.c.b16 %v4629, %v4621
          %v5238 = vpack.c.b16 %v4630, %v4622
          %v5239 = vpack.c.b16 %v4631, %v4623
          %v5240 = vpack.c.b16 %v4632, %v4624
          %v5241 = vpack.c.b16 %v4633, %v4625
          %v5242 = vpack.c.b16 %v4634, %v4626
          %v5243 = vpack.c.b16 %v4635, %v4627
          %v5244 = vpack.c.b16 %v4636, %v4628
          %v5245 = vpack.c.b16 %v4645, %v4637
          %v5246 = vpack.c.b16 %v4646, %v4638
          %v5247 = vpack.c.b16 %v4647, %v4639
          %v5248 = vpack.c.b16 %v4648, %v4640
          %v5249 = vpack.c.b16 %v4649, %v4641
          %v5250 = vpack.c.b16 %v4650, %v4642
          %v5251 = vpack.c.b16 %v4651, %v4643
          %v5252 = vpack.c.b16 %v4652, %v4644
          %v5253 = vpack.c.b16 %v4661, %v4653
          %v5254 = vpack.c.b16 %v4662, %v4654
          %v5255 = vpack.c.b16 %v4663, %v4655
          %v5256 = vpack.c.b16 %v4664, %v4656
          %v5257 = vpack.c.b16 %v4665, %v4657
          %v5258 = vpack.c.b16 %v4666, %v4658
          %v5259 = vpack.c.b16 %v4667, %v4659
          %v5260 = vpack.c.b16 %v4668, %v4660
          %v5261 = vpack.c.b16 %v4677, %v4669
          %v5262 = vpack.c.b16 %v4678, %v4670
          %v5263 = vpack.c.b16 %v4679, %v4671
          %v5264 = vpack.c.b16 %v4680, %v4672
          %v5265 = vpack.c.b16 %v4681, %v4673
          %v5266 = vpack.c.b16 %v4682, %v4674
          %v5267 = vpack.c.b16 %v4683, %v4675
          %v5268 = vpack.c.b16 %v4684, %v4676
          %v5269 = vpack.c.b16 %v4693, %v4685
          %v5270 = vpack.c.b16 %v4694, %v4686
          %v5271 = vpack.c.b16 %v4695, %v4687
          %v5272 = vpack.c.b16 %v4696, %v4688
          %v5273 = vpack.c.b16 %v4697, %v4689
          %v5274 = vpack.c.b16 %v4698, %v4690
          %v5275 = vpack.c.b16 %v4699, %v4691
          %v5276 = vpack.c.b16 %v4700, %v4692
          %v5277 = vpack.c.b16 %v4709, %v4701
          %v5278 = vpack.c.b16 %v4710, %v4702
          %v5279 = vpack.c.b16 %v4711, %v4703
          %v5280 = vpack.c.b16 %v4712, %v4704
          %v5281 = vpack.c.b16 %v4713, %v4705
          %v5282 = vpack.c.b16 %v4714, %v4706
          %v5283 = vpack.c.b16 %v4715, %v4707
          %v5284 = vpack.c.b16 %v4716, %v4708
          %v5285 = vpack.c.b16 %v4725, %v4717
          %v5286 = vpack.c.b16 %v4726, %v4718
          %v5287 = vpack.c.b16 %v4727, %v4719
          %v5288 = vpack.c.b16 %v4728, %v4720
          %v5289 = vpack.c.b16 %v4729, %v4721
          %v5290 = vpack.c.b16 %v4730, %v4722
          %v5291 = vpack.c.b16 %v4731, %v4723
          %v5292 = vpack.c.b16 %v4732, %v4724
          %v5293 = vpack.c.b16 %v4741, %v4733
          %v5294 = vpack.c.b16 %v4742, %v4734
          %v5295 = vpack.c.b16 %v4743, %v4735
          %v5296 = vpack.c.b16 %v4744, %v4736
          %v5297 = vpack.c.b16 %v4745, %v4737
          %v5298 = vpack.c.b16 %v4746, %v4738
          %v5299 = vpack.c.b16 %v4747, %v4739
          %v5300 = vpack.c.b16 %v4748, %v4740
          %v5301 = vpack.c.b16 %v4757, %v4749
          %v5302 = vpack.c.b16 %v4758, %v4750
          %v5303 = vpack.c.b16 %v4759, %v4751
          %v5304 = vpack.c.b16 %v4760, %v4752
          %v5305 = vpack.c.b16 %v4761, %v4753
          %v5306 = vpack.c.b16 %v4762, %v4754
          %v5307 = vpack.c.b16 %v4763, %v4755
          %v5308 = vpack.c.b16 %v4764, %v4756
          %v5309 = vpack.c.b16 %v4773, %v4765
          %v5310 = vpack.c.b16 %v4774, %v4766
          %v5311 = vpack.c.b16 %v4775, %v4767
          %v5312 = vpack.c.b16 %v4776, %v4768
          %v5313 = vpack.c.b16 %v4777, %v4769
          %v5314 = vpack.c.b16 %v4778, %v4770
          %v5315 = vpack.c.b16 %v4779, %v4771
          %v5316 = vpack.c.b16 %v4780, %v4772
          %v5317 = vpack.c.b16 %v4789, %v4781
          %v5318 = vpack.c.b16 %v4790, %v4782
          %v5319 = vpack.c.b16 %v4791, %v4783
          %v5320 = vpack.c.b16 %v4792, %v4784
          %v5321 = vpack.c.b16 %v4793, %v4785
          %v5322 = vpack.c.b16 %v4794, %v4786
          %v5323 = vpack.c.b16 %v4795, %v4787
          %v5324 = vpack.c.b16 %v4796, %v4788
          %v5325 = vpack.c.b16 %v4805, %v4797
          %v5326 = vpack.c.b16 %v4806, %v4798
          %v5327 = vpack.c.b16 %v4807, %v4799
          %v5328 = vpack.c.b16 %v4808, %v4800
          %v5329 = vpack.c.b16 %v4809, %v4801
          %v5330 = vpack.c.b16 %v4810, %v4802
          %v5331 = vpack.c.b16 %v4811, %v4803
          %v5332 = vpack.c.b16 %v4812, %v4804
          %v5333 = vpack.c.b16 %v4821, %v4813
          %v5334 = vpack.c.b16 %v4822, %v4814
          %v5335 = vpack.c.b16 %v4823, %v4815
          %v5336 = vpack.c.b16 %v4824, %v4816
          %v5337 = vpack.c.b16 %v4825, %v4817
          %v5338 = vpack.c.b16 %v4826, %v4818
          %v5339 = vpack.c.b16 %v4827, %v4819
          %v5340 = vpack.c.b16 %v4828, %v4820
          %5853 = vmatprep.subr.bf16.mxu0 %v4830
          %5854 = vmatpush1.bf16.msra.mxu0 %v4829
          %5855 = vmatprep.subr.bf16.mxu0 %v4838
          %5856 = vmatpush1.bf16.msra.mxu0 %v4837
          %5857 = vmatprep.subr.bf16.mxu0 %v4846
          %5858 = vmatpush1.bf16.msra.mxu0 %v4845
          %5859 = vmatprep.subr.bf16.mxu0 %v4854
          %5860 = vmatpush1.bf16.msra.mxu0 %v4853
          %5861 = vmatprep.subr.bf16.mxu0 %v4862
          %5862 = vmatpush1.bf16.msra.mxu0 %v4861
          %5863 = vmatprep.subr.bf16.mxu0 %v4870
          %5864 = vmatpush1.bf16.msra.mxu0 %v4869
          %5865 = vmatprep.subr.bf16.mxu0 %v4878
          %5866 = vmatpush1.bf16.msra.mxu0 %v4877
          %5867 = vmatprep.subr.bf16.mxu0 %v4886
          %5868 = vmatpush1.bf16.msra.mxu0 %v4885
          %5869 = vmatprep.subr.bf16.mxu0 %v4894
          %5870 = vmatpush1.bf16.msra.mxu0 %v4893
          %5871 = vmatprep.subr.bf16.mxu0 %v4902
          %5872 = vmatpush1.bf16.msra.mxu0 %v4901
          %5873 = vmatprep.subr.bf16.mxu0 %v4910
          %5874 = vmatpush1.bf16.msra.mxu0 %v4909
          %5875 = vmatprep.subr.bf16.mxu0 %v4918
          %5876 = vmatpush1.bf16.msra.mxu0 %v4917
          %5877 = vmatprep.subr.bf16.mxu0 %v4926
          %5878 = vmatpush1.bf16.msra.mxu0 %v4925
          %5879 = vmatprep.subr.bf16.mxu0 %v4934
          %5880 = vmatpush1.bf16.msra.mxu0 %v4933
          %5881 = vmatprep.subr.bf16.mxu0 %v4942
          %5882 = vmatpush1.bf16.msra.mxu0 %v4941
          %5883 = vmatprep.subr.bf16.mxu0 %v4950
          %5884 = vmatpush1.bf16.msra.mxu0 %v4949
          %5885 = vmatprep.mubr.bf16.mxu0 %v2732
          %5886 = vmatmul.mubr.bf16.gmra.mrb[0].mxu0 %v2731
          %v5887 = vpop.f32.mrb[0].mxu0
          %v5888 = vadd.f32 %v3256, %v5887
          %v5889 = vpop.f32.mrb[0].mxu0
          %v5890 = vadd.f32 %v3260, %v5889
          %v5891 = vpop.f32.mrb[0].mxu0
          %v5892 = vpop.f32.mrb[0].mxu0
          %5893 = vdwg.mxu0
          %5894 = vmatprep.subr.bf16.mxu0 %v4958
          %5895 = vmatpush1.bf16.msra.mxu0 %v4957
          %5896 = vmatprep.subr.bf16.mxu0 %v4966
          %5897 = vmatpush1.bf16.msra.mxu0 %v4965
          %5898 = vmatprep.subr.bf16.mxu0 %v4974
          %5899 = vmatpush1.bf16.msra.mxu0 %v4973
          %5900 = vmatprep.subr.bf16.mxu0 %v4982
          %5901 = vmatpush1.bf16.msra.mxu0 %v4981
          %5902 = vmatprep.subr.bf16.mxu0 %v4990
          %5903 = vmatpush1.bf16.msra.mxu0 %v4989
          %5904 = vmatprep.subr.bf16.mxu0 %v4998
          %5905 = vmatpush1.bf16.msra.mxu0 %v4997
          %5906 = vmatprep.subr.bf16.mxu0 %v5006
          %5907 = vmatpush1.bf16.msra.mxu0 %v5005
          %5908 = vmatprep.subr.bf16.mxu0 %v5014
          %5909 = vmatpush1.bf16.msra.mxu0 %v5013
          %5910 = vmatprep.subr.bf16.mxu0 %v5022
          %5911 = vmatpush1.bf16.msra.mxu0 %v5021
          %5912 = vmatprep.subr.bf16.mxu0 %v5030
          %5913 = vmatpush1.bf16.msra.mxu0 %v5029
          %5914 = vmatprep.subr.bf16.mxu0 %v5038
          %5915 = vmatpush1.bf16.msra.mxu0 %v5037
          %5916 = vmatprep.subr.bf16.mxu0 %v5046
          %5917 = vmatpush1.bf16.msra.mxu0 %v5045
          %5918 = vmatprep.subr.bf16.mxu0 %v5054
          %5919 = vmatpush1.bf16.msra.mxu0 %v5053
          %5920 = vmatprep.subr.bf16.mxu0 %v5062
          %5921 = vmatpush1.bf16.msra.mxu0 %v5061
          %5922 = vmatprep.subr.bf16.mxu0 %v5070
          %5923 = vmatpush1.bf16.msra.mxu0 %v5069
          %5924 = vmatprep.subr.bf16.mxu0 %v5078
          %5925 = vmatpush1.bf16.msra.mxu0 %v5077
          %5926 = vmatprep.mubr.bf16.mxu0 %v2734
          %5927 = vmatmul.mubr.bf16.gmra.mrb[0].mxu0 %v2733
          %v5928 = vpop.f32.mrb[0].mxu0
          %v5929 = vadd.f32 %v5888, %v5928
          %v5930 = vpop.f32.mrb[0].mxu0
          %v5931 = vadd.f32 %v5890, %v5930
          %v5932 = vpop.f32.mrb[0].mxu0
          %v5933 = vpop.f32.mrb[0].mxu0
          %5934 = vdwg.mxu0
          %5935 = vmatprep.subr.bf16.mxu0 %v5086
          %5936 = vmatpush1.bf16.msra.mxu0 %v5085
          %5937 = vmatprep.subr.bf16.mxu0 %v5094
          %5938 = vmatpush1.bf16.msra.mxu0 %v5093
          %5939 = vmatprep.subr.bf16.mxu0 %v5102
          %5940 = vmatpush1.bf16.msra.mxu0 %v5101
          %5941 = vmatprep.subr.bf16.mxu0 %v5110
          %5942 = vmatpush1.bf16.msra.mxu0 %v5109
          %5943 = vmatprep.subr.bf16.mxu0 %v5118
          %5944 = vmatpush1.bf16.msra.mxu0 %v5117
          %5945 = vmatprep.subr.bf16.mxu0 %v5126
          %5946 = vmatpush1.bf16.msra.mxu0 %v5125
          %5947 = vmatprep.subr.bf16.mxu0 %v5134
          %5948 = vmatpush1.bf16.msra.mxu0 %v5133
          %5949 = vmatprep.subr.bf16.mxu0 %v5142
          %5950 = vmatpush1.bf16.msra.mxu0 %v5141
          %5951 = vmatprep.subr.bf16.mxu0 %v5150
          %5952 = vmatpush1.bf16.msra.mxu0 %v5149
          %5953 = vmatprep.subr.bf16.mxu0 %v5158
          %5954 = vmatpush1.bf16.msra.mxu0 %v5157
          %5955 = vmatprep.subr.bf16.mxu0 %v5166
          %5956 = vmatpush1.bf16.msra.mxu0 %v5165
          %5957 = vmatprep.subr.bf16.mxu0 %v5174
          %5958 = vmatpush1.bf16.msra.mxu0 %v5173
          %5959 = vmatprep.subr.bf16.mxu0 %v5182
          %5960 = vmatpush1.bf16.msra.mxu0 %v5181
          %5961 = vmatprep.subr.bf16.mxu0 %v5190
          %5962 = vmatpush1.bf16.msra.mxu0 %v5189
          %5963 = vmatprep.subr.bf16.mxu0 %v5198
          %5964 = vmatpush1.bf16.msra.mxu0 %v5197
          %5965 = vmatprep.subr.bf16.mxu0 %v5206
          %5966 = vmatpush1.bf16.msra.mxu0 %v5205
          %5967 = vmatprep.mubr.bf16.mxu0 %v2736
          %5968 = vmatmul.mubr.bf16.gmra.mrb[0].mxu0 %v2735
          %v5969 = vpop.f32.mrb[0].mxu0
          %v5970 = vadd.f32 %v5929, %v5969
          %v5971 = vpop.f32.mrb[0].mxu0
          %v5972 = vadd.f32 %v5931, %v5971
          %v5973 = vpop.f32.mrb[0].mxu0
          %v5974 = vpop.f32.mrb[0].mxu0
          %5975 = vdwg.mxu0
          %5976 = vmatprep.subr.bf16.mxu0 %v5214
          %5977 = vmatpush1.bf16.msra.mxu0 %v5213
          %5978 = vmatprep.subr.bf16.mxu0 %v5222
          %5979 = vmatpush1.bf16.msra.mxu0 %v5221
          %5980 = vmatprep.subr.bf16.mxu0 %v5230
          %5981 = vmatpush1.bf16.msra.mxu0 %v5229
          %5982 = vmatprep.subr.bf16.mxu0 %v5238
          %5983 = vmatpush1.bf16.msra.mxu0 %v5237
          %5984 = vmatprep.subr.bf16.mxu0 %v5246
          %5985 = vmatpush1.bf16.msra.mxu0 %v5245
          %5986 = vmatprep.subr.bf16.mxu0 %v5254
          %5987 = vmatpush1.bf16.msra.mxu0 %v5253
          %5988 = vmatprep.subr.bf16.mxu0 %v5262
          %5989 = vmatpush1.bf16.msra.mxu0 %v5261
          %5990 = vmatprep.subr.bf16.mxu0 %v5270
          %5991 = vmatpush1.bf16.msra.mxu0 %v5269
          %5992 = vmatprep.subr.bf16.mxu0 %v5278
          %5993 = vmatpush1.bf16.msra.mxu0 %v5277
          %5994 = vmatprep.subr.bf16.mxu0 %v5286
          %5995 = vmatpush1.bf16.msra.mxu0 %v5285
          %5996 = vmatprep.subr.bf16.mxu0 %v5294
          %5997 = vmatpush1.bf16.msra.mxu0 %v5293
          %5998 = vmatprep.subr.bf16.mxu0 %v5302
          %5999 = vmatpush1.bf16.msra.mxu0 %v5301
          %6000 = vmatprep.subr.bf16.mxu0 %v5310
          %6001 = vmatpush1.bf16.msra.mxu0 %v5309
          %6002 = vmatprep.subr.bf16.mxu0 %v5318
          %6003 = vmatpush1.bf16.msra.mxu0 %v5317
          %6004 = vmatprep.subr.bf16.mxu0 %v5326
          %6005 = vmatpush1.bf16.msra.mxu0 %v5325
          %6006 = vmatprep.subr.bf16.mxu0 %v5334
          %6007 = vmatpush1.bf16.msra.mxu0 %v5333
          %6008 = vmatprep.mubr.bf16.mxu0 %v2738
          %6009 = vmatmul.mubr.bf16.gmra.mrb[0].mxu0 %v2737
          %v6010 = vpop.f32.mrb[0].mxu0
          %v6011 = vadd.f32 %v5970, %v6010
          %v6012 = vpop.f32.mrb[0].mxu0
          %v6013 = vadd.f32 %v5972, %v6012
          %v6014 = vpop.f32.mrb[0].mxu0
          %v6015 = vpop.f32.mrb[0].mxu0
          %6016 = vdwg.mxu0
          %6017 = vmatprep.subr.bf16.mxu0 %v4832
          %6018 = vmatpush1.bf16.msra.mxu0 %v4831
          %6019 = vmatprep.subr.bf16.mxu0 %v4840
          %6020 = vmatpush1.bf16.msra.mxu0 %v4839
          %6021 = vmatprep.subr.bf16.mxu0 %v4848
          %6022 = vmatpush1.bf16.msra.mxu0 %v4847
          %6023 = vmatprep.subr.bf16.mxu0 %v4856
          %6024 = vmatpush1.bf16.msra.mxu0 %v4855
          %6025 = vmatprep.subr.bf16.mxu0 %v4864
          %6026 = vmatpush1.bf16.msra.mxu0 %v4863
          %6027 = vmatprep.subr.bf16.mxu0 %v4872
          %6028 = vmatpush1.bf16.msra.mxu0 %v4871
          %6029 = vmatprep.subr.bf16.mxu0 %v4880
          %6030 = vmatpush1.bf16.msra.mxu0 %v4879
          %6031 = vmatprep.subr.bf16.mxu0 %v4888
          %6032 = vmatpush1.bf16.msra.mxu0 %v4887
          %6033 = vmatprep.subr.bf16.mxu0 %v4896
          %6034 = vmatpush1.bf16.msra.mxu0 %v4895
          %6035 = vmatprep.subr.bf16.mxu0 %v4904
          %6036 = vmatpush1.bf16.msra.mxu0 %v4903
          %6037 = vmatprep.subr.bf16.mxu0 %v4912
          %6038 = vmatpush1.bf16.msra.mxu0 %v4911
          %6039 = vmatprep.subr.bf16.mxu0 %v4920
          %6040 = vmatpush1.bf16.msra.mxu0 %v4919
          %6041 = vmatprep.subr.bf16.mxu0 %v4928
          %6042 = vmatpush1.bf16.msra.mxu0 %v4927
          %6043 = vmatprep.subr.bf16.mxu0 %v4936
          %6044 = vmatpush1.bf16.msra.mxu0 %v4935
          %6045 = vmatprep.subr.bf16.mxu0 %v4944
          %6046 = vmatpush1.bf16.msra.mxu0 %v4943
          %6047 = vmatprep.subr.bf16.mxu0 %v4952
          %6048 = vmatpush1.bf16.msra.mxu0 %v4951
          %6049 = vmatprep.mubr.bf16.mxu0 %v2732
          %6050 = vmatmul.mubr.bf16.gmra.mrb[0].mxu0 %v2731
          %v6051 = vpop.f32.mrb[0].mxu0
          %v6052 = vadd.f32 %v3264, %v6051
          %v6053 = vpop.f32.mrb[0].mxu0
          %v6054 = vadd.f32 %v3268, %v6053
          %v6055 = vpop.f32.mrb[0].mxu0
          %v6056 = vpop.f32.mrb[0].mxu0
          %6057 = vdwg.mxu0
          %6058 = vmatprep.subr.bf16.mxu0 %v4960
          %6059 = vmatpush1.bf16.msra.mxu0 %v4959
          %6060 = vmatprep.subr.bf16.mxu0 %v4968
          %6061 = vmatpush1.bf16.msra.mxu0 %v4967
          %6062 = vmatprep.subr.bf16.mxu0 %v4976
          %6063 = vmatpush1.bf16.msra.mxu0 %v4975
          %6064 = vmatprep.subr.bf16.mxu0 %v4984
          %6065 = vmatpush1.bf16.msra.mxu0 %v4983
          %6066 = vmatprep.subr.bf16.mxu0 %v4992
          %6067 = vmatpush1.bf16.msra.mxu0 %v4991
          %6068 = vmatprep.subr.bf16.mxu0 %v5000
          %6069 = vmatpush1.bf16.msra.mxu0 %v4999
          %6070 = vmatprep.subr.bf16.mxu0 %v5008
          %6071 = vmatpush1.bf16.msra.mxu0 %v5007
          %6072 = vmatprep.subr.bf16.mxu0 %v5016
          %6073 = vmatpush1.bf16.msra.mxu0 %v5015
          %6074 = vmatprep.subr.bf16.mxu0 %v5024
          %6075 = vmatpush1.bf16.msra.mxu0 %v5023
          %6076 = vmatprep.subr.bf16.mxu0 %v5032
          %6077 = vmatpush1.bf16.msra.mxu0 %v5031
          %6078 = vmatprep.subr.bf16.mxu0 %v5040
          %6079 = vmatpush1.bf16.msra.mxu0 %v5039
          %6080 = vmatprep.subr.bf16.mxu0 %v5048
          %6081 = vmatpush1.bf16.msra.mxu0 %v5047
          %6082 = vmatprep.subr.bf16.mxu0 %v5056
          %6083 = vmatpush1.bf16.msra.mxu0 %v5055
          %6084 = vmatprep.subr.bf16.mxu0 %v5064
          %6085 = vmatpush1.bf16.msra.mxu0 %v5063
          %6086 = vmatprep.subr.bf16.mxu0 %v5072
          %6087 = vmatpush1.bf16.msra.mxu0 %v5071
          %6088 = vmatprep.subr.bf16.mxu0 %v5080
          %6089 = vmatpush1.bf16.msra.mxu0 %v5079
          %6090 = vmatprep.mubr.bf16.mxu0 %v2734
          %6091 = vmatmul.mubr.bf16.gmra.mrb[0].mxu0 %v2733
          %v6092 = vpop.f32.mrb[0].mxu0
          %v6093 = vadd.f32 %v6052, %v6092
          %v6094 = vpop.f32.mrb[0].mxu0
          %v6095 = vadd.f32 %v6054, %v6094
          %v6096 = vpop.f32.mrb[0].mxu0
          %v6097 = vpop.f32.mrb[0].mxu0
          %6098 = vdwg.mxu0
          %6099 = vmatprep.subr.bf16.mxu0 %v5088
          %6100 = vmatpush1.bf16.msra.mxu0 %v5087
          %6101 = vmatprep.subr.bf16.mxu0 %v5096
          %6102 = vmatpush1.bf16.msra.mxu0 %v5095
          %6103 = vmatprep.subr.bf16.mxu0 %v5104
          %6104 = vmatpush1.bf16.msra.mxu0 %v5103
          %6105 = vmatprep.subr.bf16.mxu0 %v5112
          %6106 = vmatpush1.bf16.msra.mxu0 %v5111
          %6107 = vmatprep.subr.bf16.mxu0 %v5120
          %6108 = vmatpush1.bf16.msra.mxu0 %v5119
          %6109 = vmatprep.subr.bf16.mxu0 %v5128
          %6110 = vmatpush1.bf16.msra.mxu0 %v5127
          %6111 = vmatprep.subr.bf16.mxu0 %v5136
          %6112 = vmatpush1.bf16.msra.mxu0 %v5135
          %6113 = vmatprep.subr.bf16.mxu0 %v5144
          %6114 = vmatpush1.bf16.msra.mxu0 %v5143
          %6115 = vmatprep.subr.bf16.mxu0 %v5152
          %6116 = vmatpush1.bf16.msra.mxu0 %v5151
          %6117 = vmatprep.subr.bf16.mxu0 %v5160
          %6118 = vmatpush1.bf16.msra.mxu0 %v5159
          %6119 = vmatprep.subr.bf16.mxu0 %v5168
          %6120 = vmatpush1.bf16.msra.mxu0 %v5167
          %6121 = vmatprep.subr.bf16.mxu0 %v5176
          %6122 = vmatpush1.bf16.msra.mxu0 %v5175
          %6123 = vmatprep.subr.bf16.mxu0 %v5184
          %6124 = vmatpush1.bf16.msra.mxu0 %v5183
          %6125 = vmatprep.subr.bf16.mxu0 %v5192
          %6126 = vmatpush1.bf16.msra.mxu0 %v5191
          %6127 = vmatprep.subr.bf16.mxu0 %v5200
          %6128 = vmatpush1.bf16.msra.mxu0 %v5199
          %6129 = vmatprep.subr.bf16.mxu0 %v5208
          %6130 = vmatpush1.bf16.msra.mxu0 %v5207
          %6131 = vmatprep.mubr.bf16.mxu0 %v2736
          %6132 = vmatmul.mubr.bf16.gmra.mrb[0].mxu0 %v2735
          %v6133 = vpop.f32.mrb[0].mxu0
          %v6134 = vadd.f32 %v6093, %v6133
          %v6135 = vpop.f32.mrb[0].mxu0
          %v6136 = vadd.f32 %v6095, %v6135
          %v6137 = vpop.f32.mrb[0].mxu0
          %v6138 = vpop.f32.mrb[0].mxu0
          %6139 = vdwg.mxu0
          %6140 = vmatprep.subr.bf16.mxu0 %v5216
          %6141 = vmatpush1.bf16.msra.mxu0 %v5215
          %6142 = vmatprep.subr.bf16.mxu0 %v5224
          %6143 = vmatpush1.bf16.msra.mxu0 %v5223
          %6144 = vmatprep.subr.bf16.mxu0 %v5232
          %6145 = vmatpush1.bf16.msra.mxu0 %v5231
          %6146 = vmatprep.subr.bf16.mxu0 %v5240
          %6147 = vmatpush1.bf16.msra.mxu0 %v5239
          %6148 = vmatprep.subr.bf16.mxu0 %v5248
          %6149 = vmatpush1.bf16.msra.mxu0 %v5247
          %6150 = vmatprep.subr.bf16.mxu0 %v5256
          %6151 = vmatpush1.bf16.msra.mxu0 %v5255
          %6152 = vmatprep.subr.bf16.mxu0 %v5264
          %6153 = vmatpush1.bf16.msra.mxu0 %v5263
          %6154 = vmatprep.subr.bf16.mxu0 %v5272
          %6155 = vmatpush1.bf16.msra.mxu0 %v5271
          %6156 = vmatprep.subr.bf16.mxu0 %v5280
          %6157 = vmatpush1.bf16.msra.mxu0 %v5279
          %6158 = vmatprep.subr.bf16.mxu0 %v5288
          %6159 = vmatpush1.bf16.msra.mxu0 %v5287
          %6160 = vmatprep.subr.bf16.mxu0 %v5296
          %6161 = vmatpush1.bf16.msra.mxu0 %v5295
          %6162 = vmatprep.subr.bf16.mxu0 %v5304
          %6163 = vmatpush1.bf16.msra.mxu0 %v5303
          %6164 = vmatprep.subr.bf16.mxu0 %v5312
          %6165 = vmatpush1.bf16.msra.mxu0 %v5311
          %6166 = vmatprep.subr.bf16.mxu0 %v5320
          %6167 = vmatpush1.bf16.msra.mxu0 %v5319
          %6168 = vmatprep.subr.bf16.mxu0 %v5328
          %6169 = vmatpush1.bf16.msra.mxu0 %v5327
          %6170 = vmatprep.subr.bf16.mxu0 %v5336
          %6171 = vmatpush1.bf16.msra.mxu0 %v5335
          %6172 = vmatprep.mubr.bf16.mxu0 %v2738
          %6173 = vmatmul.mubr.bf16.gmra.mrb[0].mxu0 %v2737
          %v6174 = vpop.f32.mrb[0].mxu0
          %v6175 = vadd.f32 %v6134, %v6174
          %v6176 = vpop.f32.mrb[0].mxu0
          %v6177 = vadd.f32 %v6136, %v6176
          %v6178 = vpop.f32.mrb[0].mxu0
          %v6179 = vpop.f32.mrb[0].mxu0
          %6180 = vdwg.mxu0
          %6181 = vmatprep.subr.bf16.mxu0 %v4834
          %6182 = vmatpush1.bf16.msra.mxu0 %v4833
          %6183 = vmatprep.subr.bf16.mxu0 %v4842
          %6184 = vmatpush1.bf16.msra.mxu0 %v4841
          %6185 = vmatprep.subr.bf16.mxu0 %v4850
          %6186 = vmatpush1.bf16.msra.mxu0 %v4849
          %6187 = vmatprep.subr.bf16.mxu0 %v4858
          %6188 = vmatpush1.bf16.msra.mxu0 %v4857
          %6189 = vmatprep.subr.bf16.mxu0 %v4866
          %6190 = vmatpush1.bf16.msra.mxu0 %v4865
          %6191 = vmatprep.subr.bf16.mxu0 %v4874
          %6192 = vmatpush1.bf16.msra.mxu0 %v4873
          %6193 = vmatprep.subr.bf16.mxu0 %v4882
          %6194 = vmatpush1.bf16.msra.mxu0 %v4881
          %6195 = vmatprep.subr.bf16.mxu0 %v4890
          %6196 = vmatpush1.bf16.msra.mxu0 %v4889
          %6197 = vmatprep.subr.bf16.mxu0 %v4898
          %6198 = vmatpush1.bf16.msra.mxu0 %v4897
          %6199 = vmatprep.subr.bf16.mxu0 %v4906
          %6200 = vmatpush1.bf16.msra.mxu0 %v4905
          %6201 = vmatprep.subr.bf16.mxu0 %v4914
          %6202 = vmatpush1.bf16.msra.mxu0 %v4913
          %6203 = vmatprep.subr.bf16.mxu0 %v4922
          %6204 = vmatpush1.bf16.msra.mxu0 %v4921
          %6205 = vmatprep.subr.bf16.mxu0 %v4930
          %6206 = vmatpush1.bf16.msra.mxu0 %v4929
          %6207 = vmatprep.subr.bf16.mxu0 %v4938
          %6208 = vmatpush1.bf16.msra.mxu0 %v4937
          %6209 = vmatprep.subr.bf16.mxu0 %v4946
          %6210 = vmatpush1.bf16.msra.mxu0 %v4945
          %6211 = vmatprep.subr.bf16.mxu0 %v4954
          %6212 = vmatpush1.bf16.msra.mxu0 %v4953
          %6213 = vmatprep.mubr.bf16.mxu0 %v2732
          %6214 = vmatmul.mubr.bf16.gmra.mrb[0].mxu0 %v2731
          %v6215 = vpop.f32.mrb[0].mxu0
          %v6216 = vadd.f32 %v3272, %v6215
          %v6217 = vpop.f32.mrb[0].mxu0
          %v6218 = vadd.f32 %v3276, %v6217
          %v6219 = vpop.f32.mrb[0].mxu0
          %v6220 = vpop.f32.mrb[0].mxu0
          %6221 = vdwg.mxu0
          %6222 = vmatprep.subr.bf16.mxu0 %v4962
          %6223 = vmatpush1.bf16.msra.mxu0 %v4961
          %6224 = vmatprep.subr.bf16.mxu0 %v4970
          %6225 = vmatpush1.bf16.msra.mxu0 %v4969
          %6226 = vmatprep.subr.bf16.mxu0 %v4978
          %6227 = vmatpush1.bf16.msra.mxu0 %v4977
          %6228 = vmatprep.subr.bf16.mxu0 %v4986
          %6229 = vmatpush1.bf16.msra.mxu0 %v4985
          %6230 = vmatprep.subr.bf16.mxu0 %v4994
          %6231 = vmatpush1.bf16.msra.mxu0 %v4993
          %6232 = vmatprep.subr.bf16.mxu0 %v5002
          %6233 = vmatpush1.bf16.msra.mxu0 %v5001
          %6234 = vmatprep.subr.bf16.mxu0 %v5010
          %6235 = vmatpush1.bf16.msra.mxu0 %v5009
          %6236 = vmatprep.subr.bf16.mxu0 %v5018
          %6237 = vmatpush1.bf16.msra.mxu0 %v5017
          %6238 = vmatprep.subr.bf16.mxu0 %v5026
          %6239 = vmatpush1.bf16.msra.mxu0 %v5025
          %6240 = vmatprep.subr.bf16.mxu0 %v5034
          %6241 = vmatpush1.bf16.msra.mxu0 %v5033
          %6242 = vmatprep.subr.bf16.mxu0 %v5042
          %6243 = vmatpush1.bf16.msra.mxu0 %v5041
          %6244 = vmatprep.subr.bf16.mxu0 %v5050
          %6245 = vmatpush1.bf16.msra.mxu0 %v5049
          %6246 = vmatprep.subr.bf16.mxu0 %v5058
          %6247 = vmatpush1.bf16.msra.mxu0 %v5057
          %6248 = vmatprep.subr.bf16.mxu0 %v5066
          %6249 = vmatpush1.bf16.msra.mxu0 %v5065
          %6250 = vmatprep.subr.bf16.mxu0 %v5074
          %6251 = vmatpush1.bf16.msra.mxu0 %v5073
          %6252 = vmatprep.subr.bf16.mxu0 %v5082
          %6253 = vmatpush1.bf16.msra.mxu0 %v5081
          %6254 = vmatprep.mubr.bf16.mxu0 %v2734
          %6255 = vmatmul.mubr.bf16.gmra.mrb[0].mxu0 %v2733
          %v6256 = vpop.f32.mrb[0].mxu0
          %v6257 = vadd.f32 %v6216, %v6256
          %v6258 = vpop.f32.mrb[0].mxu0
          %v6259 = vadd.f32 %v6218, %v6258
          %v6260 = vpop.f32.mrb[0].mxu0
          %v6261 = vpop.f32.mrb[0].mxu0
          %6262 = vdwg.mxu0
          %6263 = vmatprep.subr.bf16.mxu0 %v5090
          %6264 = vmatpush1.bf16.msra.mxu0 %v5089
          %6265 = vmatprep.subr.bf16.mxu0 %v5098
          %6266 = vmatpush1.bf16.msra.mxu0 %v5097
          %6267 = vmatprep.subr.bf16.mxu0 %v5106
          %6268 = vmatpush1.bf16.msra.mxu0 %v5105
          %6269 = vmatprep.subr.bf16.mxu0 %v5114
          %6270 = vmatpush1.bf16.msra.mxu0 %v5113
          %6271 = vmatprep.subr.bf16.mxu0 %v5122
          %6272 = vmatpush1.bf16.msra.mxu0 %v5121
          %6273 = vmatprep.subr.bf16.mxu0 %v5130
          %6274 = vmatpush1.bf16.msra.mxu0 %v5129
          %6275 = vmatprep.subr.bf16.mxu0 %v5138
          %6276 = vmatpush1.bf16.msra.mxu0 %v5137
          %6277 = vmatprep.subr.bf16.mxu0 %v5146
          %6278 = vmatpush1.bf16.msra.mxu0 %v5145
          %6279 = vmatprep.subr.bf16.mxu0 %v5154
          %6280 = vmatpush1.bf16.msra.mxu0 %v5153
          %6281 = vmatprep.subr.bf16.mxu0 %v5162
          %6282 = vmatpush1.bf16.msra.mxu0 %v5161
          %6283 = vmatprep.subr.bf16.mxu0 %v5170
          %6284 = vmatpush1.bf16.msra.mxu0 %v5169
          %6285 = vmatprep.subr.bf16.mxu0 %v5178
          %6286 = vmatpush1.bf16.msra.mxu0 %v5177
          %6287 = vmatprep.subr.bf16.mxu0 %v5186
          %6288 = vmatpush1.bf16.msra.mxu0 %v5185
          %6289 = vmatprep.subr.bf16.mxu0 %v5194
          %6290 = vmatpush1.bf16.msra.mxu0 %v5193
          %6291 = vmatprep.subr.bf16.mxu0 %v5202
          %6292 = vmatpush1.bf16.msra.mxu0 %v5201
          %6293 = vmatprep.subr.bf16.mxu0 %v5210
          %6294 = vmatpush1.bf16.msra.mxu0 %v5209
          %6295 = vmatprep.mubr.bf16.mxu0 %v2736
          %6296 = vmatmul.mubr.bf16.gmra.mrb[0].mxu0 %v2735
          %v6297 = vpop.f32.mrb[0].mxu0
          %v6298 = vadd.f32 %v6257, %v6297
          %v6299 = vpop.f32.mrb[0].mxu0
          %v6300 = vadd.f32 %v6259, %v6299
          %v6301 = vpop.f32.mrb[0].mxu0
          %v6302 = vpop.f32.mrb[0].mxu0
          %6303 = vdwg.mxu0
          %6304 = vmatprep.subr.bf16.mxu0 %v5218
          %6305 = vmatpush1.bf16.msra.mxu0 %v5217
          %6306 = vmatprep.subr.bf16.mxu0 %v5226
          %6307 = vmatpush1.bf16.msra.mxu0 %v5225
          %6308 = vmatprep.subr.bf16.mxu0 %v5234
          %6309 = vmatpush1.bf16.msra.mxu0 %v5233
          %6310 = vmatprep.subr.bf16.mxu0 %v5242
          %6311 = vmatpush1.bf16.msra.mxu0 %v5241
          %6312 = vmatprep.subr.bf16.mxu0 %v5250
          %6313 = vmatpush1.bf16.msra.mxu0 %v5249
          %6314 = vmatprep.subr.bf16.mxu0 %v5258
          %6315 = vmatpush1.bf16.msra.mxu0 %v5257
          %6316 = vmatprep.subr.bf16.mxu0 %v5266
          %6317 = vmatpush1.bf16.msra.mxu0 %v5265
          %6318 = vmatprep.subr.bf16.mxu0 %v5274
          %6319 = vmatpush1.bf16.msra.mxu0 %v5273
          %6320 = vmatprep.subr.bf16.mxu0 %v5282
          %6321 = vmatpush1.bf16.msra.mxu0 %v5281
          %6322 = vmatprep.subr.bf16.mxu0 %v5290
          %6323 = vmatpush1.bf16.msra.mxu0 %v5289
          %6324 = vmatprep.subr.bf16.mxu0 %v5298
          %6325 = vmatpush1.bf16.msra.mxu0 %v5297
          %6326 = vmatprep.subr.bf16.mxu0 %v5306
          %6327 = vmatpush1.bf16.msra.mxu0 %v5305
          %6328 = vmatprep.subr.bf16.mxu0 %v5314
          %6329 = vmatpush1.bf16.msra.mxu0 %v5313
          %6330 = vmatprep.subr.bf16.mxu0 %v5322
          %6331 = vmatpush1.bf16.msra.mxu0 %v5321
          %6332 = vmatprep.subr.bf16.mxu0 %v5330
          %6333 = vmatpush1.bf16.msra.mxu0 %v5329
          %6334 = vmatprep.subr.bf16.mxu0 %v5338
          %6335 = vmatpush1.bf16.msra.mxu0 %v5337
          %6336 = vmatprep.mubr.bf16.mxu0 %v2738
          %6337 = vmatmul.mubr.bf16.gmra.mrb[0].mxu0 %v2737
          %v6338 = vpop.f32.mrb[0].mxu0
          %v6339 = vadd.f32 %v6298, %v6338
          %v6340 = vpop.f32.mrb[0].mxu0
          %v6341 = vadd.f32 %v6300, %v6340
          %v6342 = vpop.f32.mrb[0].mxu0
          %v6343 = vpop.f32.mrb[0].mxu0
          %6344 = vdwg.mxu0
          %6345 = vmatprep.subr.bf16.mxu0 %v4836
          %6346 = vmatpush1.bf16.msra.mxu0 %v4835
          %6347 = vmatprep.subr.bf16.mxu0 %v4844
          %6348 = vmatpush1.bf16.msra.mxu0 %v4843
          %6349 = vmatprep.subr.bf16.mxu0 %v4852
          %6350 = vmatpush1.bf16.msra.mxu0 %v4851
          %6351 = vmatprep.subr.bf16.mxu0 %v4860
          %6352 = vmatpush1.bf16.msra.mxu0 %v4859
          %6353 = vmatprep.subr.bf16.mxu0 %v4868
          %6354 = vmatpush1.bf16.msra.mxu0 %v4867
          %6355 = vmatprep.subr.bf16.mxu0 %v4876
          %6356 = vmatpush1.bf16.msra.mxu0 %v4875
          %6357 = vmatprep.subr.bf16.mxu0 %v4884
          %6358 = vmatpush1.bf16.msra.mxu0 %v4883
          %6359 = vmatprep.subr.bf16.mxu0 %v4892
          %6360 = vmatpush1.bf16.msra.mxu0 %v4891
          %6361 = vmatprep.subr.bf16.mxu0 %v4900
          %6362 = vmatpush1.bf16.msra.mxu0 %v4899
          %6363 = vmatprep.subr.bf16.mxu0 %v4908
          %6364 = vmatpush1.bf16.msra.mxu0 %v4907
          %6365 = vmatprep.subr.bf16.mxu0 %v4916
          %6366 = vmatpush1.bf16.msra.mxu0 %v4915
          %6367 = vmatprep.subr.bf16.mxu0 %v4924
          %6368 = vmatpush1.bf16.msra.mxu0 %v4923
          %6369 = vmatprep.subr.bf16.mxu0 %v4932
          %6370 = vmatpush1.bf16.msra.mxu0 %v4931
          %6371 = vmatprep.subr.bf16.mxu0 %v4940
          %6372 = vmatpush1.bf16.msra.mxu0 %v4939
          %6373 = vmatprep.subr.bf16.mxu0 %v4948
          %6374 = vmatpush1.bf16.msra.mxu0 %v4947
          %6375 = vmatprep.subr.bf16.mxu0 %v4956
          %6376 = vmatpush1.bf16.msra.mxu0 %v4955
          %6377 = vmatprep.mubr.bf16.mxu0 %v2732
          %6378 = vmatmul.mubr.bf16.gmra.mrb[0].mxu0 %v2731
          %v6379 = vpop.f32.mrb[0].mxu0
          %v6380 = vadd.f32 %v3280, %v6379
          %v6381 = vpop.f32.mrb[0].mxu0
          %v6382 = vadd.f32 %v3284, %v6381
          %v6383 = vpop.f32.mrb[0].mxu0
          %v6384 = vpop.f32.mrb[0].mxu0
          %6385 = vdwg.mxu0
          %6386 = vmatprep.subr.bf16.mxu0 %v4964
          %6387 = vmatpush1.bf16.msra.mxu0 %v4963
          %6388 = vmatprep.subr.bf16.mxu0 %v4972
          %6389 = vmatpush1.bf16.msra.mxu0 %v4971
          %6390 = vmatprep.subr.bf16.mxu0 %v4980
          %6391 = vmatpush1.bf16.msra.mxu0 %v4979
          %6392 = vmatprep.subr.bf16.mxu0 %v4988
          %6393 = vmatpush1.bf16.msra.mxu0 %v4987
          %6394 = vmatprep.subr.bf16.mxu0 %v4996
          %6395 = vmatpush1.bf16.msra.mxu0 %v4995
          %6396 = vmatprep.subr.bf16.mxu0 %v5004
          %6397 = vmatpush1.bf16.msra.mxu0 %v5003
          %6398 = vmatprep.subr.bf16.mxu0 %v5012
          %6399 = vmatpush1.bf16.msra.mxu0 %v5011
          %6400 = vmatprep.subr.bf16.mxu0 %v5020
          %6401 = vmatpush1.bf16.msra.mxu0 %v5019
          %6402 = vmatprep.subr.bf16.mxu0 %v5028
          %6403 = vmatpush1.bf16.msra.mxu0 %v5027
          %6404 = vmatprep.subr.bf16.mxu0 %v5036
          %6405 = vmatpush1.bf16.msra.mxu0 %v5035
          %6406 = vmatprep.subr.bf16.mxu0 %v5044
          %6407 = vmatpush1.bf16.msra.mxu0 %v5043
          %6408 = vmatprep.subr.bf16.mxu0 %v5052
          %6409 = vmatpush1.bf16.msra.mxu0 %v5051
          %6410 = vmatprep.subr.bf16.mxu0 %v5060
          %6411 = vmatpush1.bf16.msra.mxu0 %v5059
          %6412 = vmatprep.subr.bf16.mxu0 %v5068
          %6413 = vmatpush1.bf16.msra.mxu0 %v5067
          %6414 = vmatprep.subr.bf16.mxu0 %v5076
          %6415 = vmatpush1.bf16.msra.mxu0 %v5075
          %6416 = vmatprep.subr.bf16.mxu0 %v5084
          %6417 = vmatpush1.bf16.msra.mxu0 %v5083
          %6418 = vmatprep.mubr.bf16.mxu0 %v2734
          %6419 = vmatmul.mubr.bf16.gmra.mrb[0].mxu0 %v2733
          %v6420 = vpop.f32.mrb[0].mxu0
          %v6421 = vadd.f32 %v6380, %v6420
          %v6422 = vpop.f32.mrb[0].mxu0
          %v6423 = vadd.f32 %v6382, %v6422
          %v6424 = vpop.f32.mrb[0].mxu0
          %v6425 = vpop.f32.mrb[0].mxu0
          %6426 = vdwg.mxu0
          %6427 = vmatprep.subr.bf16.mxu0 %v5092
          %6428 = vmatpush1.bf16.msra.mxu0 %v5091
          %6429 = vmatprep.subr.bf16.mxu0 %v5100
          %6430 = vmatpush1.bf16.msra.mxu0 %v5099
          %6431 = vmatprep.subr.bf16.mxu0 %v5108
          %6432 = vmatpush1.bf16.msra.mxu0 %v5107
          %6433 = vmatprep.subr.bf16.mxu0 %v5116
          %6434 = vmatpush1.bf16.msra.mxu0 %v5115
          %6435 = vmatprep.subr.bf16.mxu0 %v5124
          %6436 = vmatpush1.bf16.msra.mxu0 %v5123
          %6437 = vmatprep.subr.bf16.mxu0 %v5132
          %6438 = vmatpush1.bf16.msra.mxu0 %v5131
          %6439 = vmatprep.subr.bf16.mxu0 %v5140
          %6440 = vmatpush1.bf16.msra.mxu0 %v5139
          %6441 = vmatprep.subr.bf16.mxu0 %v5148
          %6442 = vmatpush1.bf16.msra.mxu0 %v5147
          %6443 = vmatprep.subr.bf16.mxu0 %v5156
          %6444 = vmatpush1.bf16.msra.mxu0 %v5155
          %6445 = vmatprep.subr.bf16.mxu0 %v5164
          %6446 = vmatpush1.bf16.msra.mxu0 %v5163
          %6447 = vmatprep.subr.bf16.mxu0 %v5172
          %6448 = vmatpush1.bf16.msra.mxu0 %v5171
          %6449 = vmatprep.subr.bf16.mxu0 %v5180
          %6450 = vmatpush1.bf16.msra.mxu0 %v5179
          %6451 = vmatprep.subr.bf16.mxu0 %v5188
          %6452 = vmatpush1.bf16.msra.mxu0 %v5187
          %6453 = vmatprep.subr.bf16.mxu0 %v5196
          %6454 = vmatpush1.bf16.msra.mxu0 %v5195
          %6455 = vmatprep.subr.bf16.mxu0 %v5204
          %6456 = vmatpush1.bf16.msra.mxu0 %v5203
          %6457 = vmatprep.subr.bf16.mxu0 %v5212
          %6458 = vmatpush1.bf16.msra.mxu0 %v5211
          %6459 = vmatprep.mubr.bf16.mxu0 %v2736
          %6460 = vmatmul.mubr.bf16.gmra.mrb[0].mxu0 %v2735
          %v6461 = vpop.f32.mrb[0].mxu0
          %v6462 = vadd.f32 %v6421, %v6461
          %v6463 = vpop.f32.mrb[0].mxu0
          %v6464 = vadd.f32 %v6423, %v6463
          %v6465 = vpop.f32.mrb[0].mxu0
          %v6466 = vpop.f32.mrb[0].mxu0
          %6467 = vdwg.mxu0
          %6468 = vmatprep.subr.bf16.mxu0 %v5220
          %6469 = vmatpush1.bf16.msra.mxu0 %v5219
          %6470 = vmatprep.subr.bf16.mxu0 %v5228
          %6471 = vmatpush1.bf16.msra.mxu0 %v5227
          %6472 = vmatprep.subr.bf16.mxu0 %v5236
          %6473 = vmatpush1.bf16.msra.mxu0 %v5235
          %6474 = vmatprep.subr.bf16.mxu0 %v5244
          %6475 = vmatpush1.bf16.msra.mxu0 %v5243
          %6476 = vmatprep.subr.bf16.mxu0 %v5252
          %6477 = vmatpush1.bf16.msra.mxu0 %v5251
          %6478 = vmatprep.subr.bf16.mxu0 %v5260
          %6479 = vmatpush1.bf16.msra.mxu0 %v5259
          %6480 = vmatprep.subr.bf16.mxu0 %v5268
          %6481 = vmatpush1.bf16.msra.mxu0 %v5267
          %6482 = vmatprep.subr.bf16.mxu0 %v5276
          %6483 = vmatpush1.bf16.msra.mxu0 %v5275
          %6484 = vmatprep.subr.bf16.mxu0 %v5284
          %6485 = vmatpush1.bf16.msra.mxu0 %v5283
          %6486 = vmatprep.subr.bf16.mxu0 %v5292
          %6487 = vmatpush1.bf16.msra.mxu0 %v5291
          %6488 = vmatprep.subr.bf16.mxu0 %v5300
          %6489 = vmatpush1.bf16.msra.mxu0 %v5299
          %6490 = vmatprep.subr.bf16.mxu0 %v5308
          %6491 = vmatpush1.bf16.msra.mxu0 %v5307
          %6492 = vmatprep.subr.bf16.mxu0 %v5316
          %6493 = vmatpush1.bf16.msra.mxu0 %v5315
          %6494 = vmatprep.subr.bf16.mxu0 %v5324
          %6495 = vmatpush1.bf16.msra.mxu0 %v5323
          %6496 = vmatprep.subr.bf16.mxu0 %v5332
          %6497 = vmatpush1.bf16.msra.mxu0 %v5331
          %6498 = vmatprep.subr.bf16.mxu0 %v5340
          %6499 = vmatpush1.bf16.msra.mxu0 %v5339
          %6500 = vmatprep.mubr.bf16.mxu0 %v2738
          %6501 = vmatmul.mubr.bf16.gmra.mrb[0].mxu0 %v2737
          %v6502 = vpop.f32.mrb[0].mxu0
          %v6503 = vadd.f32 %v6462, %v6502
          %v6504 = vpop.f32.mrb[0].mxu0
          %v6505 = vadd.f32 %v6464, %v6504
          %v6506 = vpop.f32.mrb[0].mxu0
          %v6507 = vpop.f32.mrb[0].mxu0
          %6508 = vdwg.mxu0
          %v6509 = vld [vmem:[#allocation12] sm:$0xff]
          %v6510 = vld [vmem:[#allocation14] sm:$0xff]
          %v6511 = vrot.slane %v6011, 4
          %v6512 = vadd.f32 %v6011, %v6511
          %v6513 = vrot.slane %v6512, 2
          %v6514 = vadd.f32 %v6512, %v6513
          %v6515 = vrot.slane %v6514, 1
          %v6516 = vadd.f32 %v6514, %v6515
          %v6517 = vrot.slane %v6013, 4
          %v6518 = vadd.f32 %v6013, %v6517
          %v6519 = vrot.slane %v6518, 2
          %v6520 = vadd.f32 %v6518, %v6519
          %v6521 = vrot.slane %v6520, 1
          %v6522 = vadd.f32 %v6520, %v6521
          %v6523 = vrot.slane %v6175, 4
          %v6524 = vadd.f32 %v6175, %v6523
          %v6525 = vrot.slane %v6524, 2
          %v6526 = vadd.f32 %v6524, %v6525
          %v6527 = vrot.slane %v6526, 1
          %v6528 = vadd.f32 %v6526, %v6527
          %v6529 = vrot.slane %v6177, 4
          %v6530 = vadd.f32 %v6177, %v6529
          %v6531 = vrot.slane %v6530, 2
          %v6532 = vadd.f32 %v6530, %v6531
          %v6533 = vrot.slane %v6532, 1
          %v6534 = vadd.f32 %v6532, %v6533
          %v6535 = vrot.slane %v6339, 4
          %v6536 = vadd.f32 %v6339, %v6535
          %v6537 = vrot.slane %v6536, 2
          %v6538 = vadd.f32 %v6536, %v6537
          %v6539 = vrot.slane %v6538, 1
          %v6540 = vadd.f32 %v6538, %v6539
          %v6541 = vrot.slane %v6341, 4
          %v6542 = vadd.f32 %v6341, %v6541
          %v6543 = vrot.slane %v6542, 2
          %v6544 = vadd.f32 %v6542, %v6543
          %v6545 = vrot.slane %v6544, 1
          %v6546 = vadd.f32 %v6544, %v6545
          %v6547 = vrot.slane %v6503, 4
          %v6548 = vadd.f32 %v6503, %v6547
          %v6549 = vrot.slane %v6548, 2
          %v6550 = vadd.f32 %v6548, %v6549
          %v6551 = vrot.slane %v6550, 1
          %v6552 = vadd.f32 %v6550, %v6551
          %v6553 = vrot.slane %v6505, 4
          %v6554 = vadd.f32 %v6505, %v6553
          %v6555 = vrot.slane %v6554, 2
          %v6556 = vadd.f32 %v6554, %v6555
          %v6557 = vrot.slane %v6556, 1
          %v6558 = vadd.f32 %v6556, %v6557
          %v6559 = vrcp.pop 8.0
          %v6560 = vmul.f32 %v6516, %v6559
          %v6561 = vmul.f32 %v6522, %v6559
          %v6562 = vmul.f32 %v6528, %v6559
          %v6563 = vmul.f32 %v6534, %v6559
          %v6564 = vmul.f32 %v6540, %v6559
          %v6565 = vmul.f32 %v6546, %v6559
          %v6566 = vmul.f32 %v6552, %v6559
          %v6567 = vmul.f32 %v6558, %v6559
          %v6568 = vmul.f32 %v6011, %v6011
          %v6569 = vmul.f32 %v6013, %v6013
          %v6570 = vmul.f32 %v6175, %v6175
          %v6571 = vmul.f32 %v6177, %v6177
          %v6572 = vmul.f32 %v6339, %v6339
          %v6573 = vmul.f32 %v6341, %v6341
          %v6574 = vmul.f32 %v6503, %v6503
          %v6575 = vmul.f32 %v6505, %v6505
          %v6576 = vrot.slane %v6568, 4
          %v6577 = vadd.f32 %v6568, %v6576
          %v6578 = vrot.slane %v6577, 2
          %v6579 = vadd.f32 %v6577, %v6578
          %v6580 = vrot.slane %v6579, 1
          %v6581 = vadd.f32 %v6579, %v6580
          %v6582 = vrot.slane %v6569, 4
          %v6583 = vadd.f32 %v6569, %v6582
          %v6584 = vrot.slane %v6583, 2
          %v6585 = vadd.f32 %v6583, %v6584
          %v6586 = vrot.slane %v6585, 1
          %v6587 = vadd.f32 %v6585, %v6586
          %v6588 = vrot.slane %v6570, 4
          %v6589 = vadd.f32 %v6570, %v6588
          %v6590 = vrot.slane %v6589, 2
          %v6591 = vadd.f32 %v6589, %v6590
          %v6592 = vrot.slane %v6591, 1
          %v6593 = vadd.f32 %v6591, %v6592
          %v6594 = vrot.slane %v6571, 4
          %v6595 = vadd.f32 %v6571, %v6594
          %v6596 = vrot.slane %v6595, 2
          %v6597 = vadd.f32 %v6595, %v6596
          %v6598 = vrot.slane %v6597, 1
          %v6599 = vadd.f32 %v6597, %v6598
          %v6600 = vrot.slane %v6572, 4
          %v6601 = vadd.f32 %v6572, %v6600
          %v6602 = vrot.slane %v6601, 2
          %v6603 = vadd.f32 %v6601, %v6602
          %v6604 = vrot.slane %v6603, 1
          %v6605 = vadd.f32 %v6603, %v6604
          %v6606 = vrot.slane %v6573, 4
          %v6607 = vadd.f32 %v6573, %v6606
          %v6608 = vrot.slane %v6607, 2
          %v6609 = vadd.f32 %v6607, %v6608
          %v6610 = vrot.slane %v6609, 1
          %v6611 = vadd.f32 %v6609, %v6610
          %v6612 = vrot.slane %v6574, 4
          %v6613 = vadd.f32 %v6574, %v6612
          %v6614 = vrot.slane %v6613, 2
          %v6615 = vadd.f32 %v6613, %v6614
          %v6616 = vrot.slane %v6615, 1
          %v6617 = vadd.f32 %v6615, %v6616
          %v6618 = vrot.slane %v6575, 4
          %v6619 = vadd.f32 %v6575, %v6618
          %v6620 = vrot.slane %v6619, 2
          %v6621 = vadd.f32 %v6619, %v6620
          %v6622 = vrot.slane %v6621, 1
          %v6623 = vadd.f32 %v6621, %v6622
          %v6624 = vmul.f32 %v6581, %v6559
          %v6625 = vmul.f32 %v6587, %v6559
          %v6626 = vmul.f32 %v6593, %v6559
          %v6627 = vmul.f32 %v6599, %v6559
          %v6628 = vmul.f32 %v6605, %v6559
          %v6629 = vmul.f32 %v6611, %v6559
          %v6630 = vmul.f32 %v6617, %v6559
          %v6631 = vmul.f32 %v6623, %v6559
          %v6632 = vmul.f32 %v6560, %v6560
          %v6633 = vmul.f32 %v6561, %v6561
          %v6634 = vmul.f32 %v6562, %v6562
          %v6635 = vmul.f32 %v6563, %v6563
          %v6636 = vmul.f32 %v6564, %v6564
          %v6637 = vmul.f32 %v6565, %v6565
          %v6638 = vmul.f32 %v6566, %v6566
          %v6639 = vmul.f32 %v6567, %v6567
          %v6640 = vsub.f32 %v6624, %v6632
          %v6641 = vsub.f32 %v6625, %v6633
          %v6642 = vsub.f32 %v6626, %v6634
          %v6643 = vsub.f32 %v6627, %v6635
          %v6644 = vsub.f32 %v6628, %v6636
          %v6645 = vsub.f32 %v6629, %v6637
          %v6646 = vsub.f32 %v6630, %v6638
          %v6647 = vsub.f32 %v6631, %v6639
          %v6648 = vsub.f32 %v6011, %v6560
          %v6649 = vsub.f32 %v6013, %v6561
          %v6650 = vsub.f32 %v6175, %v6562
          %v6651 = vsub.f32 %v6177, %v6563
          %v6652 = vsub.f32 %v6339, %v6564
          %v6653 = vsub.f32 %v6341, %v6565
          %v6654 = vsub.f32 %v6503, %v6566
          %v6655 = vsub.f32 %v6505, %v6567
          %v6656 = vadd.f32 %v6640, 1e-05
          %v6657 = vadd.f32 %v6641, 1e-05
          %v6658 = vadd.f32 %v6642, 1e-05
          %v6659 = vadd.f32 %v6643, 1e-05
          %v6660 = vadd.f32 %v6644, 1e-05
          %v6661 = vadd.f32 %v6645, 1e-05
          %v6662 = vadd.f32 %v6646, 1e-05
          %v6663 = vadd.f32 %v6647, 1e-05
          %v6664 = vrsqrt.pop %v6656
          %v6665 = vrsqrt.pop %v6657
          %v6666 = vrsqrt.pop %v6658
          %v6667 = vrsqrt.pop %v6659
          %v6668 = vrsqrt.pop %v6660
          %v6669 = vrsqrt.pop %v6661
          %v6670 = vrsqrt.pop %v6662
          %v6671 = vrsqrt.pop %v6663
          %v6672 = vmul.f32 %v6648, %v6664
          %v6673 = vmul.f32 %v6649, %v6665
          %v6674 = vmul.f32 %v6650, %v6666
          %v6675 = vmul.f32 %v6651, %v6667
          %v6676 = vmul.f32 %v6652, %v6668
          %v6677 = vmul.f32 %v6653, %v6669
          %v6678 = vmul.f32 %v6654, %v6670
          %v6679 = vmul.f32 %v6655, %v6671
          %v6681 = vlaneseq
          %v6682 = vshrl.u32 %v6681, 7
          %v6683 = vsub.s32 0, %v6682
          %v6684 = vrot.slane %v6509, %v6683
          %v6685 = vlaneseq
          %v6686 = vshrl.u32 %v6685, 7
          %v6687 = vsub.s32 1, %v6686
          %v6688 = vrot.slane %v6509, %v6687
          %v6689 = vlaneseq
          %v6690 = vshrl.u32 %v6689, 7
          %v6691 = vsub.s32 2, %v6690
          %v6692 = vrot.slane %v6509, %v6691
          %v6693 = vlaneseq
          %v6694 = vshrl.u32 %v6693, 7
          %v6695 = vsub.s32 3, %v6694
          %v6696 = vrot.slane %v6509, %v6695
          %v6697 = vlaneseq
          %v6698 = vshrl.u32 %v6697, 7
          %v6699 = vsub.s32 4, %v6698
          %v6700 = vrot.slane %v6509, %v6699
          %v6701 = vlaneseq
          %v6702 = vshrl.u32 %v6701, 7
          %v6703 = vsub.s32 5, %v6702
          %v6704 = vrot.slane %v6509, %v6703
          %v6705 = vlaneseq
          %v6706 = vshrl.u32 %v6705, 7
          %v6707 = vsub.s32 6, %v6706
          %v6708 = vrot.slane %v6509, %v6707
          %v6709 = vlaneseq
          %v6710 = vshrl.u32 %v6709, 7
          %v6711 = vsub.s32 7, %v6710
          %v6712 = vrot.slane %v6509, %v6711
          %v6721 = vmul.f32 %v6672, %v6684
          %v6722 = vmul.f32 %v6673, %v6688
          %v6723 = vmul.f32 %v6674, %v6692
          %v6724 = vmul.f32 %v6675, %v6696
          %v6725 = vmul.f32 %v6676, %v6700
          %v6726 = vmul.f32 %v6677, %v6704
          %v6727 = vmul.f32 %v6678, %v6708
          %v6728 = vmul.f32 %v6679, %v6712
          %v6730 = vlaneseq
          %v6731 = vshrl.u32 %v6730, 7
          %v6732 = vsub.s32 0, %v6731
          %v6733 = vrot.slane %v6510, %v6732
          %v6734 = vlaneseq
          %v6735 = vshrl.u32 %v6734, 7
          %v6736 = vsub.s32 1, %v6735
          %v6737 = vrot.slane %v6510, %v6736
          %v6738 = vlaneseq
          %v6739 = vshrl.u32 %v6738, 7
          %v6740 = vsub.s32 2, %v6739
          %v6741 = vrot.slane %v6510, %v6740
          %v6742 = vlaneseq
          %v6743 = vshrl.u32 %v6742, 7
          %v6744 = vsub.s32 3, %v6743
          %v6745 = vrot.slane %v6510, %v6744
          %v6746 = vlaneseq
          %v6747 = vshrl.u32 %v6746, 7
          %v6748 = vsub.s32 4, %v6747
          %v6749 = vrot.slane %v6510, %v6748
          %v6750 = vlaneseq
          %v6751 = vshrl.u32 %v6750, 7
          %v6752 = vsub.s32 5, %v6751
          %v6753 = vrot.slane %v6510, %v6752
          %v6754 = vlaneseq
          %v6755 = vshrl.u32 %v6754, 7
          %v6756 = vsub.s32 6, %v6755
          %v6757 = vrot.slane %v6510, %v6756
          %v6758 = vlaneseq
          %v6759 = vshrl.u32 %v6758, 7
          %v6760 = vsub.s32 7, %v6759
          %v6761 = vrot.slane %v6510, %v6760
          %v6770 = vadd.f32 %v6721, %v6733
          %v6771 = vadd.f32 %v6722, %v6737
          %v6772 = vadd.f32 %v6723, %v6741
          %v6773 = vadd.f32 %v6724, %v6745
          %v6774 = vadd.f32 %v6725, %v6749
          %v6775 = vadd.f32 %v6726, %v6753
          %v6776 = vadd.f32 %v6727, %v6757
          %v6777 = vadd.f32 %v6728, %v6761
          %vm6778 = vcmp.gt.f32.partialorder %v6770, 0.0
          %vm6779 = vcmp.gt.f32.partialorder %v6771, 0.0
          %vm6780 = vcmp.gt.f32.partialorder %v6772, 0.0
          %vm6781 = vcmp.gt.f32.partialorder %v6773, 0.0
          %vm6782 = vcmp.gt.f32.partialorder %v6774, 0.0
          %vm6783 = vcmp.gt.f32.partialorder %v6775, 0.0
          %vm6784 = vcmp.gt.f32.partialorder %v6776, 0.0
          %vm6785 = vcmp.gt.f32.partialorder %v6777, 0.0
          %v6786 = vmul.f32 %v6770, 1.442695
          %v6787 = vpow.pop %v6786
          %v6788 = vmul.f32 %v6771, 1.442695
          %v6789 = vpow.pop %v6788
          %v6790 = vmul.f32 %v6772, 1.442695
          %v6791 = vpow.pop %v6790
          %v6792 = vmul.f32 %v6773, 1.442695
          %v6793 = vpow.pop %v6792
          %v6794 = vmul.f32 %v6774, 1.442695
          %v6795 = vpow.pop %v6794
          %v6796 = vmul.f32 %v6775, 1.442695
          %v6797 = vpow.pop %v6796
          %v6798 = vmul.f32 %v6776, 1.442695
          %v6799 = vpow.pop %v6798
          %v6800 = vmul.f32 %v6777, 1.442695
          %v6801 = vpow.pop %v6800
          %v6802 = vsub.f32 %v6787, 1.0
          %v6803 = vsub.f32 %v6789, 1.0
          %v6804 = vsub.f32 %v6791, 1.0
          %v6805 = vsub.f32 %v6793, 1.0
          %v6806 = vsub.f32 %v6795, 1.0
          %v6807 = vsub.f32 %v6797, 1.0
          %v6808 = vsub.f32 %v6799, 1.0
          %v6809 = vsub.f32 %v6801, 1.0
          %v6810 = vsel %vm6778, %v6770, %v6802
          %v6811 = vsel %vm6779, %v6771, %v6803
          %v6812 = vsel %vm6780, %v6772, %v6804
          %v6813 = vsel %vm6781, %v6773, %v6805
          %v6814 = vsel %vm6782, %v6774, %v6806
          %v6815 = vsel %vm6783, %v6775, %v6807
          %v6816 = vsel %vm6784, %v6776, %v6808
          %v6817 = vsel %vm6785, %v6777, %v6809
          %v6818 = vpack.c.bf16 %v6810, %v6810
          %v6819 = vpack.c.bf16 %v6811, %v6811
          %v6820 = vpack.c.bf16 %v6812, %v6812
          %v6821 = vpack.c.bf16 %v6813, %v6813
          %v6822 = vpack.c.bf16 %v6814, %v6814
          %v6823 = vpack.c.bf16 %v6815, %v6815
          %v6824 = vpack.c.bf16 %v6816, %v6816
          %v6825 = vpack.c.bf16 %v6817, %v6817
          %v6826 = vld [vmem:[#allocation15] sm:$0xff]
          %v6827 = vld [vmem:[#allocation15 + $0x8] sm:$0xff]
          %v6828 = vld [vmem:[#allocation15 + $0x10] sm:$0xff]
          %v6829 = vld [vmem:[#allocation15 + $0x18] sm:$0xff]
          %v6830 = vld [vmem:[#allocation15 + $0x20] sm:$0xff]
          %v6831 = vld [vmem:[#allocation15 + $0x28] sm:$0xff]
          %v6832 = vld [vmem:[#allocation15 + $0x30] sm:$0xff]
          %v6833 = vld [vmem:[#allocation15 + $0x38] sm:$0xff]
          %v6834 = vld [vmem:[#allocation15 + $0x40] sm:$0xff]
          %v6835 = vld [vmem:[#allocation15 + $0x48] sm:$0xff]
          %v6836 = vld [vmem:[#allocation15 + $0x50] sm:$0xff]
          %v6837 = vld [vmem:[#allocation15 + $0x58] sm:$0xff]
          %v6838 = vld [vmem:[#allocation15 + $0x60] sm:$0xff]
          %v6839 = vld [vmem:[#allocation15 + $0x68] sm:$0xff]
          %v6840 = vld [vmem:[#allocation15 + $0x70] sm:$0xff]
          %v6841 = vld [vmem:[#allocation15 + $0x78] sm:$0xff]
          %v6842 = vld [vmem:[#allocation15 + $0x80] sm:$0xff]
          %v6843 = vld [vmem:[#allocation15 + $0x88] sm:$0xff]
          %v6844 = vld [vmem:[#allocation15 + $0x90] sm:$0xff]
          %v6845 = vld [vmem:[#allocation15 + $0x98] sm:$0xff]
          %v6846 = vld [vmem:[#allocation15 + $0xa0] sm:$0xff]
          %v6847 = vld [vmem:[#allocation15 + $0xa8] sm:$0xff]
          %v6848 = vld [vmem:[#allocation15 + $0xb0] sm:$0xff]
          %v6849 = vld [vmem:[#allocation15 + $0xb8] sm:$0xff]
          %v6850 = vld [vmem:[#allocation15 + $0xc0] sm:$0xff]
          %v6851 = vld [vmem:[#allocation15 + $0xc8] sm:$0xff]
          %v6852 = vld [vmem:[#allocation15 + $0xd0] sm:$0xff]
          %v6853 = vld [vmem:[#allocation15 + $0xd8] sm:$0xff]
          %v6854 = vld [vmem:[#allocation15 + $0xe0] sm:$0xff]
          %v6855 = vld [vmem:[#allocation15 + $0xe8] sm:$0xff]
          %v6856 = vld [vmem:[#allocation15 + $0xf0] sm:$0xff]
          %v6857 = vld [vmem:[#allocation15 + $0xf8] sm:$0xff]
          %v6858 = vld [vmem:[#allocation15 + $0x100] sm:$0xff]
          %v6859 = vld [vmem:[#allocation15 + $0x108] sm:$0xff]
          %v6860 = vld [vmem:[#allocation15 + $0x110] sm:$0xff]
          %v6861 = vld [vmem:[#allocation15 + $0x118] sm:$0xff]
          %v6862 = vld [vmem:[#allocation15 + $0x120] sm:$0xff]
          %v6863 = vld [vmem:[#allocation15 + $0x128] sm:$0xff]
          %v6864 = vld [vmem:[#allocation15 + $0x130] sm:$0xff]
          %v6865 = vld [vmem:[#allocation15 + $0x138] sm:$0xff]
          %v6866 = vld [vmem:[#allocation15 + $0x140] sm:$0xff]
          %v6867 = vld [vmem:[#allocation15 + $0x148] sm:$0xff]
          %v6868 = vld [vmem:[#allocation15 + $0x150] sm:$0xff]
          %v6869 = vld [vmem:[#allocation15 + $0x158] sm:$0xff]
          %v6870 = vld [vmem:[#allocation15 + $0x160] sm:$0xff]
          %v6871 = vld [vmem:[#allocation15 + $0x168] sm:$0xff]
          %v6872 = vld [vmem:[#allocation15 + $0x170] sm:$0xff]
          %v6873 = vld [vmem:[#allocation15 + $0x178] sm:$0xff]
          %v6874 = vld [vmem:[#allocation15 + $0x180] sm:$0xff]
          %v6875 = vld [vmem:[#allocation15 + $0x188] sm:$0xff]
          %v6876 = vld [vmem:[#allocation15 + $0x190] sm:$0xff]
          %v6877 = vld [vmem:[#allocation15 + $0x198] sm:$0xff]
          %v6878 = vld [vmem:[#allocation15 + $0x1a0] sm:$0xff]
          %v6879 = vld [vmem:[#allocation15 + $0x1a8] sm:$0xff]
          %v6880 = vld [vmem:[#allocation15 + $0x1b0] sm:$0xff]
          %v6881 = vld [vmem:[#allocation15 + $0x1b8] sm:$0xff]
          %v6882 = vld [vmem:[#allocation15 + $0x1c0] sm:$0xff]
          %v6883 = vld [vmem:[#allocation15 + $0x1c8] sm:$0xff]
          %v6884 = vld [vmem:[#allocation15 + $0x1d0] sm:$0xff]
          %v6885 = vld [vmem:[#allocation15 + $0x1d8] sm:$0xff]
          %v6886 = vld [vmem:[#allocation15 + $0x1e0] sm:$0xff]
          %v6887 = vld [vmem:[#allocation15 + $0x1e8] sm:$0xff]
          %v6888 = vld [vmem:[#allocation15 + $0x1f0] sm:$0xff]
          %v6889 = vld [vmem:[#allocation15 + $0x1f8] sm:$0xff]
          %v6890 = vld [vmem:[#allocation15 + $0x200] sm:$0xff]
          %v6891 = vld [vmem:[#allocation15 + $0x208] sm:$0xff]
          %v6892 = vld [vmem:[#allocation15 + $0x210] sm:$0xff]
          %v6893 = vld [vmem:[#allocation15 + $0x218] sm:$0xff]
          %v6894 = vld [vmem:[#allocation15 + $0x220] sm:$0xff]
          %v6895 = vld [vmem:[#allocation15 + $0x228] sm:$0xff]
          %v6896 = vld [vmem:[#allocation15 + $0x230] sm:$0xff]
          %v6897 = vld [vmem:[#allocation15 + $0x238] sm:$0xff]
          %v6898 = vld [vmem:[#allocation15 + $0x240] sm:$0xff]
          %v6899 = vld [vmem:[#allocation15 + $0x248] sm:$0xff]
          %v6900 = vld [vmem:[#allocation15 + $0x250] sm:$0xff]
          %v6901 = vld [vmem:[#allocation15 + $0x258] sm:$0xff]
          %v6902 = vld [vmem:[#allocation15 + $0x260] sm:$0xff]
          %v6903 = vld [vmem:[#allocation15 + $0x268] sm:$0xff]
          %v6904 = vld [vmem:[#allocation15 + $0x270] sm:$0xff]
          %v6905 = vld [vmem:[#allocation15 + $0x278] sm:$0xff]
          %v6906 = vld [vmem:[#allocation15 + $0x280] sm:$0xff]
          %v6907 = vld [vmem:[#allocation15 + $0x288] sm:$0xff]
          %v6908 = vld [vmem:[#allocation15 + $0x290] sm:$0xff]
          %v6909 = vld [vmem:[#allocation15 + $0x298] sm:$0xff]
          %v6910 = vld [vmem:[#allocation15 + $0x2a0] sm:$0xff]
          %v6911 = vld [vmem:[#allocation15 + $0x2a8] sm:$0xff]
          %v6912 = vld [vmem:[#allocation15 + $0x2b0] sm:$0xff]
          %v6913 = vld [vmem:[#allocation15 + $0x2b8] sm:$0xff]
          %v6914 = vld [vmem:[#allocation15 + $0x2c0] sm:$0xff]
          %v6915 = vld [vmem:[#allocation15 + $0x2c8] sm:$0xff]
          %v6916 = vld [vmem:[#allocation15 + $0x2d0] sm:$0xff]
          %v6917 = vld [vmem:[#allocation15 + $0x2d8] sm:$0xff]
          %v6918 = vld [vmem:[#allocation15 + $0x2e0] sm:$0xff]
          %v6919 = vld [vmem:[#allocation15 + $0x2e8] sm:$0xff]
          %v6920 = vld [vmem:[#allocation15 + $0x2f0] sm:$0xff]
          %v6921 = vld [vmem:[#allocation15 + $0x2f8] sm:$0xff]
          %v6922 = vld [vmem:[#allocation15 + $0x300] sm:$0xff]
          %v6923 = vld [vmem:[#allocation15 + $0x308] sm:$0xff]
          %v6924 = vld [vmem:[#allocation15 + $0x310] sm:$0xff]
          %v6925 = vld [vmem:[#allocation15 + $0x318] sm:$0xff]
          %v6926 = vld [vmem:[#allocation15 + $0x320] sm:$0xff]
          %v6927 = vld [vmem:[#allocation15 + $0x328] sm:$0xff]
          %v6928 = vld [vmem:[#allocation15 + $0x330] sm:$0xff]
          %v6929 = vld [vmem:[#allocation15 + $0x338] sm:$0xff]
          %v6930 = vld [vmem:[#allocation15 + $0x340] sm:$0xff]
          %v6931 = vld [vmem:[#allocation15 + $0x348] sm:$0xff]
          %v6932 = vld [vmem:[#allocation15 + $0x350] sm:$0xff]
          %v6933 = vld [vmem:[#allocation15 + $0x358] sm:$0xff]
          %v6934 = vld [vmem:[#allocation15 + $0x360] sm:$0xff]
          %v6935 = vld [vmem:[#allocation15 + $0x368] sm:$0xff]
          %v6936 = vld [vmem:[#allocation15 + $0x370] sm:$0xff]
          %v6937 = vld [vmem:[#allocation15 + $0x378] sm:$0xff]
          %v6938 = vld [vmem:[#allocation15 + $0x380] sm:$0xff]
          %v6939 = vld [vmem:[#allocation15 + $0x388] sm:$0xff]
          %v6940 = vld [vmem:[#allocation15 + $0x390] sm:$0xff]
          %v6941 = vld [vmem:[#allocation15 + $0x398] sm:$0xff]
          %v6942 = vld [vmem:[#allocation15 + $0x3a0] sm:$0xff]
          %v6943 = vld [vmem:[#allocation15 + $0x3a8] sm:$0xff]
          %v6944 = vld [vmem:[#allocation15 + $0x3b0] sm:$0xff]
          %v6945 = vld [vmem:[#allocation15 + $0x3b8] sm:$0xff]
          %v6946 = vld [vmem:[#allocation15 + $0x3c0] sm:$0xff]
          %v6947 = vld [vmem:[#allocation15 + $0x3c8] sm:$0xff]
          %v6948 = vld [vmem:[#allocation15 + $0x3d0] sm:$0xff]
          %v6949 = vld [vmem:[#allocation15 + $0x3d8] sm:$0xff]
          %v6950 = vld [vmem:[#allocation15 + $0x3e0] sm:$0xff]
          %v6951 = vld [vmem:[#allocation15 + $0x3e8] sm:$0xff]
          %v6952 = vld [vmem:[#allocation15 + $0x3f0] sm:$0xff]
          %v6953 = vld [vmem:[#allocation15 + $0x3f8] sm:$0xff]
          %v6954 = vld [vmem:[#allocation17] sm:$0x3]
          %v6956 = vlaneseq
          %v6957 = vshrl.u32 %v6956, 7
          %v6958 = vsub.s32 0, %v6957
          %v6959 = vrot.slane %v6954, %v6958
          %v6960 = vlaneseq
          %v6961 = vshrl.u32 %v6960, 7
          %v6962 = vsub.s32 1, %v6961
          %v6963 = vrot.slane %v6954, %v6962
          %v7094 = vunpack.c.l.b16 %v6826
          %v7095 = vunpack.c.h.b16 %v6826
          %v7096 = vunpack.c.l.b16 %v6827
          %v7097 = vunpack.c.h.b16 %v6827
          %v7098 = vunpack.c.l.b16 %v6828
          %v7099 = vunpack.c.h.b16 %v6828
          %v7100 = vunpack.c.l.b16 %v6829
          %v7101 = vunpack.c.h.b16 %v6829
          %v7102 = vunpack.c.l.b16 %v6830
          %v7103 = vunpack.c.h.b16 %v6830
          %v7104 = vunpack.c.l.b16 %v6831
          %v7105 = vunpack.c.h.b16 %v6831
          %v7106 = vunpack.c.l.b16 %v6832
          %v7107 = vunpack.c.h.b16 %v6832
          %v7108 = vunpack.c.l.b16 %v6833
          %v7109 = vunpack.c.h.b16 %v6833
          %v7110 = vunpack.c.l.b16 %v6834
          %v7111 = vunpack.c.h.b16 %v6834
          %v7112 = vunpack.c.l.b16 %v6835
          %v7113 = vunpack.c.h.b16 %v6835
          %v7114 = vunpack.c.l.b16 %v6836
          %v7115 = vunpack.c.h.b16 %v6836
          %v7116 = vunpack.c.l.b16 %v6837
          %v7117 = vunpack.c.h.b16 %v6837
          %v7118 = vunpack.c.l.b16 %v6838
          %v7119 = vunpack.c.h.b16 %v6838
          %v7120 = vunpack.c.l.b16 %v6839
          %v7121 = vunpack.c.h.b16 %v6839
          %v7122 = vunpack.c.l.b16 %v6840
          %v7123 = vunpack.c.h.b16 %v6840
          %v7124 = vunpack.c.l.b16 %v6841
          %v7125 = vunpack.c.h.b16 %v6841
          %v7126 = vunpack.c.l.b16 %v6842
          %v7127 = vunpack.c.h.b16 %v6842
          %v7128 = vunpack.c.l.b16 %v6843
          %v7129 = vunpack.c.h.b16 %v6843
          %v7130 = vunpack.c.l.b16 %v6844
          %v7131 = vunpack.c.h.b16 %v6844
          %v7132 = vunpack.c.l.b16 %v6845
          %v7133 = vunpack.c.h.b16 %v6845
          %v7134 = vunpack.c.l.b16 %v6846
          %v7135 = vunpack.c.h.b16 %v6846
          %v7136 = vunpack.c.l.b16 %v6847
          %v7137 = vunpack.c.h.b16 %v6847
          %v7138 = vunpack.c.l.b16 %v6848
          %v7139 = vunpack.c.h.b16 %v6848
          %v7140 = vunpack.c.l.b16 %v6849
          %v7141 = vunpack.c.h.b16 %v6849
          %v7142 = vunpack.c.l.b16 %v6850
          %v7143 = vunpack.c.h.b16 %v6850
          %v7144 = vunpack.c.l.b16 %v6851
          %v7145 = vunpack.c.h.b16 %v6851
          %v7146 = vunpack.c.l.b16 %v6852
          %v7147 = vunpack.c.h.b16 %v6852
          %v7148 = vunpack.c.l.b16 %v6853
          %v7149 = vunpack.c.h.b16 %v6853
          %v7150 = vunpack.c.l.b16 %v6854
          %v7151 = vunpack.c.h.b16 %v6854
          %v7152 = vunpack.c.l.b16 %v6855
          %v7153 = vunpack.c.h.b16 %v6855
          %v7154 = vunpack.c.l.b16 %v6856
          %v7155 = vunpack.c.h.b16 %v6856
          %v7156 = vunpack.c.l.b16 %v6857
          %v7157 = vunpack.c.h.b16 %v6857
          %v7158 = vunpack.c.l.b16 %v6858
          %v7159 = vunpack.c.h.b16 %v6858
          %v7160 = vunpack.c.l.b16 %v6859
          %v7161 = vunpack.c.h.b16 %v6859
          %v7162 = vunpack.c.l.b16 %v6860
          %v7163 = vunpack.c.h.b16 %v6860
          %v7164 = vunpack.c.l.b16 %v6861
          %v7165 = vunpack.c.h.b16 %v6861
          %v7166 = vunpack.c.l.b16 %v6862
          %v7167 = vunpack.c.h.b16 %v6862
          %v7168 = vunpack.c.l.b16 %v6863
          %v7169 = vunpack.c.h.b16 %v6863
          %v7170 = vunpack.c.l.b16 %v6864
          %v7171 = vunpack.c.h.b16 %v6864
          %v7172 = vunpack.c.l.b16 %v6865
          %v7173 = vunpack.c.h.b16 %v6865
          %v7174 = vunpack.c.l.b16 %v6866
          %v7175 = vunpack.c.h.b16 %v6866
          %v7176 = vunpack.c.l.b16 %v6867
          %v7177 = vunpack.c.h.b16 %v6867
          %v7178 = vunpack.c.l.b16 %v6868
          %v7179 = vunpack.c.h.b16 %v6868
          %v7180 = vunpack.c.l.b16 %v6869
          %v7181 = vunpack.c.h.b16 %v6869
          %v7182 = vunpack.c.l.b16 %v6870
          %v7183 = vunpack.c.h.b16 %v6870
          %v7184 = vunpack.c.l.b16 %v6871
          %v7185 = vunpack.c.h.b16 %v6871
          %v7186 = vunpack.c.l.b16 %v6872
          %v7187 = vunpack.c.h.b16 %v6872
          %v7188 = vunpack.c.l.b16 %v6873
          %v7189 = vunpack.c.h.b16 %v6873
          %v7190 = vunpack.c.l.b16 %v6874
          %v7191 = vunpack.c.h.b16 %v6874
          %v7192 = vunpack.c.l.b16 %v6875
          %v7193 = vunpack.c.h.b16 %v6875
          %v7194 = vunpack.c.l.b16 %v6876
          %v7195 = vunpack.c.h.b16 %v6876
          %v7196 = vunpack.c.l.b16 %v6877
          %v7197 = vunpack.c.h.b16 %v6877
          %v7198 = vunpack.c.l.b16 %v6878
          %v7199 = vunpack.c.h.b16 %v6878
          %v7200 = vunpack.c.l.b16 %v6879
          %v7201 = vunpack.c.h.b16 %v6879
          %v7202 = vunpack.c.l.b16 %v6880
          %v7203 = vunpack.c.h.b16 %v6880
          %v7204 = vunpack.c.l.b16 %v6881
          %v7205 = vunpack.c.h.b16 %v6881
          %v7206 = vunpack.c.l.b16 %v6882
          %v7207 = vunpack.c.h.b16 %v6882
          %v7208 = vunpack.c.l.b16 %v6883
          %v7209 = vunpack.c.h.b16 %v6883
          %v7210 = vunpack.c.l.b16 %v6884
          %v7211 = vunpack.c.h.b16 %v6884
          %v7212 = vunpack.c.l.b16 %v6885
          %v7213 = vunpack.c.h.b16 %v6885
          %v7214 = vunpack.c.l.b16 %v6886
          %v7215 = vunpack.c.h.b16 %v6886
          %v7216 = vunpack.c.l.b16 %v6887
          %v7217 = vunpack.c.h.b16 %v6887
          %v7218 = vunpack.c.l.b16 %v6888
          %v7219 = vunpack.c.h.b16 %v6888
          %v7220 = vunpack.c.l.b16 %v6889
          %v7221 = vunpack.c.h.b16 %v6889
          %v7222 = vunpack.c.l.b16 %v6890
          %v7223 = vunpack.c.h.b16 %v6890
          %v7224 = vunpack.c.l.b16 %v6891
          %v7225 = vunpack.c.h.b16 %v6891
          %v7226 = vunpack.c.l.b16 %v6892
          %v7227 = vunpack.c.h.b16 %v6892
          %v7228 = vunpack.c.l.b16 %v6893
          %v7229 = vunpack.c.h.b16 %v6893
          %v7230 = vunpack.c.l.b16 %v6894
          %v7231 = vunpack.c.h.b16 %v6894
          %v7232 = vunpack.c.l.b16 %v6895
          %v7233 = vunpack.c.h.b16 %v6895
          %v7234 = vunpack.c.l.b16 %v6896
          %v7235 = vunpack.c.h.b16 %v6896
          %v7236 = vunpack.c.l.b16 %v6897
          %v7237 = vunpack.c.h.b16 %v6897
          %v7238 = vunpack.c.l.b16 %v6898
          %v7239 = vunpack.c.h.b16 %v6898
          %v7240 = vunpack.c.l.b16 %v6899
          %v7241 = vunpack.c.h.b16 %v6899
          %v7242 = vunpack.c.l.b16 %v6900
          %v7243 = vunpack.c.h.b16 %v6900
          %v7244 = vunpack.c.l.b16 %v6901
          %v7245 = vunpack.c.h.b16 %v6901
          %v7246 = vunpack.c.l.b16 %v6902
          %v7247 = vunpack.c.h.b16 %v6902
          %v7248 = vunpack.c.l.b16 %v6903
          %v7249 = vunpack.c.h.b16 %v6903
          %v7250 = vunpack.c.l.b16 %v6904
          %v7251 = vunpack.c.h.b16 %v6904
          %v7252 = vunpack.c.l.b16 %v6905
          %v7253 = vunpack.c.h.b16 %v6905
          %v7254 = vunpack.c.l.b16 %v6906
          %v7255 = vunpack.c.h.b16 %v6906
          %v7256 = vunpack.c.l.b16 %v6907
          %v7257 = vunpack.c.h.b16 %v6907
          %v7258 = vunpack.c.l.b16 %v6908
          %v7259 = vunpack.c.h.b16 %v6908
          %v7260 = vunpack.c.l.b16 %v6909
          %v7261 = vunpack.c.h.b16 %v6909
          %v7262 = vunpack.c.l.b16 %v6910
          %v7263 = vunpack.c.h.b16 %v6910
          %v7264 = vunpack.c.l.b16 %v6911
          %v7265 = vunpack.c.h.b16 %v6911
          %v7266 = vunpack.c.l.b16 %v6912
          %v7267 = vunpack.c.h.b16 %v6912
          %v7268 = vunpack.c.l.b16 %v6913
          %v7269 = vunpack.c.h.b16 %v6913
          %v7270 = vunpack.c.l.b16 %v6914
          %v7271 = vunpack.c.h.b16 %v6914
          %v7272 = vunpack.c.l.b16 %v6915
          %v7273 = vunpack.c.h.b16 %v6915
          %v7274 = vunpack.c.l.b16 %v6916
          %v7275 = vunpack.c.h.b16 %v6916
          %v7276 = vunpack.c.l.b16 %v6917
          %v7277 = vunpack.c.h.b16 %v6917
          %v7278 = vunpack.c.l.b16 %v6918
          %v7279 = vunpack.c.h.b16 %v6918
          %v7280 = vunpack.c.l.b16 %v6919
          %v7281 = vunpack.c.h.b16 %v6919
          %v7282 = vunpack.c.l.b16 %v6920
          %v7283 = vunpack.c.h.b16 %v6920
          %v7284 = vunpack.c.l.b16 %v6921
          %v7285 = vunpack.c.h.b16 %v6921
          %v7286 = vunpack.c.l.b16 %v6922
          %v7287 = vunpack.c.h.b16 %v6922
          %v7288 = vunpack.c.l.b16 %v6923
          %v7289 = vunpack.c.h.b16 %v6923
          %v7290 = vunpack.c.l.b16 %v6924
          %v7291 = vunpack.c.h.b16 %v6924
          %v7292 = vunpack.c.l.b16 %v6925
          %v7293 = vunpack.c.h.b16 %v6925
          %v7294 = vunpack.c.l.b16 %v6926
          %v7295 = vunpack.c.h.b16 %v6926
          %v7296 = vunpack.c.l.b16 %v6927
          %v7297 = vunpack.c.h.b16 %v6927
          %v7298 = vunpack.c.l.b16 %v6928
          %v7299 = vunpack.c.h.b16 %v6928
          %v7300 = vunpack.c.l.b16 %v6929
          %v7301 = vunpack.c.h.b16 %v6929
          %v7302 = vunpack.c.l.b16 %v6930
          %v7303 = vunpack.c.h.b16 %v6930
          %v7304 = vunpack.c.l.b16 %v6931
          %v7305 = vunpack.c.h.b16 %v6931
          %v7306 = vunpack.c.l.b16 %v6932
          %v7307 = vunpack.c.h.b16 %v6932
          %v7308 = vunpack.c.l.b16 %v6933
          %v7309 = vunpack.c.h.b16 %v6933
          %v7310 = vunpack.c.l.b16 %v6934
          %v7311 = vunpack.c.h.b16 %v6934
          %v7312 = vunpack.c.l.b16 %v6935
          %v7313 = vunpack.c.h.b16 %v6935
          %v7314 = vunpack.c.l.b16 %v6936
          %v7315 = vunpack.c.h.b16 %v6936
          %v7316 = vunpack.c.l.b16 %v6937
          %v7317 = vunpack.c.h.b16 %v6937
          %v7318 = vunpack.c.l.b16 %v6938
          %v7319 = vunpack.c.h.b16 %v6938
          %v7320 = vunpack.c.l.b16 %v6939
          %v7321 = vunpack.c.h.b16 %v6939
          %v7322 = vunpack.c.l.b16 %v6940
          %v7323 = vunpack.c.h.b16 %v6940
          %v7324 = vunpack.c.l.b16 %v6941
          %v7325 = vunpack.c.h.b16 %v6941
          %v7326 = vunpack.c.l.b16 %v6942
          %v7327 = vunpack.c.h.b16 %v6942
          %v7328 = vunpack.c.l.b16 %v6943
          %v7329 = vunpack.c.h.b16 %v6943
          %v7330 = vunpack.c.l.b16 %v6944
          %v7331 = vunpack.c.h.b16 %v6944
          %v7332 = vunpack.c.l.b16 %v6945
          %v7333 = vunpack.c.h.b16 %v6945
          %v7334 = vunpack.c.l.b16 %v6946
          %v7335 = vunpack.c.h.b16 %v6946
          %v7336 = vunpack.c.l.b16 %v6947
          %v7337 = vunpack.c.h.b16 %v6947
          %v7338 = vunpack.c.l.b16 %v6948
          %v7339 = vunpack.c.h.b16 %v6948
          %v7340 = vunpack.c.l.b16 %v6949
          %v7341 = vunpack.c.h.b16 %v6949
          %v7342 = vunpack.c.l.b16 %v6950
          %v7343 = vunpack.c.h.b16 %v6950
          %v7344 = vunpack.c.l.b16 %v6951
          %v7345 = vunpack.c.h.b16 %v6951
          %v7346 = vunpack.c.l.b16 %v6952
          %v7347 = vunpack.c.h.b16 %v6952
          %v7348 = vunpack.c.l.b16 %v6953
          %v7349 = vunpack.c.h.b16 %v6953
          %v7350 = vpack.c.b16 %v7096, %v7094
          %v7351 = vpack.c.b16 %v7097, %v7095
          %v7352 = vpack.c.b16 %v7100, %v7098
          %v7353 = vpack.c.b16 %v7101, %v7099
          %v7354 = vpack.c.b16 %v7104, %v7102
          %v7355 = vpack.c.b16 %v7105, %v7103
          %v7356 = vpack.c.b16 %v7108, %v7106
          %v7357 = vpack.c.b16 %v7109, %v7107
          %v7358 = vpack.c.b16 %v7112, %v7110
          %v7359 = vpack.c.b16 %v7113, %v7111
          %v7360 = vpack.c.b16 %v7116, %v7114
          %v7361 = vpack.c.b16 %v7117, %v7115
          %v7362 = vpack.c.b16 %v7120, %v7118
          %v7363 = vpack.c.b16 %v7121, %v7119
          %v7364 = vpack.c.b16 %v7124, %v7122
          %v7365 = vpack.c.b16 %v7125, %v7123
          %v7366 = vpack.c.b16 %v7128, %v7126
          %v7367 = vpack.c.b16 %v7129, %v7127
          %v7368 = vpack.c.b16 %v7132, %v7130
          %v7369 = vpack.c.b16 %v7133, %v7131
          %v7370 = vpack.c.b16 %v7136, %v7134
          %v7371 = vpack.c.b16 %v7137, %v7135
          %v7372 = vpack.c.b16 %v7140, %v7138
          %v7373 = vpack.c.b16 %v7141, %v7139
          %v7374 = vpack.c.b16 %v7144, %v7142
          %v7375 = vpack.c.b16 %v7145, %v7143
          %v7376 = vpack.c.b16 %v7148, %v7146
          %v7377 = vpack.c.b16 %v7149, %v7147
          %v7378 = vpack.c.b16 %v7152, %v7150
          %v7379 = vpack.c.b16 %v7153, %v7151
          %v7380 = vpack.c.b16 %v7156, %v7154
          %v7381 = vpack.c.b16 %v7157, %v7155
          %v7382 = vpack.c.b16 %v7160, %v7158
          %v7383 = vpack.c.b16 %v7161, %v7159
          %v7384 = vpack.c.b16 %v7164, %v7162
          %v7385 = vpack.c.b16 %v7165, %v7163
          %v7386 = vpack.c.b16 %v7168, %v7166
          %v7387 = vpack.c.b16 %v7169, %v7167
          %v7388 = vpack.c.b16 %v7172, %v7170
          %v7389 = vpack.c.b16 %v7173, %v7171
          %v7390 = vpack.c.b16 %v7176, %v7174
          %v7391 = vpack.c.b16 %v7177, %v7175
          %v7392 = vpack.c.b16 %v7180, %v7178
          %v7393 = vpack.c.b16 %v7181, %v7179
          %v7394 = vpack.c.b16 %v7184, %v7182
          %v7395 = vpack.c.b16 %v7185, %v7183
          %v7396 = vpack.c.b16 %v7188, %v7186
          %v7397 = vpack.c.b16 %v7189, %v7187
          %v7398 = vpack.c.b16 %v7192, %v7190
          %v7399 = vpack.c.b16 %v7193, %v7191
          %v7400 = vpack.c.b16 %v7196, %v7194
          %v7401 = vpack.c.b16 %v7197, %v7195
          %v7402 = vpack.c.b16 %v7200, %v7198
          %v7403 = vpack.c.b16 %v7201, %v7199
          %v7404 = vpack.c.b16 %v7204, %v7202
          %v7405 = vpack.c.b16 %v7205, %v7203
          %v7406 = vpack.c.b16 %v7208, %v7206
          %v7407 = vpack.c.b16 %v7209, %v7207
          %v7408 = vpack.c.b16 %v7212, %v7210
          %v7409 = vpack.c.b16 %v7213, %v7211
          %v7410 = vpack.c.b16 %v7216, %v7214
          %v7411 = vpack.c.b16 %v7217, %v7215
          %v7412 = vpack.c.b16 %v7220, %v7218
          %v7413 = vpack.c.b16 %v7221, %v7219
          %v7414 = vpack.c.b16 %v7224, %v7222
          %v7415 = vpack.c.b16 %v7225, %v7223
          %v7416 = vpack.c.b16 %v7228, %v7226
          %v7417 = vpack.c.b16 %v7229, %v7227
          %v7418 = vpack.c.b16 %v7232, %v7230
          %v7419 = vpack.c.b16 %v7233, %v7231
          %v7420 = vpack.c.b16 %v7236, %v7234
          %v7421 = vpack.c.b16 %v7237, %v7235
          %v7422 = vpack.c.b16 %v7240, %v7238
          %v7423 = vpack.c.b16 %v7241, %v7239
          %v7424 = vpack.c.b16 %v7244, %v7242
          %v7425 = vpack.c.b16 %v7245, %v7243
          %v7426 = vpack.c.b16 %v7248, %v7246
          %v7427 = vpack.c.b16 %v7249, %v7247
          %v7428 = vpack.c.b16 %v7252, %v7250
          %v7429 = vpack.c.b16 %v7253, %v7251
          %v7430 = vpack.c.b16 %v7256, %v7254
          %v7431 = vpack.c.b16 %v7257, %v7255
          %v7432 = vpack.c.b16 %v7260, %v7258
          %v7433 = vpack.c.b16 %v7261, %v7259
          %v7434 = vpack.c.b16 %v7264, %v7262
          %v7435 = vpack.c.b16 %v7265, %v7263
          %v7436 = vpack.c.b16 %v7268, %v7266
          %v7437 = vpack.c.b16 %v7269, %v7267
          %v7438 = vpack.c.b16 %v7272, %v7270
          %v7439 = vpack.c.b16 %v7273, %v7271
          %v7440 = vpack.c.b16 %v7276, %v7274
          %v7441 = vpack.c.b16 %v7277, %v7275
          %v7442 = vpack.c.b16 %v7280, %v7278
          %v7443 = vpack.c.b16 %v7281, %v7279
          %v7444 = vpack.c.b16 %v7284, %v7282
          %v7445 = vpack.c.b16 %v7285, %v7283
          %v7446 = vpack.c.b16 %v7288, %v7286
          %v7447 = vpack.c.b16 %v7289, %v7287
          %v7448 = vpack.c.b16 %v7292, %v7290
          %v7449 = vpack.c.b16 %v7293, %v7291
          %v7450 = vpack.c.b16 %v7296, %v7294
          %v7451 = vpack.c.b16 %v7297, %v7295
          %v7452 = vpack.c.b16 %v7300, %v7298
          %v7453 = vpack.c.b16 %v7301, %v7299
          %v7454 = vpack.c.b16 %v7304, %v7302
          %v7455 = vpack.c.b16 %v7305, %v7303
          %v7456 = vpack.c.b16 %v7308, %v7306
          %v7457 = vpack.c.b16 %v7309, %v7307
          %v7458 = vpack.c.b16 %v7312, %v7310
          %v7459 = vpack.c.b16 %v7313, %v7311
          %v7460 = vpack.c.b16 %v7316, %v7314
          %v7461 = vpack.c.b16 %v7317, %v7315
          %v7462 = vpack.c.b16 %v7320, %v7318
          %v7463 = vpack.c.b16 %v7321, %v7319
          %v7464 = vpack.c.b16 %v7324, %v7322
          %v7465 = vpack.c.b16 %v7325, %v7323
          %v7466 = vpack.c.b16 %v7328, %v7326
          %v7467 = vpack.c.b16 %v7329, %v7327
          %v7468 = vpack.c.b16 %v7332, %v7330
          %v7469 = vpack.c.b16 %v7333, %v7331
          %v7470 = vpack.c.b16 %v7336, %v7334
          %v7471 = vpack.c.b16 %v7337, %v7335
          %v7472 = vpack.c.b16 %v7340, %v7338
          %v7473 = vpack.c.b16 %v7341, %v7339
          %v7474 = vpack.c.b16 %v7344, %v7342
          %v7475 = vpack.c.b16 %v7345, %v7343
          %v7476 = vpack.c.b16 %v7348, %v7346
          %v7477 = vpack.c.b16 %v7349, %v7347
          %7606 = vmatprep.subr.bf16.mxu0 %v7351
          %7607 = vmatpush1.bf16.msra.mxu0 %v7350
          %7608 = vmatprep.subr.bf16.mxu0 %v7353
          %7609 = vmatpush1.bf16.msra.mxu0 %v7352
          %7610 = vmatprep.subr.bf16.mxu0 %v7355
          %7611 = vmatpush1.bf16.msra.mxu0 %v7354
          %7612 = vmatprep.subr.bf16.mxu0 %v7357
          %7613 = vmatpush1.bf16.msra.mxu0 %v7356
          %7614 = vmatprep.subr.bf16.mxu0 %v7359
          %7615 = vmatpush1.bf16.msra.mxu0 %v7358
          %7616 = vmatprep.subr.bf16.mxu0 %v7361
          %7617 = vmatpush1.bf16.msra.mxu0 %v7360
          %7618 = vmatprep.subr.bf16.mxu0 %v7363
          %7619 = vmatpush1.bf16.msra.mxu0 %v7362
          %7620 = vmatprep.subr.bf16.mxu0 %v7365
          %7621 = vmatpush1.bf16.msra.mxu0 %v7364
          %7622 = vmatprep.subr.bf16.mxu0 %v7367
          %7623 = vmatpush1.bf16.msra.mxu0 %v7366
          %7624 = vmatprep.subr.bf16.mxu0 %v7369
          %7625 = vmatpush1.bf16.msra.mxu0 %v7368
          %7626 = vmatprep.subr.bf16.mxu0 %v7371
          %7627 = vmatpush1.bf16.msra.mxu0 %v7370
          %7628 = vmatprep.subr.bf16.mxu0 %v7373
          %7629 = vmatpush1.bf16.msra.mxu0 %v7372
          %7630 = vmatprep.subr.bf16.mxu0 %v7375
          %7631 = vmatpush1.bf16.msra.mxu0 %v7374
          %7632 = vmatprep.subr.bf16.mxu0 %v7377
          %7633 = vmatpush1.bf16.msra.mxu0 %v7376
          %7634 = vmatprep.subr.bf16.mxu0 %v7379
          %7635 = vmatpush1.bf16.msra.mxu0 %v7378
          %7636 = vmatprep.subr.bf16.mxu0 %v7381
          %7637 = vmatpush1.bf16.msra.mxu0 %v7380
          %7638 = vmatprep.mubr.bf16.mxu0 %v6819
          %7639 = vmatmul.mubr.bf16.gmra.mrb[0].mxu0 %v6818
          %v7640 = vpop.f32.mrb[0].mxu0
          %v7641 = vadd.f32 %v6959, %v7640
          %v7642 = vpop.f32.mrb[0].mxu0
          %v7643 = vadd.f32 %v6963, %v7642
          %v7644 = vpop.f32.mrb[0].mxu0
          %v7645 = vpop.f32.mrb[0].mxu0
          %7646 = vdwg.mxu0
          %7647 = vmatprep.subr.bf16.mxu0 %v7383
          %7648 = vmatpush1.bf16.msra.mxu0 %v7382
          %7649 = vmatprep.subr.bf16.mxu0 %v7385
          %7650 = vmatpush1.bf16.msra.mxu0 %v7384
          %7651 = vmatprep.subr.bf16.mxu0 %v7387
          %7652 = vmatpush1.bf16.msra.mxu0 %v7386
          %7653 = vmatprep.subr.bf16.mxu0 %v7389
          %7654 = vmatpush1.bf16.msra.mxu0 %v7388
          %7655 = vmatprep.subr.bf16.mxu0 %v7391
          %7656 = vmatpush1.bf16.msra.mxu0 %v7390
          %7657 = vmatprep.subr.bf16.mxu0 %v7393
          %7658 = vmatpush1.bf16.msra.mxu0 %v7392
          %7659 = vmatprep.subr.bf16.mxu0 %v7395
          %7660 = vmatpush1.bf16.msra.mxu0 %v7394
          %7661 = vmatprep.subr.bf16.mxu0 %v7397
          %7662 = vmatpush1.bf16.msra.mxu0 %v7396
          %7663 = vmatprep.subr.bf16.mxu0 %v7399
          %7664 = vmatpush1.bf16.msra.mxu0 %v7398
          %7665 = vmatprep.subr.bf16.mxu0 %v7401
          %7666 = vmatpush1.bf16.msra.mxu0 %v7400
          %7667 = vmatprep.subr.bf16.mxu0 %v7403
          %7668 = vmatpush1.bf16.msra.mxu0 %v7402
          %7669 = vmatprep.subr.bf16.mxu0 %v7405
          %7670 = vmatpush1.bf16.msra.mxu0 %v7404
          %7671 = vmatprep.subr.bf16.mxu0 %v7407
          %7672 = vmatpush1.bf16.msra.mxu0 %v7406
          %7673 = vmatprep.subr.bf16.mxu0 %v7409
          %7674 = vmatpush1.bf16.msra.mxu0 %v7408
          %7675 = vmatprep.subr.bf16.mxu0 %v7411
          %7676 = vmatpush1.bf16.msra.mxu0 %v7410
          %7677 = vmatprep.subr.bf16.mxu0 %v7413
          %7678 = vmatpush1.bf16.msra.mxu0 %v7412
          %7679 = vmatprep.mubr.bf16.mxu0 %v6821
          %7680 = vmatmul.mubr.bf16.gmra.mrb[0].mxu0 %v6820
          %v7681 = vpop.f32.mrb[0].mxu0
          %v7682 = vadd.f32 %v7641, %v7681
          %v7683 = vpop.f32.mrb[0].mxu0
          %v7684 = vadd.f32 %v7643, %v7683
          %v7685 = vpop.f32.mrb[0].mxu0
          %v7686 = vpop.f32.mrb[0].mxu0
          %7687 = vdwg.mxu0
          %7688 = vmatprep.subr.bf16.mxu0 %v7415
          %7689 = vmatpush1.bf16.msra.mxu0 %v7414
          %7690 = vmatprep.subr.bf16.mxu0 %v7417
          %7691 = vmatpush1.bf16.msra.mxu0 %v7416
          %7692 = vmatprep.subr.bf16.mxu0 %v7419
          %7693 = vmatpush1.bf16.msra.mxu0 %v7418
          %7694 = vmatprep.subr.bf16.mxu0 %v7421
          %7695 = vmatpush1.bf16.msra.mxu0 %v7420
          %7696 = vmatprep.subr.bf16.mxu0 %v7423
          %7697 = vmatpush1.bf16.msra.mxu0 %v7422
          %7698 = vmatprep.subr.bf16.mxu0 %v7425
          %7699 = vmatpush1.bf16.msra.mxu0 %v7424
          %7700 = vmatprep.subr.bf16.mxu0 %v7427
          %7701 = vmatpush1.bf16.msra.mxu0 %v7426
          %7702 = vmatprep.subr.bf16.mxu0 %v7429
          %7703 = vmatpush1.bf16.msra.mxu0 %v7428
          %7704 = vmatprep.subr.bf16.mxu0 %v7431
          %7705 = vmatpush1.bf16.msra.mxu0 %v7430
          %7706 = vmatprep.subr.bf16.mxu0 %v7433
          %7707 = vmatpush1.bf16.msra.mxu0 %v7432
          %7708 = vmatprep.subr.bf16.mxu0 %v7435
          %7709 = vmatpush1.bf16.msra.mxu0 %v7434
          %7710 = vmatprep.subr.bf16.mxu0 %v7437
          %7711 = vmatpush1.bf16.msra.mxu0 %v7436
          %7712 = vmatprep.subr.bf16.mxu0 %v7439
          %7713 = vmatpush1.bf16.msra.mxu0 %v7438
          %7714 = vmatprep.subr.bf16.mxu0 %v7441
          %7715 = vmatpush1.bf16.msra.mxu0 %v7440
          %7716 = vmatprep.subr.bf16.mxu0 %v7443
          %7717 = vmatpush1.bf16.msra.mxu0 %v7442
          %7718 = vmatprep.subr.bf16.mxu0 %v7445
          %7719 = vmatpush1.bf16.msra.mxu0 %v7444
          %7720 = vmatprep.mubr.bf16.mxu0 %v6823
          %7721 = vmatmul.mubr.bf16.gmra.mrb[0].mxu0 %v6822
          %v7722 = vpop.f32.mrb[0].mxu0
          %v7723 = vadd.f32 %v7682, %v7722
          %v7724 = vpop.f32.mrb[0].mxu0
          %v7725 = vadd.f32 %v7684, %v7724
          %v7726 = vpop.f32.mrb[0].mxu0
          %v7727 = vpop.f32.mrb[0].mxu0
          %7728 = vdwg.mxu0
          %7729 = vmatprep.subr.bf16.mxu0 %v7447
          %7730 = vmatpush1.bf16.msra.mxu0 %v7446
          %7731 = vmatprep.subr.bf16.mxu0 %v7449
          %7732 = vmatpush1.bf16.msra.mxu0 %v7448
          %7733 = vmatprep.subr.bf16.mxu0 %v7451
          %7734 = vmatpush1.bf16.msra.mxu0 %v7450
          %7735 = vmatprep.subr.bf16.mxu0 %v7453
          %7736 = vmatpush1.bf16.msra.mxu0 %v7452
          %7737 = vmatprep.subr.bf16.mxu0 %v7455
          %7738 = vmatpush1.bf16.msra.mxu0 %v7454
          %7739 = vmatprep.subr.bf16.mxu0 %v7457
          %7740 = vmatpush1.bf16.msra.mxu0 %v7456
          %7741 = vmatprep.subr.bf16.mxu0 %v7459
          %7742 = vmatpush1.bf16.msra.mxu0 %v7458
          %7743 = vmatprep.subr.bf16.mxu0 %v7461
          %7744 = vmatpush1.bf16.msra.mxu0 %v7460
          %7745 = vmatprep.subr.bf16.mxu0 %v7463
          %7746 = vmatpush1.bf16.msra.mxu0 %v7462
          %7747 = vmatprep.subr.bf16.mxu0 %v7465
          %7748 = vmatpush1.bf16.msra.mxu0 %v7464
          %7749 = vmatprep.subr.bf16.mxu0 %v7467
          %7750 = vmatpush1.bf16.msra.mxu0 %v7466
          %7751 = vmatprep.subr.bf16.mxu0 %v7469
          %7752 = vmatpush1.bf16.msra.mxu0 %v7468
          %7753 = vmatprep.subr.bf16.mxu0 %v7471
          %7754 = vmatpush1.bf16.msra.mxu0 %v7470
          %7755 = vmatprep.subr.bf16.mxu0 %v7473
          %7756 = vmatpush1.bf16.msra.mxu0 %v7472
          %7757 = vmatprep.subr.bf16.mxu0 %v7475
          %7758 = vmatpush1.bf16.msra.mxu0 %v7474
          %7759 = vmatprep.subr.bf16.mxu0 %v7477
          %7760 = vmatpush1.bf16.msra.mxu0 %v7476
          %7761 = vmatprep.mubr.bf16.mxu0 %v6825
          %7762 = vmatmul.mubr.bf16.gmra.mrb[0].mxu0 %v6824
          %v7763 = vpop.f32.mrb[0].mxu0
          %v7764 = vadd.f32 %v7723, %v7763
          %v7765 = vpop.f32.mrb[0].mxu0
          %v7766 = vadd.f32 %v7725, %v7765
          %v7767 = vpop.f32.mrb[0].mxu0
          %v7768 = vpop.f32.mrb[0].mxu0
          %7769 = vdwg.mxu0
          %vm7770 = vcmp.gt.f32.partialorder %v7764, 0.0
          %vm7771 = vcmp.gt.f32.partialorder %v7766, 0.0
          %v7772 = vmul.f32 %v7764, 1.442695
          %v7773 = vpow.pop %v7772
          %v7774 = vmul.f32 %v7766, 1.442695
          %v7775 = vpow.pop %v7774
          %v7776 = vsub.f32 %v7773, 1.0
          %v7777 = vsub.f32 %v7775, 1.0
          %v7778 = vsel %vm7770, %v7764, %v7776
          %v7779 = vsel %vm7771, %v7766, %v7777
          %v7780 = vpack.c.bf16 %v7778, %v7778
          %v7781 = vpack.c.bf16 %v7779, %v7779
          %v7782 = vld [vmem:[#allocation18] sm:$0xff]
          %v7783 = vld [vmem:[#allocation18 + $0x8] sm:$0xff]
          %v7784 = vld [vmem:[#allocation18 + $0x10] sm:$0xff]
          %v7785 = vld [vmem:[#allocation18 + $0x18] sm:$0xff]
          %v7786 = vld [vmem:[#allocation18 + $0x20] sm:$0xff]
          %v7787 = vld [vmem:[#allocation18 + $0x28] sm:$0xff]
          %v7788 = vld [vmem:[#allocation18 + $0x30] sm:$0xff]
          %v7789 = vld [vmem:[#allocation18 + $0x38] sm:$0xff]
          %v7790 = vld [vmem:[#allocation18 + $0x40] sm:$0xff]
          %v7791 = vld [vmem:[#allocation18 + $0x48] sm:$0xff]
          %v7792 = vld [vmem:[#allocation18 + $0x50] sm:$0xff]
          %v7793 = vld [vmem:[#allocation18 + $0x58] sm:$0xff]
          %v7794 = vld [vmem:[#allocation18 + $0x60] sm:$0xff]
          %v7795 = vld [vmem:[#allocation18 + $0x68] sm:$0xff]
          %v7796 = vld [vmem:[#allocation18 + $0x70] sm:$0xff]
          %v7797 = vld [vmem:[#allocation18 + $0x78] sm:$0xff]
          %v7798 = vld [vmem:[#allocation18 + $0x80] sm:$0xff]
          %v7799 = vld [vmem:[#allocation18 + $0x88] sm:$0xff]
          %v7800 = vld [vmem:[#allocation18 + $0x90] sm:$0xff]
          %v7801 = vld [vmem:[#allocation18 + $0x98] sm:$0xff]
          %v7802 = vld [vmem:[#allocation18 + $0xa0] sm:$0xff]
          %v7803 = vld [vmem:[#allocation18 + $0xa8] sm:$0xff]
          %v7804 = vld [vmem:[#allocation18 + $0xb0] sm:$0xff]
          %v7805 = vld [vmem:[#allocation18 + $0xb8] sm:$0xff]
          %v7806 = vld [vmem:[#allocation18 + $0xc0] sm:$0xff]
          %v7807 = vld [vmem:[#allocation18 + $0xc8] sm:$0xff]
          %v7808 = vld [vmem:[#allocation18 + $0xd0] sm:$0xff]
          %v7809 = vld [vmem:[#allocation18 + $0xd8] sm:$0xff]
          %v7810 = vld [vmem:[#allocation18 + $0xe0] sm:$0xff]
          %v7811 = vld [vmem:[#allocation18 + $0xe8] sm:$0xff]
          %v7812 = vld [vmem:[#allocation18 + $0xf0] sm:$0xff]
          %v7813 = vld [vmem:[#allocation18 + $0xf8] sm:$0xff]
          %v7814 = vld [vmem:[#allocation20] sm:$0x3]
          %v7816 = vlaneseq
          %v7817 = vshrl.u32 %v7816, 7
          %v7818 = vsub.s32 0, %v7817
          %v7819 = vrot.slane %v7814, %v7818
          %v7820 = vlaneseq
          %v7821 = vshrl.u32 %v7820, 7
          %v7822 = vsub.s32 1, %v7821
          %v7823 = vrot.slane %v7814, %v7822
          %v7858 = vunpack.c.l.b16 %v7782
          %v7859 = vunpack.c.h.b16 %v7782
          %v7860 = vunpack.c.l.b16 %v7783
          %v7861 = vunpack.c.h.b16 %v7783
          %v7862 = vunpack.c.l.b16 %v7784
          %v7863 = vunpack.c.h.b16 %v7784
          %v7864 = vunpack.c.l.b16 %v7785
          %v7865 = vunpack.c.h.b16 %v7785
          %v7866 = vunpack.c.l.b16 %v7786
          %v7867 = vunpack.c.h.b16 %v7786
          %v7868 = vunpack.c.l.b16 %v7787
          %v7869 = vunpack.c.h.b16 %v7787
          %v7870 = vunpack.c.l.b16 %v7788
          %v7871 = vunpack.c.h.b16 %v7788
          %v7872 = vunpack.c.l.b16 %v7789
          %v7873 = vunpack.c.h.b16 %v7789
          %v7874 = vunpack.c.l.b16 %v7790
          %v7875 = vunpack.c.h.b16 %v7790
          %v7876 = vunpack.c.l.b16 %v7791
          %v7877 = vunpack.c.h.b16 %v7791
          %v7878 = vunpack.c.l.b16 %v7792
          %v7879 = vunpack.c.h.b16 %v7792
          %v7880 = vunpack.c.l.b16 %v7793
          %v7881 = vunpack.c.h.b16 %v7793
          %v7882 = vunpack.c.l.b16 %v7794
          %v7883 = vunpack.c.h.b16 %v7794
          %v7884 = vunpack.c.l.b16 %v7795
          %v7885 = vunpack.c.h.b16 %v7795
          %v7886 = vunpack.c.l.b16 %v7796
          %v7887 = vunpack.c.h.b16 %v7796
          %v7888 = vunpack.c.l.b16 %v7797
          %v7889 = vunpack.c.h.b16 %v7797
          %v7890 = vunpack.c.l.b16 %v7798
          %v7891 = vunpack.c.h.b16 %v7798
          %v7892 = vunpack.c.l.b16 %v7799
          %v7893 = vunpack.c.h.b16 %v7799
          %v7894 = vunpack.c.l.b16 %v7800
          %v7895 = vunpack.c.h.b16 %v7800
          %v7896 = vunpack.c.l.b16 %v7801
          %v7897 = vunpack.c.h.b16 %v7801
          %v7898 = vunpack.c.l.b16 %v7802
          %v7899 = vunpack.c.h.b16 %v7802
          %v7900 = vunpack.c.l.b16 %v7803
          %v7901 = vunpack.c.h.b16 %v7803
          %v7902 = vunpack.c.l.b16 %v7804
          %v7903 = vunpack.c.h.b16 %v7804
          %v7904 = vunpack.c.l.b16 %v7805
          %v7905 = vunpack.c.h.b16 %v7805
          %v7906 = vunpack.c.l.b16 %v7806
          %v7907 = vunpack.c.h.b16 %v7806
          %v7908 = vunpack.c.l.b16 %v7807
          %v7909 = vunpack.c.h.b16 %v7807
          %v7910 = vunpack.c.l.b16 %v7808
          %v7911 = vunpack.c.h.b16 %v7808
          %v7912 = vunpack.c.l.b16 %v7809
          %v7913 = vunpack.c.h.b16 %v7809
          %v7914 = vunpack.c.l.b16 %v7810
          %v7915 = vunpack.c.h.b16 %v7810
          %v7916 = vunpack.c.l.b16 %v7811
          %v7917 = vunpack.c.h.b16 %v7811
          %v7918 = vunpack.c.l.b16 %v7812
          %v7919 = vunpack.c.h.b16 %v7812
          %v7920 = vunpack.c.l.b16 %v7813
          %v7921 = vunpack.c.h.b16 %v7813
          %v7922 = vpack.c.b16 %v7860, %v7858
          %v7923 = vpack.c.b16 %v7861, %v7859
          %v7924 = vpack.c.b16 %v7864, %v7862
          %v7925 = vpack.c.b16 %v7865, %v7863
          %v7926 = vpack.c.b16 %v7868, %v7866
          %v7927 = vpack.c.b16 %v7869, %v7867
          %v7928 = vpack.c.b16 %v7872, %v7870
          %v7929 = vpack.c.b16 %v7873, %v7871
          %v7930 = vpack.c.b16 %v7876, %v7874
          %v7931 = vpack.c.b16 %v7877, %v7875
          %v7932 = vpack.c.b16 %v7880, %v7878
          %v7933 = vpack.c.b16 %v7881, %v7879
          %v7934 = vpack.c.b16 %v7884, %v7882
          %v7935 = vpack.c.b16 %v7885, %v7883
          %v7936 = vpack.c.b16 %v7888, %v7886
          %v7937 = vpack.c.b16 %v7889, %v7887
          %v7938 = vpack.c.b16 %v7892, %v7890
          %v7939 = vpack.c.b16 %v7893, %v7891
          %v7940 = vpack.c.b16 %v7896, %v7894
          %v7941 = vpack.c.b16 %v7897, %v7895
          %v7942 = vpack.c.b16 %v7900, %v7898
          %v7943 = vpack.c.b16 %v7901, %v7899
          %v7944 = vpack.c.b16 %v7904, %v7902
          %v7945 = vpack.c.b16 %v7905, %v7903
          %v7946 = vpack.c.b16 %v7908, %v7906
          %v7947 = vpack.c.b16 %v7909, %v7907
          %v7948 = vpack.c.b16 %v7912, %v7910
          %v7949 = vpack.c.b16 %v7913, %v7911
          %v7950 = vpack.c.b16 %v7916, %v7914
          %v7951 = vpack.c.b16 %v7917, %v7915
          %v7952 = vpack.c.b16 %v7920, %v7918
          %v7953 = vpack.c.b16 %v7921, %v7919
          %7986 = vmatprep.subr.bf16.mxu0 %v7923
          %7987 = vmatpush1.bf16.msra.mxu0 %v7922
          %7988 = vmatprep.subr.bf16.mxu0 %v7925
          %7989 = vmatpush1.bf16.msra.mxu0 %v7924
          %7990 = vmatprep.subr.bf16.mxu0 %v7927
          %7991 = vmatpush1.bf16.msra.mxu0 %v7926
          %7992 = vmatprep.subr.bf16.mxu0 %v7929
          %7993 = vmatpush1.bf16.msra.mxu0 %v7928
          %7994 = vmatprep.subr.bf16.mxu0 %v7931
          %7995 = vmatpush1.bf16.msra.mxu0 %v7930
          %7996 = vmatprep.subr.bf16.mxu0 %v7933
          %7997 = vmatpush1.bf16.msra.mxu0 %v7932
          %7998 = vmatprep.subr.bf16.mxu0 %v7935
          %7999 = vmatpush1.bf16.msra.mxu0 %v7934
          %8000 = vmatprep.subr.bf16.mxu0 %v7937
          %8001 = vmatpush1.bf16.msra.mxu0 %v7936
          %8002 = vmatprep.subr.bf16.mxu0 %v7939
          %8003 = vmatpush1.bf16.msra.mxu0 %v7938
          %8004 = vmatprep.subr.bf16.mxu0 %v7941
          %8005 = vmatpush1.bf16.msra.mxu0 %v7940
          %8006 = vmatprep.subr.bf16.mxu0 %v7943
          %8007 = vmatpush1.bf16.msra.mxu0 %v7942
          %8008 = vmatprep.subr.bf16.mxu0 %v7945
          %8009 = vmatpush1.bf16.msra.mxu0 %v7944
          %8010 = vmatprep.subr.bf16.mxu0 %v7947
          %8011 = vmatpush1.bf16.msra.mxu0 %v7946
          %8012 = vmatprep.subr.bf16.mxu0 %v7949
          %8013 = vmatpush1.bf16.msra.mxu0 %v7948
          %8014 = vmatprep.subr.bf16.mxu0 %v7951
          %8015 = vmatpush1.bf16.msra.mxu0 %v7950
          %8016 = vmatprep.subr.bf16.mxu0 %v7953
          %8017 = vmatpush1.bf16.msra.mxu0 %v7952
          %8018 = vmatprep.mubr.bf16.mxu0 %v7781
          %8019 = vmatmul.mubr.bf16.gmra.mrb[0].mxu0 %v7780
          %v8020 = vpop.f32.mrb[0].mxu0
          %v8021 = vadd.f32 %v7819, %v8020
          %v8022 = vpop.f32.mrb[0].mxu0
          %v8023 = vadd.f32 %v7823, %v8022
          %v8024 = vpop.f32.mrb[0].mxu0
          %v8025 = vpop.f32.mrb[0].mxu0
          %8026 = vdwg.mxu0
          %v8027 = vld [vmem:[#allocation21] sm:$0x3]
          %v8028 = vld [vmem:[#allocation23] sm:$0x3]
          %v8029 = vrot.slane %v8021, 4
          %v8030 = vadd.f32 %v8021, %v8029
          %v8031 = vrot.slane %v8030, 2
          %v8032 = vadd.f32 %v8030, %v8031
          %v8033 = vrot.slane %v8032, 1
          %v8034 = vadd.f32 %v8032, %v8033
          %v8035 = vrot.slane %v8023, 4
          %v8036 = vadd.f32 %v8023, %v8035
          %v8037 = vrot.slane %v8036, 2
          %v8038 = vadd.f32 %v8036, %v8037
          %v8039 = vrot.slane %v8038, 1
          %v8040 = vadd.f32 %v8038, %v8039
          %v8041 = vmul.f32 %v8034, %v6559
          %v8042 = vmul.f32 %v8040, %v6559
          %v8043 = vmul.f32 %v8021, %v8021
          %v8044 = vmul.f32 %v8023, %v8023
          %v8045 = vrot.slane %v8043, 4
          %v8046 = vadd.f32 %v8043, %v8045
          %v8047 = vrot.slane %v8046, 2
          %v8048 = vadd.f32 %v8046, %v8047
          %v8049 = vrot.slane %v8048, 1
          %v8050 = vadd.f32 %v8048, %v8049
          %v8051 = vrot.slane %v8044, 4
          %v8052 = vadd.f32 %v8044, %v8051
          %v8053 = vrot.slane %v8052, 2
          %v8054 = vadd.f32 %v8052, %v8053
          %v8055 = vrot.slane %v8054, 1
          %v8056 = vadd.f32 %v8054, %v8055
          %v8057 = vmul.f32 %v8050, %v6559
          %v8058 = vmul.f32 %v8056, %v6559
          %v8059 = vmul.f32 %v8041, %v8041
          %v8060 = vmul.f32 %v8042, %v8042
          %v8061 = vsub.f32 %v8057, %v8059
          %v8062 = vsub.f32 %v8058, %v8060
          %v8063 = vsub.f32 %v8021, %v8041
          %v8064 = vsub.f32 %v8023, %v8042
          %v8065 = vadd.f32 %v8061, 1e-05
          %v8066 = vadd.f32 %v8062, 1e-05
          %v8067 = vrsqrt.pop %v8065
          %v8068 = vrsqrt.pop %v8066
          %v8069 = vmul.f32 %v8063, %v8067
          %v8070 = vmul.f32 %v8064, %v8068
          %v8072 = vlaneseq
          %v8073 = vshrl.u32 %v8072, 7
          %v8074 = vsub.s32 0, %v8073
          %v8075 = vrot.slane %v8027, %v8074
          %v8076 = vlaneseq
          %v8077 = vshrl.u32 %v8076, 7
          %v8078 = vsub.s32 1, %v8077
          %v8079 = vrot.slane %v8027, %v8078
          %v8082 = vmul.f32 %v8069, %v8075
          %v8083 = vmul.f32 %v8070, %v8079
          %v8085 = vlaneseq
          %v8086 = vshrl.u32 %v8085, 7
          %v8087 = vsub.s32 0, %v8086
          %v8088 = vrot.slane %v8028, %v8087
          %v8089 = vlaneseq
          %v8090 = vshrl.u32 %v8089, 7
          %v8091 = vsub.s32 1, %v8090
          %v8092 = vrot.slane %v8028, %v8091
          %v8095 = vadd.f32 %v8082, %v8088
          %v8096 = vadd.f32 %v8083, %v8092
          %vm8097 = vcmp.gt.f32.partialorder %v8095, 0.0
          %vm8098 = vcmp.gt.f32.partialorder %v8096, 0.0
          %v8099 = vmul.f32 %v8095, 1.442695
          %v8100 = vpow.pop %v8099
          %v8101 = vmul.f32 %v8096, 1.442695
          %v8102 = vpow.pop %v8101
          %v8103 = vsub.f32 %v8100, 1.0
          %v8104 = vsub.f32 %v8102, 1.0
          %v8105 = vsel %vm8097, %v8095, %v8103
          %v8106 = vsel %vm8098, %v8096, %v8104
          %v8107 = vpack.c.bf16 %v8105, %v8105
          %v8108 = vpack.c.bf16 %v8106, %v8106
          %v8109 = vld [vmem:[#allocation24] sm:$0xf]
          %v8110 = vld [vmem:[#allocation24 + $0x4] sm:$0xf]
          %v8111 = vld [vmem:[#allocation24 + $0x8] sm:$0xf]
          %v8112 = vld [vmem:[#allocation24 + $0xc] sm:$0xf]
          %v8113 = vld [vmem:[#allocation24 + $0x10] sm:$0xf]
          %v8114 = vld [vmem:[#allocation24 + $0x14] sm:$0xf]
          %v8115 = vld [vmem:[#allocation24 + $0x18] sm:$0xf]
          %v8116 = vld [vmem:[#allocation24 + $0x1c] sm:$0xf]
          %v8117 = vld [vmem:[#allocation24 + $0x20] sm:$0xf]
          %v8118 = vld [vmem:[#allocation24 + $0x24] sm:$0xf]
          %v8119 = vld [vmem:[#allocation24 + $0x28] sm:$0xf]
          %v8120 = vld [vmem:[#allocation24 + $0x2c] sm:$0xf]
          %v8121 = vld [vmem:[#allocation24 + $0x30] sm:$0xf]
          %v8122 = vld [vmem:[#allocation24 + $0x34] sm:$0xf]
          %v8123 = vld [vmem:[#allocation24 + $0x38] sm:$0xf]
          %v8124 = vld [vmem:[#allocation24 + $0x3c] sm:$0xf]
          %v8125 = vld [vmem:[#allocation24 + $0x40] sm:$0xf]
          %v8126 = vld [vmem:[#allocation24 + $0x44] sm:$0xf]
          %v8127 = vld [vmem:[#allocation24 + $0x48] sm:$0xf]
          %v8128 = vld [vmem:[#allocation24 + $0x4c] sm:$0xf]
          %v8129 = vld [vmem:[#allocation24 + $0x50] sm:$0xf]
          %v8130 = vld [vmem:[#allocation24 + $0x54] sm:$0xf]
          %v8131 = vld [vmem:[#allocation24 + $0x58] sm:$0xf]
          %v8132 = vld [vmem:[#allocation24 + $0x5c] sm:$0xf]
          %v8133 = vld [vmem:[#allocation24 + $0x60] sm:$0xf]
          %v8134 = vld [vmem:[#allocation24 + $0x64] sm:$0xf]
          %v8135 = vld [vmem:[#allocation24 + $0x68] sm:$0xf]
          %v8136 = vld [vmem:[#allocation24 + $0x6c] sm:$0xf]
          %v8137 = vld [vmem:[#allocation24 + $0x70] sm:$0xf]
          %v8138 = vld [vmem:[#allocation24 + $0x74] sm:$0xf]
          %v8139 = vld [vmem:[#allocation24 + $0x78] sm:$0xf]
          %v8140 = vld [vmem:[#allocation24 + $0x7c] sm:$0xf]
          %v8141 = vld [vmem:[#allocation26] sm:$0x1]
          %v8143 = vlaneseq
          %v8144 = vshrl.u32 %v8143, 7
          %v8145 = vsub.s32 0, %v8144
          %v8146 = vrot.slane %v8141, %v8145
          %v8180 = vunpack.c.l.b16 %v8109
          %v8181 = vunpack.c.l.b16 %v8110
          %v8182 = vunpack.c.l.b16 %v8111
          %v8183 = vunpack.c.l.b16 %v8112
          %v8184 = vunpack.c.l.b16 %v8113
          %v8185 = vunpack.c.l.b16 %v8114
          %v8186 = vunpack.c.l.b16 %v8115
          %v8187 = vunpack.c.l.b16 %v8116
          %v8188 = vunpack.c.l.b16 %v8117
          %v8189 = vunpack.c.l.b16 %v8118
          %v8190 = vunpack.c.l.b16 %v8119
          %v8191 = vunpack.c.l.b16 %v8120
          %v8192 = vunpack.c.l.b16 %v8121
          %v8193 = vunpack.c.l.b16 %v8122
          %v8194 = vunpack.c.l.b16 %v8123
          %v8195 = vunpack.c.l.b16 %v8124
          %v8196 = vunpack.c.l.b16 %v8125
          %v8197 = vunpack.c.l.b16 %v8126
          %v8198 = vunpack.c.l.b16 %v8127
          %v8199 = vunpack.c.l.b16 %v8128
          %v8200 = vunpack.c.l.b16 %v8129
          %v8201 = vunpack.c.l.b16 %v8130
          %v8202 = vunpack.c.l.b16 %v8131
          %v8203 = vunpack.c.l.b16 %v8132
          %v8204 = vunpack.c.l.b16 %v8133
          %v8205 = vunpack.c.l.b16 %v8134
          %v8206 = vunpack.c.l.b16 %v8135
          %v8207 = vunpack.c.l.b16 %v8136
          %v8208 = vunpack.c.l.b16 %v8137
          %v8209 = vunpack.c.l.b16 %v8138
          %v8210 = vunpack.c.l.b16 %v8139
          %v8211 = vunpack.c.l.b16 %v8140
          %v8212 = vpack.c.b16 %v8181, %v8180
          %v8213 = vpack.c.b16 %v8183, %v8182
          %v8214 = vpack.c.b16 %v8185, %v8184
          %v8215 = vpack.c.b16 %v8187, %v8186
          %v8216 = vpack.c.b16 %v8189, %v8188
          %v8217 = vpack.c.b16 %v8191, %v8190
          %v8218 = vpack.c.b16 %v8193, %v8192
          %v8219 = vpack.c.b16 %v8195, %v8194
          %v8220 = vpack.c.b16 %v8197, %v8196
          %v8221 = vpack.c.b16 %v8199, %v8198
          %v8222 = vpack.c.b16 %v8201, %v8200
          %v8223 = vpack.c.b16 %v8203, %v8202
          %v8224 = vpack.c.b16 %v8205, %v8204
          %v8225 = vpack.c.b16 %v8207, %v8206
          %v8226 = vpack.c.b16 %v8209, %v8208
          %v8227 = vpack.c.b16 %v8211, %v8210
          %8244 = vmatprep.subr.bf16.mxu0 0
          %8245 = vmatpush1.bf16.msra.mxu0 %v8212
          %8246 = vmatprep.subr.bf16.mxu0 0
          %8247 = vmatpush1.bf16.msra.mxu0 %v8213
          %8248 = vmatprep.subr.bf16.mxu0 0
          %8249 = vmatpush1.bf16.msra.mxu0 %v8214
          %8250 = vmatprep.subr.bf16.mxu0 0
          %8251 = vmatpush1.bf16.msra.mxu0 %v8215
          %8252 = vmatprep.subr.bf16.mxu0 0
          %8253 = vmatpush1.bf16.msra.mxu0 %v8216
          %8254 = vmatprep.subr.bf16.mxu0 0
          %8255 = vmatpush1.bf16.msra.mxu0 %v8217
          %8256 = vmatprep.subr.bf16.mxu0 0
          %8257 = vmatpush1.bf16.msra.mxu0 %v8218
          %8258 = vmatprep.subr.bf16.mxu0 0
          %8259 = vmatpush1.bf16.msra.mxu0 %v8219
          %8260 = vmatprep.subr.bf16.mxu0 0
          %8261 = vmatpush1.bf16.msra.mxu0 %v8220
          %8262 = vmatprep.subr.bf16.mxu0 0
          %8263 = vmatpush1.bf16.msra.mxu0 %v8221
          %8264 = vmatprep.subr.bf16.mxu0 0
          %8265 = vmatpush1.bf16.msra.mxu0 %v8222
          %8266 = vmatprep.subr.bf16.mxu0 0
          %8267 = vmatpush1.bf16.msra.mxu0 %v8223
          %8268 = vmatprep.subr.bf16.mxu0 0
          %8269 = vmatpush1.bf16.msra.mxu0 %v8224
          %8270 = vmatprep.subr.bf16.mxu0 0
          %8271 = vmatpush1.bf16.msra.mxu0 %v8225
          %8272 = vmatprep.subr.bf16.mxu0 0
          %8273 = vmatpush1.bf16.msra.mxu0 %v8226
          %8274 = vmatprep.subr.bf16.mxu0 0
          %8275 = vmatpush1.bf16.msra.mxu0 %v8227
          %8276 = vmatprep.mubr.bf16.mxu0 %v8108
          %8277 = vmatmul.mubr.bf16.gmra.mrb[0].mxu0 %v8107
          %v8278 = vpop.f32.mrb[0].mxu0
          %v8279 = vadd.f32 %v8146, %v8278
          %v8280 = vpop.f32.mrb[0].mxu0
          %v8281 = vpop.f32.mrb[0].mxu0
          %v8282 = vpop.f32.mrb[0].mxu0
          %8283 = vdwg.mxu0
          %8284 = vst [vmem:[#allocation27] sm:$0xff] %v8279
        $region148: #{tpu_custom_call.1} parent=79 // pred_fallthru
          _
        // Predicated region
        $region149: #{tpu_custom_call.1} parent=79 // pred_check
          %p8285 = pneg %p377
        $region150: #{tpu_custom_call.1} parent=79 // pred_check_branch
          %8287 = sbr.rel (%p8285) target = $region152
        $region151: #{tpu_custom_call.1} parent=79 // pred_region
          %s8289 = ssub.s32 128, 128
          %8290 = vsyncadd [#allocation5], %s8289
          %s8292 = sshll.u32 [#allocation27], 4
          %s8293 = int_to_ptr.vmem [resolvable:$true] %s8292
          %8295 = dma.vmem_to_hbm [thread:$0]  %s8293, 128, %s15, [#allocation5]
        $region152: #{tpu_custom_call.1} parent=79 // pred_fallthru
          _
        // Predicated region
        $region153: #{tpu_custom_call.1} parent=79 // pred_check
          %p8296 = pneg %p377
        $region154: #{tpu_custom_call.1} parent=79 // pred_check_branch
          %8298 = sbr.rel (%p8296) target = $region156
        $region155: #{tpu_custom_call.1} parent=79 // pred_region
          %8299 = dma.done [#allocation5], 128
        $region156: #{tpu_custom_call.1} parent=79 // pred_fallthru
          _
      $region80: #{tpu_custom_call.1} parent=5 // pred_fallthru
        _
      %p8300 = scmp.le.s32.totalorder 2, %s34
      // Predicated region
      $region157: #{tpu_custom_call.1} parent=5 // pred_check
        %p8301 = pneg %p8300
      $region158: #{tpu_custom_call.1} parent=5 // pred_check_branch
        %8303 = sbr.rel (%p8301) target = $region160
      $region159: #{tpu_custom_call.1} parent=5 // pred_region
        %s8304 = ssub.s32 %s34, 2
      $region160: #{tpu_custom_call.1} parent=5 // pred_fallthru
        _
    $region6: #{tpu_custom_call.1} parent=1 // loop_footer
      %s38 = sadd.s32 1, %s34
    $region7: #{tpu_custom_call.1} parent=1 // loop_footer_branch
      %33 = sbr.rel target = $region3
    $region8: #{tpu_custom_call.1} parent=1 // loop_exit
      _
    %8305 = vsyncpa [#allocation4], 1
    %s8306 = scalar_lea.sflag [#allocation4], 1
    %8307 = vsyncpa %s8306, 1
    %8308 = vsyncpa [#allocation7], 1
    %s8309 = scalar_lea.sflag [#allocation7], 1
    %8310 = vsyncpa %s8309, 1
    %8311 = vsyncpa [#allocation10], 1
    %8312 = vsyncpa [#allocation13], 1
    %8313 = vsyncpa [#allocation16], 1
    %8314 = vsyncpa [#allocation19], 1
    %8315 = vsyncpa [#allocation22], 1
    %8316 = vsyncpa [#allocation25], 1
    %8317 = vsyncpa [#allocation5], 1
    %s8318 = scalar_lea.sflag [#allocation5], 1
    %8319 = vsyncpa %s8318, 1

</llo_original>
